<compile_context>
chip_gen: v7x
topology: tpu7x:2x2x1
jax: 0.10.0
libtpu: 0.0.40
codegen_flags: <defaults>
</compile_context>

<pallas_src>
import functools

import jax
import jax.numpy as jnp
from jax.experimental import pallas as pl
from jax.experimental.pallas import tpu as pltpu


# ----------------------------- in-kernel helpers -----------------------------

def _iota2(shape, dim):
    return jax.lax.broadcasted_iota(jnp.int32, shape, dim)


def _f32dot(a, b):
    return jnp.dot(a, b, preferred_element_type=jnp.float32)


def _pair_rows(n_out, n_in):
    """0/1 (n_out, n_in) matrices selecting input rows 2r / 2r+1 (left-multiply)."""
    r = _iota2((n_out, n_in), 0)
    c = _iota2((n_out, n_in), 1)
    return (c == 2 * r).astype(jnp.float32), (c == 2 * r + 1).astype(jnp.float32)


def _pair_cols(n_in, n_out):
    """0/1 (n_in, n_out) matrices selecting input lanes 2q / 2q+1 (right-multiply)."""
    r = _iota2((n_in, n_out), 0)
    c = _iota2((n_in, n_out), 1)
    return (r == 2 * c).astype(jnp.float32), (r == 2 * c + 1).astype(jnp.float32)


def _maxpool_2x2(h, tb, rows_per_sample, lanes):
    """2x2 stride-2 max pool on a (tb*rows, lanes) slab; lanes are C-major * W."""
    er, orr = _pair_rows(tb * rows_per_sample // 2, tb * rows_per_sample)
    h = jnp.maximum(_f32dot(er, h), _f32dot(orr, h))
    ec, occ = _pair_cols(lanes, lanes // 2)
    return jnp.maximum(_f32dot(h, ec), _f32dot(h, occ))


def _sample_mats(tb, rows_per_sample):
    """S: (tb, tb*rows) per-sample row-sum;  ST: (tb*rows, tb) per-sample row-broadcast."""
    n = tb * rows_per_sample
    rs, cs = _iota2((tb, n), 0), _iota2((tb, n), 1)
    s = ((cs >= rows_per_sample * rs) & (cs < rows_per_sample * (rs + 1))).astype(jnp.float32)
    rt, ct = _iota2((n, tb), 0), _iota2((n, tb), 1)
    st = ((rt >= rows_per_sample * ct) & (rt < rows_per_sample * (ct + 1))).astype(jnp.float32)
    return s, st


def _layernorm_conv2d(h, tb, rows_per_sample, n_feat, gamma_l, beta_l, eps):
    """Per-sample stats over all (C,H,W); unbiased std; (x-mean)/(std+eps); per-channel affine
    (gamma/beta pre-expanded to the lane layout).  h: (tb*rows, lanes)."""
    s, st = _sample_mats(tb, rows_per_sample)
    tot = jnp.sum(_f32dot(s, h), axis=-1, keepdims=True)        # (tb, 1)
    tot2 = jnp.sum(_f32dot(s, h * h), axis=-1, keepdims=True)   # (tb, 1)
    mean = tot / n_feat
    var = (tot2 - n_feat * mean * mean) / (n_feat - 1.0)        # torch.std() is unbiased
    inv = 1.0 / (jnp.sqrt(jnp.maximum(var, 0.0)) + eps)
    mean_r = _f32dot(st, mean)                                  # broadcast per-sample -> rows
    inv_r = _f32dot(st, inv)
    return (h - mean_r) * inv_r * gamma_l + beta_l


def _layernorm_lastdim(x, n_valid, g, b, eps=1e-5):
    """nn.LayerNorm over the last dim; lanes >= n_valid must hold exact zeros."""
    mean = jnp.sum(x, axis=-1, keepdims=True) / n_valid
    msq = jnp.sum(x * x, axis=-1, keepdims=True) / n_valid
    var = msq - mean * mean
    return (x - mean) * jax.lax.rsqrt(var + eps) * g + b


# ----------------------------- fused forward kernel --------------------------

def _cnn_kernel(x_ref, m1_ref, cb1_ref, cg1_ref, cbe1_ref,
                m2_ref, cb2_ref, cg2_ref, cbe2_ref,
                w1_ref, fb1_ref, fg1_ref, fbe1_ref,
                w2_ref, fb2_ref, fg2_ref, fbe2_ref,
                w3_ref, fb3_ref, o_ref, *, tb, eps_conv):
    x = x_ref[...]                                              # (tb, 28, 28)

    # conv1 (1->6, 5x5, VALID) as 5 banded matmuls; output lanes = oc*24 + j  (144 lanes)
    acc = None
    for ki in range(5):
        xk = x[:, ki:ki + 24, :].reshape(tb * 24, 28)           # leading-dim merge (24 % 8 == 0)
        t = _f32dot(xk, m1_ref[ki])
        acc = t if acc is None else acc + t                     # (tb*24, 144)
    h = jnp.maximum(acc + cb1_ref[...], 0.0)                    # + bias, ReLU
    h = _layernorm_conv2d(h, tb, 24, 6.0 * 24.0 * 24.0,
                          cg1_ref[...], cbe1_ref[...], eps_conv)
    h = _maxpool_2x2(h, tb, 24, 144)                            # (tb*12, 72); lanes = c*12 + w

    # conv2 (6->12, 5x5); per-sample row gather (stride 12) via 0/1 selection matmuls
    r_i = _iota2((tb * 8, tb * 12), 0)
    c_i = _iota2((tb * 8, tb * 12), 1)
    base = 12 * jnp.right_shift(r_i, 3) + jnp.bitwise_and(r_i, 7)
    acc = None
    for ki in range(5):
        sel = (c_i == base + ki).astype(jnp.float32)
        t = _f32dot(_f32dot(sel, h), m2_ref[ki])                # (tb*8, 96); lanes = oc*8 + j
        acc = t if acc is None else acc + t
    h = jnp.maximum(acc + cb2_ref[...], 0.0)
    h = _layernorm_conv2d(h, tb, 8, 12.0 * 8.0 * 8.0,
                          cg2_ref[...], cbe2_ref[...], eps_conv)
    h = _maxpool_2x2(h, tb, 8, 96)                              # (tb*4, 48); lanes = c*4 + w

    # FC head, lane-padded to 128 (pads stay exactly zero through ReLU / LayerNorm)
    r_g = _iota2((tb, tb * 4), 0)
    c_g = _iota2((tb, tb * 4), 1)
    acc = None
    for hh in range(4):                                         # gather pooled row hh per sample
        g_sel = (c_g == 4 * r_g + hh).astype(jnp.float32)
        t = _f32dot(_f32dot(g_sel, h), w1_ref[hh])              # (tb, 128)
        acc = t if acc is None else acc + t
    f = jnp.maximum(acc + fb1_ref[...], 0.0)
    f = _layernorm_lastdim(f, 120.0, fg1_ref[...], fbe1_ref[...])
    f = jnp.maximum(_f32dot(f, w2_ref[...]) + fb2_ref[...], 0.0)
    f = _layernorm_lastdim(f, 60.0, fg2_ref[...], fbe2_ref[...])
    o_ref[...] = _f32dot(f, w3_ref[...]) + fb3_ref[...]         # (tb, 128); lanes >= 10 are 0


# ----------------------------- weight re-layout (one time) -------------------

_PARAM_ORDER = ('m1', 'cb1', 'cg1', 'cbe1', 'm2', 'cb2', 'cg2', 'cbe2',
                'w1p', 'fb1', 'fg1', 'fbe1', 'w2p', 'fb2', 'fg2', 'fbe2', 'w3p', 'fb3')


def prepare_params(p):
    """One-time weight re-layout: band matrices, lane-expanded affines, 128-lane padding."""
    f32 = jnp.float32

    def banded(w, w_in, ow):
        # M[ki, c*w_in + iw, oc*ow + j] = w[oc, c, ki, iw - j]  for 0 <= iw - j < K, else 0.
        oc_n, cin, k, _ = w.shape
        shift = (jnp.arange(w_in)[None, :, None] ==
                 jnp.arange(ow)[None, None, :] + jnp.arange(k)[:, None, None]).astype(f32)
        m = jnp.einsum('ocik,kwj->icwoj', w.astype(f32), shift)
        return m.reshape(k, cin * w_in, oc_n * ow)

    q = {
        'm1': banded(p['conv1_w'], 28, 24),                      # (5, 28, 144)
        'cb1': jnp.repeat(p['conv1_b'], 24).reshape(1, 144),
        'cg1': jnp.repeat(p['nc1_g'], 24).reshape(1, 144),
        'cbe1': jnp.repeat(p['nc1_b'], 24).reshape(1, 144),
        'm2': banded(p['conv2_w'], 12, 8),                       # (5, 72, 96)
        'cb2': jnp.repeat(p['conv2_b'], 8).reshape(1, 96),
        'cg2': jnp.repeat(p['nc2_g'], 8).reshape(1, 96),
        'cbe2': jnp.repeat(p['nc2_b'], 8).reshape(1, 96),
    }
    # fc1 rows reordered from PyTorch's (c, h, w) flatten to the kernel's (h, c*4+w) tiles.
    w1 = p['w1'].reshape(12, 4, 4, 120).transpose(1, 0, 2, 3).reshape(4, 48, 120)
    q['w1p'] = jnp.pad(w1, ((0, 0), (0, 0), (0, 8)))
    q['fb1'] = jnp.pad(p['b1'].reshape(1, 120), ((0, 0), (0, 8)))
    q['fg1'] = jnp.pad(p['g1'].reshape(1, 120), ((0, 0), (0, 8)))
    q['fbe1'] = jnp.pad(p['be1'].reshape(1, 120), ((0, 0), (0, 8)))
    q['w2p'] = jnp.pad(p['w2'], ((0, 8), (0, 68)))               # (128, 128)
    q['fb2'] = jnp.pad(p['b2'].reshape(1, 60), ((0, 0), (0, 68)))
    q['fg2'] = jnp.pad(p['g2'].reshape(1, 60), ((0, 0), (0, 68)))
    q['fbe2'] = jnp.pad(p['be2'].reshape(1, 60), ((0, 0), (0, 68)))
    q['w3p'] = jnp.pad(p['w3'], ((0, 68), (0, 118)))             # (128, 128)
    q['fb3'] = jnp.pad(p['b3'].reshape(1, 10), ((0, 0), (0, 118)))
    return {k: v.astype(f32) for k, v in q.items()}


# ----------------------------- pallas_call wrapper ---------------------------

def cnn_forward(x_nchw, prep, *, tb=8):
    """Fused Pallas forward.  x: (B, 1, 28, 28) f32 NCHW -> logits (B, 10)."""
    b = x_nchw.shape[0]
    assert x_nchw.shape[1:] == (1, 28, 28) and b % tb == 0
    x = x_nchw.reshape(b, 28, 28)

    def whole(a):
        nd = a.ndim
        return pl.BlockSpec(a.shape, lambda i, _nd=nd: (0,) * _nd)

    in_specs = [pl.BlockSpec((tb, 28, 28), lambda i: (i, 0, 0))]
    in_specs += [whole(prep[k]) for k in _PARAM_ORDER]

    out = pl.pallas_call(
        functools.partial(_cnn_kernel, tb=tb, eps_conv=1e-6),
        out_shape=jax.ShapeDtypeStruct((b, 128), jnp.float32),
        grid=(b // tb,),
        in_specs=in_specs,
        out_specs=pl.BlockSpec((tb, 128), lambda i: (i, 0)),
        compiler_params=pltpu.CompilerParams(
            dimension_semantics=("parallel",)),
    )(x, *[prep[k] for k in _PARAM_ORDER])
    return out[:, :10]                                          # drop lane padding


# ----------------------------- pure-JAX reference ----------------------------

def cnn_forward_ref(x, p):
    def conv(a, w, b):
        y = jax.lax.conv_general_dilated(a, w, window_strides=(1, 1), padding='VALID',
                                         dimension_numbers=('NCHW', 'OIHW', 'NCHW'))
        return y + b[None, :, None, None]

    def ln_conv(a, g, bt, eps=1e-6):
        n = a.shape[0]
        af = a.reshape(n, -1)
        mean = jnp.mean(af, axis=1).reshape(n, 1, 1, 1)
        std = jnp.std(af, axis=1, ddof=1).reshape(n, 1, 1, 1)
        return g[None, :, None, None] * (a - mean) / (std + eps) + bt[None, :, None, None]

    def pool(a):
        n, c, hh, ww = a.shape
        return jnp.max(a.reshape(n, c, hh // 2, 2, ww // 2, 2), axis=(3, 5))

    def ln(a, g, b, eps=1e-5):
        m = jnp.mean(a, axis=-1, keepdims=True)
        v = jnp.mean((a - m) ** 2, axis=-1, keepdims=True)
        return (a - m) * jax.lax.rsqrt(v + eps) * g + b

    h = pool(ln_conv(jax.nn.relu(conv(x, p['conv1_w'], p['conv1_b'])), p['nc1_g'], p['nc1_b']))
    h = pool(ln_conv(jax.nn.relu(conv(h, p['conv2_w'], p['conv2_b'])), p['nc2_g'], p['nc2_b']))
    h = h.reshape(h.shape[0], -1)
    h = ln(jax.nn.relu(h @ p['w1'] + p['b1']), p['g1'], p['be1'])
    h = ln(jax.nn.relu(h @ p['w2'] + p['b2']), p['g2'], p['be2'])
    return h @ p['w3'] + p['b3']


# ----------------------------- params / main ---------------------------------

def init_params(key):
    ks = jax.random.split(key, 18)

    def w(k, shape, scale=0.1):
        return (scale * jax.random.normal(k, shape)).astype(jnp.float32)

    p = {}
    p['conv1_w'] = w(ks[0], (6, 1, 5, 5))
    p['conv1_b'] = w(ks[1], (6,), 0.05)
    p['nc1_g'] = 1.0 + w(ks[2], (6,), 0.1)
    p['nc1_b'] = w(ks[3], (6,), 0.1)
    p['conv2_w'] = w(ks[4], (12, 6, 5, 5))
    p['conv2_b'] = w(ks[5], (12,), 0.05)
    p['nc2_g'] = 1.0 + w(ks[6], (12,), 0.1)
    p['nc2_b'] = w(ks[7], (12,), 0.1)
    # fc weights stored transposed (in, out) relative to nn.Linear's (out, in).
    p['w1'] = w(ks[8], (192, 120))
    p['b1'] = w(ks[9], (1, 120), 0.05)
    p['g1'] = 1.0 + w(ks[10], (1, 120), 0.1)
    p['be1'] = w(ks[11], (1, 120), 0.1)
    p['w2'] = w(ks[12], (120, 60))
    p['b2'] = w(ks[13], (1, 60), 0.05)
    p['g2'] = 1.0 + w(ks[14], (1, 60), 0.1)
    p['be2'] = w(ks[15], (1, 60), 0.1)
    p['w3'] = w(ks[16], (60, 10))
    p['b3'] = w(ks[17], (1, 10), 0.05)
    return p


if __name__ == "__main__":
    key = jax.random.PRNGKey(0)
    kx, kp = jax.random.split(key)
    B, TB = 16, 8                              # spatial size pinned to 28x28 by fc1 (12*4*4)
    x = jax.random.normal(kx, (B, 1, 28, 28), dtype=jnp.float32)
    params = init_params(kp)
    prep = prepare_params(params)              # one-time weight re-layout (not per call)

    fwd = jax.jit(functools.partial(cnn_forward, tb=TB))
    out = jax.block_until_ready(fwd(x, prep))
    assert out.shape == (B, 10) and out.dtype == jnp.float32

    ref = jax.block_until_ready(jax.jit(cnn_forward_ref)(x, params))
    assert float(jnp.max(jnp.abs(out - ref))) < 1e-1
    print("KERNEL_OK")
</pallas_src>

<mosaic_0001>
module attributes {stable_mosaic.version = 11 : i64} {
  func.func @_cnn_kernel(%arg0: i32, %arg1: memref<8x28x28xf32, #tpu.memory_space<vmem>>, %arg2: memref<5x28x144xf32, #tpu.memory_space<vmem>>, %arg3: memref<1x144xf32, #tpu.memory_space<vmem>>, %arg4: memref<1x144xf32, #tpu.memory_space<vmem>>, %arg5: memref<1x144xf32, #tpu.memory_space<vmem>>, %arg6: memref<5x72x96xf32, #tpu.memory_space<vmem>>, %arg7: memref<1x96xf32, #tpu.memory_space<vmem>>, %arg8: memref<1x96xf32, #tpu.memory_space<vmem>>, %arg9: memref<1x96xf32, #tpu.memory_space<vmem>>, %arg10: memref<4x48x128xf32, #tpu.memory_space<vmem>>, %arg11: memref<1x128xf32, #tpu.memory_space<vmem>>, %arg12: memref<1x128xf32, #tpu.memory_space<vmem>>, %arg13: memref<1x128xf32, #tpu.memory_space<vmem>>, %arg14: memref<128x128xf32, #tpu.memory_space<vmem>>, %arg15: memref<1x128xf32, #tpu.memory_space<vmem>>, %arg16: memref<1x128xf32, #tpu.memory_space<vmem>>, %arg17: memref<1x128xf32, #tpu.memory_space<vmem>>, %arg18: memref<128x128xf32, #tpu.memory_space<vmem>>, %arg19: memref<1x128xf32, #tpu.memory_space<vmem>>, %arg20: memref<8x128xf32, #tpu.memory_space<vmem>>) attributes {dimension_semantics = [#tpu.dimension_semantics<parallel>], iteration_bounds = array<i64: 2>, scalar_prefetch = 0 : i64, scratch_operands = 0 : i64, tpu.core_type = #tpu.core_type<tc>, window_params = [{transform_indices = @transform_0, window_bounds = array<i64: 8, 28, 28>}, {pipeline_mode = #tpu.pipeline_mode<synchronous>, transform_indices = @transform_1, window_bounds = array<i64: 5, 28, 144>}, {pipeline_mode = #tpu.pipeline_mode<synchronous>, transform_indices = @transform_2, window_bounds = array<i64: 1, 144>}, {pipeline_mode = #tpu.pipeline_mode<synchronous>, transform_indices = @transform_3, window_bounds = array<i64: 1, 144>}, {pipeline_mode = #tpu.pipeline_mode<synchronous>, transform_indices = @transform_4, window_bounds = array<i64: 1, 144>}, {pipeline_mode = #tpu.pipeline_mode<synchronous>, transform_indices = @transform_5, window_bounds = array<i64: 5, 72, 96>}, {pipeline_mode = #tpu.pipeline_mode<synchronous>, transform_indices = @transform_6, window_bounds = array<i64: 1, 96>}, {pipeline_mode = #tpu.pipeline_mode<synchronous>, transform_indices = @transform_7, window_bounds = array<i64: 1, 96>}, {pipeline_mode = #tpu.pipeline_mode<synchronous>, transform_indices = @transform_8, window_bounds = array<i64: 1, 96>}, {pipeline_mode = #tpu.pipeline_mode<synchronous>, transform_indices = @transform_9, window_bounds = array<i64: 4, 48, 128>}, {pipeline_mode = #tpu.pipeline_mode<synchronous>, transform_indices = @transform_10, window_bounds = array<i64: 1, 128>}, {pipeline_mode = #tpu.pipeline_mode<synchronous>, transform_indices = @transform_11, window_bounds = array<i64: 1, 128>}, {pipeline_mode = #tpu.pipeline_mode<synchronous>, transform_indices = @transform_12, window_bounds = array<i64: 1, 128>}, {pipeline_mode = #tpu.pipeline_mode<synchronous>, transform_indices = @transform_13, window_bounds = array<i64: 128, 128>}, {pipeline_mode = #tpu.pipeline_mode<synchronous>, transform_indices = @transform_14, window_bounds = array<i64: 1, 128>}, {pipeline_mode = #tpu.pipeline_mode<synchronous>, transform_indices = @transform_15, window_bounds = array<i64: 1, 128>}, {pipeline_mode = #tpu.pipeline_mode<synchronous>, transform_indices = @transform_16, window_bounds = array<i64: 1, 128>}, {pipeline_mode = #tpu.pipeline_mode<synchronous>, transform_indices = @transform_17, window_bounds = array<i64: 128, 128>}, {pipeline_mode = #tpu.pipeline_mode<synchronous>, transform_indices = @transform_18, window_bounds = array<i64: 1, 128>}, {transform_indices = @transform_19, window_bounds = array<i64: 8, 128>}]} {
    %c0 = arith.constant 0 : index
    %c0_0 = arith.constant 0 : index
    %c0_1 = arith.constant 0 : index
    %0 = vector.load %arg1[%c0, %c0_0, %c0_1] : memref<8x28x28xf32, #tpu.memory_space<vmem>>, vector<8x28x28xf32>
    %1 = vector.extract_strided_slice %0 {offsets = [0, 0, 0], sizes = [8, 24, 28], strides = [1, 1, 1]} : vector<8x28x28xf32> to vector<8x24x28xf32>
    %2 = vector.shape_cast %1 : vector<8x24x28xf32> to vector<192x28xf32>
    %c0_2 = arith.constant 0 : index
    %c0_3 = arith.constant 0 : index
    %c0_4 = arith.constant 0 : index
    %3 = vector.load %arg2[%c0_2, %c0_3, %c0_4] : memref<5x28x144xf32, #tpu.memory_space<vmem>>, vector<1x28x144xf32>
    %4 = vector.shape_cast %3 : vector<1x28x144xf32> to vector<28x144xf32>
    %cst = arith.constant dense<0.000000e+00> : vector<192x144xf32>
    %5 = tpu.matmul %2, %4, %cst {dimension_numbers = #tpu.dot_dimension_numbers<[1], [0], [0], [1], [0, 0, 1, 1], [], []>} : vector<192x28xf32>, vector<28x144xf32>, vector<192x144xf32> -> vector<192x144xf32>
    %6 = vector.extract_strided_slice %0 {offsets = [0, 1, 0], sizes = [8, 24, 28], strides = [1, 1, 1]} : vector<8x28x28xf32> to vector<8x24x28xf32>
    %7 = vector.shape_cast %6 : vector<8x24x28xf32> to vector<192x28xf32>
    %c1 = arith.constant 1 : index
    %c0_5 = arith.constant 0 : index
    %c0_6 = arith.constant 0 : index
    %8 = vector.load %arg2[%c1, %c0_5, %c0_6] : memref<5x28x144xf32, #tpu.memory_space<vmem>>, vector<1x28x144xf32>
    %9 = vector.shape_cast %8 : vector<1x28x144xf32> to vector<28x144xf32>
    %cst_7 = arith.constant dense<0.000000e+00> : vector<192x144xf32>
    %10 = tpu.matmul %7, %9, %cst_7 {dimension_numbers = #tpu.dot_dimension_numbers<[1], [0], [0], [1], [0, 0, 1, 1], [], []>} : vector<192x28xf32>, vector<28x144xf32>, vector<192x144xf32> -> vector<192x144xf32>
    %11 = arith.addf %5, %10 : vector<192x144xf32>
    %12 = vector.extract_strided_slice %0 {offsets = [0, 2, 0], sizes = [8, 24, 28], strides = [1, 1, 1]} : vector<8x28x28xf32> to vector<8x24x28xf32>
    %13 = vector.shape_cast %12 : vector<8x24x28xf32> to vector<192x28xf32>
    %c2 = arith.constant 2 : index
    %c0_8 = arith.constant 0 : index
    %c0_9 = arith.constant 0 : index
    %14 = vector.load %arg2[%c2, %c0_8, %c0_9] : memref<5x28x144xf32, #tpu.memory_space<vmem>>, vector<1x28x144xf32>
    %15 = vector.shape_cast %14 : vector<1x28x144xf32> to vector<28x144xf32>
    %cst_10 = arith.constant dense<0.000000e+00> : vector<192x144xf32>
    %16 = tpu.matmul %13, %15, %cst_10 {dimension_numbers = #tpu.dot_dimension_numbers<[1], [0], [0], [1], [0, 0, 1, 1], [], []>} : vector<192x28xf32>, vector<28x144xf32>, vector<192x144xf32> -> vector<192x144xf32>
    %17 = arith.addf %11, %16 : vector<192x144xf32>
    %18 = vector.extract_strided_slice %0 {offsets = [0, 3, 0], sizes = [8, 24, 28], strides = [1, 1, 1]} : vector<8x28x28xf32> to vector<8x24x28xf32>
    %19 = vector.shape_cast %18 : vector<8x24x28xf32> to vector<192x28xf32>
    %c3 = arith.constant 3 : index
    %c0_11 = arith.constant 0 : index
    %c0_12 = arith.constant 0 : index
    %20 = vector.load %arg2[%c3, %c0_11, %c0_12] : memref<5x28x144xf32, #tpu.memory_space<vmem>>, vector<1x28x144xf32>
    %21 = vector.shape_cast %20 : vector<1x28x144xf32> to vector<28x144xf32>
    %cst_13 = arith.constant dense<0.000000e+00> : vector<192x144xf32>
    %22 = tpu.matmul %19, %21, %cst_13 {dimension_numbers = #tpu.dot_dimension_numbers<[1], [0], [0], [1], [0, 0, 1, 1], [], []>} : vector<192x28xf32>, vector<28x144xf32>, vector<192x144xf32> -> vector<192x144xf32>
    %23 = arith.addf %17, %22 : vector<192x144xf32>
    %24 = vector.extract_strided_slice %0 {offsets = [0, 4, 0], sizes = [8, 24, 28], strides = [1, 1, 1]} : vector<8x28x28xf32> to vector<8x24x28xf32>
    %25 = vector.shape_cast %24 : vector<8x24x28xf32> to vector<192x28xf32>
    %c4 = arith.constant 4 : index
    %c0_14 = arith.constant 0 : index
    %c0_15 = arith.constant 0 : index
    %26 = vector.load %arg2[%c4, %c0_14, %c0_15] : memref<5x28x144xf32, #tpu.memory_space<vmem>>, vector<1x28x144xf32>
    %27 = vector.shape_cast %26 : vector<1x28x144xf32> to vector<28x144xf32>
    %cst_16 = arith.constant dense<0.000000e+00> : vector<192x144xf32>
    %28 = tpu.matmul %25, %27, %cst_16 {dimension_numbers = #tpu.dot_dimension_numbers<[1], [0], [0], [1], [0, 0, 1, 1], [], []>} : vector<192x28xf32>, vector<28x144xf32>, vector<192x144xf32> -> vector<192x144xf32>
    %29 = arith.addf %23, %28 : vector<192x144xf32>
    %c0_17 = arith.constant 0 : index
    %c0_18 = arith.constant 0 : index
    %30 = vector.load %arg3[%c0_17, %c0_18] : memref<1x144xf32, #tpu.memory_space<vmem>>, vector<1x144xf32>
    %31 = vector.broadcast %30 : vector<1x144xf32> to vector<192x144xf32>
    %32 = arith.addf %29, %31 : vector<192x144xf32>
    %cst_19 = arith.constant 0.000000e+00 : f32
    %33 = vector.broadcast %cst_19 : f32 to vector<192x144xf32>
    %34 = arith.maximumf %32, %33 : vector<192x144xf32>
    %c0_20 = arith.constant 0 : index
    %c0_21 = arith.constant 0 : index
    %35 = vector.load %arg4[%c0_20, %c0_21] : memref<1x144xf32, #tpu.memory_space<vmem>>, vector<1x144xf32>
    %c0_22 = arith.constant 0 : index
    %c0_23 = arith.constant 0 : index
    %36 = vector.load %arg5[%c0_22, %c0_23] : memref<1x144xf32, #tpu.memory_space<vmem>>, vector<1x144xf32>
    %37 = tpu.iota {dimensions = array<i32: 0>} : vector<8x192xi32>
    %38 = tpu.iota {dimensions = array<i32: 1>} : vector<8x192xi32>
    %c24_i32 = arith.constant 24 : i32
    %39 = vector.broadcast %c24_i32 : i32 to vector<8x192xi32>
    %40 = arith.muli %39, %37 : vector<8x192xi32>
    %41 = arith.cmpi sge, %38, %40 : vector<8x192xi32>
    %c1_i32 = arith.constant 1 : i32
    %42 = vector.broadcast %c1_i32 : i32 to vector<8x192xi32>
    %43 = arith.addi %37, %42 : vector<8x192xi32>
    %c24_i32_24 = arith.constant 24 : i32
    %44 = vector.broadcast %c24_i32_24 : i32 to vector<8x192xi32>
    %45 = arith.muli %44, %43 : vector<8x192xi32>
    %46 = arith.cmpi slt, %38, %45 : vector<8x192xi32>
    %47 = arith.andi %41, %46 : vector<8x192xi1>
    %48 = arith.extui %47 : vector<8x192xi1> to vector<8x192xi32>
    %49 = arith.sitofp %48 : vector<8x192xi32> to vector<8x192xf32>
    %50 = tpu.iota {dimensions = array<i32: 0>} : vector<192x8xi32>
    %51 = tpu.iota {dimensions = array<i32: 1>} : vector<192x8xi32>
    %c24_i32_25 = arith.constant 24 : i32
    %52 = vector.broadcast %c24_i32_25 : i32 to vector<192x8xi32>
    %53 = arith.muli %52, %51 : vector<192x8xi32>
    %54 = arith.cmpi sge, %50, %53 : vector<192x8xi32>
    %c1_i32_26 = arith.constant 1 : i32
    %55 = vector.broadcast %c1_i32_26 : i32 to vector<192x8xi32>
    %56 = arith.addi %51, %55 : vector<192x8xi32>
    %c24_i32_27 = arith.constant 24 : i32
    %57 = vector.broadcast %c24_i32_27 : i32 to vector<192x8xi32>
    %58 = arith.muli %57, %56 : vector<192x8xi32>
    %59 = arith.cmpi slt, %50, %58 : vector<192x8xi32>
    %60 = arith.andi %54, %59 : vector<192x8xi1>
    %61 = arith.extui %60 : vector<192x8xi1> to vector<192x8xi32>
    %62 = arith.sitofp %61 : vector<192x8xi32> to vector<192x8xf32>
    %cst_28 = arith.constant dense<0.000000e+00> : vector<8x144xf32>
    %63 = tpu.matmul %49, %34, %cst_28 {dimension_numbers = #tpu.dot_dimension_numbers<[1], [0], [0], [1], [0, 0, 1, 1], [], []>} : vector<8x192xf32>, vector<192x144xf32>, vector<8x144xf32> -> vector<8x144xf32>
    %cst_29 = arith.constant dense<0.000000e+00> : vector<8xf32>
    %64 = vector.multi_reduction <add>, %63, %cst_29 [1] : vector<8x144xf32> to vector<8xf32>
    %65 = vector.shape_cast %64 : vector<8xf32> to vector<8x1xf32>
    %66 = arith.mulf %34, %34 : vector<192x144xf32>
    %cst_30 = arith.constant dense<0.000000e+00> : vector<8x144xf32>
    %67 = tpu.matmul %49, %66, %cst_30 {dimension_numbers = #tpu.dot_dimension_numbers<[1], [0], [0], [1], [0, 0, 1, 1], [], []>} : vector<8x192xf32>, vector<192x144xf32>, vector<8x144xf32> -> vector<8x144xf32>
    %cst_31 = arith.constant dense<0.000000e+00> : vector<8xf32>
    %68 = vector.multi_reduction <add>, %67, %cst_31 [1] : vector<8x144xf32> to vector<8xf32>
    %69 = vector.shape_cast %68 : vector<8xf32> to vector<8x1xf32>
    %cst_32 = arith.constant 3.456000e+03 : f32
    %70 = vector.broadcast %cst_32 : f32 to vector<8x1xf32>
    %71 = arith.divf %65, %70 : vector<8x1xf32>
    %cst_33 = arith.constant 3.456000e+03 : f32
    %72 = vector.broadcast %cst_33 : f32 to vector<8x1xf32>
    %73 = arith.mulf %72, %71 : vector<8x1xf32>
    %74 = arith.mulf %73, %71 : vector<8x1xf32>
    %75 = arith.subf %69, %74 : vector<8x1xf32>
    %cst_34 = arith.constant 3.455000e+03 : f32
    %76 = vector.broadcast %cst_34 : f32 to vector<8x1xf32>
    %77 = arith.divf %75, %76 : vector<8x1xf32>
    %cst_35 = arith.constant 0.000000e+00 : f32
    %78 = vector.broadcast %cst_35 : f32 to vector<8x1xf32>
    %79 = arith.maximumf %77, %78 : vector<8x1xf32>
    %80 = math.sqrt %79 : vector<8x1xf32>
    %cst_36 = arith.constant 9.99999997E-7 : f32
    %81 = vector.broadcast %cst_36 : f32 to vector<8x1xf32>
    %82 = arith.addf %80, %81 : vector<8x1xf32>
    %cst_37 = arith.constant 1.000000e+00 : f32
    %83 = vector.broadcast %cst_37 : f32 to vector<8x1xf32>
    %84 = arith.divf %83, %82 : vector<8x1xf32>
    %cst_38 = arith.constant dense<0.000000e+00> : vector<192x1xf32>
    %85 = tpu.matmul %62, %71, %cst_38 {dimension_numbers = #tpu.dot_dimension_numbers<[1], [0], [0], [1], [0, 0, 1, 1], [], []>} : vector<192x8xf32>, vector<8x1xf32>, vector<192x1xf32> -> vector<192x1xf32>
    %cst_39 = arith.constant dense<0.000000e+00> : vector<192x1xf32>
    %86 = tpu.matmul %62, %84, %cst_39 {dimension_numbers = #tpu.dot_dimension_numbers<[1], [0], [0], [1], [0, 0, 1, 1], [], []>} : vector<192x8xf32>, vector<8x1xf32>, vector<192x1xf32> -> vector<192x1xf32>
    %87 = vector.broadcast %85 : vector<192x1xf32> to vector<192x144xf32>
    %88 = arith.subf %34, %87 : vector<192x144xf32>
    %89 = vector.broadcast %86 : vector<192x1xf32> to vector<192x144xf32>
    %90 = arith.mulf %88, %89 : vector<192x144xf32>
    %91 = vector.broadcast %35 : vector<1x144xf32> to vector<192x144xf32>
    %92 = arith.mulf %90, %91 : vector<192x144xf32>
    %93 = vector.broadcast %36 : vector<1x144xf32> to vector<192x144xf32>
    %94 = arith.addf %92, %93 : vector<192x144xf32>
    %95 = tpu.iota {dimensions = array<i32: 0>} : vector<96x192xi32>
    %96 = tpu.iota {dimensions = array<i32: 1>} : vector<96x192xi32>
    %c2_i32 = arith.constant 2 : i32
    %97 = vector.broadcast %c2_i32 : i32 to vector<96x192xi32>
    %98 = arith.muli %97, %95 : vector<96x192xi32>
    %99 = arith.cmpi eq, %96, %98 : vector<96x192xi32>
    %100 = arith.extui %99 : vector<96x192xi1> to vector<96x192xi32>
    %101 = arith.sitofp %100 : vector<96x192xi32> to vector<96x192xf32>
    %c2_i32_40 = arith.constant 2 : i32
    %102 = vector.broadcast %c2_i32_40 : i32 to vector<96x192xi32>
    %103 = arith.muli %102, %95 : vector<96x192xi32>
    %c1_i32_41 = arith.constant 1 : i32
    %104 = vector.broadcast %c1_i32_41 : i32 to vector<96x192xi32>
    %105 = arith.addi %103, %104 : vector<96x192xi32>
    %106 = arith.cmpi eq, %96, %105 : vector<96x192xi32>
    %107 = arith.extui %106 : vector<96x192xi1> to vector<96x192xi32>
    %108 = arith.sitofp %107 : vector<96x192xi32> to vector<96x192xf32>
    %cst_42 = arith.constant dense<0.000000e+00> : vector<96x144xf32>
    %109 = tpu.matmul %101, %94, %cst_42 {dimension_numbers = #tpu.dot_dimension_numbers<[1], [0], [0], [1], [0, 0, 1, 1], [], []>} : vector<96x192xf32>, vector<192x144xf32>, vector<96x144xf32> -> vector<96x144xf32>
    %cst_43 = arith.constant dense<0.000000e+00> : vector<96x144xf32>
    %110 = tpu.matmul %108, %94, %cst_43 {dimension_numbers = #tpu.dot_dimension_numbers<[1], [0], [0], [1], [0, 0, 1, 1], [], []>} : vector<96x192xf32>, vector<192x144xf32>, vector<96x144xf32> -> vector<96x144xf32>
    %111 = arith.maximumf %109, %110 : vector<96x144xf32>
    %112 = tpu.iota {dimensions = array<i32: 0>} : vector<144x72xi32>
    %113 = tpu.iota {dimensions = array<i32: 1>} : vector<144x72xi32>
    %c2_i32_44 = arith.constant 2 : i32
    %114 = vector.broadcast %c2_i32_44 : i32 to vector<144x72xi32>
    %115 = arith.muli %114, %113 : vector<144x72xi32>
    %116 = arith.cmpi eq, %112, %115 : vector<144x72xi32>
    %117 = arith.extui %116 : vector<144x72xi1> to vector<144x72xi32>
    %118 = arith.sitofp %117 : vector<144x72xi32> to vector<144x72xf32>
    %c2_i32_45 = arith.constant 2 : i32
    %119 = vector.broadcast %c2_i32_45 : i32 to vector<144x72xi32>
    %120 = arith.muli %119, %113 : vector<144x72xi32>
    %c1_i32_46 = arith.constant 1 : i32
    %121 = vector.broadcast %c1_i32_46 : i32 to vector<144x72xi32>
    %122 = arith.addi %120, %121 : vector<144x72xi32>
    %123 = arith.cmpi eq, %112, %122 : vector<144x72xi32>
    %124 = arith.extui %123 : vector<144x72xi1> to vector<144x72xi32>
    %125 = arith.sitofp %124 : vector<144x72xi32> to vector<144x72xf32>
    %cst_47 = arith.constant dense<0.000000e+00> : vector<96x72xf32>
    %126 = tpu.matmul %111, %118, %cst_47 {dimension_numbers = #tpu.dot_dimension_numbers<[1], [0], [0], [1], [0, 0, 1, 1], [], []>} : vector<96x144xf32>, vector<144x72xf32>, vector<96x72xf32> -> vector<96x72xf32>
    %cst_48 = arith.constant dense<0.000000e+00> : vector<96x72xf32>
    %127 = tpu.matmul %111, %125, %cst_48 {dimension_numbers = #tpu.dot_dimension_numbers<[1], [0], [0], [1], [0, 0, 1, 1], [], []>} : vector<96x144xf32>, vector<144x72xf32>, vector<96x72xf32> -> vector<96x72xf32>
    %128 = arith.maximumf %126, %127 : vector<96x72xf32>
    %129 = tpu.iota {dimensions = array<i32: 0>} : vector<64x96xi32>
    %130 = tpu.iota {dimensions = array<i32: 1>} : vector<64x96xi32>
    %c3_i32 = arith.constant 3 : i32
    %131 = vector.broadcast %c3_i32 : i32 to vector<64x96xi32>
    %132 = arith.shrsi %129, %131 : vector<64x96xi32>
    %c12_i32 = arith.constant 12 : i32
    %133 = vector.broadcast %c12_i32 : i32 to vector<64x96xi32>
    %134 = arith.muli %133, %132 : vector<64x96xi32>
    %c7_i32 = arith.constant 7 : i32
    %135 = vector.broadcast %c7_i32 : i32 to vector<64x96xi32>
    %136 = arith.andi %129, %135 : vector<64x96xi32>
    %137 = arith.addi %134, %136 : vector<64x96xi32>
    %c0_i32 = arith.constant 0 : i32
    %138 = vector.broadcast %c0_i32 : i32 to vector<64x96xi32>
    %139 = arith.addi %137, %138 : vector<64x96xi32>
    %140 = arith.cmpi eq, %130, %139 : vector<64x96xi32>
    %141 = arith.extui %140 : vector<64x96xi1> to vector<64x96xi32>
    %142 = arith.sitofp %141 : vector<64x96xi32> to vector<64x96xf32>
    %cst_49 = arith.constant dense<0.000000e+00> : vector<64x72xf32>
    %143 = tpu.matmul %142, %128, %cst_49 {dimension_numbers = #tpu.dot_dimension_numbers<[1], [0], [0], [1], [0, 0, 1, 1], [], []>} : vector<64x96xf32>, vector<96x72xf32>, vector<64x72xf32> -> vector<64x72xf32>
    %c0_50 = arith.constant 0 : index
    %c0_51 = arith.constant 0 : index
    %c0_52 = arith.constant 0 : index
    %144 = vector.load %arg6[%c0_50, %c0_51, %c0_52] : memref<5x72x96xf32, #tpu.memory_space<vmem>>, vector<1x72x96xf32>
    %145 = vector.shape_cast %144 : vector<1x72x96xf32> to vector<72x96xf32>
    %cst_53 = arith.constant dense<0.000000e+00> : vector<64x96xf32>
    %146 = tpu.matmul %143, %145, %cst_53 {dimension_numbers = #tpu.dot_dimension_numbers<[1], [0], [0], [1], [0, 0, 1, 1], [], []>} : vector<64x72xf32>, vector<72x96xf32>, vector<64x96xf32> -> vector<64x96xf32>
    %c1_i32_54 = arith.constant 1 : i32
    %147 = vector.broadcast %c1_i32_54 : i32 to vector<64x96xi32>
    %148 = arith.addi %137, %147 : vector<64x96xi32>
    %149 = arith.cmpi eq, %130, %148 : vector<64x96xi32>
    %150 = arith.extui %149 : vector<64x96xi1> to vector<64x96xi32>
    %151 = arith.sitofp %150 : vector<64x96xi32> to vector<64x96xf32>
    %cst_55 = arith.constant dense<0.000000e+00> : vector<64x72xf32>
    %152 = tpu.matmul %151, %128, %cst_55 {dimension_numbers = #tpu.dot_dimension_numbers<[1], [0], [0], [1], [0, 0, 1, 1], [], []>} : vector<64x96xf32>, vector<96x72xf32>, vector<64x72xf32> -> vector<64x72xf32>
    %c1_56 = arith.constant 1 : index
    %c0_57 = arith.constant 0 : index
    %c0_58 = arith.constant 0 : index
    %153 = vector.load %arg6[%c1_56, %c0_57, %c0_58] : memref<5x72x96xf32, #tpu.memory_space<vmem>>, vector<1x72x96xf32>
    %154 = vector.shape_cast %153 : vector<1x72x96xf32> to vector<72x96xf32>
    %cst_59 = arith.constant dense<0.000000e+00> : vector<64x96xf32>
    %155 = tpu.matmul %152, %154, %cst_59 {dimension_numbers = #tpu.dot_dimension_numbers<[1], [0], [0], [1], [0, 0, 1, 1], [], []>} : vector<64x72xf32>, vector<72x96xf32>, vector<64x96xf32> -> vector<64x96xf32>
    %156 = arith.addf %146, %155 : vector<64x96xf32>
    %c2_i32_60 = arith.constant 2 : i32
    %157 = vector.broadcast %c2_i32_60 : i32 to vector<64x96xi32>
    %158 = arith.addi %137, %157 : vector<64x96xi32>
    %159 = arith.cmpi eq, %130, %158 : vector<64x96xi32>
    %160 = arith.extui %159 : vector<64x96xi1> to vector<64x96xi32>
    %161 = arith.sitofp %160 : vector<64x96xi32> to vector<64x96xf32>
    %cst_61 = arith.constant dense<0.000000e+00> : vector<64x72xf32>
    %162 = tpu.matmul %161, %128, %cst_61 {dimension_numbers = #tpu.dot_dimension_numbers<[1], [0], [0], [1], [0, 0, 1, 1], [], []>} : vector<64x96xf32>, vector<96x72xf32>, vector<64x72xf32> -> vector<64x72xf32>
    %c2_62 = arith.constant 2 : index
    %c0_63 = arith.constant 0 : index
    %c0_64 = arith.constant 0 : index
    %163 = vector.load %arg6[%c2_62, %c0_63, %c0_64] : memref<5x72x96xf32, #tpu.memory_space<vmem>>, vector<1x72x96xf32>
    %164 = vector.shape_cast %163 : vector<1x72x96xf32> to vector<72x96xf32>
    %cst_65 = arith.constant dense<0.000000e+00> : vector<64x96xf32>
    %165 = tpu.matmul %162, %164, %cst_65 {dimension_numbers = #tpu.dot_dimension_numbers<[1], [0], [0], [1], [0, 0, 1, 1], [], []>} : vector<64x72xf32>, vector<72x96xf32>, vector<64x96xf32> -> vector<64x96xf32>
    %166 = arith.addf %156, %165 : vector<64x96xf32>
    %c3_i32_66 = arith.constant 3 : i32
    %167 = vector.broadcast %c3_i32_66 : i32 to vector<64x96xi32>
    %168 = arith.addi %137, %167 : vector<64x96xi32>
    %169 = arith.cmpi eq, %130, %168 : vector<64x96xi32>
    %170 = arith.extui %169 : vector<64x96xi1> to vector<64x96xi32>
    %171 = arith.sitofp %170 : vector<64x96xi32> to vector<64x96xf32>
    %cst_67 = arith.constant dense<0.000000e+00> : vector<64x72xf32>
    %172 = tpu.matmul %171, %128, %cst_67 {dimension_numbers = #tpu.dot_dimension_numbers<[1], [0], [0], [1], [0, 0, 1, 1], [], []>} : vector<64x96xf32>, vector<96x72xf32>, vector<64x72xf32> -> vector<64x72xf32>
    %c3_68 = arith.constant 3 : index
    %c0_69 = arith.constant 0 : index
    %c0_70 = arith.constant 0 : index
    %173 = vector.load %arg6[%c3_68, %c0_69, %c0_70] : memref<5x72x96xf32, #tpu.memory_space<vmem>>, vector<1x72x96xf32>
    %174 = vector.shape_cast %173 : vector<1x72x96xf32> to vector<72x96xf32>
    %cst_71 = arith.constant dense<0.000000e+00> : vector<64x96xf32>
    %175 = tpu.matmul %172, %174, %cst_71 {dimension_numbers = #tpu.dot_dimension_numbers<[1], [0], [0], [1], [0, 0, 1, 1], [], []>} : vector<64x72xf32>, vector<72x96xf32>, vector<64x96xf32> -> vector<64x96xf32>
    %176 = arith.addf %166, %175 : vector<64x96xf32>
    %c4_i32 = arith.constant 4 : i32
    %177 = vector.broadcast %c4_i32 : i32 to vector<64x96xi32>
    %178 = arith.addi %137, %177 : vector<64x96xi32>
    %179 = arith.cmpi eq, %130, %178 : vector<64x96xi32>
    %180 = arith.extui %179 : vector<64x96xi1> to vector<64x96xi32>
    %181 = arith.sitofp %180 : vector<64x96xi32> to vector<64x96xf32>
    %cst_72 = arith.constant dense<0.000000e+00> : vector<64x72xf32>
    %182 = tpu.matmul %181, %128, %cst_72 {dimension_numbers = #tpu.dot_dimension_numbers<[1], [0], [0], [1], [0, 0, 1, 1], [], []>} : vector<64x96xf32>, vector<96x72xf32>, vector<64x72xf32> -> vector<64x72xf32>
    %c4_73 = arith.constant 4 : index
    %c0_74 = arith.constant 0 : index
    %c0_75 = arith.constant 0 : index
    %183 = vector.load %arg6[%c4_73, %c0_74, %c0_75] : memref<5x72x96xf32, #tpu.memory_space<vmem>>, vector<1x72x96xf32>
    %184 = vector.shape_cast %183 : vector<1x72x96xf32> to vector<72x96xf32>
    %cst_76 = arith.constant dense<0.000000e+00> : vector<64x96xf32>
    %185 = tpu.matmul %182, %184, %cst_76 {dimension_numbers = #tpu.dot_dimension_numbers<[1], [0], [0], [1], [0, 0, 1, 1], [], []>} : vector<64x72xf32>, vector<72x96xf32>, vector<64x96xf32> -> vector<64x96xf32>
    %186 = arith.addf %176, %185 : vector<64x96xf32>
    %c0_77 = arith.constant 0 : index
    %c0_78 = arith.constant 0 : index
    %187 = vector.load %arg7[%c0_77, %c0_78] : memref<1x96xf32, #tpu.memory_space<vmem>>, vector<1x96xf32>
    %188 = vector.broadcast %187 : vector<1x96xf32> to vector<64x96xf32>
    %189 = arith.addf %186, %188 : vector<64x96xf32>
    %cst_79 = arith.constant 0.000000e+00 : f32
    %190 = vector.broadcast %cst_79 : f32 to vector<64x96xf32>
    %191 = arith.maximumf %189, %190 : vector<64x96xf32>
    %c0_80 = arith.constant 0 : index
    %c0_81 = arith.constant 0 : index
    %192 = vector.load %arg8[%c0_80, %c0_81] : memref<1x96xf32, #tpu.memory_space<vmem>>, vector<1x96xf32>
    %c0_82 = arith.constant 0 : index
    %c0_83 = arith.constant 0 : index
    %193 = vector.load %arg9[%c0_82, %c0_83] : memref<1x96xf32, #tpu.memory_space<vmem>>, vector<1x96xf32>
    %194 = tpu.iota {dimensions = array<i32: 0>} : vector<8x64xi32>
    %195 = tpu.iota {dimensions = array<i32: 1>} : vector<8x64xi32>
    %c8_i32 = arith.constant 8 : i32
    %196 = vector.broadcast %c8_i32 : i32 to vector<8x64xi32>
    %197 = arith.muli %196, %194 : vector<8x64xi32>
    %198 = arith.cmpi sge, %195, %197 : vector<8x64xi32>
    %c1_i32_84 = arith.constant 1 : i32
    %199 = vector.broadcast %c1_i32_84 : i32 to vector<8x64xi32>
    %200 = arith.addi %194, %199 : vector<8x64xi32>
    %c8_i32_85 = arith.constant 8 : i32
    %201 = vector.broadcast %c8_i32_85 : i32 to vector<8x64xi32>
    %202 = arith.muli %201, %200 : vector<8x64xi32>
    %203 = arith.cmpi slt, %195, %202 : vector<8x64xi32>
    %204 = arith.andi %198, %203 : vector<8x64xi1>
    %205 = arith.extui %204 : vector<8x64xi1> to vector<8x64xi32>
    %206 = arith.sitofp %205 : vector<8x64xi32> to vector<8x64xf32>
    %207 = tpu.iota {dimensions = array<i32: 0>} : vector<64x8xi32>
    %208 = tpu.iota {dimensions = array<i32: 1>} : vector<64x8xi32>
    %c8_i32_86 = arith.constant 8 : i32
    %209 = vector.broadcast %c8_i32_86 : i32 to vector<64x8xi32>
    %210 = arith.muli %209, %208 : vector<64x8xi32>
    %211 = arith.cmpi sge, %207, %210 : vector<64x8xi32>
    %c1_i32_87 = arith.constant 1 : i32
    %212 = vector.broadcast %c1_i32_87 : i32 to vector<64x8xi32>
    %213 = arith.addi %208, %212 : vector<64x8xi32>
    %c8_i32_88 = arith.constant 8 : i32
    %214 = vector.broadcast %c8_i32_88 : i32 to vector<64x8xi32>
    %215 = arith.muli %214, %213 : vector<64x8xi32>
    %216 = arith.cmpi slt, %207, %215 : vector<64x8xi32>
    %217 = arith.andi %211, %216 : vector<64x8xi1>
    %218 = arith.extui %217 : vector<64x8xi1> to vector<64x8xi32>
    %219 = arith.sitofp %218 : vector<64x8xi32> to vector<64x8xf32>
    %cst_89 = arith.constant dense<0.000000e+00> : vector<8x96xf32>
    %220 = tpu.matmul %206, %191, %cst_89 {dimension_numbers = #tpu.dot_dimension_numbers<[1], [0], [0], [1], [0, 0, 1, 1], [], []>} : vector<8x64xf32>, vector<64x96xf32>, vector<8x96xf32> -> vector<8x96xf32>
    %cst_90 = arith.constant dense<0.000000e+00> : vector<8xf32>
    %221 = vector.multi_reduction <add>, %220, %cst_90 [1] : vector<8x96xf32> to vector<8xf32>
    %222 = vector.shape_cast %221 : vector<8xf32> to vector<8x1xf32>
    %223 = arith.mulf %191, %191 : vector<64x96xf32>
    %cst_91 = arith.constant dense<0.000000e+00> : vector<8x96xf32>
    %224 = tpu.matmul %206, %223, %cst_91 {dimension_numbers = #tpu.dot_dimension_numbers<[1], [0], [0], [1], [0, 0, 1, 1], [], []>} : vector<8x64xf32>, vector<64x96xf32>, vector<8x96xf32> -> vector<8x96xf32>
    %cst_92 = arith.constant dense<0.000000e+00> : vector<8xf32>
    %225 = vector.multi_reduction <add>, %224, %cst_92 [1] : vector<8x96xf32> to vector<8xf32>
    %226 = vector.shape_cast %225 : vector<8xf32> to vector<8x1xf32>
    %cst_93 = arith.constant 7.680000e+02 : f32
    %227 = vector.broadcast %cst_93 : f32 to vector<8x1xf32>
    %228 = arith.divf %222, %227 : vector<8x1xf32>
    %cst_94 = arith.constant 7.680000e+02 : f32
    %229 = vector.broadcast %cst_94 : f32 to vector<8x1xf32>
    %230 = arith.mulf %229, %228 : vector<8x1xf32>
    %231 = arith.mulf %230, %228 : vector<8x1xf32>
    %232 = arith.subf %226, %231 : vector<8x1xf32>
    %cst_95 = arith.constant 7.670000e+02 : f32
    %233 = vector.broadcast %cst_95 : f32 to vector<8x1xf32>
    %234 = arith.divf %232, %233 : vector<8x1xf32>
    %cst_96 = arith.constant 0.000000e+00 : f32
    %235 = vector.broadcast %cst_96 : f32 to vector<8x1xf32>
    %236 = arith.maximumf %234, %235 : vector<8x1xf32>
    %237 = math.sqrt %236 : vector<8x1xf32>
    %cst_97 = arith.constant 9.99999997E-7 : f32
    %238 = vector.broadcast %cst_97 : f32 to vector<8x1xf32>
    %239 = arith.addf %237, %238 : vector<8x1xf32>
    %cst_98 = arith.constant 1.000000e+00 : f32
    %240 = vector.broadcast %cst_98 : f32 to vector<8x1xf32>
    %241 = arith.divf %240, %239 : vector<8x1xf32>
    %cst_99 = arith.constant dense<0.000000e+00> : vector<64x1xf32>
    %242 = tpu.matmul %219, %228, %cst_99 {dimension_numbers = #tpu.dot_dimension_numbers<[1], [0], [0], [1], [0, 0, 1, 1], [], []>} : vector<64x8xf32>, vector<8x1xf32>, vector<64x1xf32> -> vector<64x1xf32>
    %cst_100 = arith.constant dense<0.000000e+00> : vector<64x1xf32>
    %243 = tpu.matmul %219, %241, %cst_100 {dimension_numbers = #tpu.dot_dimension_numbers<[1], [0], [0], [1], [0, 0, 1, 1], [], []>} : vector<64x8xf32>, vector<8x1xf32>, vector<64x1xf32> -> vector<64x1xf32>
    %244 = vector.broadcast %242 : vector<64x1xf32> to vector<64x96xf32>
    %245 = arith.subf %191, %244 : vector<64x96xf32>
    %246 = vector.broadcast %243 : vector<64x1xf32> to vector<64x96xf32>
    %247 = arith.mulf %245, %246 : vector<64x96xf32>
    %248 = vector.broadcast %192 : vector<1x96xf32> to vector<64x96xf32>
    %249 = arith.mulf %247, %248 : vector<64x96xf32>
    %250 = vector.broadcast %193 : vector<1x96xf32> to vector<64x96xf32>
    %251 = arith.addf %249, %250 : vector<64x96xf32>
    %252 = tpu.iota {dimensions = array<i32: 0>} : vector<32x64xi32>
    %253 = tpu.iota {dimensions = array<i32: 1>} : vector<32x64xi32>
    %c2_i32_101 = arith.constant 2 : i32
    %254 = vector.broadcast %c2_i32_101 : i32 to vector<32x64xi32>
    %255 = arith.muli %254, %252 : vector<32x64xi32>
    %256 = arith.cmpi eq, %253, %255 : vector<32x64xi32>
    %257 = arith.extui %256 : vector<32x64xi1> to vector<32x64xi32>
    %258 = arith.sitofp %257 : vector<32x64xi32> to vector<32x64xf32>
    %c2_i32_102 = arith.constant 2 : i32
    %259 = vector.broadcast %c2_i32_102 : i32 to vector<32x64xi32>
    %260 = arith.muli %259, %252 : vector<32x64xi32>
    %c1_i32_103 = arith.constant 1 : i32
    %261 = vector.broadcast %c1_i32_103 : i32 to vector<32x64xi32>
    %262 = arith.addi %260, %261 : vector<32x64xi32>
    %263 = arith.cmpi eq, %253, %262 : vector<32x64xi32>
    %264 = arith.extui %263 : vector<32x64xi1> to vector<32x64xi32>
    %265 = arith.sitofp %264 : vector<32x64xi32> to vector<32x64xf32>
    %cst_104 = arith.constant dense<0.000000e+00> : vector<32x96xf32>
    %266 = tpu.matmul %258, %251, %cst_104 {dimension_numbers = #tpu.dot_dimension_numbers<[1], [0], [0], [1], [0, 0, 1, 1], [], []>} : vector<32x64xf32>, vector<64x96xf32>, vector<32x96xf32> -> vector<32x96xf32>
    %cst_105 = arith.constant dense<0.000000e+00> : vector<32x96xf32>
    %267 = tpu.matmul %265, %251, %cst_105 {dimension_numbers = #tpu.dot_dimension_numbers<[1], [0], [0], [1], [0, 0, 1, 1], [], []>} : vector<32x64xf32>, vector<64x96xf32>, vector<32x96xf32> -> vector<32x96xf32>
    %268 = arith.maximumf %266, %267 : vector<32x96xf32>
    %269 = tpu.iota {dimensions = array<i32: 0>} : vector<96x48xi32>
    %270 = tpu.iota {dimensions = array<i32: 1>} : vector<96x48xi32>
    %c2_i32_106 = arith.constant 2 : i32
    %271 = vector.broadcast %c2_i32_106 : i32 to vector<96x48xi32>
    %272 = arith.muli %271, %270 : vector<96x48xi32>
    %273 = arith.cmpi eq, %269, %272 : vector<96x48xi32>
    %274 = arith.extui %273 : vector<96x48xi1> to vector<96x48xi32>
    %275 = arith.sitofp %274 : vector<96x48xi32> to vector<96x48xf32>
    %c2_i32_107 = arith.constant 2 : i32
    %276 = vector.broadcast %c2_i32_107 : i32 to vector<96x48xi32>
    %277 = arith.muli %276, %270 : vector<96x48xi32>
    %c1_i32_108 = arith.constant 1 : i32
    %278 = vector.broadcast %c1_i32_108 : i32 to vector<96x48xi32>
    %279 = arith.addi %277, %278 : vector<96x48xi32>
    %280 = arith.cmpi eq, %269, %279 : vector<96x48xi32>
    %281 = arith.extui %280 : vector<96x48xi1> to vector<96x48xi32>
    %282 = arith.sitofp %281 : vector<96x48xi32> to vector<96x48xf32>
    %cst_109 = arith.constant dense<0.000000e+00> : vector<32x48xf32>
    %283 = tpu.matmul %268, %275, %cst_109 {dimension_numbers = #tpu.dot_dimension_numbers<[1], [0], [0], [1], [0, 0, 1, 1], [], []>} : vector<32x96xf32>, vector<96x48xf32>, vector<32x48xf32> -> vector<32x48xf32>
    %cst_110 = arith.constant dense<0.000000e+00> : vector<32x48xf32>
    %284 = tpu.matmul %268, %282, %cst_110 {dimension_numbers = #tpu.dot_dimension_numbers<[1], [0], [0], [1], [0, 0, 1, 1], [], []>} : vector<32x96xf32>, vector<96x48xf32>, vector<32x48xf32> -> vector<32x48xf32>
    %285 = arith.maximumf %283, %284 : vector<32x48xf32>
    %286 = tpu.iota {dimensions = array<i32: 0>} : vector<8x32xi32>
    %287 = tpu.iota {dimensions = array<i32: 1>} : vector<8x32xi32>
    %c4_i32_111 = arith.constant 4 : i32
    %288 = vector.broadcast %c4_i32_111 : i32 to vector<8x32xi32>
    %289 = arith.muli %288, %286 : vector<8x32xi32>
    %c0_i32_112 = arith.constant 0 : i32
    %290 = vector.broadcast %c0_i32_112 : i32 to vector<8x32xi32>
    %291 = arith.addi %289, %290 : vector<8x32xi32>
    %292 = arith.cmpi eq, %287, %291 : vector<8x32xi32>
    %293 = arith.extui %292 : vector<8x32xi1> to vector<8x32xi32>
    %294 = arith.sitofp %293 : vector<8x32xi32> to vector<8x32xf32>
    %cst_113 = arith.constant dense<0.000000e+00> : vector<8x48xf32>
    %295 = tpu.matmul %294, %285, %cst_113 {dimension_numbers = #tpu.dot_dimension_numbers<[1], [0], [0], [1], [0, 0, 1, 1], [], []>} : vector<8x32xf32>, vector<32x48xf32>, vector<8x48xf32> -> vector<8x48xf32>
    %c0_114 = arith.constant 0 : index
    %c0_115 = arith.constant 0 : index
    %c0_116 = arith.constant 0 : index
    %296 = vector.load %arg10[%c0_114, %c0_115, %c0_116] : memref<4x48x128xf32, #tpu.memory_space<vmem>>, vector<1x48x128xf32>
    %297 = vector.shape_cast %296 : vector<1x48x128xf32> to vector<48x128xf32>
    %cst_117 = arith.constant dense<0.000000e+00> : vector<8x128xf32>
    %298 = tpu.matmul %295, %297, %cst_117 {dimension_numbers = #tpu.dot_dimension_numbers<[1], [0], [0], [1], [0, 0, 1, 1], [], []>} : vector<8x48xf32>, vector<48x128xf32>, vector<8x128xf32> -> vector<8x128xf32>
    %c4_i32_118 = arith.constant 4 : i32
    %299 = vector.broadcast %c4_i32_118 : i32 to vector<8x32xi32>
    %300 = arith.muli %299, %286 : vector<8x32xi32>
    %c1_i32_119 = arith.constant 1 : i32
    %301 = vector.broadcast %c1_i32_119 : i32 to vector<8x32xi32>
    %302 = arith.addi %300, %301 : vector<8x32xi32>
    %303 = arith.cmpi eq, %287, %302 : vector<8x32xi32>
    %304 = arith.extui %303 : vector<8x32xi1> to vector<8x32xi32>
    %305 = arith.sitofp %304 : vector<8x32xi32> to vector<8x32xf32>
    %cst_120 = arith.constant dense<0.000000e+00> : vector<8x48xf32>
    %306 = tpu.matmul %305, %285, %cst_120 {dimension_numbers = #tpu.dot_dimension_numbers<[1], [0], [0], [1], [0, 0, 1, 1], [], []>} : vector<8x32xf32>, vector<32x48xf32>, vector<8x48xf32> -> vector<8x48xf32>
    %c1_121 = arith.constant 1 : index
    %c0_122 = arith.constant 0 : index
    %c0_123 = arith.constant 0 : index
    %307 = vector.load %arg10[%c1_121, %c0_122, %c0_123] : memref<4x48x128xf32, #tpu.memory_space<vmem>>, vector<1x48x128xf32>
    %308 = vector.shape_cast %307 : vector<1x48x128xf32> to vector<48x128xf32>
    %cst_124 = arith.constant dense<0.000000e+00> : vector<8x128xf32>
    %309 = tpu.matmul %306, %308, %cst_124 {dimension_numbers = #tpu.dot_dimension_numbers<[1], [0], [0], [1], [0, 0, 1, 1], [], []>} : vector<8x48xf32>, vector<48x128xf32>, vector<8x128xf32> -> vector<8x128xf32>
    %310 = arith.addf %298, %309 : vector<8x128xf32>
    %c4_i32_125 = arith.constant 4 : i32
    %311 = vector.broadcast %c4_i32_125 : i32 to vector<8x32xi32>
    %312 = arith.muli %311, %286 : vector<8x32xi32>
    %c2_i32_126 = arith.constant 2 : i32
    %313 = vector.broadcast %c2_i32_126 : i32 to vector<8x32xi32>
    %314 = arith.addi %312, %313 : vector<8x32xi32>
    %315 = arith.cmpi eq, %287, %314 : vector<8x32xi32>
    %316 = arith.extui %315 : vector<8x32xi1> to vector<8x32xi32>
    %317 = arith.sitofp %316 : vector<8x32xi32> to vector<8x32xf32>
    %cst_127 = arith.constant dense<0.000000e+00> : vector<8x48xf32>
    %318 = tpu.matmul %317, %285, %cst_127 {dimension_numbers = #tpu.dot_dimension_numbers<[1], [0], [0], [1], [0, 0, 1, 1], [], []>} : vector<8x32xf32>, vector<32x48xf32>, vector<8x48xf32> -> vector<8x48xf32>
    %c2_128 = arith.constant 2 : index
    %c0_129 = arith.constant 0 : index
    %c0_130 = arith.constant 0 : index
    %319 = vector.load %arg10[%c2_128, %c0_129, %c0_130] : memref<4x48x128xf32, #tpu.memory_space<vmem>>, vector<1x48x128xf32>
    %320 = vector.shape_cast %319 : vector<1x48x128xf32> to vector<48x128xf32>
    %cst_131 = arith.constant dense<0.000000e+00> : vector<8x128xf32>
    %321 = tpu.matmul %318, %320, %cst_131 {dimension_numbers = #tpu.dot_dimension_numbers<[1], [0], [0], [1], [0, 0, 1, 1], [], []>} : vector<8x48xf32>, vector<48x128xf32>, vector<8x128xf32> -> vector<8x128xf32>
    %322 = arith.addf %310, %321 : vector<8x128xf32>
    %c4_i32_132 = arith.constant 4 : i32
    %323 = vector.broadcast %c4_i32_132 : i32 to vector<8x32xi32>
    %324 = arith.muli %323, %286 : vector<8x32xi32>
    %c3_i32_133 = arith.constant 3 : i32
    %325 = vector.broadcast %c3_i32_133 : i32 to vector<8x32xi32>
    %326 = arith.addi %324, %325 : vector<8x32xi32>
    %327 = arith.cmpi eq, %287, %326 : vector<8x32xi32>
    %328 = arith.extui %327 : vector<8x32xi1> to vector<8x32xi32>
    %329 = arith.sitofp %328 : vector<8x32xi32> to vector<8x32xf32>
    %cst_134 = arith.constant dense<0.000000e+00> : vector<8x48xf32>
    %330 = tpu.matmul %329, %285, %cst_134 {dimension_numbers = #tpu.dot_dimension_numbers<[1], [0], [0], [1], [0, 0, 1, 1], [], []>} : vector<8x32xf32>, vector<32x48xf32>, vector<8x48xf32> -> vector<8x48xf32>
    %c3_135 = arith.constant 3 : index
    %c0_136 = arith.constant 0 : index
    %c0_137 = arith.constant 0 : index
    %331 = vector.load %arg10[%c3_135, %c0_136, %c0_137] : memref<4x48x128xf32, #tpu.memory_space<vmem>>, vector<1x48x128xf32>
    %332 = vector.shape_cast %331 : vector<1x48x128xf32> to vector<48x128xf32>
    %cst_138 = arith.constant dense<0.000000e+00> : vector<8x128xf32>
    %333 = tpu.matmul %330, %332, %cst_138 {dimension_numbers = #tpu.dot_dimension_numbers<[1], [0], [0], [1], [0, 0, 1, 1], [], []>} : vector<8x48xf32>, vector<48x128xf32>, vector<8x128xf32> -> vector<8x128xf32>
    %334 = arith.addf %322, %333 : vector<8x128xf32>
    %c0_139 = arith.constant 0 : index
    %c0_140 = arith.constant 0 : index
    %335 = vector.load %arg11[%c0_139, %c0_140] : memref<1x128xf32, #tpu.memory_space<vmem>>, vector<1x128xf32>
    %336 = vector.broadcast %335 : vector<1x128xf32> to vector<8x128xf32>
    %337 = arith.addf %334, %336 : vector<8x128xf32>
    %cst_141 = arith.constant 0.000000e+00 : f32
    %338 = vector.broadcast %cst_141 : f32 to vector<8x128xf32>
    %339 = arith.maximumf %337, %338 : vector<8x128xf32>
    %c0_142 = arith.constant 0 : index
    %c0_143 = arith.constant 0 : index
    %340 = vector.load %arg12[%c0_142, %c0_143] : memref<1x128xf32, #tpu.memory_space<vmem>>, vector<1x128xf32>
    %c0_144 = arith.constant 0 : index
    %c0_145 = arith.constant 0 : index
    %341 = vector.load %arg13[%c0_144, %c0_145] : memref<1x128xf32, #tpu.memory_space<vmem>>, vector<1x128xf32>
    %cst_146 = arith.constant dense<0.000000e+00> : vector<8xf32>
    %342 = vector.multi_reduction <add>, %339, %cst_146 [1] : vector<8x128xf32> to vector<8xf32>
    %343 = vector.shape_cast %342 : vector<8xf32> to vector<8x1xf32>
    %cst_147 = arith.constant 1.200000e+02 : f32
    %344 = vector.broadcast %cst_147 : f32 to vector<8x1xf32>
    %345 = arith.divf %343, %344 : vector<8x1xf32>
    %346 = arith.mulf %339, %339 : vector<8x128xf32>
    %cst_148 = arith.constant dense<0.000000e+00> : vector<8xf32>
    %347 = vector.multi_reduction <add>, %346, %cst_148 [1] : vector<8x128xf32> to vector<8xf32>
    %348 = vector.shape_cast %347 : vector<8xf32> to vector<8x1xf32>
    %cst_149 = arith.constant 1.200000e+02 : f32
    %349 = vector.broadcast %cst_149 : f32 to vector<8x1xf32>
    %350 = arith.divf %348, %349 : vector<8x1xf32>
    %351 = arith.mulf %345, %345 : vector<8x1xf32>
    %352 = arith.subf %350, %351 : vector<8x1xf32>
    %353 = vector.broadcast %345 : vector<8x1xf32> to vector<8x128xf32>
    %354 = arith.subf %339, %353 : vector<8x128xf32>
    %cst_150 = arith.constant 9.99999974E-6 : f32
    %355 = vector.broadcast %cst_150 : f32 to vector<8x1xf32>
    %356 = arith.addf %352, %355 : vector<8x1xf32>
    %357 = math.rsqrt %356 : vector<8x1xf32>
    %358 = vector.broadcast %357 : vector<8x1xf32> to vector<8x128xf32>
    %359 = arith.mulf %354, %358 : vector<8x128xf32>
    %360 = vector.broadcast %340 : vector<1x128xf32> to vector<8x128xf32>
    %361 = arith.mulf %359, %360 : vector<8x128xf32>
    %362 = vector.broadcast %341 : vector<1x128xf32> to vector<8x128xf32>
    %363 = arith.addf %361, %362 : vector<8x128xf32>
    %c0_151 = arith.constant 0 : index
    %c0_152 = arith.constant 0 : index
    %364 = vector.load %arg14[%c0_151, %c0_152] : memref<128x128xf32, #tpu.memory_space<vmem>>, vector<128x128xf32>
    %cst_153 = arith.constant dense<0.000000e+00> : vector<8x128xf32>
    %365 = tpu.matmul %363, %364, %cst_153 {dimension_numbers = #tpu.dot_dimension_numbers<[1], [0], [0], [1], [0, 0, 1, 1], [], []>} : vector<8x128xf32>, vector<128x128xf32>, vector<8x128xf32> -> vector<8x128xf32>
    %c0_154 = arith.constant 0 : index
    %c0_155 = arith.constant 0 : index
    %366 = vector.load %arg15[%c0_154, %c0_155] : memref<1x128xf32, #tpu.memory_space<vmem>>, vector<1x128xf32>
    %367 = vector.broadcast %366 : vector<1x128xf32> to vector<8x128xf32>
    %368 = arith.addf %365, %367 : vector<8x128xf32>
    %cst_156 = arith.constant 0.000000e+00 : f32
    %369 = vector.broadcast %cst_156 : f32 to vector<8x128xf32>
    %370 = arith.maximumf %368, %369 : vector<8x128xf32>
    %c0_157 = arith.constant 0 : index
    %c0_158 = arith.constant 0 : index
    %371 = vector.load %arg16[%c0_157, %c0_158] : memref<1x128xf32, #tpu.memory_space<vmem>>, vector<1x128xf32>
    %c0_159 = arith.constant 0 : index
    %c0_160 = arith.constant 0 : index
    %372 = vector.load %arg17[%c0_159, %c0_160] : memref<1x128xf32, #tpu.memory_space<vmem>>, vector<1x128xf32>
    %cst_161 = arith.constant dense<0.000000e+00> : vector<8xf32>
    %373 = vector.multi_reduction <add>, %370, %cst_161 [1] : vector<8x128xf32> to vector<8xf32>
    %374 = vector.shape_cast %373 : vector<8xf32> to vector<8x1xf32>
    %cst_162 = arith.constant 6.000000e+01 : f32
    %375 = vector.broadcast %cst_162 : f32 to vector<8x1xf32>
    %376 = arith.divf %374, %375 : vector<8x1xf32>
    %377 = arith.mulf %370, %370 : vector<8x128xf32>
    %cst_163 = arith.constant dense<0.000000e+00> : vector<8xf32>
    %378 = vector.multi_reduction <add>, %377, %cst_163 [1] : vector<8x128xf32> to vector<8xf32>
    %379 = vector.shape_cast %378 : vector<8xf32> to vector<8x1xf32>
    %cst_164 = arith.constant 6.000000e+01 : f32
    %380 = vector.broadcast %cst_164 : f32 to vector<8x1xf32>
    %381 = arith.divf %379, %380 : vector<8x1xf32>
    %382 = arith.mulf %376, %376 : vector<8x1xf32>
    %383 = arith.subf %381, %382 : vector<8x1xf32>
    %384 = vector.broadcast %376 : vector<8x1xf32> to vector<8x128xf32>
    %385 = arith.subf %370, %384 : vector<8x128xf32>
    %cst_165 = arith.constant 9.99999974E-6 : f32
    %386 = vector.broadcast %cst_165 : f32 to vector<8x1xf32>
    %387 = arith.addf %383, %386 : vector<8x1xf32>
    %388 = math.rsqrt %387 : vector<8x1xf32>
    %389 = vector.broadcast %388 : vector<8x1xf32> to vector<8x128xf32>
    %390 = arith.mulf %385, %389 : vector<8x128xf32>
    %391 = vector.broadcast %371 : vector<1x128xf32> to vector<8x128xf32>
    %392 = arith.mulf %390, %391 : vector<8x128xf32>
    %393 = vector.broadcast %372 : vector<1x128xf32> to vector<8x128xf32>
    %394 = arith.addf %392, %393 : vector<8x128xf32>
    %c0_166 = arith.constant 0 : index
    %c0_167 = arith.constant 0 : index
    %395 = vector.load %arg18[%c0_166, %c0_167] : memref<128x128xf32, #tpu.memory_space<vmem>>, vector<128x128xf32>
    %cst_168 = arith.constant dense<0.000000e+00> : vector<8x128xf32>
    %396 = tpu.matmul %394, %395, %cst_168 {dimension_numbers = #tpu.dot_dimension_numbers<[1], [0], [0], [1], [0, 0, 1, 1], [], []>} : vector<8x128xf32>, vector<128x128xf32>, vector<8x128xf32> -> vector<8x128xf32>
    %c0_169 = arith.constant 0 : index
    %c0_170 = arith.constant 0 : index
    %397 = vector.load %arg19[%c0_169, %c0_170] : memref<1x128xf32, #tpu.memory_space<vmem>>, vector<1x128xf32>
    %398 = vector.broadcast %397 : vector<1x128xf32> to vector<8x128xf32>
    %399 = arith.addf %396, %398 : vector<8x128xf32>
    %c0_171 = arith.constant 0 : index
    %c0_172 = arith.constant 0 : index
    %400 = vector.load %arg20[%c0_171, %c0_172] : memref<8x128xf32, #tpu.memory_space<vmem>>, vector<8x128xf32>
    tpu.vector_store %arg20[%c0_171, %c0_172], %399 {strides = array<i32>} : memref<8x128xf32, #tpu.memory_space<vmem>>, vector<8x128xf32>,
    return
  }
  func.func @transform_0(%arg0: i32) -> (i32, i32, i32) {
    %c0_i32 = arith.constant 0 : i32
    %c0_i32_0 = arith.constant 0 : i32
    %c0_i32_1 = arith.constant 0 : i32
    return %arg0, %c0_i32, %c0_i32_0 : i32, i32, i32
  }
  func.func @transform_1(%arg0: i32) -> (i32, i32, i32) {
    %c0_i32 = arith.constant 0 : i32
    %c0_i32_0 = arith.constant 0 : i32
    %c0_i32_1 = arith.constant 0 : i32
    %c0_i32_2 = arith.constant 0 : i32
    return %c0_i32, %c0_i32_0, %c0_i32_1 : i32, i32, i32
  }
  func.func @transform_2(%arg0: i32) -> (i32, i32) {
    %c0_i32 = arith.constant 0 : i32
    %c0_i32_0 = arith.constant 0 : i32
    %c0_i32_1 = arith.constant 0 : i32
    return %c0_i32, %c0_i32_0 : i32, i32
  }
  func.func @transform_3(%arg0: i32) -> (i32, i32) {
    %c0_i32 = arith.constant 0 : i32
    %c0_i32_0 = arith.constant 0 : i32
    %c0_i32_1 = arith.constant 0 : i32
    return %c0_i32, %c0_i32_0 : i32, i32
  }
  func.func @transform_4(%arg0: i32) -> (i32, i32) {
    %c0_i32 = arith.constant 0 : i32
    %c0_i32_0 = arith.constant 0 : i32
    %c0_i32_1 = arith.constant 0 : i32
    return %c0_i32, %c0_i32_0 : i32, i32
  }
  func.func @transform_5(%arg0: i32) -> (i32, i32, i32) {
    %c0_i32 = arith.constant 0 : i32
    %c0_i32_0 = arith.constant 0 : i32
    %c0_i32_1 = arith.constant 0 : i32
    %c0_i32_2 = arith.constant 0 : i32
    return %c0_i32, %c0_i32_0, %c0_i32_1 : i32, i32, i32
  }
  func.func @transform_6(%arg0: i32) -> (i32, i32) {
    %c0_i32 = arith.constant 0 : i32
    %c0_i32_0 = arith.constant 0 : i32
    %c0_i32_1 = arith.constant 0 : i32
    return %c0_i32, %c0_i32_0 : i32, i32
  }
  func.func @transform_7(%arg0: i32) -> (i32, i32) {
    %c0_i32 = arith.constant 0 : i32
    %c0_i32_0 = arith.constant 0 : i32
    %c0_i32_1 = arith.constant 0 : i32
    return %c0_i32, %c0_i32_0 : i32, i32
  }
  func.func @transform_8(%arg0: i32) -> (i32, i32) {
    %c0_i32 = arith.constant 0 : i32
    %c0_i32_0 = arith.constant 0 : i32
    %c0_i32_1 = arith.constant 0 : i32
    return %c0_i32, %c0_i32_0 : i32, i32
  }
  func.func @transform_9(%arg0: i32) -> (i32, i32, i32) {
    %c0_i32 = arith.constant 0 : i32
    %c0_i32_0 = arith.constant 0 : i32
    %c0_i32_1 = arith.constant 0 : i32
    %c0_i32_2 = arith.constant 0 : i32
    return %c0_i32, %c0_i32_0, %c0_i32_1 : i32, i32, i32
  }
  func.func @transform_10(%arg0: i32) -> (i32, i32) {
    %c0_i32 = arith.constant 0 : i32
    %c0_i32_0 = arith.constant 0 : i32
    %c0_i32_1 = arith.constant 0 : i32
    return %c0_i32, %c0_i32_0 : i32, i32
  }
  func.func @transform_11(%arg0: i32) -> (i32, i32) {
    %c0_i32 = arith.constant 0 : i32
    %c0_i32_0 = arith.constant 0 : i32
    %c0_i32_1 = arith.constant 0 : i32
    return %c0_i32, %c0_i32_0 : i32, i32
  }
  func.func @transform_12(%arg0: i32) -> (i32, i32) {
    %c0_i32 = arith.constant 0 : i32
    %c0_i32_0 = arith.constant 0 : i32
    %c0_i32_1 = arith.constant 0 : i32
    return %c0_i32, %c0_i32_0 : i32, i32
  }
  func.func @transform_13(%arg0: i32) -> (i32, i32) {
    %c0_i32 = arith.constant 0 : i32
    %c0_i32_0 = arith.constant 0 : i32
    %c0_i32_1 = arith.constant 0 : i32
    return %c0_i32, %c0_i32_0 : i32, i32
  }
  func.func @transform_14(%arg0: i32) -> (i32, i32) {
    %c0_i32 = arith.constant 0 : i32
    %c0_i32_0 = arith.constant 0 : i32
    %c0_i32_1 = arith.constant 0 : i32
    return %c0_i32, %c0_i32_0 : i32, i32
  }
  func.func @transform_15(%arg0: i32) -> (i32, i32) {
    %c0_i32 = arith.constant 0 : i32
    %c0_i32_0 = arith.constant 0 : i32
    %c0_i32_1 = arith.constant 0 : i32
    return %c0_i32, %c0_i32_0 : i32, i32
  }
  func.func @transform_16(%arg0: i32) -> (i32, i32) {
    %c0_i32 = arith.constant 0 : i32
    %c0_i32_0 = arith.constant 0 : i32
    %c0_i32_1 = arith.constant 0 : i32
    return %c0_i32, %c0_i32_0 : i32, i32
  }
  func.func @transform_17(%arg0: i32) -> (i32, i32) {
    %c0_i32 = arith.constant 0 : i32
    %c0_i32_0 = arith.constant 0 : i32
    %c0_i32_1 = arith.constant 0 : i32
    return %c0_i32, %c0_i32_0 : i32, i32
  }
  func.func @transform_18(%arg0: i32) -> (i32, i32) {
    %c0_i32 = arith.constant 0 : i32
    %c0_i32_0 = arith.constant 0 : i32
    %c0_i32_1 = arith.constant 0 : i32
    return %c0_i32, %c0_i32_0 : i32, i32
  }
  func.func @transform_19(%arg0: i32) -> (i32, i32) {
    %c0_i32 = arith.constant 0 : i32
    %c0_i32_0 = arith.constant 0 : i32
    return %arg0, %c0_i32 : i32, i32
  }
}

</mosaic_0001>

<llo_original>
// kernel: cnn_forward.1
$region0: #{cnn_forward.1}
  #allocation0 [shape = 'u32[]', space=smem, size = 0x4, offset = 0x4, fixed_abs, tag = 'smem constant byte address 0x4 - core index']
  #allocation1 [shape = 'u32[144,128]{1,0:T(1,128)}', space=vmem, size = 0x12000, scoped, tag = 'internal scratch']
  %s0 = inlined_call_operand.vmem [shape: f32[16,28,28], index: 0, kind: input, shape index: {}]
  %s1 = inlined_call_operand.vmem [shape: f32[5,28,144], index: 1, kind: input, shape index: {}]
  %s2 = inlined_call_operand.vmem [shape: f32[1,144], index: 2, kind: input, shape index: {}]
  %s3 = inlined_call_operand.vmem [shape: f32[1,144], index: 3, kind: input, shape index: {}]
  %s4 = inlined_call_operand.hbm [shape: f32[1,144], index: 4, kind: input, shape index: {}]
  %s5 = inlined_call_operand.vmem [shape: f32[5,72,96], index: 5, kind: input, shape index: {}]
  %s6 = inlined_call_operand.vmem [shape: f32[1,96], index: 6, kind: input, shape index: {}]
  %s7 = inlined_call_operand.hbm [shape: f32[1,96], index: 7, kind: input, shape index: {}]
  %s8 = inlined_call_operand.hbm [shape: f32[1,96], index: 8, kind: input, shape index: {}]
  %s9 = inlined_call_operand.vmem [shape: f32[4,48,128], index: 9, kind: input, shape index: {}]
  %s10 = inlined_call_operand.hbm [shape: f32[1,128], index: 10, kind: input, shape index: {}]
  %s11 = inlined_call_operand.hbm [shape: f32[1,128], index: 11, kind: input, shape index: {}]
  %s12 = inlined_call_operand.hbm [shape: f32[1,128], index: 12, kind: input, shape index: {}]
  %s13 = inlined_call_operand.vmem [shape: f32[128,128], index: 13, kind: input, shape index: {}]
  %s14 = inlined_call_operand.hbm [shape: f32[1,128], index: 14, kind: input, shape index: {}]
  %s15 = inlined_call_operand.hbm [shape: f32[1,128], index: 15, kind: input, shape index: {}]
  %s16 = inlined_call_operand.hbm [shape: f32[1,128], index: 16, kind: input, shape index: {}]
  %s17 = inlined_call_operand.hbm [shape: f32[128,128], index: 17, kind: input, shape index: {}]
  %s18 = inlined_call_operand.hbm [shape: f32[1,128], index: 18, kind: input, shape index: {}]
  %s19 = inlined_call_operand.hbm [shape: f32[16,128], index: 19, kind: output, shape index: {}]
  %s20 = sld [smem:[#allocation0]]
  $region153: #{cnn_forward.1} parent=0
    _
  %s22 = ssub.s32 1, %s20
  %s23 = scalar_select 0, %s22, %s20
  $region1: #{cnn_forward.1} parent=0
    #allocation2 [shape = 'u8[1024]{0}', space=vmem, size = 0x400, scoped, tag = 'input window, operand 4, single buffered']
    #allocation3 [shape = 's32[2]{0}', space=sflag, size = 0x8, scoped, tag = 'scoped memory for cnn_forward.1']
    #allocation4 [shape = 's32[2]{0}', space=sflag, size = 0x8, scoped, tag = 'scoped memory for cnn_forward.1']
    #allocation5 [shape = 'u8[512]{0}', space=vmem, size = 0x400, scoped, tag = 'input window, operand 7, single buffered']
    #allocation6 [shape = 's32[1]{0}', space=sflag, size = 0x4, scoped, tag = 'scoped memory for cnn_forward.1']
    #allocation7 [shape = 'u8[512]{0}', space=vmem, size = 0x400, scoped, tag = 'input window, operand 8, single buffered']
    #allocation8 [shape = 'u8[512]{0}', space=vmem, size = 0x400, scoped, tag = 'input window, operand 10, single buffered']
    #allocation9 [shape = 's32[1]{0}', space=sflag, size = 0x4, scoped, tag = 'scoped memory for cnn_forward.1']
    #allocation10 [shape = 'u8[512]{0}', space=vmem, size = 0x400, scoped, tag = 'input window, operand 11, single buffered']
    #allocation11 [shape = 'u8[512]{0}', space=vmem, size = 0x400, scoped, tag = 'input window, operand 12, single buffered']
    #allocation12 [shape = 's32[1]{0}', space=sflag, size = 0x4, scoped, tag = 'scoped memory for cnn_forward.1']
    #allocation13 [shape = 'u8[512]{0}', space=vmem, size = 0x400, scoped, tag = 'input window, operand 14, single buffered']
    #allocation14 [shape = 'u8[512]{0}', space=vmem, size = 0x400, scoped, tag = 'input window, operand 15, single buffered']
    #allocation15 [shape = 's32[1]{0}', space=sflag, size = 0x4, scoped, tag = 'scoped memory for cnn_forward.1']
    #allocation16 [shape = 'u8[512]{0}', space=vmem, size = 0x400, scoped, tag = 'input window, operand 16, single buffered']
    #allocation17 [shape = 'u8[65536]{0}', space=vmem, size = 0x10000, scoped, tag = 'input window, operand 17, single buffered']
    #allocation18 [shape = 's32[1]{0}', space=sflag, size = 0x4, scoped, tag = 'scoped memory for cnn_forward.1']
    #allocation19 [shape = 'u8[512]{0}', space=vmem, size = 0x400, scoped, tag = 'input window, operand 18, single buffered']
    #allocation20 [shape = 'u8[8192]{0}', space=vmem, size = 0x2000, scoped, tag = 'output window, operand 0']
    %24 = vsyncpa [#allocation3], 0
    %25 = vsyncpa [#allocation6], 0
    %26 = vsyncpa [#allocation9], 0
    %27 = vsyncpa [#allocation12], 0
    %28 = vsyncpa [#allocation15], 0
    %29 = vsyncpa [#allocation18], 0
    %30 = vsyncpa [#allocation4], 0
    %s31 = scalar_lea.sflag [#allocation4], 1
    %32 = vsyncpa %s31, 0
    loop: start=0, step=1, limit=4
    $region2: #{cnn_forward.1} parent=1 // loop_pre_header
      _
    $region3: #{cnn_forward.1} parent=1 // loop_header
      %s34 = sphi 0, %s38
      %p35 = scmp.ge.s32.totalorder %s34, 4
      %s44 = sphi 0, %s46
      %s47 = sphi 0, %s44
      %s48 = sphi 0, %s47
      %s64 = sphi 0, %s48
      %s68 = sphi 0, %s68
      %s70 = sphi 0, %s68
      %s71 = sphi 0, %s70
      %s85 = sphi 0, %s71
      %s89 = sphi 0, %s89
      %s91 = sphi 0, %s89
      %s92 = sphi 0, %s91
      %s106 = sphi 0, %s92
      %s110 = sphi 0, %s110
      %s112 = sphi 0, %s110
      %s113 = sphi 0, %s112
      %s127 = sphi 0, %s113
      %s131 = sphi 0, %s131
      %s133 = sphi 0, %s131
      %s134 = sphi 0, %s133
      %s148 = sphi 0, %s134
      %s152 = sphi 0, %s152
      %s154 = sphi 0, %s152
      %s155 = sphi 0, %s154
      %s169 = sphi 0, %s155
      %s173 = sphi 0, %s173
      %s175 = sphi 0, %s173
      %s176 = sphi 0, %s175
      %s190 = sphi 0, %s176
      %s194 = sphi 0, %s194
      %s196 = sphi 0, %s194
      %s197 = sphi 0, %s196
      %s211 = sphi 0, %s197
      %s215 = sphi 0, %s215
      %s217 = sphi 0, %s215
      %s218 = sphi 0, %s217
      %s232 = sphi 0, %s218
      %s236 = sphi 0, %s236
      %s238 = sphi 0, %s236
      %s239 = sphi 0, %s238
      %s253 = sphi 0, %s239
      %s257 = sphi 0, %s257
      %s259 = sphi 0, %s257
      %s260 = sphi 0, %s259
      %s274 = sphi 0, %s260
      %s278 = sphi 0, %s278
      %s280 = sphi 0, %s278
      %s281 = sphi 0, %s280
      %s295 = sphi 0, %s281
      %s299 = sphi 0, %s299
      %s301 = sphi 0, %s299
      %s302 = sphi 0, %s301
      %s316 = sphi 0, %s302
      %s320 = sphi 0, %s320
      %s322 = sphi 0, %s320
      %s323 = sphi 0, %s322
      %s337 = sphi 0, %s323
      %s341 = sphi 0, %s341
      %s343 = sphi 0, %s341
      %s344 = sphi 0, %s343
      %s358 = sphi 0, %s344
      %s362 = sphi 0, %s362
      %s364 = sphi 0, %s362
      %s365 = sphi 0, %s364
      %s379 = sphi 0, %s365
      %s383 = sphi 0, %s383
      %s385 = sphi 0, %s383
      %s386 = sphi 0, %s385
      %s400 = sphi 0, %s386
      %s404 = sphi 0, %s404
      %s406 = sphi 0, %s404
      %s407 = sphi 0, %s406
      %s421 = sphi 0, %s407
      %s425 = sphi 0, %s425
      %s427 = sphi 0, %s425
      %s428 = sphi 0, %s427
      %s442 = sphi 0, %s428
      %s448 = sphi 0, %s450
      %s451 = sphi 0, %s448
      %s452 = sphi 0, %s451
      %s468 = sphi 0, %s452
    $region4: #{cnn_forward.1} parent=1 // loop_header_branch
      %37 = sbr.rel (%p35) target = $region8
    $region5: #{cnn_forward.1} parent=1 // loop_body
      %s39 = ssub.s32 %s34, 1
      %s40 = ssub.s32 %s34, 2
      %s41 = sadd.s32 %s34, 1
      %s42 = ssub.s32 %s34, %s41
      %p43 = scmp.eq.s32.totalorder %s42, 0
      %s45 = sadd.s32 %s44, 1
      %s46 = scalar_select %p43, %s44, %s45
      %p49 = pneg %p43
      %p50 = scmp.eq.s32.totalorder %s34, 1
      %p51 = por %p49, %p50
      %p52 = scmp.ne.s32.totalorder %s44, %s47
      %p53 = scmp.eq.s32.totalorder %s34, 0
      %p54 = por %p52, %p53
      %p55 = scmp.ne.s32.totalorder %s44, %s47
      %p56 = scmp.eq.s32.totalorder %s39, 1
      %p57 = por %p55, %p56
      %p58 = scmp.ne.s32.totalorder %s47, %s48
      %p59 = scmp.eq.s32.totalorder %s39, 0
      %p60 = por %p58, %p59
      %p61 = scmp.ne.s32.totalorder %s47, %s48
      %p62 = scmp.eq.s32.totalorder %s40, 1
      %p63 = por %p61, %p62
      %p65 = scmp.ne.s32.totalorder %s48, %s64
      %p66 = scmp.eq.s32.totalorder %s40, 0
      %p67 = por %p65, %p66
      %s69 = sadd.s32 %s68, 1
      %p72 = scmp.eq.s32.totalorder %s34, 1
      %p73 = scmp.ne.s32.totalorder %s68, %s70
      %p74 = scmp.eq.s32.totalorder %s34, 0
      %p75 = por %p73, %p74
      %p76 = scmp.ne.s32.totalorder %s68, %s70
      %p77 = scmp.eq.s32.totalorder %s39, 1
      %p78 = por %p76, %p77
      %p79 = scmp.ne.s32.totalorder %s70, %s71
      %p80 = scmp.eq.s32.totalorder %s39, 0
      %p81 = por %p79, %p80
      %p82 = scmp.ne.s32.totalorder %s70, %s71
      %p83 = scmp.eq.s32.totalorder %s40, 1
      %p84 = por %p82, %p83
      %p86 = scmp.ne.s32.totalorder %s71, %s85
      %p87 = scmp.eq.s32.totalorder %s40, 0
      %p88 = por %p86, %p87
      %s90 = sadd.s32 %s89, 1
      %p93 = scmp.eq.s32.totalorder %s34, 1
      %p94 = scmp.ne.s32.totalorder %s89, %s91
      %p95 = scmp.eq.s32.totalorder %s34, 0
      %p96 = por %p94, %p95
      %p97 = scmp.ne.s32.totalorder %s89, %s91
      %p98 = scmp.eq.s32.totalorder %s39, 1
      %p99 = por %p97, %p98
      %p100 = scmp.ne.s32.totalorder %s91, %s92
      %p101 = scmp.eq.s32.totalorder %s39, 0
      %p102 = por %p100, %p101
      %p103 = scmp.ne.s32.totalorder %s91, %s92
      %p104 = scmp.eq.s32.totalorder %s40, 1
      %p105 = por %p103, %p104
      %p107 = scmp.ne.s32.totalorder %s92, %s106
      %p108 = scmp.eq.s32.totalorder %s40, 0
      %p109 = por %p107, %p108
      %s111 = sadd.s32 %s110, 1
      %p114 = scmp.eq.s32.totalorder %s34, 1
      %p115 = scmp.ne.s32.totalorder %s110, %s112
      %p116 = scmp.eq.s32.totalorder %s34, 0
      %p117 = por %p115, %p116
      %p118 = scmp.ne.s32.totalorder %s110, %s112
      %p119 = scmp.eq.s32.totalorder %s39, 1
      %p120 = por %p118, %p119
      %p121 = scmp.ne.s32.totalorder %s112, %s113
      %p122 = scmp.eq.s32.totalorder %s39, 0
      %p123 = por %p121, %p122
      %p124 = scmp.ne.s32.totalorder %s112, %s113
      %p125 = scmp.eq.s32.totalorder %s40, 1
      %p126 = por %p124, %p125
      %p128 = scmp.ne.s32.totalorder %s113, %s127
      %p129 = scmp.eq.s32.totalorder %s40, 0
      %p130 = por %p128, %p129
      %s132 = sadd.s32 %s131, 1
      %p135 = scmp.eq.s32.totalorder %s34, 1
      %p136 = scmp.ne.s32.totalorder %s131, %s133
      %p137 = scmp.eq.s32.totalorder %s34, 0
      %p138 = por %p136, %p137
      %p139 = scmp.ne.s32.totalorder %s131, %s133
      %p140 = scmp.eq.s32.totalorder %s39, 1
      %p141 = por %p139, %p140
      %p142 = scmp.ne.s32.totalorder %s133, %s134
      %p143 = scmp.eq.s32.totalorder %s39, 0
      %p144 = por %p142, %p143
      %p145 = scmp.ne.s32.totalorder %s133, %s134
      %p146 = scmp.eq.s32.totalorder %s40, 1
      %p147 = por %p145, %p146
      %p149 = scmp.ne.s32.totalorder %s134, %s148
      %p150 = scmp.eq.s32.totalorder %s40, 0
      %p151 = por %p149, %p150
      %s153 = sadd.s32 %s152, 1
      %p156 = scmp.eq.s32.totalorder %s34, 1
      %p157 = scmp.ne.s32.totalorder %s152, %s154
      %p158 = scmp.eq.s32.totalorder %s34, 0
      %p159 = por %p157, %p158
      %p160 = scmp.ne.s32.totalorder %s152, %s154
      %p161 = scmp.eq.s32.totalorder %s39, 1
      %p162 = por %p160, %p161
      %p163 = scmp.ne.s32.totalorder %s154, %s155
      %p164 = scmp.eq.s32.totalorder %s39, 0
      %p165 = por %p163, %p164
      %p166 = scmp.ne.s32.totalorder %s154, %s155
      %p167 = scmp.eq.s32.totalorder %s40, 1
      %p168 = por %p166, %p167
      %p170 = scmp.ne.s32.totalorder %s155, %s169
      %p171 = scmp.eq.s32.totalorder %s40, 0
      %p172 = por %p170, %p171
      %s174 = sadd.s32 %s173, 1
      %p177 = scmp.eq.s32.totalorder %s34, 1
      %p178 = scmp.ne.s32.totalorder %s173, %s175
      %p179 = scmp.eq.s32.totalorder %s34, 0
      %p180 = por %p178, %p179
      %p181 = scmp.ne.s32.totalorder %s173, %s175
      %p182 = scmp.eq.s32.totalorder %s39, 1
      %p183 = por %p181, %p182
      %p184 = scmp.ne.s32.totalorder %s175, %s176
      %p185 = scmp.eq.s32.totalorder %s39, 0
      %p186 = por %p184, %p185
      %p187 = scmp.ne.s32.totalorder %s175, %s176
      %p188 = scmp.eq.s32.totalorder %s40, 1
      %p189 = por %p187, %p188
      %p191 = scmp.ne.s32.totalorder %s176, %s190
      %p192 = scmp.eq.s32.totalorder %s40, 0
      %p193 = por %p191, %p192
      %s195 = sadd.s32 %s194, 1
      %p198 = scmp.eq.s32.totalorder %s34, 1
      %p199 = scmp.ne.s32.totalorder %s194, %s196
      %p200 = scmp.eq.s32.totalorder %s34, 0
      %p201 = por %p199, %p200
      %p202 = scmp.ne.s32.totalorder %s194, %s196
      %p203 = scmp.eq.s32.totalorder %s39, 1
      %p204 = por %p202, %p203
      %p205 = scmp.ne.s32.totalorder %s196, %s197
      %p206 = scmp.eq.s32.totalorder %s39, 0
      %p207 = por %p205, %p206
      %p208 = scmp.ne.s32.totalorder %s196, %s197
      %p209 = scmp.eq.s32.totalorder %s40, 1
      %p210 = por %p208, %p209
      %p212 = scmp.ne.s32.totalorder %s197, %s211
      %p213 = scmp.eq.s32.totalorder %s40, 0
      %p214 = por %p212, %p213
      %s216 = sadd.s32 %s215, 1
      %p219 = scmp.eq.s32.totalorder %s34, 1
      %p220 = scmp.ne.s32.totalorder %s215, %s217
      %p221 = scmp.eq.s32.totalorder %s34, 0
      %p222 = por %p220, %p221
      %p223 = scmp.ne.s32.totalorder %s215, %s217
      %p224 = scmp.eq.s32.totalorder %s39, 1
      %p225 = por %p223, %p224
      %p226 = scmp.ne.s32.totalorder %s217, %s218
      %p227 = scmp.eq.s32.totalorder %s39, 0
      %p228 = por %p226, %p227
      %p229 = scmp.ne.s32.totalorder %s217, %s218
      %p230 = scmp.eq.s32.totalorder %s40, 1
      %p231 = por %p229, %p230
      %p233 = scmp.ne.s32.totalorder %s218, %s232
      %p234 = scmp.eq.s32.totalorder %s40, 0
      %p235 = por %p233, %p234
      %s237 = sadd.s32 %s236, 1
      %p240 = scmp.eq.s32.totalorder %s34, 1
      %p241 = scmp.ne.s32.totalorder %s236, %s238
      %p242 = scmp.eq.s32.totalorder %s34, 0
      %p243 = por %p241, %p242
      %p244 = scmp.ne.s32.totalorder %s236, %s238
      %p245 = scmp.eq.s32.totalorder %s39, 1
      %p246 = por %p244, %p245
      %p247 = scmp.ne.s32.totalorder %s238, %s239
      %p248 = scmp.eq.s32.totalorder %s39, 0
      %p249 = por %p247, %p248
      %p250 = scmp.ne.s32.totalorder %s238, %s239
      %p251 = scmp.eq.s32.totalorder %s40, 1
      %p252 = por %p250, %p251
      %p254 = scmp.ne.s32.totalorder %s239, %s253
      %p255 = scmp.eq.s32.totalorder %s40, 0
      %p256 = por %p254, %p255
      %s258 = sadd.s32 %s257, 1
      %p261 = scmp.eq.s32.totalorder %s34, 1
      %p262 = scmp.ne.s32.totalorder %s257, %s259
      %p263 = scmp.eq.s32.totalorder %s34, 0
      %p264 = por %p262, %p263
      %p265 = scmp.ne.s32.totalorder %s257, %s259
      %p266 = scmp.eq.s32.totalorder %s39, 1
      %p267 = por %p265, %p266
      %p268 = scmp.ne.s32.totalorder %s259, %s260
      %p269 = scmp.eq.s32.totalorder %s39, 0
      %p270 = por %p268, %p269
      %p271 = scmp.ne.s32.totalorder %s259, %s260
      %p272 = scmp.eq.s32.totalorder %s40, 1
      %p273 = por %p271, %p272
      %p275 = scmp.ne.s32.totalorder %s260, %s274
      %p276 = scmp.eq.s32.totalorder %s40, 0
      %p277 = por %p275, %p276
      %s279 = sadd.s32 %s278, 1
      %p282 = scmp.eq.s32.totalorder %s34, 1
      %p283 = scmp.ne.s32.totalorder %s278, %s280
      %p284 = scmp.eq.s32.totalorder %s34, 0
      %p285 = por %p283, %p284
      %p286 = scmp.ne.s32.totalorder %s278, %s280
      %p287 = scmp.eq.s32.totalorder %s39, 1
      %p288 = por %p286, %p287
      %p289 = scmp.ne.s32.totalorder %s280, %s281
      %p290 = scmp.eq.s32.totalorder %s39, 0
      %p291 = por %p289, %p290
      %p292 = scmp.ne.s32.totalorder %s280, %s281
      %p293 = scmp.eq.s32.totalorder %s40, 1
      %p294 = por %p292, %p293
      %p296 = scmp.ne.s32.totalorder %s281, %s295
      %p297 = scmp.eq.s32.totalorder %s40, 0
      %p298 = por %p296, %p297
      %s300 = sadd.s32 %s299, 1
      %p303 = scmp.eq.s32.totalorder %s34, 1
      %p304 = scmp.ne.s32.totalorder %s299, %s301
      %p305 = scmp.eq.s32.totalorder %s34, 0
      %p306 = por %p304, %p305
      %p307 = scmp.ne.s32.totalorder %s299, %s301
      %p308 = scmp.eq.s32.totalorder %s39, 1
      %p309 = por %p307, %p308
      %p310 = scmp.ne.s32.totalorder %s301, %s302
      %p311 = scmp.eq.s32.totalorder %s39, 0
      %p312 = por %p310, %p311
      %p313 = scmp.ne.s32.totalorder %s301, %s302
      %p314 = scmp.eq.s32.totalorder %s40, 1
      %p315 = por %p313, %p314
      %p317 = scmp.ne.s32.totalorder %s302, %s316
      %p318 = scmp.eq.s32.totalorder %s40, 0
      %p319 = por %p317, %p318
      %s321 = sadd.s32 %s320, 1
      %p324 = scmp.eq.s32.totalorder %s34, 1
      %p325 = scmp.ne.s32.totalorder %s320, %s322
      %p326 = scmp.eq.s32.totalorder %s34, 0
      %p327 = por %p325, %p326
      %p328 = scmp.ne.s32.totalorder %s320, %s322
      %p329 = scmp.eq.s32.totalorder %s39, 1
      %p330 = por %p328, %p329
      %p331 = scmp.ne.s32.totalorder %s322, %s323
      %p332 = scmp.eq.s32.totalorder %s39, 0
      %p333 = por %p331, %p332
      %p334 = scmp.ne.s32.totalorder %s322, %s323
      %p335 = scmp.eq.s32.totalorder %s40, 1
      %p336 = por %p334, %p335
      %p338 = scmp.ne.s32.totalorder %s323, %s337
      %p339 = scmp.eq.s32.totalorder %s40, 0
      %p340 = por %p338, %p339
      %s342 = sadd.s32 %s341, 1
      %p345 = scmp.eq.s32.totalorder %s34, 1
      %p346 = scmp.ne.s32.totalorder %s341, %s343
      %p347 = scmp.eq.s32.totalorder %s34, 0
      %p348 = por %p346, %p347
      %p349 = scmp.ne.s32.totalorder %s341, %s343
      %p350 = scmp.eq.s32.totalorder %s39, 1
      %p351 = por %p349, %p350
      %p352 = scmp.ne.s32.totalorder %s343, %s344
      %p353 = scmp.eq.s32.totalorder %s39, 0
      %p354 = por %p352, %p353
      %p355 = scmp.ne.s32.totalorder %s343, %s344
      %p356 = scmp.eq.s32.totalorder %s40, 1
      %p357 = por %p355, %p356
      %p359 = scmp.ne.s32.totalorder %s344, %s358
      %p360 = scmp.eq.s32.totalorder %s40, 0
      %p361 = por %p359, %p360
      %s363 = sadd.s32 %s362, 1
      %p366 = scmp.eq.s32.totalorder %s34, 1
      %p367 = scmp.ne.s32.totalorder %s362, %s364
      %p368 = scmp.eq.s32.totalorder %s34, 0
      %p369 = por %p367, %p368
      %p370 = scmp.ne.s32.totalorder %s362, %s364
      %p371 = scmp.eq.s32.totalorder %s39, 1
      %p372 = por %p370, %p371
      %p373 = scmp.ne.s32.totalorder %s364, %s365
      %p374 = scmp.eq.s32.totalorder %s39, 0
      %p375 = por %p373, %p374
      %p376 = scmp.ne.s32.totalorder %s364, %s365
      %p377 = scmp.eq.s32.totalorder %s40, 1
      %p378 = por %p376, %p377
      %p380 = scmp.ne.s32.totalorder %s365, %s379
      %p381 = scmp.eq.s32.totalorder %s40, 0
      %p382 = por %p380, %p381
      %s384 = sadd.s32 %s383, 1
      %p387 = scmp.eq.s32.totalorder %s34, 1
      %p388 = scmp.ne.s32.totalorder %s383, %s385
      %p389 = scmp.eq.s32.totalorder %s34, 0
      %p390 = por %p388, %p389
      %p391 = scmp.ne.s32.totalorder %s383, %s385
      %p392 = scmp.eq.s32.totalorder %s39, 1
      %p393 = por %p391, %p392
      %p394 = scmp.ne.s32.totalorder %s385, %s386
      %p395 = scmp.eq.s32.totalorder %s39, 0
      %p396 = por %p394, %p395
      %p397 = scmp.ne.s32.totalorder %s385, %s386
      %p398 = scmp.eq.s32.totalorder %s40, 1
      %p399 = por %p397, %p398
      %p401 = scmp.ne.s32.totalorder %s386, %s400
      %p402 = scmp.eq.s32.totalorder %s40, 0
      %p403 = por %p401, %p402
      %s405 = sadd.s32 %s404, 1
      %p408 = scmp.eq.s32.totalorder %s34, 1
      %p409 = scmp.ne.s32.totalorder %s404, %s406
      %p410 = scmp.eq.s32.totalorder %s34, 0
      %p411 = por %p409, %p410
      %p412 = scmp.ne.s32.totalorder %s404, %s406
      %p413 = scmp.eq.s32.totalorder %s39, 1
      %p414 = por %p412, %p413
      %p415 = scmp.ne.s32.totalorder %s406, %s407
      %p416 = scmp.eq.s32.totalorder %s39, 0
      %p417 = por %p415, %p416
      %p418 = scmp.ne.s32.totalorder %s406, %s407
      %p419 = scmp.eq.s32.totalorder %s40, 1
      %p420 = por %p418, %p419
      %p422 = scmp.ne.s32.totalorder %s407, %s421
      %p423 = scmp.eq.s32.totalorder %s40, 0
      %p424 = por %p422, %p423
      %s426 = sadd.s32 %s425, 1
      %p429 = scmp.eq.s32.totalorder %s34, 1
      %p430 = scmp.ne.s32.totalorder %s425, %s427
      %p431 = scmp.eq.s32.totalorder %s34, 0
      %p432 = por %p430, %p431
      %p433 = scmp.ne.s32.totalorder %s425, %s427
      %p434 = scmp.eq.s32.totalorder %s39, 1
      %p435 = por %p433, %p434
      %p436 = scmp.ne.s32.totalorder %s427, %s428
      %p437 = scmp.eq.s32.totalorder %s39, 0
      %p438 = por %p436, %p437
      %p439 = scmp.ne.s32.totalorder %s427, %s428
      %p440 = scmp.eq.s32.totalorder %s40, 1
      %p441 = por %p439, %p440
      %p443 = scmp.ne.s32.totalorder %s428, %s442
      %p444 = scmp.eq.s32.totalorder %s40, 0
      %p445 = por %p443, %p444
      %s446 = ssub.s32 %s34, %s41
      %p447 = scmp.eq.s32.totalorder %s446, 0
      %s449 = sadd.s32 %s448, 1
      %s450 = scalar_select %p447, %s448, %s449
      %p453 = pneg %p447
      %p454 = scmp.eq.s32.totalorder %s34, 1
      %p455 = por %p453, %p454
      %p456 = scmp.ne.s32.totalorder %s448, %s451
      %p457 = scmp.eq.s32.totalorder %s34, 0
      %p458 = por %p456, %p457
      %p459 = scmp.ne.s32.totalorder %s448, %s451
      %p460 = scmp.eq.s32.totalorder %s39, 1
      %p461 = por %p459, %p460
      %p462 = scmp.ne.s32.totalorder %s451, %s452
      %p463 = scmp.eq.s32.totalorder %s39, 0
      %p464 = por %p462, %p463
      %p465 = scmp.ne.s32.totalorder %s451, %s452
      %p466 = scmp.eq.s32.totalorder %s40, 1
      %p467 = por %p465, %p466
      %p469 = scmp.ne.s32.totalorder %s452, %s468
      %p470 = scmp.eq.s32.totalorder %s40, 0
      %p471 = por %p469, %p470
      %p472 = scmp.le.s32.totalorder 1, %s34
      %p473 = scmp.lt.s32.totalorder %s34, 3
      %p474 = pnand %p472, %p473
      %p475 = pneg %p474
      // Predicated region
      $region9: #{cnn_forward.1} parent=5 // pred_check
        _
      $region10: #{cnn_forward.1} parent=5 // pred_check_branch
        %477 = sbr.rel (%p474) target = $region12
      $region11: #{cnn_forward.1} parent=5 // pred_region
        %s478 = ssub.s32 %s34, 1
        // Predicated region
        $region13: #{cnn_forward.1} parent=11 // pred_check
          %p479 = pneg %p81
        $region14: #{cnn_forward.1} parent=11 // pred_check_branch
          %481 = sbr.rel (%p479) target = $region16
        $region15: #{cnn_forward.1} parent=11 // pred_region
          _
        $region16: #{cnn_forward.1} parent=11 // pred_fallthru
          _
        // Predicated region
        $region17: #{cnn_forward.1} parent=11 // pred_check
          %p482 = pneg %p102
        $region18: #{cnn_forward.1} parent=11 // pred_check_branch
          %484 = sbr.rel (%p482) target = $region20
        $region19: #{cnn_forward.1} parent=11 // pred_region
          _
        $region20: #{cnn_forward.1} parent=11 // pred_fallthru
          _
        // Predicated region
        $region21: #{cnn_forward.1} parent=11 // pred_check
          %p485 = pneg %p123
        $region22: #{cnn_forward.1} parent=11 // pred_check_branch
          %487 = sbr.rel (%p485) target = $region24
        $region23: #{cnn_forward.1} parent=11 // pred_region
          _
        $region24: #{cnn_forward.1} parent=11 // pred_fallthru
          _
        // Predicated region
        $region25: #{cnn_forward.1} parent=11 // pred_check
          %p488 = pneg %p144
        $region26: #{cnn_forward.1} parent=11 // pred_check_branch
          %490 = sbr.rel (%p488) target = $region28
        $region27: #{cnn_forward.1} parent=11 // pred_region
          %s492 = ssub.s32 32, 32
          %493 = vsyncadd [#allocation3], %s492
          %s495 = sshll.u32 [#allocation2], 4
          %s496 = int_to_ptr.vmem [resolvable:$true] %s495
          %498 = dma.hbm_to_vmem [thread:$0]  %s4, 32, %s496, [#allocation3]
        $region28: #{cnn_forward.1} parent=11 // pred_fallthru
          _
        // Predicated region
        $region29: #{cnn_forward.1} parent=11 // pred_check
          %p499 = pneg %p165
        $region30: #{cnn_forward.1} parent=11 // pred_check_branch
          %501 = sbr.rel (%p499) target = $region32
        $region31: #{cnn_forward.1} parent=11 // pred_region
          _
        $region32: #{cnn_forward.1} parent=11 // pred_fallthru
          _
        // Predicated region
        $region33: #{cnn_forward.1} parent=11 // pred_check
          %p502 = pneg %p186
        $region34: #{cnn_forward.1} parent=11 // pred_check_branch
          %504 = sbr.rel (%p502) target = $region36
        $region35: #{cnn_forward.1} parent=11 // pred_region
          _
        $region36: #{cnn_forward.1} parent=11 // pred_fallthru
          _
        // Predicated region
        $region37: #{cnn_forward.1} parent=11 // pred_check
          %p505 = pneg %p207
        $region38: #{cnn_forward.1} parent=11 // pred_check_branch
          %507 = sbr.rel (%p505) target = $region40
        $region39: #{cnn_forward.1} parent=11 // pred_region
          %s509 = ssub.s32 16, 16
          %510 = vsyncadd [#allocation6], %s509
          %s512 = sshll.u32 [#allocation5], 4
          %s513 = int_to_ptr.vmem [resolvable:$true] %s512
          %515 = dma.hbm_to_vmem [thread:$0]  %s7, 16, %s513, [#allocation6]
        $region40: #{cnn_forward.1} parent=11 // pred_fallthru
          _
        // Predicated region
        $region41: #{cnn_forward.1} parent=11 // pred_check
          %p516 = pneg %p228
        $region42: #{cnn_forward.1} parent=11 // pred_check_branch
          %518 = sbr.rel (%p516) target = $region44
        $region43: #{cnn_forward.1} parent=11 // pred_region
          %s520 = ssub.s32 16, 16
          %521 = vsyncadd [#allocation6], %s520
          %s523 = sshll.u32 [#allocation7], 4
          %s524 = int_to_ptr.vmem [resolvable:$true] %s523
          %526 = dma.hbm_to_vmem [thread:$0]  %s8, 16, %s524, [#allocation6]
        $region44: #{cnn_forward.1} parent=11 // pred_fallthru
          _
        // Predicated region
        $region45: #{cnn_forward.1} parent=11 // pred_check
          %p527 = pneg %p249
        $region46: #{cnn_forward.1} parent=11 // pred_check_branch
          %529 = sbr.rel (%p527) target = $region48
        $region47: #{cnn_forward.1} parent=11 // pred_region
          _
        $region48: #{cnn_forward.1} parent=11 // pred_fallthru
          _
        // Predicated region
        $region49: #{cnn_forward.1} parent=11 // pred_check
          %p530 = pneg %p270
        $region50: #{cnn_forward.1} parent=11 // pred_check_branch
          %532 = sbr.rel (%p530) target = $region52
        $region51: #{cnn_forward.1} parent=11 // pred_region
          %s534 = ssub.s32 16, 16
          %535 = vsyncadd [#allocation9], %s534
          %s537 = sshll.u32 [#allocation8], 4
          %s538 = int_to_ptr.vmem [resolvable:$true] %s537
          %540 = dma.hbm_to_vmem [thread:$0]  %s10, 16, %s538, [#allocation9]
        $region52: #{cnn_forward.1} parent=11 // pred_fallthru
          _
        // Predicated region
        $region53: #{cnn_forward.1} parent=11 // pred_check
          %p541 = pneg %p291
        $region54: #{cnn_forward.1} parent=11 // pred_check_branch
          %543 = sbr.rel (%p541) target = $region56
        $region55: #{cnn_forward.1} parent=11 // pred_region
          %s545 = ssub.s32 16, 16
          %546 = vsyncadd [#allocation9], %s545
          %s548 = sshll.u32 [#allocation10], 4
          %s549 = int_to_ptr.vmem [resolvable:$true] %s548
          %551 = dma.hbm_to_vmem [thread:$0]  %s11, 16, %s549, [#allocation9]
        $region56: #{cnn_forward.1} parent=11 // pred_fallthru
          _
        // Predicated region
        $region57: #{cnn_forward.1} parent=11 // pred_check
          %p552 = pneg %p312
        $region58: #{cnn_forward.1} parent=11 // pred_check_branch
          %554 = sbr.rel (%p552) target = $region60
        $region59: #{cnn_forward.1} parent=11 // pred_region
          %s556 = ssub.s32 16, 16
          %557 = vsyncadd [#allocation12], %s556
          %s559 = sshll.u32 [#allocation11], 4
          %s560 = int_to_ptr.vmem [resolvable:$true] %s559
          %562 = dma.hbm_to_vmem [thread:$0]  %s12, 16, %s560, [#allocation12]
        $region60: #{cnn_forward.1} parent=11 // pred_fallthru
          _
        // Predicated region
        $region61: #{cnn_forward.1} parent=11 // pred_check
          %p563 = pneg %p333
        $region62: #{cnn_forward.1} parent=11 // pred_check_branch
          %565 = sbr.rel (%p563) target = $region64
        $region63: #{cnn_forward.1} parent=11 // pred_region
          _
        $region64: #{cnn_forward.1} parent=11 // pred_fallthru
          _
        // Predicated region
        $region65: #{cnn_forward.1} parent=11 // pred_check
          %p566 = pneg %p354
        $region66: #{cnn_forward.1} parent=11 // pred_check_branch
          %568 = sbr.rel (%p566) target = $region68
        $region67: #{cnn_forward.1} parent=11 // pred_region
          %s570 = ssub.s32 16, 16
          %571 = vsyncadd [#allocation12], %s570
          %s573 = sshll.u32 [#allocation13], 4
          %s574 = int_to_ptr.vmem [resolvable:$true] %s573
          %576 = dma.hbm_to_vmem [thread:$0]  %s14, 16, %s574, [#allocation12]
        $region68: #{cnn_forward.1} parent=11 // pred_fallthru
          _
        // Predicated region
        $region69: #{cnn_forward.1} parent=11 // pred_check
          %p577 = pneg %p375
        $region70: #{cnn_forward.1} parent=11 // pred_check_branch
          %579 = sbr.rel (%p577) target = $region72
        $region71: #{cnn_forward.1} parent=11 // pred_region
          %s581 = ssub.s32 16, 16
          %582 = vsyncadd [#allocation15], %s581
          %s584 = sshll.u32 [#allocation14], 4
          %s585 = int_to_ptr.vmem [resolvable:$true] %s584
          %587 = dma.hbm_to_vmem [thread:$0]  %s15, 16, %s585, [#allocation15]
        $region72: #{cnn_forward.1} parent=11 // pred_fallthru
          _
        // Predicated region
        $region73: #{cnn_forward.1} parent=11 // pred_check
          %p588 = pneg %p396
        $region74: #{cnn_forward.1} parent=11 // pred_check_branch
          %590 = sbr.rel (%p588) target = $region76
        $region75: #{cnn_forward.1} parent=11 // pred_region
          %s592 = ssub.s32 16, 16
          %593 = vsyncadd [#allocation15], %s592
          %s595 = sshll.u32 [#allocation16], 4
          %s596 = int_to_ptr.vmem [resolvable:$true] %s595
          %598 = dma.hbm_to_vmem [thread:$0]  %s16, 16, %s596, [#allocation15]
        $region76: #{cnn_forward.1} parent=11 // pred_fallthru
          _
        // Predicated region
        $region77: #{cnn_forward.1} parent=11 // pred_check
          %p599 = pneg %p417
        $region78: #{cnn_forward.1} parent=11 // pred_check_branch
          %601 = sbr.rel (%p599) target = $region80
        $region79: #{cnn_forward.1} parent=11 // pred_region
          %s603 = ssub.s32 2048, 2048
          %604 = vsyncadd [#allocation18], %s603
          %s605 = sshll.u32 [#allocation17], 4
          %s606 = int_to_ptr.vmem [resolvable:$true] %s605
          %611 = dma.hbm_to_vmem [thread:$0]  %s17, 2048, %s606, [#allocation18], 128, 128, 8
        $region80: #{cnn_forward.1} parent=11 // pred_fallthru
          _
        // Predicated region
        $region81: #{cnn_forward.1} parent=11 // pred_check
          %p612 = pneg %p438
        $region82: #{cnn_forward.1} parent=11 // pred_check_branch
          %614 = sbr.rel (%p612) target = $region84
        $region83: #{cnn_forward.1} parent=11 // pred_region
          %s616 = ssub.s32 16, 16
          %617 = vsyncadd [#allocation18], %s616
          %s619 = sshll.u32 [#allocation19], 4
          %s620 = int_to_ptr.vmem [resolvable:$true] %s619
          %622 = dma.hbm_to_vmem [thread:$0]  %s18, 16, %s620, [#allocation18]
        $region84: #{cnn_forward.1} parent=11 // pred_fallthru
          _
      $region12: #{cnn_forward.1} parent=5 // pred_fallthru
        _
      %p623 = scmp.lt.s32.totalorder %s34, 2
      // Predicated region
      $region85: #{cnn_forward.1} parent=5 // pred_check
        %p624 = pneg %p623
      $region86: #{cnn_forward.1} parent=5 // pred_check_branch
        %626 = sbr.rel (%p624) target = $region88
      $region87: #{cnn_forward.1} parent=5 // pred_region
        // Predicated region
        $region89: #{cnn_forward.1} parent=87 // pred_check
          %p627 = pneg %p54
        $region90: #{cnn_forward.1} parent=87 // pred_check_branch
          %629 = sbr.rel (%p627) target = $region92
        $region91: #{cnn_forward.1} parent=87 // pred_region
          %s630 = smul.u32 8, %s34
          %p631 = scmp.lt.s32.totalorder %s630, 15
          %s632 = scalar_select %p631, %s630, 15
          %s633 = smul.addr %s632, 4
          %s634 = smul.addr %s633, 8
          %s635 = scalar_lea.vmem %s0, %s634
          %s636 = smul.u32 8, %s34
        $region92: #{cnn_forward.1} parent=87 // pred_fallthru
          _
      $region88: #{cnn_forward.1} parent=5 // pred_fallthru
        _
      %p637 = scmp.le.s32.totalorder 1, %s34
      %p638 = scmp.lt.s32.totalorder %s34, 3
      %p639 = pnand %p637, %p638
      %p640 = pneg %p639
      // Predicated region
      $region93: #{cnn_forward.1} parent=5 // pred_check
        _
      $region94: #{cnn_forward.1} parent=5 // pred_check_branch
        %642 = sbr.rel (%p639) target = $region96
      $region95: #{cnn_forward.1} parent=5 // pred_region
        %s643 = ssub.s32 %s34, 1
        // Predicated region
        $region97: #{cnn_forward.1} parent=95 // pred_check
          %p644 = pneg %p144
        $region98: #{cnn_forward.1} parent=95 // pred_check_branch
          %646 = sbr.rel (%p644) target = $region100
        $region99: #{cnn_forward.1} parent=95 // pred_region
          %647 = dma.done [#allocation3], 32
        $region100: #{cnn_forward.1} parent=95 // pred_fallthru
          _
        // Predicated region
        $region101: #{cnn_forward.1} parent=95 // pred_check
          %p648 = pneg %p207
        $region102: #{cnn_forward.1} parent=95 // pred_check_branch
          %650 = sbr.rel (%p648) target = $region104
        $region103: #{cnn_forward.1} parent=95 // pred_region
          %651 = dma.done [#allocation6], 16
        $region104: #{cnn_forward.1} parent=95 // pred_fallthru
          _
        // Predicated region
        $region105: #{cnn_forward.1} parent=95 // pred_check
          %p652 = pneg %p228
        $region106: #{cnn_forward.1} parent=95 // pred_check_branch
          %654 = sbr.rel (%p652) target = $region108
        $region107: #{cnn_forward.1} parent=95 // pred_region
          %655 = dma.done [#allocation6], 16
        $region108: #{cnn_forward.1} parent=95 // pred_fallthru
          _
        // Predicated region
        $region109: #{cnn_forward.1} parent=95 // pred_check
          %p656 = pneg %p270
        $region110: #{cnn_forward.1} parent=95 // pred_check_branch
          %658 = sbr.rel (%p656) target = $region112
        $region111: #{cnn_forward.1} parent=95 // pred_region
          %659 = dma.done [#allocation9], 16
        $region112: #{cnn_forward.1} parent=95 // pred_fallthru
          _
        // Predicated region
        $region113: #{cnn_forward.1} parent=95 // pred_check
          %p660 = pneg %p291
        $region114: #{cnn_forward.1} parent=95 // pred_check_branch
          %662 = sbr.rel (%p660) target = $region116
        $region115: #{cnn_forward.1} parent=95 // pred_region
          %663 = dma.done [#allocation9], 16
        $region116: #{cnn_forward.1} parent=95 // pred_fallthru
          _
        // Predicated region
        $region117: #{cnn_forward.1} parent=95 // pred_check
          %p664 = pneg %p312
        $region118: #{cnn_forward.1} parent=95 // pred_check_branch
          %666 = sbr.rel (%p664) target = $region120
        $region119: #{cnn_forward.1} parent=95 // pred_region
          %667 = dma.done [#allocation12], 16
        $region120: #{cnn_forward.1} parent=95 // pred_fallthru
          _
        // Predicated region
        $region121: #{cnn_forward.1} parent=95 // pred_check
          %p668 = pneg %p354
        $region122: #{cnn_forward.1} parent=95 // pred_check_branch
          %670 = sbr.rel (%p668) target = $region124
        $region123: #{cnn_forward.1} parent=95 // pred_region
          %671 = dma.done [#allocation12], 16
        $region124: #{cnn_forward.1} parent=95 // pred_fallthru
          _
        // Predicated region
        $region125: #{cnn_forward.1} parent=95 // pred_check
          %p672 = pneg %p375
        $region126: #{cnn_forward.1} parent=95 // pred_check_branch
          %674 = sbr.rel (%p672) target = $region128
        $region127: #{cnn_forward.1} parent=95 // pred_region
          %675 = dma.done [#allocation15], 16
        $region128: #{cnn_forward.1} parent=95 // pred_fallthru
          _
        // Predicated region
        $region129: #{cnn_forward.1} parent=95 // pred_check
          %p676 = pneg %p396
        $region130: #{cnn_forward.1} parent=95 // pred_check_branch
          %678 = sbr.rel (%p676) target = $region132
        $region131: #{cnn_forward.1} parent=95 // pred_region
          %679 = dma.done [#allocation15], 16
        $region132: #{cnn_forward.1} parent=95 // pred_fallthru
          _
        // Predicated region
        $region133: #{cnn_forward.1} parent=95 // pred_check
          %p680 = pneg %p417
        $region134: #{cnn_forward.1} parent=95 // pred_check_branch
          %682 = sbr.rel (%p680) target = $region136
        $region135: #{cnn_forward.1} parent=95 // pred_region
          %683 = dma.done [#allocation18], 2048
        $region136: #{cnn_forward.1} parent=95 // pred_fallthru
          _
        // Predicated region
        $region137: #{cnn_forward.1} parent=95 // pred_check
          %p684 = pneg %p438
        $region138: #{cnn_forward.1} parent=95 // pred_check_branch
          %686 = sbr.rel (%p684) target = $region140
        $region139: #{cnn_forward.1} parent=95 // pred_region
          %687 = dma.done [#allocation18], 16
        $region140: #{cnn_forward.1} parent=95 // pred_fallthru
          _
        %s688 = smul.u32 8, %s39
        %p689 = scmp.lt.s32.totalorder %s688, 15
        %s690 = scalar_select %p689, %s688, 15
        %s691 = smul.addr %s690, 4
        %s692 = smul.addr %s691, 8
        %s693 = scalar_lea.vmem %s0, %s692
        %p694 = pneg %p60
        %p695 = pneg %p57
        %p696 = pneg %p81
        %p697 = pneg %p78
        %p698 = pneg %p102
        %p699 = pneg %p99
        %p700 = pneg %p123
        %p701 = pneg %p120
        %p702 = pneg %p144
        %p703 = pneg %p141
        %p704 = pneg %p165
        %p705 = pneg %p162
        %p706 = pneg %p186
        %p707 = pneg %p183
        %p708 = pneg %p207
        %p709 = pneg %p204
        %p710 = pneg %p228
        %p711 = pneg %p225
        %p712 = pneg %p249
        %p713 = pneg %p246
        %p714 = pneg %p270
        %p715 = pneg %p267
        %p716 = pneg %p291
        %p717 = pneg %p288
        %p718 = pneg %p312
        %p719 = pneg %p309
        %p720 = pneg %p333
        %p721 = pneg %p330
        %p722 = pneg %p354
        %p723 = pneg %p351
        %p724 = pneg %p375
        %p725 = pneg %p372
        %p726 = pneg %p396
        %p727 = pneg %p393
        %p728 = pneg %p417
        %p729 = pneg %p414
        %p730 = pneg %p438
        %p731 = pneg %p435
        %p732 = pneg %p464
        %p733 = pneg %p461
        %s734 = sand.u32 %s451, 1
        %s735 = scalar_lea.sflag [#allocation4], %s734
        %s736 = sand.u32 %s451, 1
        %s737 = smul.addr %s736, 8
        %s738 = scalar_lea.vmem [#allocation20], %s737
        %s739 = smul.u32 8, %s39
        %p740 = scmp.lt.s32.totalorder %s739, 15
        %s741 = scalar_select %p740, %s739, 15
        %s742 = smul.addr %s741, 4
        %s743 = smul.addr %s742, 8
        %s744 = scalar_lea.vmem %s0, %s743
        %s745 = smul.u32 8, %s39
        %v746 = vld [vmem:[%s744] sm:$0xff]
        %v747 = vld [vmem:[%s744 + $0x8] sm:$0xff]
        %v748 = vld [vmem:[%s744 + $0x10] sm:$0xff]
        %v749 = vld [vmem:[%s744 + $0x18] sm:$0xf]
        %v750 = vld [vmem:[%s744 + $0x20] sm:$0xff]
        %v751 = vld [vmem:[%s744 + $0x28] sm:$0xff]
        %v752 = vld [vmem:[%s744 + $0x30] sm:$0xff]
        %v753 = vld [vmem:[%s744 + $0x38] sm:$0xf]
        %v754 = vld [vmem:[%s744 + $0x40] sm:$0xff]
        %v755 = vld [vmem:[%s744 + $0x48] sm:$0xff]
        %v756 = vld [vmem:[%s744 + $0x50] sm:$0xff]
        %v757 = vld [vmem:[%s744 + $0x58] sm:$0xf]
        %v758 = vld [vmem:[%s744 + $0x60] sm:$0xff]
        %v759 = vld [vmem:[%s744 + $0x68] sm:$0xff]
        %v760 = vld [vmem:[%s744 + $0x70] sm:$0xff]
        %v761 = vld [vmem:[%s744 + $0x78] sm:$0xf]
        %v762 = vld [vmem:[%s744 + $0x80] sm:$0xff]
        %v763 = vld [vmem:[%s744 + $0x88] sm:$0xff]
        %v764 = vld [vmem:[%s744 + $0x90] sm:$0xff]
        %v765 = vld [vmem:[%s744 + $0x98] sm:$0xf]
        %v766 = vld [vmem:[%s744 + $0xa0] sm:$0xff]
        %v767 = vld [vmem:[%s744 + $0xa8] sm:$0xff]
        %v768 = vld [vmem:[%s744 + $0xb0] sm:$0xff]
        %v769 = vld [vmem:[%s744 + $0xb8] sm:$0xf]
        %v770 = vld [vmem:[%s744 + $0xc0] sm:$0xff]
        %v771 = vld [vmem:[%s744 + $0xc8] sm:$0xff]
        %v772 = vld [vmem:[%s744 + $0xd0] sm:$0xff]
        %v773 = vld [vmem:[%s744 + $0xd8] sm:$0xf]
        %v774 = vld [vmem:[%s744 + $0xe0] sm:$0xff]
        %v775 = vld [vmem:[%s744 + $0xe8] sm:$0xff]
        %v776 = vld [vmem:[%s744 + $0xf0] sm:$0xff]
        %v777 = vld [vmem:[%s744 + $0xf8] sm:$0xf]
        %v778 = vld [vmem:[%s1] sm:$0xff]
        %v779 = vld [vmem:[%s1 + $0x8] sm:$0xff]
        %v780 = vld [vmem:[%s1 + $0x10] sm:$0xff]
        %v781 = vld [vmem:[%s1 + $0x18] sm:$0xff]
        %v782 = vld [vmem:[%s1 + $0x20] sm:$0xff]
        %v783 = vld [vmem:[%s1 + $0x28] sm:$0xff]
        %v784 = vld [vmem:[%s1 + $0x30] sm:$0xf]
        %v785 = vld [vmem:[%s1 + $0x38] sm:$0xf]
        %vm818 = vcmask 1046528
        %v819 = vrot.slane %v746, 1
        %v820 = vrot.slane %v747, 1
        %v821 = vsel %vm818, %v819, %v820
        %v822 = vrot.slane %v748, 1
        %v823 = vsel %vm818, %v820, %v822
        %v824 = vrot.slane %v749, 1
        %v825 = vsel %vm818, %v822, %v824
        %v826 = vrot.slane %v750, 1
        %v827 = vrot.slane %v751, 1
        %v828 = vsel %vm818, %v826, %v827
        %v829 = vrot.slane %v752, 1
        %v830 = vsel %vm818, %v827, %v829
        %v831 = vrot.slane %v753, 1
        %v832 = vsel %vm818, %v829, %v831
        %v833 = vrot.slane %v754, 1
        %v834 = vrot.slane %v755, 1
        %v835 = vsel %vm818, %v833, %v834
        %v836 = vrot.slane %v756, 1
        %v837 = vsel %vm818, %v834, %v836
        %v838 = vrot.slane %v757, 1
        %v839 = vsel %vm818, %v836, %v838
        %v840 = vrot.slane %v758, 1
        %v841 = vrot.slane %v759, 1
        %v842 = vsel %vm818, %v840, %v841
        %v843 = vrot.slane %v760, 1
        %v844 = vsel %vm818, %v841, %v843
        %v845 = vrot.slane %v761, 1
        %v846 = vsel %vm818, %v843, %v845
        %v847 = vrot.slane %v762, 1
        %v848 = vrot.slane %v763, 1
        %v849 = vsel %vm818, %v847, %v848
        %v850 = vrot.slane %v764, 1
        %v851 = vsel %vm818, %v848, %v850
        %v852 = vrot.slane %v765, 1
        %v853 = vsel %vm818, %v850, %v852
        %v854 = vrot.slane %v766, 1
        %v855 = vrot.slane %v767, 1
        %v856 = vsel %vm818, %v854, %v855
        %v857 = vrot.slane %v768, 1
        %v858 = vsel %vm818, %v855, %v857
        %v859 = vrot.slane %v769, 1
        %v860 = vsel %vm818, %v857, %v859
        %v861 = vrot.slane %v770, 1
        %v862 = vrot.slane %v771, 1
        %v863 = vsel %vm818, %v861, %v862
        %v864 = vrot.slane %v772, 1
        %v865 = vsel %vm818, %v862, %v864
        %v866 = vrot.slane %v773, 1
        %v867 = vsel %vm818, %v864, %v866
        %v868 = vrot.slane %v774, 1
        %v869 = vrot.slane %v775, 1
        %v870 = vsel %vm818, %v868, %v869
        %v871 = vrot.slane %v776, 1
        %v872 = vsel %vm818, %v869, %v871
        %v873 = vrot.slane %v777, 1
        %v874 = vsel %vm818, %v871, %v873
        %s875 = scalar_lea.vmem %s1, 64
        %v876 = vld [vmem:[%s875] sm:$0xff]
        %v877 = vld [vmem:[%s875 + $0x8] sm:$0xff]
        %v878 = vld [vmem:[%s875 + $0x10] sm:$0xff]
        %v879 = vld [vmem:[%s875 + $0x18] sm:$0xff]
        %v880 = vld [vmem:[%s875 + $0x20] sm:$0xff]
        %v881 = vld [vmem:[%s875 + $0x28] sm:$0xff]
        %v882 = vld [vmem:[%s875 + $0x30] sm:$0xf]
        %v883 = vld [vmem:[%s875 + $0x38] sm:$0xf]
        %vm884 = vcmask 228352
        %v885 = vsel %vm884, %v821, 0
        %v887 = vsel %vm884, %v823, 0
        %v889 = vsel %vm884, %v825, 0
        %v891 = vsel %vm884, %v828, 0
        %v893 = vsel %vm884, %v830, 0
        %v895 = vsel %vm884, %v832, 0
        %v897 = vsel %vm884, %v835, 0
        %v899 = vsel %vm884, %v837, 0
        %v901 = vsel %vm884, %v839, 0
        %v903 = vsel %vm884, %v842, 0
        %v905 = vsel %vm884, %v844, 0
        %v907 = vsel %vm884, %v846, 0
        %v909 = vsel %vm884, %v849, 0
        %v911 = vsel %vm884, %v851, 0
        %v913 = vsel %vm884, %v853, 0
        %v915 = vsel %vm884, %v856, 0
        %v917 = vsel %vm884, %v858, 0
        %v919 = vsel %vm884, %v860, 0
        %v921 = vsel %vm884, %v863, 0
        %v923 = vsel %vm884, %v865, 0
        %v925 = vsel %vm884, %v867, 0
        %v927 = vsel %vm884, %v870, 0
        %v929 = vsel %vm884, %v872, 0
        %v931 = vsel %vm884, %v874, 0
        %vm933 = vcmask 1043456
        %v935 = vsel %vm933, %v882, 0
        %v938 = vsel %vm933, %v883, 0
        %940 = vmatprep.subr.mxu0 %v877
        %941 = vmatpush1.msra.mxu0 %v876
        %942 = vmatprep.subr.mxu0 %v879
        %943 = vmatpush1.msra.mxu0 %v878
        %944 = vmatprep.subr.mxu0 %v881
        %945 = vmatpush1.msra.mxu0 %v880
        %946 = vmatprep.subr.mxu0 %v938
        %947 = vmatpush1.msra.mxu0 %v935
        %948 = vmatprep.subr.mxu0 0.0
        %949 = vmatpush1.msra.mxu0 0.0
        %950 = vmatprep.subr.mxu0 0.0
        %951 = vmatpush1.msra.mxu0 0.0
        %952 = vmatprep.subr.mxu0 0.0
        %953 = vmatpush1.msra.mxu0 0.0
        %954 = vmatprep.subr.mxu0 0.0
        %955 = vmatpush1.msra.mxu0 0.0
        %956 = vmatprep.subr.mxu0 0.0
        %957 = vmatpush1.msra.mxu0 0.0
        %958 = vmatprep.subr.mxu0 0.0
        %959 = vmatpush1.msra.mxu0 0.0
        %960 = vmatprep.subr.mxu0 0.0
        %961 = vmatpush1.msra.mxu0 0.0
        %962 = vmatprep.subr.mxu0 0.0
        %963 = vmatpush1.msra.mxu0 0.0
        %964 = vmatprep.subr.mxu0 0.0
        %965 = vmatpush1.msra.mxu0 0.0
        %966 = vmatprep.subr.mxu0 0.0
        %967 = vmatpush1.msra.mxu0 0.0
        %968 = vmatprep.subr.mxu0 0.0
        %969 = vmatpush1.msra.mxu0 0.0
        %970 = vmatprep.subr.mxu0 0.0
        %971 = vmatpush1.msra.mxu0 0.0
        %972 = vmatprep.subr.mxu0 0.0
        %973 = vmatpush1.msra.mxu0 0.0
        %974 = vmatprep.subr.mxu0 0.0
        %975 = vmatpush1.msra.mxu0 0.0
        %976 = vmatprep.subr.mxu0 0.0
        %977 = vmatpush1.msra.mxu0 0.0
        %978 = vmatprep.subr.mxu0 0.0
        %979 = vmatpush1.msra.mxu0 0.0
        %980 = vmatprep.subr.mxu0 0.0
        %981 = vmatpush1.msra.mxu0 0.0
        %982 = vmatprep.subr.mxu0 0.0
        %983 = vmatpush1.msra.mxu0 0.0
        %984 = vmatprep.subr.mxu0 0.0
        %985 = vmatpush1.msra.mxu0 0.0
        %986 = vmatprep.subr.mxu0 0.0
        %987 = vmatpush1.msra.mxu0 0.0
        %988 = vmatprep.subr.mxu0 0.0
        %989 = vmatpush1.msra.mxu0 0.0
        %990 = vmatprep.subr.mxu0 0.0
        %991 = vmatpush1.msra.mxu0 0.0
        %992 = vmatprep.subr.mxu0 0.0
        %993 = vmatpush1.msra.mxu0 0.0
        %994 = vmatprep.subr.mxu0 0.0
        %995 = vmatpush1.msra.mxu0 0.0
        %996 = vmatprep.subr.mxu0 0.0
        %997 = vmatpush1.msra.mxu0 0.0
        %998 = vmatprep.subr.mxu0 0.0
        %999 = vmatpush1.msra.mxu0 0.0
        %1000 = vmatprep.subr.mxu0 0.0
        %1001 = vmatpush1.msra.mxu0 0.0
        %1002 = vmatprep.subr.mxu0 0.0
        %1003 = vmatpush1.msra.mxu0 0.0
        %1004 = vmatprep.mubr.f32.mxu0 0.0
        %1005 = vmatmul.mubr.f32.gmra.mrb[0].mxu0 %v885
        %v1006 = vpop.f32.mrb[0].mxu0
        %v1007 = vadd.f32 0.0, %v1006
        %v1008 = vpop.f32.mrb[0].mxu0
        %v1009 = vadd.f32 0.0, %v1008
        %1010 = vmatprep.mubr.f32.mxu0 0.0
        %1011 = vmatmul.mubr.f32.gmra.mrb[0].mxu0 %v887
        %v1012 = vpop.f32.mrb[0].mxu0
        %v1013 = vadd.f32 0.0, %v1012
        %v1014 = vpop.f32.mrb[0].mxu0
        %v1015 = vadd.f32 0.0, %v1014
        %1016 = vmatprep.mubr.f32.mxu0 0.0
        %1017 = vmatmul.mubr.f32.gmra.mrb[0].mxu0 %v889
        %v1018 = vpop.f32.mrb[0].mxu0
        %v1019 = vadd.f32 0.0, %v1018
        %v1020 = vpop.f32.mrb[0].mxu0
        %v1021 = vadd.f32 0.0, %v1020
        %1022 = vmatprep.mubr.f32.mxu0 0.0
        %1023 = vmatmul.mubr.f32.gmra.mrb[0].mxu0 %v891
        %v1024 = vpop.f32.mrb[0].mxu0
        %v1025 = vadd.f32 0.0, %v1024
        %v1026 = vpop.f32.mrb[0].mxu0
        %v1027 = vadd.f32 0.0, %v1026
        %1028 = vmatprep.mubr.f32.mxu0 0.0
        %1029 = vmatmul.mubr.f32.gmra.mrb[0].mxu0 %v893
        %v1030 = vpop.f32.mrb[0].mxu0
        %v1031 = vadd.f32 0.0, %v1030
        %v1032 = vpop.f32.mrb[0].mxu0
        %v1033 = vadd.f32 0.0, %v1032
        %1034 = vmatprep.mubr.f32.mxu0 0.0
        %1035 = vmatmul.mubr.f32.gmra.mrb[0].mxu0 %v895
        %v1036 = vpop.f32.mrb[0].mxu0
        %v1037 = vadd.f32 0.0, %v1036
        %v1038 = vpop.f32.mrb[0].mxu0
        %v1039 = vadd.f32 0.0, %v1038
        %1040 = vmatprep.mubr.f32.mxu0 0.0
        %1041 = vmatmul.mubr.f32.gmra.mrb[0].mxu0 %v897
        %v1042 = vpop.f32.mrb[0].mxu0
        %v1043 = vadd.f32 0.0, %v1042
        %v1044 = vpop.f32.mrb[0].mxu0
        %v1045 = vadd.f32 0.0, %v1044
        %1046 = vmatprep.mubr.f32.mxu0 0.0
        %1047 = vmatmul.mubr.f32.gmra.mrb[0].mxu0 %v899
        %v1048 = vpop.f32.mrb[0].mxu0
        %v1049 = vadd.f32 0.0, %v1048
        %v1050 = vpop.f32.mrb[0].mxu0
        %v1051 = vadd.f32 0.0, %v1050
        %1052 = vmatprep.mubr.f32.mxu0 0.0
        %1053 = vmatmul.mubr.f32.gmra.mrb[0].mxu0 %v901
        %v1054 = vpop.f32.mrb[0].mxu0
        %v1055 = vadd.f32 0.0, %v1054
        %v1056 = vpop.f32.mrb[0].mxu0
        %v1057 = vadd.f32 0.0, %v1056
        %1058 = vmatprep.mubr.f32.mxu0 0.0
        %1059 = vmatmul.mubr.f32.gmra.mrb[0].mxu0 %v903
        %v1060 = vpop.f32.mrb[0].mxu0
        %v1061 = vadd.f32 0.0, %v1060
        %v1062 = vpop.f32.mrb[0].mxu0
        %v1063 = vadd.f32 0.0, %v1062
        %1064 = vmatprep.mubr.f32.mxu0 0.0
        %1065 = vmatmul.mubr.f32.gmra.mrb[0].mxu0 %v905
        %v1066 = vpop.f32.mrb[0].mxu0
        %v1067 = vadd.f32 0.0, %v1066
        %v1068 = vpop.f32.mrb[0].mxu0
        %v1069 = vadd.f32 0.0, %v1068
        %1070 = vmatprep.mubr.f32.mxu0 0.0
        %1071 = vmatmul.mubr.f32.gmra.mrb[0].mxu0 %v907
        %v1072 = vpop.f32.mrb[0].mxu0
        %v1073 = vadd.f32 0.0, %v1072
        %v1074 = vpop.f32.mrb[0].mxu0
        %v1075 = vadd.f32 0.0, %v1074
        %1076 = vmatprep.mubr.f32.mxu0 0.0
        %1077 = vmatmul.mubr.f32.gmra.mrb[0].mxu0 %v909
        %v1078 = vpop.f32.mrb[0].mxu0
        %v1079 = vadd.f32 0.0, %v1078
        %v1080 = vpop.f32.mrb[0].mxu0
        %v1081 = vadd.f32 0.0, %v1080
        %1082 = vmatprep.mubr.f32.mxu0 0.0
        %1083 = vmatmul.mubr.f32.gmra.mrb[0].mxu0 %v911
        %v1084 = vpop.f32.mrb[0].mxu0
        %v1085 = vadd.f32 0.0, %v1084
        %v1086 = vpop.f32.mrb[0].mxu0
        %v1087 = vadd.f32 0.0, %v1086
        %1088 = vmatprep.mubr.f32.mxu0 0.0
        %1089 = vmatmul.mubr.f32.gmra.mrb[0].mxu0 %v913
        %v1090 = vpop.f32.mrb[0].mxu0
        %v1091 = vadd.f32 0.0, %v1090
        %v1092 = vpop.f32.mrb[0].mxu0
        %v1093 = vadd.f32 0.0, %v1092
        %1094 = vmatprep.mubr.f32.mxu0 0.0
        %1095 = vmatmul.mubr.f32.gmra.mrb[0].mxu0 %v915
        %v1096 = vpop.f32.mrb[0].mxu0
        %v1097 = vadd.f32 0.0, %v1096
        %v1098 = vpop.f32.mrb[0].mxu0
        %v1099 = vadd.f32 0.0, %v1098
        %1100 = vmatprep.mubr.f32.mxu0 0.0
        %1101 = vmatmul.mubr.f32.gmra.mrb[0].mxu0 %v917
        %v1102 = vpop.f32.mrb[0].mxu0
        %v1103 = vadd.f32 0.0, %v1102
        %v1104 = vpop.f32.mrb[0].mxu0
        %v1105 = vadd.f32 0.0, %v1104
        %1106 = vmatprep.mubr.f32.mxu0 0.0
        %1107 = vmatmul.mubr.f32.gmra.mrb[0].mxu0 %v919
        %v1108 = vpop.f32.mrb[0].mxu0
        %v1109 = vadd.f32 0.0, %v1108
        %v1110 = vpop.f32.mrb[0].mxu0
        %v1111 = vadd.f32 0.0, %v1110
        %1112 = vmatprep.mubr.f32.mxu0 0.0
        %1113 = vmatmul.mubr.f32.gmra.mrb[0].mxu0 %v921
        %v1114 = vpop.f32.mrb[0].mxu0
        %v1115 = vadd.f32 0.0, %v1114
        %v1116 = vpop.f32.mrb[0].mxu0
        %v1117 = vadd.f32 0.0, %v1116
        %1118 = vmatprep.mubr.f32.mxu0 0.0
        %1119 = vmatmul.mubr.f32.gmra.mrb[0].mxu0 %v923
        %v1120 = vpop.f32.mrb[0].mxu0
        %v1121 = vadd.f32 0.0, %v1120
        %v1122 = vpop.f32.mrb[0].mxu0
        %v1123 = vadd.f32 0.0, %v1122
        %1124 = vmatprep.mubr.f32.mxu0 0.0
        %1125 = vmatmul.mubr.f32.gmra.mrb[0].mxu0 %v925
        %v1126 = vpop.f32.mrb[0].mxu0
        %v1127 = vadd.f32 0.0, %v1126
        %v1128 = vpop.f32.mrb[0].mxu0
        %v1129 = vadd.f32 0.0, %v1128
        %1130 = vmatprep.mubr.f32.mxu0 0.0
        %1131 = vmatmul.mubr.f32.gmra.mrb[0].mxu0 %v927
        %v1132 = vpop.f32.mrb[0].mxu0
        %v1133 = vadd.f32 0.0, %v1132
        %v1134 = vpop.f32.mrb[0].mxu0
        %v1135 = vadd.f32 0.0, %v1134
        %1136 = vmatprep.mubr.f32.mxu0 0.0
        %1137 = vmatmul.mubr.f32.gmra.mrb[0].mxu0 %v929
        %v1138 = vpop.f32.mrb[0].mxu0
        %v1139 = vadd.f32 0.0, %v1138
        %v1140 = vpop.f32.mrb[0].mxu0
        %v1141 = vadd.f32 0.0, %v1140
        %1142 = vmatprep.mubr.f32.mxu0 0.0
        %1143 = vmatmul.mubr.f32.gmra.mrb[0].mxu0 %v931
        %v1144 = vpop.f32.mrb[0].mxu0
        %v1145 = vadd.f32 0.0, %v1144
        %v1146 = vpop.f32.mrb[0].mxu0
        %v1147 = vadd.f32 0.0, %v1146
        %1148 = vdwg.mxu0
        %v1149 = vsel %vm884, %v746, 0
        %v1151 = vsel %vm884, %v747, 0
        %v1153 = vsel %vm884, %v748, 0
        %v1155 = vsel %vm884, %v750, 0
        %v1157 = vsel %vm884, %v751, 0
        %v1159 = vsel %vm884, %v752, 0
        %v1161 = vsel %vm884, %v754, 0
        %v1163 = vsel %vm884, %v755, 0
        %v1165 = vsel %vm884, %v756, 0
        %v1167 = vsel %vm884, %v758, 0
        %v1169 = vsel %vm884, %v759, 0
        %v1171 = vsel %vm884, %v760, 0
        %v1173 = vsel %vm884, %v762, 0
        %v1175 = vsel %vm884, %v763, 0
        %v1177 = vsel %vm884, %v764, 0
        %v1179 = vsel %vm884, %v766, 0
        %v1181 = vsel %vm884, %v767, 0
        %v1183 = vsel %vm884, %v768, 0
        %v1185 = vsel %vm884, %v770, 0
        %v1187 = vsel %vm884, %v771, 0
        %v1189 = vsel %vm884, %v772, 0
        %v1191 = vsel %vm884, %v774, 0
        %v1193 = vsel %vm884, %v775, 0
        %v1195 = vsel %vm884, %v776, 0
        %v1198 = vsel %vm933, %v784, 0
        %v1201 = vsel %vm933, %v785, 0
        %1203 = vmatprep.subr.mxu0 %v779
        %1204 = vmatpush1.msra.mxu0 %v778
        %1205 = vmatprep.subr.mxu0 %v781
        %1206 = vmatpush1.msra.mxu0 %v780
        %1207 = vmatprep.subr.mxu0 %v783
        %1208 = vmatpush1.msra.mxu0 %v782
        %1209 = vmatprep.subr.mxu0 %v1201
        %1210 = vmatpush1.msra.mxu0 %v1198
        %1211 = vmatprep.subr.mxu0 0.0
        %1212 = vmatpush1.msra.mxu0 0.0
        %1213 = vmatprep.subr.mxu0 0.0
        %1214 = vmatpush1.msra.mxu0 0.0
        %1215 = vmatprep.subr.mxu0 0.0
        %1216 = vmatpush1.msra.mxu0 0.0
        %1217 = vmatprep.subr.mxu0 0.0
        %1218 = vmatpush1.msra.mxu0 0.0
        %1219 = vmatprep.subr.mxu0 0.0
        %1220 = vmatpush1.msra.mxu0 0.0
        %1221 = vmatprep.subr.mxu0 0.0
        %1222 = vmatpush1.msra.mxu0 0.0
        %1223 = vmatprep.subr.mxu0 0.0
        %1224 = vmatpush1.msra.mxu0 0.0
        %1225 = vmatprep.subr.mxu0 0.0
        %1226 = vmatpush1.msra.mxu0 0.0
        %1227 = vmatprep.subr.mxu0 0.0
        %1228 = vmatpush1.msra.mxu0 0.0
        %1229 = vmatprep.subr.mxu0 0.0
        %1230 = vmatpush1.msra.mxu0 0.0
        %1231 = vmatprep.subr.mxu0 0.0
        %1232 = vmatpush1.msra.mxu0 0.0
        %1233 = vmatprep.subr.mxu0 0.0
        %1234 = vmatpush1.msra.mxu0 0.0
        %1235 = vmatprep.subr.mxu0 0.0
        %1236 = vmatpush1.msra.mxu0 0.0
        %1237 = vmatprep.subr.mxu0 0.0
        %1238 = vmatpush1.msra.mxu0 0.0
        %1239 = vmatprep.subr.mxu0 0.0
        %1240 = vmatpush1.msra.mxu0 0.0
        %1241 = vmatprep.subr.mxu0 0.0
        %1242 = vmatpush1.msra.mxu0 0.0
        %1243 = vmatprep.subr.mxu0 0.0
        %1244 = vmatpush1.msra.mxu0 0.0
        %1245 = vmatprep.subr.mxu0 0.0
        %1246 = vmatpush1.msra.mxu0 0.0
        %1247 = vmatprep.subr.mxu0 0.0
        %1248 = vmatpush1.msra.mxu0 0.0
        %1249 = vmatprep.subr.mxu0 0.0
        %1250 = vmatpush1.msra.mxu0 0.0
        %1251 = vmatprep.subr.mxu0 0.0
        %1252 = vmatpush1.msra.mxu0 0.0
        %1253 = vmatprep.subr.mxu0 0.0
        %1254 = vmatpush1.msra.mxu0 0.0
        %1255 = vmatprep.subr.mxu0 0.0
        %1256 = vmatpush1.msra.mxu0 0.0
        %1257 = vmatprep.subr.mxu0 0.0
        %1258 = vmatpush1.msra.mxu0 0.0
        %1259 = vmatprep.subr.mxu0 0.0
        %1260 = vmatpush1.msra.mxu0 0.0
        %1261 = vmatprep.subr.mxu0 0.0
        %1262 = vmatpush1.msra.mxu0 0.0
        %1263 = vmatprep.subr.mxu0 0.0
        %1264 = vmatpush1.msra.mxu0 0.0
        %1265 = vmatprep.subr.mxu0 0.0
        %1266 = vmatpush1.msra.mxu0 0.0
        %1267 = vmatprep.mubr.f32.mxu0 0.0
        %1268 = vmatmul.mubr.f32.gmra.mrb[0].mxu0 %v1149
        %v1269 = vpop.f32.mrb[0].mxu0
        %v1270 = vadd.f32 %v1007, %v1269
        %v1271 = vpop.f32.mrb[0].mxu0
        %v1272 = vadd.f32 %v1009, %v1271
        %1273 = vmatprep.mubr.f32.mxu0 0.0
        %1274 = vmatmul.mubr.f32.gmra.mrb[0].mxu0 %v1151
        %v1275 = vpop.f32.mrb[0].mxu0
        %v1276 = vadd.f32 %v1013, %v1275
        %v1277 = vpop.f32.mrb[0].mxu0
        %v1278 = vadd.f32 %v1015, %v1277
        %1279 = vmatprep.mubr.f32.mxu0 0.0
        %1280 = vmatmul.mubr.f32.gmra.mrb[0].mxu0 %v1153
        %v1281 = vpop.f32.mrb[0].mxu0
        %v1282 = vadd.f32 %v1019, %v1281
        %v1283 = vpop.f32.mrb[0].mxu0
        %v1284 = vadd.f32 %v1021, %v1283
        %1285 = vmatprep.mubr.f32.mxu0 0.0
        %1286 = vmatmul.mubr.f32.gmra.mrb[0].mxu0 %v1155
        %v1287 = vpop.f32.mrb[0].mxu0
        %v1288 = vadd.f32 %v1025, %v1287
        %v1289 = vpop.f32.mrb[0].mxu0
        %v1290 = vadd.f32 %v1027, %v1289
        %1291 = vmatprep.mubr.f32.mxu0 0.0
        %1292 = vmatmul.mubr.f32.gmra.mrb[0].mxu0 %v1157
        %v1293 = vpop.f32.mrb[0].mxu0
        %v1294 = vadd.f32 %v1031, %v1293
        %v1295 = vpop.f32.mrb[0].mxu0
        %v1296 = vadd.f32 %v1033, %v1295
        %1297 = vmatprep.mubr.f32.mxu0 0.0
        %1298 = vmatmul.mubr.f32.gmra.mrb[0].mxu0 %v1159
        %v1299 = vpop.f32.mrb[0].mxu0
        %v1300 = vadd.f32 %v1037, %v1299
        %v1301 = vpop.f32.mrb[0].mxu0
        %v1302 = vadd.f32 %v1039, %v1301
        %1303 = vmatprep.mubr.f32.mxu0 0.0
        %1304 = vmatmul.mubr.f32.gmra.mrb[0].mxu0 %v1161
        %v1305 = vpop.f32.mrb[0].mxu0
        %v1306 = vadd.f32 %v1043, %v1305
        %v1307 = vpop.f32.mrb[0].mxu0
        %v1308 = vadd.f32 %v1045, %v1307
        %1309 = vmatprep.mubr.f32.mxu0 0.0
        %1310 = vmatmul.mubr.f32.gmra.mrb[0].mxu0 %v1163
        %v1311 = vpop.f32.mrb[0].mxu0
        %v1312 = vadd.f32 %v1049, %v1311
        %v1313 = vpop.f32.mrb[0].mxu0
        %v1314 = vadd.f32 %v1051, %v1313
        %1315 = vmatprep.mubr.f32.mxu0 0.0
        %1316 = vmatmul.mubr.f32.gmra.mrb[0].mxu0 %v1165
        %v1317 = vpop.f32.mrb[0].mxu0
        %v1318 = vadd.f32 %v1055, %v1317
        %v1319 = vpop.f32.mrb[0].mxu0
        %v1320 = vadd.f32 %v1057, %v1319
        %1321 = vmatprep.mubr.f32.mxu0 0.0
        %1322 = vmatmul.mubr.f32.gmra.mrb[0].mxu0 %v1167
        %v1323 = vpop.f32.mrb[0].mxu0
        %v1324 = vadd.f32 %v1061, %v1323
        %v1325 = vpop.f32.mrb[0].mxu0
        %v1326 = vadd.f32 %v1063, %v1325
        %1327 = vmatprep.mubr.f32.mxu0 0.0
        %1328 = vmatmul.mubr.f32.gmra.mrb[0].mxu0 %v1169
        %v1329 = vpop.f32.mrb[0].mxu0
        %v1330 = vadd.f32 %v1067, %v1329
        %v1331 = vpop.f32.mrb[0].mxu0
        %v1332 = vadd.f32 %v1069, %v1331
        %1333 = vmatprep.mubr.f32.mxu0 0.0
        %1334 = vmatmul.mubr.f32.gmra.mrb[0].mxu0 %v1171
        %v1335 = vpop.f32.mrb[0].mxu0
        %v1336 = vadd.f32 %v1073, %v1335
        %v1337 = vpop.f32.mrb[0].mxu0
        %v1338 = vadd.f32 %v1075, %v1337
        %1339 = vmatprep.mubr.f32.mxu0 0.0
        %1340 = vmatmul.mubr.f32.gmra.mrb[0].mxu0 %v1173
        %v1341 = vpop.f32.mrb[0].mxu0
        %v1342 = vadd.f32 %v1079, %v1341
        %v1343 = vpop.f32.mrb[0].mxu0
        %v1344 = vadd.f32 %v1081, %v1343
        %1345 = vmatprep.mubr.f32.mxu0 0.0
        %1346 = vmatmul.mubr.f32.gmra.mrb[0].mxu0 %v1175
        %v1347 = vpop.f32.mrb[0].mxu0
        %v1348 = vadd.f32 %v1085, %v1347
        %v1349 = vpop.f32.mrb[0].mxu0
        %v1350 = vadd.f32 %v1087, %v1349
        %1351 = vmatprep.mubr.f32.mxu0 0.0
        %1352 = vmatmul.mubr.f32.gmra.mrb[0].mxu0 %v1177
        %v1353 = vpop.f32.mrb[0].mxu0
        %v1354 = vadd.f32 %v1091, %v1353
        %v1355 = vpop.f32.mrb[0].mxu0
        %v1356 = vadd.f32 %v1093, %v1355
        %1357 = vmatprep.mubr.f32.mxu0 0.0
        %1358 = vmatmul.mubr.f32.gmra.mrb[0].mxu0 %v1179
        %v1359 = vpop.f32.mrb[0].mxu0
        %v1360 = vadd.f32 %v1097, %v1359
        %v1361 = vpop.f32.mrb[0].mxu0
        %v1362 = vadd.f32 %v1099, %v1361
        %1363 = vmatprep.mubr.f32.mxu0 0.0
        %1364 = vmatmul.mubr.f32.gmra.mrb[0].mxu0 %v1181
        %v1365 = vpop.f32.mrb[0].mxu0
        %v1366 = vadd.f32 %v1103, %v1365
        %v1367 = vpop.f32.mrb[0].mxu0
        %v1368 = vadd.f32 %v1105, %v1367
        %1369 = vmatprep.mubr.f32.mxu0 0.0
        %1370 = vmatmul.mubr.f32.gmra.mrb[0].mxu0 %v1183
        %v1371 = vpop.f32.mrb[0].mxu0
        %v1372 = vadd.f32 %v1109, %v1371
        %v1373 = vpop.f32.mrb[0].mxu0
        %v1374 = vadd.f32 %v1111, %v1373
        %1375 = vmatprep.mubr.f32.mxu0 0.0
        %1376 = vmatmul.mubr.f32.gmra.mrb[0].mxu0 %v1185
        %v1377 = vpop.f32.mrb[0].mxu0
        %v1378 = vadd.f32 %v1115, %v1377
        %v1379 = vpop.f32.mrb[0].mxu0
        %v1380 = vadd.f32 %v1117, %v1379
        %1381 = vmatprep.mubr.f32.mxu0 0.0
        %1382 = vmatmul.mubr.f32.gmra.mrb[0].mxu0 %v1187
        %v1383 = vpop.f32.mrb[0].mxu0
        %v1384 = vadd.f32 %v1121, %v1383
        %v1385 = vpop.f32.mrb[0].mxu0
        %v1386 = vadd.f32 %v1123, %v1385
        %1387 = vmatprep.mubr.f32.mxu0 0.0
        %1388 = vmatmul.mubr.f32.gmra.mrb[0].mxu0 %v1189
        %v1389 = vpop.f32.mrb[0].mxu0
        %v1390 = vadd.f32 %v1127, %v1389
        %v1391 = vpop.f32.mrb[0].mxu0
        %v1392 = vadd.f32 %v1129, %v1391
        %1393 = vmatprep.mubr.f32.mxu0 0.0
        %1394 = vmatmul.mubr.f32.gmra.mrb[0].mxu0 %v1191
        %v1395 = vpop.f32.mrb[0].mxu0
        %v1396 = vadd.f32 %v1133, %v1395
        %v1397 = vpop.f32.mrb[0].mxu0
        %v1398 = vadd.f32 %v1135, %v1397
        %1399 = vmatprep.mubr.f32.mxu0 0.0
        %1400 = vmatmul.mubr.f32.gmra.mrb[0].mxu0 %v1193
        %v1401 = vpop.f32.mrb[0].mxu0
        %v1402 = vadd.f32 %v1139, %v1401
        %v1403 = vpop.f32.mrb[0].mxu0
        %v1404 = vadd.f32 %v1141, %v1403
        %1405 = vmatprep.mubr.f32.mxu0 0.0
        %1406 = vmatmul.mubr.f32.gmra.mrb[0].mxu0 %v1195
        %v1407 = vpop.f32.mrb[0].mxu0
        %v1408 = vadd.f32 %v1145, %v1407
        %v1409 = vpop.f32.mrb[0].mxu0
        %v1410 = vadd.f32 %v1147, %v1409
        %1411 = vdwg.mxu0
        %vm1412 = vcmask 1045504
        %v1413 = vrot.slane %v746, 2
        %v1414 = vrot.slane %v747, 2
        %v1415 = vsel %vm1412, %v1413, %v1414
        %v1416 = vrot.slane %v748, 2
        %v1417 = vsel %vm1412, %v1414, %v1416
        %v1418 = vrot.slane %v749, 2
        %v1419 = vsel %vm1412, %v1416, %v1418
        %v1420 = vrot.slane %v750, 2
        %v1421 = vrot.slane %v751, 2
        %v1422 = vsel %vm1412, %v1420, %v1421
        %v1423 = vrot.slane %v752, 2
        %v1424 = vsel %vm1412, %v1421, %v1423
        %v1425 = vrot.slane %v753, 2
        %v1426 = vsel %vm1412, %v1423, %v1425
        %v1427 = vrot.slane %v754, 2
        %v1428 = vrot.slane %v755, 2
        %v1429 = vsel %vm1412, %v1427, %v1428
        %v1430 = vrot.slane %v756, 2
        %v1431 = vsel %vm1412, %v1428, %v1430
        %v1432 = vrot.slane %v757, 2
        %v1433 = vsel %vm1412, %v1430, %v1432
        %v1434 = vrot.slane %v758, 2
        %v1435 = vrot.slane %v759, 2
        %v1436 = vsel %vm1412, %v1434, %v1435
        %v1437 = vrot.slane %v760, 2
        %v1438 = vsel %vm1412, %v1435, %v1437
        %v1439 = vrot.slane %v761, 2
        %v1440 = vsel %vm1412, %v1437, %v1439
        %v1441 = vrot.slane %v762, 2
        %v1442 = vrot.slane %v763, 2
        %v1443 = vsel %vm1412, %v1441, %v1442
        %v1444 = vrot.slane %v764, 2
        %v1445 = vsel %vm1412, %v1442, %v1444
        %v1446 = vrot.slane %v765, 2
        %v1447 = vsel %vm1412, %v1444, %v1446
        %v1448 = vrot.slane %v766, 2
        %v1449 = vrot.slane %v767, 2
        %v1450 = vsel %vm1412, %v1448, %v1449
        %v1451 = vrot.slane %v768, 2
        %v1452 = vsel %vm1412, %v1449, %v1451
        %v1453 = vrot.slane %v769, 2
        %v1454 = vsel %vm1412, %v1451, %v1453
        %v1455 = vrot.slane %v770, 2
        %v1456 = vrot.slane %v771, 2
        %v1457 = vsel %vm1412, %v1455, %v1456
        %v1458 = vrot.slane %v772, 2
        %v1459 = vsel %vm1412, %v1456, %v1458
        %v1460 = vrot.slane %v773, 2
        %v1461 = vsel %vm1412, %v1458, %v1460
        %v1462 = vrot.slane %v774, 2
        %v1463 = vrot.slane %v775, 2
        %v1464 = vsel %vm1412, %v1462, %v1463
        %v1465 = vrot.slane %v776, 2
        %v1466 = vsel %vm1412, %v1463, %v1465
        %v1467 = vrot.slane %v777, 2
        %v1468 = vsel %vm1412, %v1465, %v1467
        %s1469 = scalar_lea.vmem %s1, 128
        %v1470 = vld [vmem:[%s1469] sm:$0xff]
        %v1471 = vld [vmem:[%s1469 + $0x8] sm:$0xff]
        %v1472 = vld [vmem:[%s1469 + $0x10] sm:$0xff]
        %v1473 = vld [vmem:[%s1469 + $0x18] sm:$0xff]
        %v1474 = vld [vmem:[%s1469 + $0x20] sm:$0xff]
        %v1475 = vld [vmem:[%s1469 + $0x28] sm:$0xff]
        %v1476 = vld [vmem:[%s1469 + $0x30] sm:$0xf]
        %v1477 = vld [vmem:[%s1469 + $0x38] sm:$0xf]
        %v1478 = vsel %vm884, %v1415, 0
        %v1480 = vsel %vm884, %v1417, 0
        %v1482 = vsel %vm884, %v1419, 0
        %v1484 = vsel %vm884, %v1422, 0
        %v1486 = vsel %vm884, %v1424, 0
        %v1488 = vsel %vm884, %v1426, 0
        %v1490 = vsel %vm884, %v1429, 0
        %v1492 = vsel %vm884, %v1431, 0
        %v1494 = vsel %vm884, %v1433, 0
        %v1496 = vsel %vm884, %v1436, 0
        %v1498 = vsel %vm884, %v1438, 0
        %v1500 = vsel %vm884, %v1440, 0
        %v1502 = vsel %vm884, %v1443, 0
        %v1504 = vsel %vm884, %v1445, 0
        %v1506 = vsel %vm884, %v1447, 0
        %v1508 = vsel %vm884, %v1450, 0
        %v1510 = vsel %vm884, %v1452, 0
        %v1512 = vsel %vm884, %v1454, 0
        %v1514 = vsel %vm884, %v1457, 0
        %v1516 = vsel %vm884, %v1459, 0
        %v1518 = vsel %vm884, %v1461, 0
        %v1520 = vsel %vm884, %v1464, 0
        %v1522 = vsel %vm884, %v1466, 0
        %v1524 = vsel %vm884, %v1468, 0
        %v1527 = vsel %vm933, %v1476, 0
        %v1530 = vsel %vm933, %v1477, 0
        %1532 = vmatprep.subr.mxu0 %v1471
        %1533 = vmatpush1.msra.mxu0 %v1470
        %1534 = vmatprep.subr.mxu0 %v1473
        %1535 = vmatpush1.msra.mxu0 %v1472
        %1536 = vmatprep.subr.mxu0 %v1475
        %1537 = vmatpush1.msra.mxu0 %v1474
        %1538 = vmatprep.subr.mxu0 %v1530
        %1539 = vmatpush1.msra.mxu0 %v1527
        %1540 = vmatprep.subr.mxu0 0.0
        %1541 = vmatpush1.msra.mxu0 0.0
        %1542 = vmatprep.subr.mxu0 0.0
        %1543 = vmatpush1.msra.mxu0 0.0
        %1544 = vmatprep.subr.mxu0 0.0
        %1545 = vmatpush1.msra.mxu0 0.0
        %1546 = vmatprep.subr.mxu0 0.0
        %1547 = vmatpush1.msra.mxu0 0.0
        %1548 = vmatprep.subr.mxu0 0.0
        %1549 = vmatpush1.msra.mxu0 0.0
        %1550 = vmatprep.subr.mxu0 0.0
        %1551 = vmatpush1.msra.mxu0 0.0
        %1552 = vmatprep.subr.mxu0 0.0
        %1553 = vmatpush1.msra.mxu0 0.0
        %1554 = vmatprep.subr.mxu0 0.0
        %1555 = vmatpush1.msra.mxu0 0.0
        %1556 = vmatprep.subr.mxu0 0.0
        %1557 = vmatpush1.msra.mxu0 0.0
        %1558 = vmatprep.subr.mxu0 0.0
        %1559 = vmatpush1.msra.mxu0 0.0
        %1560 = vmatprep.subr.mxu0 0.0
        %1561 = vmatpush1.msra.mxu0 0.0
        %1562 = vmatprep.subr.mxu0 0.0
        %1563 = vmatpush1.msra.mxu0 0.0
        %1564 = vmatprep.subr.mxu0 0.0
        %1565 = vmatpush1.msra.mxu0 0.0
        %1566 = vmatprep.subr.mxu0 0.0
        %1567 = vmatpush1.msra.mxu0 0.0
        %1568 = vmatprep.subr.mxu0 0.0
        %1569 = vmatpush1.msra.mxu0 0.0
        %1570 = vmatprep.subr.mxu0 0.0
        %1571 = vmatpush1.msra.mxu0 0.0
        %1572 = vmatprep.subr.mxu0 0.0
        %1573 = vmatpush1.msra.mxu0 0.0
        %1574 = vmatprep.subr.mxu0 0.0
        %1575 = vmatpush1.msra.mxu0 0.0
        %1576 = vmatprep.subr.mxu0 0.0
        %1577 = vmatpush1.msra.mxu0 0.0
        %1578 = vmatprep.subr.mxu0 0.0
        %1579 = vmatpush1.msra.mxu0 0.0
        %1580 = vmatprep.subr.mxu0 0.0
        %1581 = vmatpush1.msra.mxu0 0.0
        %1582 = vmatprep.subr.mxu0 0.0
        %1583 = vmatpush1.msra.mxu0 0.0
        %1584 = vmatprep.subr.mxu0 0.0
        %1585 = vmatpush1.msra.mxu0 0.0
        %1586 = vmatprep.subr.mxu0 0.0
        %1587 = vmatpush1.msra.mxu0 0.0
        %1588 = vmatprep.subr.mxu0 0.0
        %1589 = vmatpush1.msra.mxu0 0.0
        %1590 = vmatprep.subr.mxu0 0.0
        %1591 = vmatpush1.msra.mxu0 0.0
        %1592 = vmatprep.subr.mxu0 0.0
        %1593 = vmatpush1.msra.mxu0 0.0
        %1594 = vmatprep.subr.mxu0 0.0
        %1595 = vmatpush1.msra.mxu0 0.0
        %1596 = vmatprep.mubr.f32.mxu0 0.0
        %1597 = vmatmul.mubr.f32.gmra.mrb[0].mxu0 %v1478
        %v1598 = vpop.f32.mrb[0].mxu0
        %v1599 = vadd.f32 0.0, %v1598
        %v1600 = vpop.f32.mrb[0].mxu0
        %v1601 = vadd.f32 0.0, %v1600
        %1602 = vmatprep.mubr.f32.mxu0 0.0
        %1603 = vmatmul.mubr.f32.gmra.mrb[0].mxu0 %v1480
        %v1604 = vpop.f32.mrb[0].mxu0
        %v1605 = vadd.f32 0.0, %v1604
        %v1606 = vpop.f32.mrb[0].mxu0
        %v1607 = vadd.f32 0.0, %v1606
        %1608 = vmatprep.mubr.f32.mxu0 0.0
        %1609 = vmatmul.mubr.f32.gmra.mrb[0].mxu0 %v1482
        %v1610 = vpop.f32.mrb[0].mxu0
        %v1611 = vadd.f32 0.0, %v1610
        %v1612 = vpop.f32.mrb[0].mxu0
        %v1613 = vadd.f32 0.0, %v1612
        %1614 = vmatprep.mubr.f32.mxu0 0.0
        %1615 = vmatmul.mubr.f32.gmra.mrb[0].mxu0 %v1484
        %v1616 = vpop.f32.mrb[0].mxu0
        %v1617 = vadd.f32 0.0, %v1616
        %v1618 = vpop.f32.mrb[0].mxu0
        %v1619 = vadd.f32 0.0, %v1618
        %1620 = vmatprep.mubr.f32.mxu0 0.0
        %1621 = vmatmul.mubr.f32.gmra.mrb[0].mxu0 %v1486
        %v1622 = vpop.f32.mrb[0].mxu0
        %v1623 = vadd.f32 0.0, %v1622
        %v1624 = vpop.f32.mrb[0].mxu0
        %v1625 = vadd.f32 0.0, %v1624
        %1626 = vmatprep.mubr.f32.mxu0 0.0
        %1627 = vmatmul.mubr.f32.gmra.mrb[0].mxu0 %v1488
        %v1628 = vpop.f32.mrb[0].mxu0
        %v1629 = vadd.f32 0.0, %v1628
        %v1630 = vpop.f32.mrb[0].mxu0
        %v1631 = vadd.f32 0.0, %v1630
        %1632 = vmatprep.mubr.f32.mxu0 0.0
        %1633 = vmatmul.mubr.f32.gmra.mrb[0].mxu0 %v1490
        %v1634 = vpop.f32.mrb[0].mxu0
        %v1635 = vadd.f32 0.0, %v1634
        %v1636 = vpop.f32.mrb[0].mxu0
        %v1637 = vadd.f32 0.0, %v1636
        %1638 = vmatprep.mubr.f32.mxu0 0.0
        %1639 = vmatmul.mubr.f32.gmra.mrb[0].mxu0 %v1492
        %v1640 = vpop.f32.mrb[0].mxu0
        %v1641 = vadd.f32 0.0, %v1640
        %v1642 = vpop.f32.mrb[0].mxu0
        %v1643 = vadd.f32 0.0, %v1642
        %1644 = vmatprep.mubr.f32.mxu0 0.0
        %1645 = vmatmul.mubr.f32.gmra.mrb[0].mxu0 %v1494
        %v1646 = vpop.f32.mrb[0].mxu0
        %v1647 = vadd.f32 0.0, %v1646
        %v1648 = vpop.f32.mrb[0].mxu0
        %v1649 = vadd.f32 0.0, %v1648
        %1650 = vmatprep.mubr.f32.mxu0 0.0
        %1651 = vmatmul.mubr.f32.gmra.mrb[0].mxu0 %v1496
        %v1652 = vpop.f32.mrb[0].mxu0
        %v1653 = vadd.f32 0.0, %v1652
        %v1654 = vpop.f32.mrb[0].mxu0
        %v1655 = vadd.f32 0.0, %v1654
        %1656 = vmatprep.mubr.f32.mxu0 0.0
        %1657 = vmatmul.mubr.f32.gmra.mrb[0].mxu0 %v1498
        %v1658 = vpop.f32.mrb[0].mxu0
        %v1659 = vadd.f32 0.0, %v1658
        %v1660 = vpop.f32.mrb[0].mxu0
        %v1661 = vadd.f32 0.0, %v1660
        %1662 = vmatprep.mubr.f32.mxu0 0.0
        %1663 = vmatmul.mubr.f32.gmra.mrb[0].mxu0 %v1500
        %v1664 = vpop.f32.mrb[0].mxu0
        %v1665 = vadd.f32 0.0, %v1664
        %v1666 = vpop.f32.mrb[0].mxu0
        %v1667 = vadd.f32 0.0, %v1666
        %1668 = vmatprep.mubr.f32.mxu0 0.0
        %1669 = vmatmul.mubr.f32.gmra.mrb[0].mxu0 %v1502
        %v1670 = vpop.f32.mrb[0].mxu0
        %v1671 = vadd.f32 0.0, %v1670
        %v1672 = vpop.f32.mrb[0].mxu0
        %v1673 = vadd.f32 0.0, %v1672
        %1674 = vmatprep.mubr.f32.mxu0 0.0
        %1675 = vmatmul.mubr.f32.gmra.mrb[0].mxu0 %v1504
        %v1676 = vpop.f32.mrb[0].mxu0
        %v1677 = vadd.f32 0.0, %v1676
        %v1678 = vpop.f32.mrb[0].mxu0
        %v1679 = vadd.f32 0.0, %v1678
        %1680 = vmatprep.mubr.f32.mxu0 0.0
        %1681 = vmatmul.mubr.f32.gmra.mrb[0].mxu0 %v1506
        %v1682 = vpop.f32.mrb[0].mxu0
        %v1683 = vadd.f32 0.0, %v1682
        %v1684 = vpop.f32.mrb[0].mxu0
        %v1685 = vadd.f32 0.0, %v1684
        %1686 = vmatprep.mubr.f32.mxu0 0.0
        %1687 = vmatmul.mubr.f32.gmra.mrb[0].mxu0 %v1508
        %v1688 = vpop.f32.mrb[0].mxu0
        %v1689 = vadd.f32 0.0, %v1688
        %v1690 = vpop.f32.mrb[0].mxu0
        %v1691 = vadd.f32 0.0, %v1690
        %1692 = vmatprep.mubr.f32.mxu0 0.0
        %1693 = vmatmul.mubr.f32.gmra.mrb[0].mxu0 %v1510
        %v1694 = vpop.f32.mrb[0].mxu0
        %v1695 = vadd.f32 0.0, %v1694
        %v1696 = vpop.f32.mrb[0].mxu0
        %v1697 = vadd.f32 0.0, %v1696
        %1698 = vmatprep.mubr.f32.mxu0 0.0
        %1699 = vmatmul.mubr.f32.gmra.mrb[0].mxu0 %v1512
        %v1700 = vpop.f32.mrb[0].mxu0
        %v1701 = vadd.f32 0.0, %v1700
        %v1702 = vpop.f32.mrb[0].mxu0
        %v1703 = vadd.f32 0.0, %v1702
        %1704 = vmatprep.mubr.f32.mxu0 0.0
        %1705 = vmatmul.mubr.f32.gmra.mrb[0].mxu0 %v1514
        %v1706 = vpop.f32.mrb[0].mxu0
        %v1707 = vadd.f32 0.0, %v1706
        %v1708 = vpop.f32.mrb[0].mxu0
        %v1709 = vadd.f32 0.0, %v1708
        %1710 = vmatprep.mubr.f32.mxu0 0.0
        %1711 = vmatmul.mubr.f32.gmra.mrb[0].mxu0 %v1516
        %v1712 = vpop.f32.mrb[0].mxu0
        %v1713 = vadd.f32 0.0, %v1712
        %v1714 = vpop.f32.mrb[0].mxu0
        %v1715 = vadd.f32 0.0, %v1714
        %1716 = vmatprep.mubr.f32.mxu0 0.0
        %1717 = vmatmul.mubr.f32.gmra.mrb[0].mxu0 %v1518
        %v1718 = vpop.f32.mrb[0].mxu0
        %v1719 = vadd.f32 0.0, %v1718
        %v1720 = vpop.f32.mrb[0].mxu0
        %v1721 = vadd.f32 0.0, %v1720
        %1722 = vmatprep.mubr.f32.mxu0 0.0
        %1723 = vmatmul.mubr.f32.gmra.mrb[0].mxu0 %v1520
        %v1724 = vpop.f32.mrb[0].mxu0
        %v1725 = vadd.f32 0.0, %v1724
        %v1726 = vpop.f32.mrb[0].mxu0
        %v1727 = vadd.f32 0.0, %v1726
        %1728 = vmatprep.mubr.f32.mxu0 0.0
        %1729 = vmatmul.mubr.f32.gmra.mrb[0].mxu0 %v1522
        %v1730 = vpop.f32.mrb[0].mxu0
        %v1731 = vadd.f32 0.0, %v1730
        %v1732 = vpop.f32.mrb[0].mxu0
        %v1733 = vadd.f32 0.0, %v1732
        %1734 = vmatprep.mubr.f32.mxu0 0.0
        %1735 = vmatmul.mubr.f32.gmra.mrb[0].mxu0 %v1524
        %v1736 = vpop.f32.mrb[0].mxu0
        %v1737 = vadd.f32 0.0, %v1736
        %v1738 = vpop.f32.mrb[0].mxu0
        %v1739 = vadd.f32 0.0, %v1738
        %1740 = vdwg.mxu0
        %v1741 = vadd.f32 %v1270, %v1599
        %v1742 = vadd.f32 %v1272, %v1601
        %v1743 = vadd.f32 %v1276, %v1605
        %v1744 = vadd.f32 %v1278, %v1607
        %v1745 = vadd.f32 %v1282, %v1611
        %v1746 = vadd.f32 %v1284, %v1613
        %v1747 = vadd.f32 %v1288, %v1617
        %v1748 = vadd.f32 %v1290, %v1619
        %v1749 = vadd.f32 %v1294, %v1623
        %v1750 = vadd.f32 %v1296, %v1625
        %v1751 = vadd.f32 %v1300, %v1629
        %v1752 = vadd.f32 %v1302, %v1631
        %v1753 = vadd.f32 %v1306, %v1635
        %v1754 = vadd.f32 %v1308, %v1637
        %v1755 = vadd.f32 %v1312, %v1641
        %v1756 = vadd.f32 %v1314, %v1643
        %v1757 = vadd.f32 %v1318, %v1647
        %v1758 = vadd.f32 %v1320, %v1649
        %v1759 = vadd.f32 %v1324, %v1653
        %v1760 = vadd.f32 %v1326, %v1655
        %v1761 = vadd.f32 %v1330, %v1659
        %v1762 = vadd.f32 %v1332, %v1661
        %v1763 = vadd.f32 %v1336, %v1665
        %v1764 = vadd.f32 %v1338, %v1667
        %v1765 = vadd.f32 %v1342, %v1671
        %v1766 = vadd.f32 %v1344, %v1673
        %v1767 = vadd.f32 %v1348, %v1677
        %v1768 = vadd.f32 %v1350, %v1679
        %v1769 = vadd.f32 %v1354, %v1683
        %v1770 = vadd.f32 %v1356, %v1685
        %v1771 = vadd.f32 %v1360, %v1689
        %v1772 = vadd.f32 %v1362, %v1691
        %v1773 = vadd.f32 %v1366, %v1695
        %v1774 = vadd.f32 %v1368, %v1697
        %v1775 = vadd.f32 %v1372, %v1701
        %v1776 = vadd.f32 %v1374, %v1703
        %v1777 = vadd.f32 %v1378, %v1707
        %v1778 = vadd.f32 %v1380, %v1709
        %v1779 = vadd.f32 %v1384, %v1713
        %v1780 = vadd.f32 %v1386, %v1715
        %v1781 = vadd.f32 %v1390, %v1719
        %v1782 = vadd.f32 %v1392, %v1721
        %v1783 = vadd.f32 %v1396, %v1725
        %v1784 = vadd.f32 %v1398, %v1727
        %v1785 = vadd.f32 %v1402, %v1731
        %v1786 = vadd.f32 %v1404, %v1733
        %v1787 = vadd.f32 %v1408, %v1737
        %v1788 = vadd.f32 %v1410, %v1739
        %vm1789 = vcmask 1044480
        %v1790 = vrot.slane %v746, 3
        %v1791 = vrot.slane %v747, 3
        %v1792 = vsel %vm1789, %v1790, %v1791
        %v1793 = vrot.slane %v748, 3
        %v1794 = vsel %vm1789, %v1791, %v1793
        %v1795 = vrot.slane %v749, 3
        %v1796 = vsel %vm1789, %v1793, %v1795
        %v1797 = vrot.slane %v750, 3
        %v1798 = vrot.slane %v751, 3
        %v1799 = vsel %vm1789, %v1797, %v1798
        %v1800 = vrot.slane %v752, 3
        %v1801 = vsel %vm1789, %v1798, %v1800
        %v1802 = vrot.slane %v753, 3
        %v1803 = vsel %vm1789, %v1800, %v1802
        %v1804 = vrot.slane %v754, 3
        %v1805 = vrot.slane %v755, 3
        %v1806 = vsel %vm1789, %v1804, %v1805
        %v1807 = vrot.slane %v756, 3
        %v1808 = vsel %vm1789, %v1805, %v1807
        %v1809 = vrot.slane %v757, 3
        %v1810 = vsel %vm1789, %v1807, %v1809
        %v1811 = vrot.slane %v758, 3
        %v1812 = vrot.slane %v759, 3
        %v1813 = vsel %vm1789, %v1811, %v1812
        %v1814 = vrot.slane %v760, 3
        %v1815 = vsel %vm1789, %v1812, %v1814
        %v1816 = vrot.slane %v761, 3
        %v1817 = vsel %vm1789, %v1814, %v1816
        %v1818 = vrot.slane %v762, 3
        %v1819 = vrot.slane %v763, 3
        %v1820 = vsel %vm1789, %v1818, %v1819
        %v1821 = vrot.slane %v764, 3
        %v1822 = vsel %vm1789, %v1819, %v1821
        %v1823 = vrot.slane %v765, 3
        %v1824 = vsel %vm1789, %v1821, %v1823
        %v1825 = vrot.slane %v766, 3
        %v1826 = vrot.slane %v767, 3
        %v1827 = vsel %vm1789, %v1825, %v1826
        %v1828 = vrot.slane %v768, 3
        %v1829 = vsel %vm1789, %v1826, %v1828
        %v1830 = vrot.slane %v769, 3
        %v1831 = vsel %vm1789, %v1828, %v1830
        %v1832 = vrot.slane %v770, 3
        %v1833 = vrot.slane %v771, 3
        %v1834 = vsel %vm1789, %v1832, %v1833
        %v1835 = vrot.slane %v772, 3
        %v1836 = vsel %vm1789, %v1833, %v1835
        %v1837 = vrot.slane %v773, 3
        %v1838 = vsel %vm1789, %v1835, %v1837
        %v1839 = vrot.slane %v774, 3
        %v1840 = vrot.slane %v775, 3
        %v1841 = vsel %vm1789, %v1839, %v1840
        %v1842 = vrot.slane %v776, 3
        %v1843 = vsel %vm1789, %v1840, %v1842
        %v1844 = vrot.slane %v777, 3
        %v1845 = vsel %vm1789, %v1842, %v1844
        %s1846 = scalar_lea.vmem %s1, 192
        %v1847 = vld [vmem:[%s1846] sm:$0xff]
        %v1848 = vld [vmem:[%s1846 + $0x8] sm:$0xff]
        %v1849 = vld [vmem:[%s1846 + $0x10] sm:$0xff]
        %v1850 = vld [vmem:[%s1846 + $0x18] sm:$0xff]
        %v1851 = vld [vmem:[%s1846 + $0x20] sm:$0xff]
        %v1852 = vld [vmem:[%s1846 + $0x28] sm:$0xff]
        %v1853 = vld [vmem:[%s1846 + $0x30] sm:$0xf]
        %v1854 = vld [vmem:[%s1846 + $0x38] sm:$0xf]
        %v1855 = vsel %vm884, %v1792, 0
        %v1857 = vsel %vm884, %v1794, 0
        %v1859 = vsel %vm884, %v1796, 0
        %v1861 = vsel %vm884, %v1799, 0
        %v1863 = vsel %vm884, %v1801, 0
        %v1865 = vsel %vm884, %v1803, 0
        %v1867 = vsel %vm884, %v1806, 0
        %v1869 = vsel %vm884, %v1808, 0
        %v1871 = vsel %vm884, %v1810, 0
        %v1873 = vsel %vm884, %v1813, 0
        %v1875 = vsel %vm884, %v1815, 0
        %v1877 = vsel %vm884, %v1817, 0
        %v1879 = vsel %vm884, %v1820, 0
        %v1881 = vsel %vm884, %v1822, 0
        %v1883 = vsel %vm884, %v1824, 0
        %v1885 = vsel %vm884, %v1827, 0
        %v1887 = vsel %vm884, %v1829, 0
        %v1889 = vsel %vm884, %v1831, 0
        %v1891 = vsel %vm884, %v1834, 0
        %v1893 = vsel %vm884, %v1836, 0
        %v1895 = vsel %vm884, %v1838, 0
        %v1897 = vsel %vm884, %v1841, 0
        %v1899 = vsel %vm884, %v1843, 0
        %v1901 = vsel %vm884, %v1845, 0
        %v1904 = vsel %vm933, %v1853, 0
        %v1907 = vsel %vm933, %v1854, 0
        %1909 = vmatprep.subr.mxu0 %v1848
        %1910 = vmatpush1.msra.mxu0 %v1847
        %1911 = vmatprep.subr.mxu0 %v1850
        %1912 = vmatpush1.msra.mxu0 %v1849
        %1913 = vmatprep.subr.mxu0 %v1852
        %1914 = vmatpush1.msra.mxu0 %v1851
        %1915 = vmatprep.subr.mxu0 %v1907
        %1916 = vmatpush1.msra.mxu0 %v1904
        %1917 = vmatprep.subr.mxu0 0.0
        %1918 = vmatpush1.msra.mxu0 0.0
        %1919 = vmatprep.subr.mxu0 0.0
        %1920 = vmatpush1.msra.mxu0 0.0
        %1921 = vmatprep.subr.mxu0 0.0
        %1922 = vmatpush1.msra.mxu0 0.0
        %1923 = vmatprep.subr.mxu0 0.0
        %1924 = vmatpush1.msra.mxu0 0.0
        %1925 = vmatprep.subr.mxu0 0.0
        %1926 = vmatpush1.msra.mxu0 0.0
        %1927 = vmatprep.subr.mxu0 0.0
        %1928 = vmatpush1.msra.mxu0 0.0
        %1929 = vmatprep.subr.mxu0 0.0
        %1930 = vmatpush1.msra.mxu0 0.0
        %1931 = vmatprep.subr.mxu0 0.0
        %1932 = vmatpush1.msra.mxu0 0.0
        %1933 = vmatprep.subr.mxu0 0.0
        %1934 = vmatpush1.msra.mxu0 0.0
        %1935 = vmatprep.subr.mxu0 0.0
        %1936 = vmatpush1.msra.mxu0 0.0
        %1937 = vmatprep.subr.mxu0 0.0
        %1938 = vmatpush1.msra.mxu0 0.0
        %1939 = vmatprep.subr.mxu0 0.0
        %1940 = vmatpush1.msra.mxu0 0.0
        %1941 = vmatprep.subr.mxu0 0.0
        %1942 = vmatpush1.msra.mxu0 0.0
        %1943 = vmatprep.subr.mxu0 0.0
        %1944 = vmatpush1.msra.mxu0 0.0
        %1945 = vmatprep.subr.mxu0 0.0
        %1946 = vmatpush1.msra.mxu0 0.0
        %1947 = vmatprep.subr.mxu0 0.0
        %1948 = vmatpush1.msra.mxu0 0.0
        %1949 = vmatprep.subr.mxu0 0.0
        %1950 = vmatpush1.msra.mxu0 0.0
        %1951 = vmatprep.subr.mxu0 0.0
        %1952 = vmatpush1.msra.mxu0 0.0
        %1953 = vmatprep.subr.mxu0 0.0
        %1954 = vmatpush1.msra.mxu0 0.0
        %1955 = vmatprep.subr.mxu0 0.0
        %1956 = vmatpush1.msra.mxu0 0.0
        %1957 = vmatprep.subr.mxu0 0.0
        %1958 = vmatpush1.msra.mxu0 0.0
        %1959 = vmatprep.subr.mxu0 0.0
        %1960 = vmatpush1.msra.mxu0 0.0
        %1961 = vmatprep.subr.mxu0 0.0
        %1962 = vmatpush1.msra.mxu0 0.0
        %1963 = vmatprep.subr.mxu0 0.0
        %1964 = vmatpush1.msra.mxu0 0.0
        %1965 = vmatprep.subr.mxu0 0.0
        %1966 = vmatpush1.msra.mxu0 0.0
        %1967 = vmatprep.subr.mxu0 0.0
        %1968 = vmatpush1.msra.mxu0 0.0
        %1969 = vmatprep.subr.mxu0 0.0
        %1970 = vmatpush1.msra.mxu0 0.0
        %1971 = vmatprep.subr.mxu0 0.0
        %1972 = vmatpush1.msra.mxu0 0.0
        %1973 = vmatprep.mubr.f32.mxu0 0.0
        %1974 = vmatmul.mubr.f32.gmra.mrb[0].mxu0 %v1855
        %v1975 = vpop.f32.mrb[0].mxu0
        %v1976 = vadd.f32 0.0, %v1975
        %v1977 = vpop.f32.mrb[0].mxu0
        %v1978 = vadd.f32 0.0, %v1977
        %1979 = vmatprep.mubr.f32.mxu0 0.0
        %1980 = vmatmul.mubr.f32.gmra.mrb[0].mxu0 %v1857
        %v1981 = vpop.f32.mrb[0].mxu0
        %v1982 = vadd.f32 0.0, %v1981
        %v1983 = vpop.f32.mrb[0].mxu0
        %v1984 = vadd.f32 0.0, %v1983
        %1985 = vmatprep.mubr.f32.mxu0 0.0
        %1986 = vmatmul.mubr.f32.gmra.mrb[0].mxu0 %v1859
        %v1987 = vpop.f32.mrb[0].mxu0
        %v1988 = vadd.f32 0.0, %v1987
        %v1989 = vpop.f32.mrb[0].mxu0
        %v1990 = vadd.f32 0.0, %v1989
        %1991 = vmatprep.mubr.f32.mxu0 0.0
        %1992 = vmatmul.mubr.f32.gmra.mrb[0].mxu0 %v1861
        %v1993 = vpop.f32.mrb[0].mxu0
        %v1994 = vadd.f32 0.0, %v1993
        %v1995 = vpop.f32.mrb[0].mxu0
        %v1996 = vadd.f32 0.0, %v1995
        %1997 = vmatprep.mubr.f32.mxu0 0.0
        %1998 = vmatmul.mubr.f32.gmra.mrb[0].mxu0 %v1863
        %v1999 = vpop.f32.mrb[0].mxu0
        %v2000 = vadd.f32 0.0, %v1999
        %v2001 = vpop.f32.mrb[0].mxu0
        %v2002 = vadd.f32 0.0, %v2001
        %2003 = vmatprep.mubr.f32.mxu0 0.0
        %2004 = vmatmul.mubr.f32.gmra.mrb[0].mxu0 %v1865
        %v2005 = vpop.f32.mrb[0].mxu0
        %v2006 = vadd.f32 0.0, %v2005
        %v2007 = vpop.f32.mrb[0].mxu0
        %v2008 = vadd.f32 0.0, %v2007
        %2009 = vmatprep.mubr.f32.mxu0 0.0
        %2010 = vmatmul.mubr.f32.gmra.mrb[0].mxu0 %v1867
        %v2011 = vpop.f32.mrb[0].mxu0
        %v2012 = vadd.f32 0.0, %v2011
        %v2013 = vpop.f32.mrb[0].mxu0
        %v2014 = vadd.f32 0.0, %v2013
        %2015 = vmatprep.mubr.f32.mxu0 0.0
        %2016 = vmatmul.mubr.f32.gmra.mrb[0].mxu0 %v1869
        %v2017 = vpop.f32.mrb[0].mxu0
        %v2018 = vadd.f32 0.0, %v2017
        %v2019 = vpop.f32.mrb[0].mxu0
        %v2020 = vadd.f32 0.0, %v2019
        %2021 = vmatprep.mubr.f32.mxu0 0.0
        %2022 = vmatmul.mubr.f32.gmra.mrb[0].mxu0 %v1871
        %v2023 = vpop.f32.mrb[0].mxu0
        %v2024 = vadd.f32 0.0, %v2023
        %v2025 = vpop.f32.mrb[0].mxu0
        %v2026 = vadd.f32 0.0, %v2025
        %2027 = vmatprep.mubr.f32.mxu0 0.0
        %2028 = vmatmul.mubr.f32.gmra.mrb[0].mxu0 %v1873
        %v2029 = vpop.f32.mrb[0].mxu0
        %v2030 = vadd.f32 0.0, %v2029
        %v2031 = vpop.f32.mrb[0].mxu0
        %v2032 = vadd.f32 0.0, %v2031
        %2033 = vmatprep.mubr.f32.mxu0 0.0
        %2034 = vmatmul.mubr.f32.gmra.mrb[0].mxu0 %v1875
        %v2035 = vpop.f32.mrb[0].mxu0
        %v2036 = vadd.f32 0.0, %v2035
        %v2037 = vpop.f32.mrb[0].mxu0
        %v2038 = vadd.f32 0.0, %v2037
        %2039 = vmatprep.mubr.f32.mxu0 0.0
        %2040 = vmatmul.mubr.f32.gmra.mrb[0].mxu0 %v1877
        %v2041 = vpop.f32.mrb[0].mxu0
        %v2042 = vadd.f32 0.0, %v2041
        %v2043 = vpop.f32.mrb[0].mxu0
        %v2044 = vadd.f32 0.0, %v2043
        %2045 = vmatprep.mubr.f32.mxu0 0.0
        %2046 = vmatmul.mubr.f32.gmra.mrb[0].mxu0 %v1879
        %v2047 = vpop.f32.mrb[0].mxu0
        %v2048 = vadd.f32 0.0, %v2047
        %v2049 = vpop.f32.mrb[0].mxu0
        %v2050 = vadd.f32 0.0, %v2049
        %2051 = vmatprep.mubr.f32.mxu0 0.0
        %2052 = vmatmul.mubr.f32.gmra.mrb[0].mxu0 %v1881
        %v2053 = vpop.f32.mrb[0].mxu0
        %v2054 = vadd.f32 0.0, %v2053
        %v2055 = vpop.f32.mrb[0].mxu0
        %v2056 = vadd.f32 0.0, %v2055
        %2057 = vmatprep.mubr.f32.mxu0 0.0
        %2058 = vmatmul.mubr.f32.gmra.mrb[0].mxu0 %v1883
        %v2059 = vpop.f32.mrb[0].mxu0
        %v2060 = vadd.f32 0.0, %v2059
        %v2061 = vpop.f32.mrb[0].mxu0
        %v2062 = vadd.f32 0.0, %v2061
        %2063 = vmatprep.mubr.f32.mxu0 0.0
        %2064 = vmatmul.mubr.f32.gmra.mrb[0].mxu0 %v1885
        %v2065 = vpop.f32.mrb[0].mxu0
        %v2066 = vadd.f32 0.0, %v2065
        %v2067 = vpop.f32.mrb[0].mxu0
        %v2068 = vadd.f32 0.0, %v2067
        %2069 = vmatprep.mubr.f32.mxu0 0.0
        %2070 = vmatmul.mubr.f32.gmra.mrb[0].mxu0 %v1887
        %v2071 = vpop.f32.mrb[0].mxu0
        %v2072 = vadd.f32 0.0, %v2071
        %v2073 = vpop.f32.mrb[0].mxu0
        %v2074 = vadd.f32 0.0, %v2073
        %2075 = vmatprep.mubr.f32.mxu0 0.0
        %2076 = vmatmul.mubr.f32.gmra.mrb[0].mxu0 %v1889
        %v2077 = vpop.f32.mrb[0].mxu0
        %v2078 = vadd.f32 0.0, %v2077
        %v2079 = vpop.f32.mrb[0].mxu0
        %v2080 = vadd.f32 0.0, %v2079
        %2081 = vmatprep.mubr.f32.mxu0 0.0
        %2082 = vmatmul.mubr.f32.gmra.mrb[0].mxu0 %v1891
        %v2083 = vpop.f32.mrb[0].mxu0
        %v2084 = vadd.f32 0.0, %v2083
        %v2085 = vpop.f32.mrb[0].mxu0
        %v2086 = vadd.f32 0.0, %v2085
        %2087 = vmatprep.mubr.f32.mxu0 0.0
        %2088 = vmatmul.mubr.f32.gmra.mrb[0].mxu0 %v1893
        %v2089 = vpop.f32.mrb[0].mxu0
        %v2090 = vadd.f32 0.0, %v2089
        %v2091 = vpop.f32.mrb[0].mxu0
        %v2092 = vadd.f32 0.0, %v2091
        %2093 = vmatprep.mubr.f32.mxu0 0.0
        %2094 = vmatmul.mubr.f32.gmra.mrb[0].mxu0 %v1895
        %v2095 = vpop.f32.mrb[0].mxu0
        %v2096 = vadd.f32 0.0, %v2095
        %v2097 = vpop.f32.mrb[0].mxu0
        %v2098 = vadd.f32 0.0, %v2097
        %2099 = vmatprep.mubr.f32.mxu0 0.0
        %2100 = vmatmul.mubr.f32.gmra.mrb[0].mxu0 %v1897
        %v2101 = vpop.f32.mrb[0].mxu0
        %v2102 = vadd.f32 0.0, %v2101
        %v2103 = vpop.f32.mrb[0].mxu0
        %v2104 = vadd.f32 0.0, %v2103
        %2105 = vmatprep.mubr.f32.mxu0 0.0
        %2106 = vmatmul.mubr.f32.gmra.mrb[0].mxu0 %v1899
        %v2107 = vpop.f32.mrb[0].mxu0
        %v2108 = vadd.f32 0.0, %v2107
        %v2109 = vpop.f32.mrb[0].mxu0
        %v2110 = vadd.f32 0.0, %v2109
        %2111 = vmatprep.mubr.f32.mxu0 0.0
        %2112 = vmatmul.mubr.f32.gmra.mrb[0].mxu0 %v1901
        %v2113 = vpop.f32.mrb[0].mxu0
        %v2114 = vadd.f32 0.0, %v2113
        %v2115 = vpop.f32.mrb[0].mxu0
        %v2116 = vadd.f32 0.0, %v2115
        %2117 = vdwg.mxu0
        %v2118 = vadd.f32 %v1741, %v1976
        %v2119 = vadd.f32 %v1742, %v1978
        %v2120 = vadd.f32 %v1743, %v1982
        %v2121 = vadd.f32 %v1744, %v1984
        %v2122 = vadd.f32 %v1745, %v1988
        %v2123 = vadd.f32 %v1746, %v1990
        %v2124 = vadd.f32 %v1747, %v1994
        %v2125 = vadd.f32 %v1748, %v1996
        %v2126 = vadd.f32 %v1749, %v2000
        %v2127 = vadd.f32 %v1750, %v2002
        %v2128 = vadd.f32 %v1751, %v2006
        %v2129 = vadd.f32 %v1752, %v2008
        %v2130 = vadd.f32 %v1753, %v2012
        %v2131 = vadd.f32 %v1754, %v2014
        %v2132 = vadd.f32 %v1755, %v2018
        %v2133 = vadd.f32 %v1756, %v2020
        %v2134 = vadd.f32 %v1757, %v2024
        %v2135 = vadd.f32 %v1758, %v2026
        %v2136 = vadd.f32 %v1759, %v2030
        %v2137 = vadd.f32 %v1760, %v2032
        %v2138 = vadd.f32 %v1761, %v2036
        %v2139 = vadd.f32 %v1762, %v2038
        %v2140 = vadd.f32 %v1763, %v2042
        %v2141 = vadd.f32 %v1764, %v2044
        %v2142 = vadd.f32 %v1765, %v2048
        %v2143 = vadd.f32 %v1766, %v2050
        %v2144 = vadd.f32 %v1767, %v2054
        %v2145 = vadd.f32 %v1768, %v2056
        %v2146 = vadd.f32 %v1769, %v2060
        %v2147 = vadd.f32 %v1770, %v2062
        %v2148 = vadd.f32 %v1771, %v2066
        %v2149 = vadd.f32 %v1772, %v2068
        %v2150 = vadd.f32 %v1773, %v2072
        %v2151 = vadd.f32 %v1774, %v2074
        %v2152 = vadd.f32 %v1775, %v2078
        %v2153 = vadd.f32 %v1776, %v2080
        %v2154 = vadd.f32 %v1777, %v2084
        %v2155 = vadd.f32 %v1778, %v2086
        %v2156 = vadd.f32 %v1779, %v2090
        %v2157 = vadd.f32 %v1780, %v2092
        %v2158 = vadd.f32 %v1781, %v2096
        %v2159 = vadd.f32 %v1782, %v2098
        %v2160 = vadd.f32 %v1783, %v2102
        %v2161 = vadd.f32 %v1784, %v2104
        %v2162 = vadd.f32 %v1785, %v2108
        %v2163 = vadd.f32 %v1786, %v2110
        %v2164 = vadd.f32 %v1787, %v2114
        %v2165 = vadd.f32 %v1788, %v2116
        %v2166 = vrot.slane %v746, 4
        %v2167 = vrot.slane %v747, 4
        %v2168 = vsel %vm933, %v2166, %v2167
        %v2169 = vrot.slane %v748, 4
        %v2170 = vsel %vm933, %v2167, %v2169
        %v2171 = vrot.slane %v749, 4
        %v2172 = vsel %vm933, %v2169, %v2171
        %v2173 = vrot.slane %v750, 4
        %v2174 = vrot.slane %v751, 4
        %v2175 = vsel %vm933, %v2173, %v2174
        %v2176 = vrot.slane %v752, 4
        %v2177 = vsel %vm933, %v2174, %v2176
        %v2178 = vrot.slane %v753, 4
        %v2179 = vsel %vm933, %v2176, %v2178
        %v2180 = vrot.slane %v754, 4
        %v2181 = vrot.slane %v755, 4
        %v2182 = vsel %vm933, %v2180, %v2181
        %v2183 = vrot.slane %v756, 4
        %v2184 = vsel %vm933, %v2181, %v2183
        %v2185 = vrot.slane %v757, 4
        %v2186 = vsel %vm933, %v2183, %v2185
        %v2187 = vrot.slane %v758, 4
        %v2188 = vrot.slane %v759, 4
        %v2189 = vsel %vm933, %v2187, %v2188
        %v2190 = vrot.slane %v760, 4
        %v2191 = vsel %vm933, %v2188, %v2190
        %v2192 = vrot.slane %v761, 4
        %v2193 = vsel %vm933, %v2190, %v2192
        %v2194 = vrot.slane %v762, 4
        %v2195 = vrot.slane %v763, 4
        %v2196 = vsel %vm933, %v2194, %v2195
        %v2197 = vrot.slane %v764, 4
        %v2198 = vsel %vm933, %v2195, %v2197
        %v2199 = vrot.slane %v765, 4
        %v2200 = vsel %vm933, %v2197, %v2199
        %v2201 = vrot.slane %v766, 4
        %v2202 = vrot.slane %v767, 4
        %v2203 = vsel %vm933, %v2201, %v2202
        %v2204 = vrot.slane %v768, 4
        %v2205 = vsel %vm933, %v2202, %v2204
        %v2206 = vrot.slane %v769, 4
        %v2207 = vsel %vm933, %v2204, %v2206
        %v2208 = vrot.slane %v770, 4
        %v2209 = vrot.slane %v771, 4
        %v2210 = vsel %vm933, %v2208, %v2209
        %v2211 = vrot.slane %v772, 4
        %v2212 = vsel %vm933, %v2209, %v2211
        %v2213 = vrot.slane %v773, 4
        %v2214 = vsel %vm933, %v2211, %v2213
        %v2215 = vrot.slane %v774, 4
        %v2216 = vrot.slane %v775, 4
        %v2217 = vsel %vm933, %v2215, %v2216
        %v2218 = vrot.slane %v776, 4
        %v2219 = vsel %vm933, %v2216, %v2218
        %v2220 = vrot.slane %v777, 4
        %v2221 = vsel %vm933, %v2218, %v2220
        %s2222 = scalar_lea.vmem %s1, 256
        %v2223 = vld [vmem:[%s2222] sm:$0xff]
        %v2224 = vld [vmem:[%s2222 + $0x8] sm:$0xff]
        %v2225 = vld [vmem:[%s2222 + $0x10] sm:$0xff]
        %v2226 = vld [vmem:[%s2222 + $0x18] sm:$0xff]
        %v2227 = vld [vmem:[%s2222 + $0x20] sm:$0xff]
        %v2228 = vld [vmem:[%s2222 + $0x28] sm:$0xff]
        %v2229 = vld [vmem:[%s2222 + $0x30] sm:$0xf]
        %v2230 = vld [vmem:[%s2222 + $0x38] sm:$0xf]
        %v2231 = vsel %vm884, %v2168, 0
        %v2233 = vsel %vm884, %v2170, 0
        %v2235 = vsel %vm884, %v2172, 0
        %v2237 = vsel %vm884, %v2175, 0
        %v2239 = vsel %vm884, %v2177, 0
        %v2241 = vsel %vm884, %v2179, 0
        %v2243 = vsel %vm884, %v2182, 0
        %v2245 = vsel %vm884, %v2184, 0
        %v2247 = vsel %vm884, %v2186, 0
        %v2249 = vsel %vm884, %v2189, 0
        %v2251 = vsel %vm884, %v2191, 0
        %v2253 = vsel %vm884, %v2193, 0
        %v2255 = vsel %vm884, %v2196, 0
        %v2257 = vsel %vm884, %v2198, 0
        %v2259 = vsel %vm884, %v2200, 0
        %v2261 = vsel %vm884, %v2203, 0
        %v2263 = vsel %vm884, %v2205, 0
        %v2265 = vsel %vm884, %v2207, 0
        %v2267 = vsel %vm884, %v2210, 0
        %v2269 = vsel %vm884, %v2212, 0
        %v2271 = vsel %vm884, %v2214, 0
        %v2273 = vsel %vm884, %v2217, 0
        %v2275 = vsel %vm884, %v2219, 0
        %v2277 = vsel %vm884, %v2221, 0
        %v2280 = vsel %vm933, %v2229, 0
        %v2283 = vsel %vm933, %v2230, 0
        %2285 = vmatprep.subr.mxu0 %v2224
        %2286 = vmatpush1.msra.mxu0 %v2223
        %2287 = vmatprep.subr.mxu0 %v2226
        %2288 = vmatpush1.msra.mxu0 %v2225
        %2289 = vmatprep.subr.mxu0 %v2228
        %2290 = vmatpush1.msra.mxu0 %v2227
        %2291 = vmatprep.subr.mxu0 %v2283
        %2292 = vmatpush1.msra.mxu0 %v2280
        %2293 = vmatprep.subr.mxu0 0.0
        %2294 = vmatpush1.msra.mxu0 0.0
        %2295 = vmatprep.subr.mxu0 0.0
        %2296 = vmatpush1.msra.mxu0 0.0
        %2297 = vmatprep.subr.mxu0 0.0
        %2298 = vmatpush1.msra.mxu0 0.0
        %2299 = vmatprep.subr.mxu0 0.0
        %2300 = vmatpush1.msra.mxu0 0.0
        %2301 = vmatprep.subr.mxu0 0.0
        %2302 = vmatpush1.msra.mxu0 0.0
        %2303 = vmatprep.subr.mxu0 0.0
        %2304 = vmatpush1.msra.mxu0 0.0
        %2305 = vmatprep.subr.mxu0 0.0
        %2306 = vmatpush1.msra.mxu0 0.0
        %2307 = vmatprep.subr.mxu0 0.0
        %2308 = vmatpush1.msra.mxu0 0.0
        %2309 = vmatprep.subr.mxu0 0.0
        %2310 = vmatpush1.msra.mxu0 0.0
        %2311 = vmatprep.subr.mxu0 0.0
        %2312 = vmatpush1.msra.mxu0 0.0
        %2313 = vmatprep.subr.mxu0 0.0
        %2314 = vmatpush1.msra.mxu0 0.0
        %2315 = vmatprep.subr.mxu0 0.0
        %2316 = vmatpush1.msra.mxu0 0.0
        %2317 = vmatprep.subr.mxu0 0.0
        %2318 = vmatpush1.msra.mxu0 0.0
        %2319 = vmatprep.subr.mxu0 0.0
        %2320 = vmatpush1.msra.mxu0 0.0
        %2321 = vmatprep.subr.mxu0 0.0
        %2322 = vmatpush1.msra.mxu0 0.0
        %2323 = vmatprep.subr.mxu0 0.0
        %2324 = vmatpush1.msra.mxu0 0.0
        %2325 = vmatprep.subr.mxu0 0.0
        %2326 = vmatpush1.msra.mxu0 0.0
        %2327 = vmatprep.subr.mxu0 0.0
        %2328 = vmatpush1.msra.mxu0 0.0
        %2329 = vmatprep.subr.mxu0 0.0
        %2330 = vmatpush1.msra.mxu0 0.0
        %2331 = vmatprep.subr.mxu0 0.0
        %2332 = vmatpush1.msra.mxu0 0.0
        %2333 = vmatprep.subr.mxu0 0.0
        %2334 = vmatpush1.msra.mxu0 0.0
        %2335 = vmatprep.subr.mxu0 0.0
        %2336 = vmatpush1.msra.mxu0 0.0
        %2337 = vmatprep.subr.mxu0 0.0
        %2338 = vmatpush1.msra.mxu0 0.0
        %2339 = vmatprep.subr.mxu0 0.0
        %2340 = vmatpush1.msra.mxu0 0.0
        %2341 = vmatprep.subr.mxu0 0.0
        %2342 = vmatpush1.msra.mxu0 0.0
        %2343 = vmatprep.subr.mxu0 0.0
        %2344 = vmatpush1.msra.mxu0 0.0
        %2345 = vmatprep.subr.mxu0 0.0
        %2346 = vmatpush1.msra.mxu0 0.0
        %2347 = vmatprep.subr.mxu0 0.0
        %2348 = vmatpush1.msra.mxu0 0.0
        %2349 = vmatprep.mubr.f32.mxu0 0.0
        %2350 = vmatmul.mubr.f32.gmra.mrb[0].mxu0 %v2231
        %v2351 = vpop.f32.mrb[0].mxu0
        %v2352 = vadd.f32 0.0, %v2351
        %v2353 = vpop.f32.mrb[0].mxu0
        %v2354 = vadd.f32 0.0, %v2353
        %2355 = vmatprep.mubr.f32.mxu0 0.0
        %2356 = vmatmul.mubr.f32.gmra.mrb[0].mxu0 %v2233
        %v2357 = vpop.f32.mrb[0].mxu0
        %v2358 = vadd.f32 0.0, %v2357
        %v2359 = vpop.f32.mrb[0].mxu0
        %v2360 = vadd.f32 0.0, %v2359
        %2361 = vmatprep.mubr.f32.mxu0 0.0
        %2362 = vmatmul.mubr.f32.gmra.mrb[0].mxu0 %v2235
        %v2363 = vpop.f32.mrb[0].mxu0
        %v2364 = vadd.f32 0.0, %v2363
        %v2365 = vpop.f32.mrb[0].mxu0
        %v2366 = vadd.f32 0.0, %v2365
        %2367 = vmatprep.mubr.f32.mxu0 0.0
        %2368 = vmatmul.mubr.f32.gmra.mrb[0].mxu0 %v2237
        %v2369 = vpop.f32.mrb[0].mxu0
        %v2370 = vadd.f32 0.0, %v2369
        %v2371 = vpop.f32.mrb[0].mxu0
        %v2372 = vadd.f32 0.0, %v2371
        %2373 = vmatprep.mubr.f32.mxu0 0.0
        %2374 = vmatmul.mubr.f32.gmra.mrb[0].mxu0 %v2239
        %v2375 = vpop.f32.mrb[0].mxu0
        %v2376 = vadd.f32 0.0, %v2375
        %v2377 = vpop.f32.mrb[0].mxu0
        %v2378 = vadd.f32 0.0, %v2377
        %2379 = vmatprep.mubr.f32.mxu0 0.0
        %2380 = vmatmul.mubr.f32.gmra.mrb[0].mxu0 %v2241
        %v2381 = vpop.f32.mrb[0].mxu0
        %v2382 = vadd.f32 0.0, %v2381
        %v2383 = vpop.f32.mrb[0].mxu0
        %v2384 = vadd.f32 0.0, %v2383
        %2385 = vmatprep.mubr.f32.mxu0 0.0
        %2386 = vmatmul.mubr.f32.gmra.mrb[0].mxu0 %v2243
        %v2387 = vpop.f32.mrb[0].mxu0
        %v2388 = vadd.f32 0.0, %v2387
        %v2389 = vpop.f32.mrb[0].mxu0
        %v2390 = vadd.f32 0.0, %v2389
        %2391 = vmatprep.mubr.f32.mxu0 0.0
        %2392 = vmatmul.mubr.f32.gmra.mrb[0].mxu0 %v2245
        %v2393 = vpop.f32.mrb[0].mxu0
        %v2394 = vadd.f32 0.0, %v2393
        %v2395 = vpop.f32.mrb[0].mxu0
        %v2396 = vadd.f32 0.0, %v2395
        %2397 = vmatprep.mubr.f32.mxu0 0.0
        %2398 = vmatmul.mubr.f32.gmra.mrb[0].mxu0 %v2247
        %v2399 = vpop.f32.mrb[0].mxu0
        %v2400 = vadd.f32 0.0, %v2399
        %v2401 = vpop.f32.mrb[0].mxu0
        %v2402 = vadd.f32 0.0, %v2401
        %2403 = vmatprep.mubr.f32.mxu0 0.0
        %2404 = vmatmul.mubr.f32.gmra.mrb[0].mxu0 %v2249
        %v2405 = vpop.f32.mrb[0].mxu0
        %v2406 = vadd.f32 0.0, %v2405
        %v2407 = vpop.f32.mrb[0].mxu0
        %v2408 = vadd.f32 0.0, %v2407
        %2409 = vmatprep.mubr.f32.mxu0 0.0
        %2410 = vmatmul.mubr.f32.gmra.mrb[0].mxu0 %v2251
        %v2411 = vpop.f32.mrb[0].mxu0
        %v2412 = vadd.f32 0.0, %v2411
        %v2413 = vpop.f32.mrb[0].mxu0
        %v2414 = vadd.f32 0.0, %v2413
        %2415 = vmatprep.mubr.f32.mxu0 0.0
        %2416 = vmatmul.mubr.f32.gmra.mrb[0].mxu0 %v2253
        %v2417 = vpop.f32.mrb[0].mxu0
        %v2418 = vadd.f32 0.0, %v2417
        %v2419 = vpop.f32.mrb[0].mxu0
        %v2420 = vadd.f32 0.0, %v2419
        %2421 = vmatprep.mubr.f32.mxu0 0.0
        %2422 = vmatmul.mubr.f32.gmra.mrb[0].mxu0 %v2255
        %v2423 = vpop.f32.mrb[0].mxu0
        %v2424 = vadd.f32 0.0, %v2423
        %v2425 = vpop.f32.mrb[0].mxu0
        %v2426 = vadd.f32 0.0, %v2425
        %2427 = vmatprep.mubr.f32.mxu0 0.0
        %2428 = vmatmul.mubr.f32.gmra.mrb[0].mxu0 %v2257
        %v2429 = vpop.f32.mrb[0].mxu0
        %v2430 = vadd.f32 0.0, %v2429
        %v2431 = vpop.f32.mrb[0].mxu0
        %v2432 = vadd.f32 0.0, %v2431
        %2433 = vmatprep.mubr.f32.mxu0 0.0
        %2434 = vmatmul.mubr.f32.gmra.mrb[0].mxu0 %v2259
        %v2435 = vpop.f32.mrb[0].mxu0
        %v2436 = vadd.f32 0.0, %v2435
        %v2437 = vpop.f32.mrb[0].mxu0
        %v2438 = vadd.f32 0.0, %v2437
        %2439 = vmatprep.mubr.f32.mxu0 0.0
        %2440 = vmatmul.mubr.f32.gmra.mrb[0].mxu0 %v2261
        %v2441 = vpop.f32.mrb[0].mxu0
        %v2442 = vadd.f32 0.0, %v2441
        %v2443 = vpop.f32.mrb[0].mxu0
        %v2444 = vadd.f32 0.0, %v2443
        %2445 = vmatprep.mubr.f32.mxu0 0.0
        %2446 = vmatmul.mubr.f32.gmra.mrb[0].mxu0 %v2263
        %v2447 = vpop.f32.mrb[0].mxu0
        %v2448 = vadd.f32 0.0, %v2447
        %v2449 = vpop.f32.mrb[0].mxu0
        %v2450 = vadd.f32 0.0, %v2449
        %2451 = vmatprep.mubr.f32.mxu0 0.0
        %2452 = vmatmul.mubr.f32.gmra.mrb[0].mxu0 %v2265
        %v2453 = vpop.f32.mrb[0].mxu0
        %v2454 = vadd.f32 0.0, %v2453
        %v2455 = vpop.f32.mrb[0].mxu0
        %v2456 = vadd.f32 0.0, %v2455
        %2457 = vmatprep.mubr.f32.mxu0 0.0
        %2458 = vmatmul.mubr.f32.gmra.mrb[0].mxu0 %v2267
        %v2459 = vpop.f32.mrb[0].mxu0
        %v2460 = vadd.f32 0.0, %v2459
        %v2461 = vpop.f32.mrb[0].mxu0
        %v2462 = vadd.f32 0.0, %v2461
        %2463 = vmatprep.mubr.f32.mxu0 0.0
        %2464 = vmatmul.mubr.f32.gmra.mrb[0].mxu0 %v2269
        %v2465 = vpop.f32.mrb[0].mxu0
        %v2466 = vadd.f32 0.0, %v2465
        %v2467 = vpop.f32.mrb[0].mxu0
        %v2468 = vadd.f32 0.0, %v2467
        %2469 = vmatprep.mubr.f32.mxu0 0.0
        %2470 = vmatmul.mubr.f32.gmra.mrb[0].mxu0 %v2271
        %v2471 = vpop.f32.mrb[0].mxu0
        %v2472 = vadd.f32 0.0, %v2471
        %v2473 = vpop.f32.mrb[0].mxu0
        %v2474 = vadd.f32 0.0, %v2473
        %2475 = vmatprep.mubr.f32.mxu0 0.0
        %2476 = vmatmul.mubr.f32.gmra.mrb[0].mxu0 %v2273
        %v2477 = vpop.f32.mrb[0].mxu0
        %v2478 = vadd.f32 0.0, %v2477
        %v2479 = vpop.f32.mrb[0].mxu0
        %v2480 = vadd.f32 0.0, %v2479
        %2481 = vmatprep.mubr.f32.mxu0 0.0
        %2482 = vmatmul.mubr.f32.gmra.mrb[0].mxu0 %v2275
        %v2483 = vpop.f32.mrb[0].mxu0
        %v2484 = vadd.f32 0.0, %v2483
        %v2485 = vpop.f32.mrb[0].mxu0
        %v2486 = vadd.f32 0.0, %v2485
        %2487 = vmatprep.mubr.f32.mxu0 0.0
        %2488 = vmatmul.mubr.f32.gmra.mrb[0].mxu0 %v2277
        %v2489 = vpop.f32.mrb[0].mxu0
        %v2490 = vadd.f32 0.0, %v2489
        %v2491 = vpop.f32.mrb[0].mxu0
        %v2492 = vadd.f32 0.0, %v2491
        %2493 = vdwg.mxu0
        %v2494 = vadd.f32 %v2118, %v2352
        %v2495 = vadd.f32 %v2119, %v2354
        %v2496 = vadd.f32 %v2120, %v2358
        %v2497 = vadd.f32 %v2121, %v2360
        %v2498 = vadd.f32 %v2122, %v2364
        %v2499 = vadd.f32 %v2123, %v2366
        %v2500 = vadd.f32 %v2124, %v2370
        %v2501 = vadd.f32 %v2125, %v2372
        %v2502 = vadd.f32 %v2126, %v2376
        %v2503 = vadd.f32 %v2127, %v2378
        %v2504 = vadd.f32 %v2128, %v2382
        %v2505 = vadd.f32 %v2129, %v2384
        %v2506 = vadd.f32 %v2130, %v2388
        %v2507 = vadd.f32 %v2131, %v2390
        %v2508 = vadd.f32 %v2132, %v2394
        %v2509 = vadd.f32 %v2133, %v2396
        %v2510 = vadd.f32 %v2134, %v2400
        %v2511 = vadd.f32 %v2135, %v2402
        %v2512 = vadd.f32 %v2136, %v2406
        %v2513 = vadd.f32 %v2137, %v2408
        %v2514 = vadd.f32 %v2138, %v2412
        %v2515 = vadd.f32 %v2139, %v2414
        %v2516 = vadd.f32 %v2140, %v2418
        %v2517 = vadd.f32 %v2141, %v2420
        %v2518 = vadd.f32 %v2142, %v2424
        %v2519 = vadd.f32 %v2143, %v2426
        %v2520 = vadd.f32 %v2144, %v2430
        %v2521 = vadd.f32 %v2145, %v2432
        %v2522 = vadd.f32 %v2146, %v2436
        %v2523 = vadd.f32 %v2147, %v2438
        %v2524 = vadd.f32 %v2148, %v2442
        %v2525 = vadd.f32 %v2149, %v2444
        %v2526 = vadd.f32 %v2150, %v2448
        %v2527 = vadd.f32 %v2151, %v2450
        %v2528 = vadd.f32 %v2152, %v2454
        %v2529 = vadd.f32 %v2153, %v2456
        %v2530 = vadd.f32 %v2154, %v2460
        %v2531 = vadd.f32 %v2155, %v2462
        %v2532 = vadd.f32 %v2156, %v2466
        %v2533 = vadd.f32 %v2157, %v2468
        %v2534 = vadd.f32 %v2158, %v2472
        %v2535 = vadd.f32 %v2159, %v2474
        %v2536 = vadd.f32 %v2160, %v2478
        %v2537 = vadd.f32 %v2161, %v2480
        %v2538 = vadd.f32 %v2162, %v2484
        %v2539 = vadd.f32 %v2163, %v2486
        %v2540 = vadd.f32 %v2164, %v2490
        %v2541 = vadd.f32 %v2165, %v2492
        %v2542 = vld [vmem:[%s2] sm:$0x3]
        %v2544 = vlaneseq
        %v2545 = vshrl.u32 %v2544, 7
        %v2546 = vsub.s32 0, %v2545
        %v2547 = vrot.slane %v2542, %v2546
        %v2548 = vlaneseq
        %v2549 = vshrl.u32 %v2548, 7
        %v2550 = vsub.s32 1, %v2549
        %v2551 = vrot.slane %v2542, %v2550
        %v2554 = vadd.f32 %v2494, %v2547
        %v2555 = vadd.f32 %v2495, %v2551
        %v2556 = vadd.f32 %v2496, %v2547
        %v2557 = vadd.f32 %v2497, %v2551
        %v2558 = vadd.f32 %v2498, %v2547
        %v2559 = vadd.f32 %v2499, %v2551
        %v2560 = vadd.f32 %v2500, %v2547
        %v2561 = vadd.f32 %v2501, %v2551
        %v2562 = vadd.f32 %v2502, %v2547
        %v2563 = vadd.f32 %v2503, %v2551
        %v2564 = vadd.f32 %v2504, %v2547
        %v2565 = vadd.f32 %v2505, %v2551
        %v2566 = vadd.f32 %v2506, %v2547
        %v2567 = vadd.f32 %v2507, %v2551
        %v2568 = vadd.f32 %v2508, %v2547
        %v2569 = vadd.f32 %v2509, %v2551
        %v2570 = vadd.f32 %v2510, %v2547
        %v2571 = vadd.f32 %v2511, %v2551
        %v2572 = vadd.f32 %v2512, %v2547
        %v2573 = vadd.f32 %v2513, %v2551
        %v2574 = vadd.f32 %v2514, %v2547
        %v2575 = vadd.f32 %v2515, %v2551
        %v2576 = vadd.f32 %v2516, %v2547
        %v2577 = vadd.f32 %v2517, %v2551
        %v2578 = vadd.f32 %v2518, %v2547
        %v2579 = vadd.f32 %v2519, %v2551
        %v2580 = vadd.f32 %v2520, %v2547
        %v2581 = vadd.f32 %v2521, %v2551
        %v2582 = vadd.f32 %v2522, %v2547
        %v2583 = vadd.f32 %v2523, %v2551
        %v2584 = vadd.f32 %v2524, %v2547
        %v2585 = vadd.f32 %v2525, %v2551
        %v2586 = vadd.f32 %v2526, %v2547
        %v2587 = vadd.f32 %v2527, %v2551
        %v2588 = vadd.f32 %v2528, %v2547
        %v2589 = vadd.f32 %v2529, %v2551
        %v2590 = vadd.f32 %v2530, %v2547
        %v2591 = vadd.f32 %v2531, %v2551
        %v2592 = vadd.f32 %v2532, %v2547
        %v2593 = vadd.f32 %v2533, %v2551
        %v2594 = vadd.f32 %v2534, %v2547
        %v2595 = vadd.f32 %v2535, %v2551
        %v2596 = vadd.f32 %v2536, %v2547
        %v2597 = vadd.f32 %v2537, %v2551
        %v2598 = vadd.f32 %v2538, %v2547
        %v2599 = vadd.f32 %v2539, %v2551
        %v2600 = vadd.f32 %v2540, %v2547
        %v2601 = vadd.f32 %v2541, %v2551
        %v2602 = vmax.f32 %v2554, 0.0
        %v2603 = vmax.f32 %v2555, 0.0
        %v2604 = vmax.f32 %v2556, 0.0
        %v2605 = vmax.f32 %v2557, 0.0
        %v2606 = vmax.f32 %v2558, 0.0
        %v2607 = vmax.f32 %v2559, 0.0
        %v2608 = vmax.f32 %v2560, 0.0
        %v2609 = vmax.f32 %v2561, 0.0
        %v2610 = vmax.f32 %v2562, 0.0
        %v2611 = vmax.f32 %v2563, 0.0
        %v2612 = vmax.f32 %v2564, 0.0
        %v2613 = vmax.f32 %v2565, 0.0
        %v2614 = vmax.f32 %v2566, 0.0
        %v2615 = vmax.f32 %v2567, 0.0
        %v2616 = vmax.f32 %v2568, 0.0
        %v2617 = vmax.f32 %v2569, 0.0
        %v2618 = vmax.f32 %v2570, 0.0
        %v2619 = vmax.f32 %v2571, 0.0
        %v2620 = vmax.f32 %v2572, 0.0
        %v2621 = vmax.f32 %v2573, 0.0
        %v2622 = vmax.f32 %v2574, 0.0
        %v2623 = vmax.f32 %v2575, 0.0
        %v2624 = vmax.f32 %v2576, 0.0
        %v2625 = vmax.f32 %v2577, 0.0
        %v2626 = vmax.f32 %v2578, 0.0
        %v2627 = vmax.f32 %v2579, 0.0
        %v2628 = vmax.f32 %v2580, 0.0
        %v2629 = vmax.f32 %v2581, 0.0
        %v2630 = vmax.f32 %v2582, 0.0
        %v2631 = vmax.f32 %v2583, 0.0
        %v2632 = vmax.f32 %v2584, 0.0
        %v2633 = vmax.f32 %v2585, 0.0
        %v2634 = vmax.f32 %v2586, 0.0
        %v2635 = vmax.f32 %v2587, 0.0
        %v2636 = vmax.f32 %v2588, 0.0
        %v2637 = vmax.f32 %v2589, 0.0
        %v2638 = vmax.f32 %v2590, 0.0
        %v2639 = vmax.f32 %v2591, 0.0
        %v2640 = vmax.f32 %v2592, 0.0
        %v2641 = vmax.f32 %v2593, 0.0
        %v2642 = vmax.f32 %v2594, 0.0
        %v2643 = vmax.f32 %v2595, 0.0
        %v2644 = vmax.f32 %v2596, 0.0
        %v2645 = vmax.f32 %v2597, 0.0
        %v2646 = vmax.f32 %v2598, 0.0
        %v2647 = vmax.f32 %v2599, 0.0
        %v2648 = vmax.f32 %v2600, 0.0
        %v2649 = vmax.f32 %v2601, 0.0
        %v2650 = vld [vmem:[%s3] sm:$0x3]
        %v2651 = vld [vmem:[#allocation2] sm:$0x3]
        %v2652 = vlaneseq
        %v2653 = vshrl.u32 %v2652, 7
        %v2654 = vlaneseq
        %v2655 = vand.u32 %v2654, 127
        %v2656 = vadd.s32 %v2655, 128
        %v2657 = vmul.u32 %v2653, 24
        %vm2658 = vcmp.ge.s32.totalorder %v2655, %v2657
        %vm2659 = vcmp.ge.s32.totalorder %v2656, %v2657
        %v2660 = vadd.s32 %v2653, 1
        %v2661 = vmul.u32 %v2660, 24
        %vm2662 = vcmp.lt.s32.totalorder %v2655, %v2661
        %vm2663 = vcmp.lt.s32.totalorder %v2656, %v2661
        %vm2664 = vmand %vm2658, %vm2662
        %vm2665 = vmand %vm2659, %vm2663
        %v2666 = vsel %vm2664, 1, 0
        %v2667 = vsel %vm2665, 1, 0
        %v2668 = vcvt.s32.f32 %v2666
        %v2669 = vcvt.s32.f32 %v2667
        %v2670 = vadd.s32 %v2653, 8
        %v2671 = vadd.s32 %v2653, 16
        %v2672 = vadd.s32 %v2653, 24
        %v2673 = vadd.s32 %v2653, 32
        %v2674 = vadd.s32 %v2653, 40
        %v2675 = vadd.s32 %v2653, 48
        %v2676 = vadd.s32 %v2653, 56
        %v2677 = vadd.s32 %v2653, 64
        %v2678 = vadd.s32 %v2653, 72
        %v2679 = vadd.s32 %v2653, 80
        %v2680 = vadd.s32 %v2653, 88
        %v2681 = vadd.s32 %v2653, 96
        %v2682 = vadd.s32 %v2653, 104
        %v2683 = vadd.s32 %v2653, 112
        %v2684 = vadd.s32 %v2653, 120
        %v2685 = vadd.s32 %v2653, 128
        %v2686 = vadd.s32 %v2653, 136
        %v2687 = vadd.s32 %v2653, 144
        %v2688 = vadd.s32 %v2653, 152
        %v2689 = vadd.s32 %v2653, 160
        %v2690 = vadd.s32 %v2653, 168
        %v2691 = vadd.s32 %v2653, 176
        %v2692 = vadd.s32 %v2653, 184
        %v2693 = vmul.u32 %v2655, 24
        %vm2694 = vcmp.ge.s32.totalorder %v2653, %v2693
        %vm2695 = vcmp.ge.s32.totalorder %v2670, %v2693
        %vm2696 = vcmp.ge.s32.totalorder %v2671, %v2693
        %vm2697 = vcmp.ge.s32.totalorder %v2672, %v2693
        %vm2698 = vcmp.ge.s32.totalorder %v2673, %v2693
        %vm2699 = vcmp.ge.s32.totalorder %v2674, %v2693
        %vm2700 = vcmp.ge.s32.totalorder %v2675, %v2693
        %vm2701 = vcmp.ge.s32.totalorder %v2676, %v2693
        %vm2702 = vcmp.ge.s32.totalorder %v2677, %v2693
        %vm2703 = vcmp.ge.s32.totalorder %v2678, %v2693
        %vm2704 = vcmp.ge.s32.totalorder %v2679, %v2693
        %vm2705 = vcmp.ge.s32.totalorder %v2680, %v2693
        %vm2706 = vcmp.ge.s32.totalorder %v2681, %v2693
        %vm2707 = vcmp.ge.s32.totalorder %v2682, %v2693
        %vm2708 = vcmp.ge.s32.totalorder %v2683, %v2693
        %vm2709 = vcmp.ge.s32.totalorder %v2684, %v2693
        %vm2710 = vcmp.ge.s32.totalorder %v2685, %v2693
        %vm2711 = vcmp.ge.s32.totalorder %v2686, %v2693
        %vm2712 = vcmp.ge.s32.totalorder %v2687, %v2693
        %vm2713 = vcmp.ge.s32.totalorder %v2688, %v2693
        %vm2714 = vcmp.ge.s32.totalorder %v2689, %v2693
        %vm2715 = vcmp.ge.s32.totalorder %v2690, %v2693
        %vm2716 = vcmp.ge.s32.totalorder %v2691, %v2693
        %vm2717 = vcmp.ge.s32.totalorder %v2692, %v2693
        %v2718 = vadd.s32 %v2655, 1
        %v2719 = vmul.u32 %v2718, 24
        %vm2720 = vcmp.lt.s32.totalorder %v2653, %v2719
        %vm2721 = vcmp.lt.s32.totalorder %v2670, %v2719
        %vm2722 = vcmp.lt.s32.totalorder %v2671, %v2719
        %vm2723 = vcmp.lt.s32.totalorder %v2672, %v2719
        %vm2724 = vcmp.lt.s32.totalorder %v2673, %v2719
        %vm2725 = vcmp.lt.s32.totalorder %v2674, %v2719
        %vm2726 = vcmp.lt.s32.totalorder %v2675, %v2719
        %vm2727 = vcmp.lt.s32.totalorder %v2676, %v2719
        %vm2728 = vcmp.lt.s32.totalorder %v2677, %v2719
        %vm2729 = vcmp.lt.s32.totalorder %v2678, %v2719
        %vm2730 = vcmp.lt.s32.totalorder %v2679, %v2719
        %vm2731 = vcmp.lt.s32.totalorder %v2680, %v2719
        %vm2732 = vcmp.lt.s32.totalorder %v2681, %v2719
        %vm2733 = vcmp.lt.s32.totalorder %v2682, %v2719
        %vm2734 = vcmp.lt.s32.totalorder %v2683, %v2719
        %vm2735 = vcmp.lt.s32.totalorder %v2684, %v2719
        %vm2736 = vcmp.lt.s32.totalorder %v2685, %v2719
        %vm2737 = vcmp.lt.s32.totalorder %v2686, %v2719
        %vm2738 = vcmp.lt.s32.totalorder %v2687, %v2719
        %vm2739 = vcmp.lt.s32.totalorder %v2688, %v2719
        %vm2740 = vcmp.lt.s32.totalorder %v2689, %v2719
        %vm2741 = vcmp.lt.s32.totalorder %v2690, %v2719
        %vm2742 = vcmp.lt.s32.totalorder %v2691, %v2719
        %vm2743 = vcmp.lt.s32.totalorder %v2692, %v2719
        %vm2744 = vmand %vm2694, %vm2720
        %vm2745 = vmand %vm2695, %vm2721
        %vm2746 = vmand %vm2696, %vm2722
        %vm2747 = vmand %vm2697, %vm2723
        %vm2748 = vmand %vm2698, %vm2724
        %vm2749 = vmand %vm2699, %vm2725
        %vm2750 = vmand %vm2700, %vm2726
        %vm2751 = vmand %vm2701, %vm2727
        %vm2752 = vmand %vm2702, %vm2728
        %vm2753 = vmand %vm2703, %vm2729
        %vm2754 = vmand %vm2704, %vm2730
        %vm2755 = vmand %vm2705, %vm2731
        %vm2756 = vmand %vm2706, %vm2732
        %vm2757 = vmand %vm2707, %vm2733
        %vm2758 = vmand %vm2708, %vm2734
        %vm2759 = vmand %vm2709, %vm2735
        %vm2760 = vmand %vm2710, %vm2736
        %vm2761 = vmand %vm2711, %vm2737
        %vm2762 = vmand %vm2712, %vm2738
        %vm2763 = vmand %vm2713, %vm2739
        %vm2764 = vmand %vm2714, %vm2740
        %vm2765 = vmand %vm2715, %vm2741
        %vm2766 = vmand %vm2716, %vm2742
        %vm2767 = vmand %vm2717, %vm2743
        %v2768 = vsel %vm2744, 1, 0
        %v2769 = vsel %vm2745, 1, 0
        %v2770 = vsel %vm2746, 1, 0
        %v2771 = vsel %vm2747, 1, 0
        %v2772 = vsel %vm2748, 1, 0
        %v2773 = vsel %vm2749, 1, 0
        %v2774 = vsel %vm2750, 1, 0
        %v2775 = vsel %vm2751, 1, 0
        %v2776 = vsel %vm2752, 1, 0
        %v2777 = vsel %vm2753, 1, 0
        %v2778 = vsel %vm2754, 1, 0
        %v2779 = vsel %vm2755, 1, 0
        %v2780 = vsel %vm2756, 1, 0
        %v2781 = vsel %vm2757, 1, 0
        %v2782 = vsel %vm2758, 1, 0
        %v2783 = vsel %vm2759, 1, 0
        %v2784 = vsel %vm2760, 1, 0
        %v2785 = vsel %vm2761, 1, 0
        %v2786 = vsel %vm2762, 1, 0
        %v2787 = vsel %vm2763, 1, 0
        %v2788 = vsel %vm2764, 1, 0
        %v2789 = vsel %vm2765, 1, 0
        %v2790 = vsel %vm2766, 1, 0
        %v2791 = vsel %vm2767, 1, 0
        %v2792 = vcvt.s32.f32 %v2768
        %v2793 = vcvt.s32.f32 %v2769
        %v2794 = vcvt.s32.f32 %v2770
        %v2795 = vcvt.s32.f32 %v2771
        %v2796 = vcvt.s32.f32 %v2772
        %v2797 = vcvt.s32.f32 %v2773
        %v2798 = vcvt.s32.f32 %v2774
        %v2799 = vcvt.s32.f32 %v2775
        %v2800 = vcvt.s32.f32 %v2776
        %v2801 = vcvt.s32.f32 %v2777
        %v2802 = vcvt.s32.f32 %v2778
        %v2803 = vcvt.s32.f32 %v2779
        %v2804 = vcvt.s32.f32 %v2780
        %v2805 = vcvt.s32.f32 %v2781
        %v2806 = vcvt.s32.f32 %v2782
        %v2807 = vcvt.s32.f32 %v2783
        %v2808 = vcvt.s32.f32 %v2784
        %v2809 = vcvt.s32.f32 %v2785
        %v2810 = vcvt.s32.f32 %v2786
        %v2811 = vcvt.s32.f32 %v2787
        %v2812 = vcvt.s32.f32 %v2788
        %v2813 = vcvt.s32.f32 %v2789
        %v2814 = vcvt.s32.f32 %v2790
        %v2815 = vcvt.s32.f32 %v2791
        %vm2816 = vcmask 523264
        %v2818 = vsel %vm2816, %v2669, 0
        %2820 = vmatprep.subr.mxu0 %v2603
        %2821 = vmatpush1.msra.mxu0 %v2602
        %2822 = vmatprep.subr.mxu0 %v2605
        %2823 = vmatpush1.msra.mxu0 %v2604
        %2824 = vmatprep.subr.mxu0 %v2607
        %2825 = vmatpush1.msra.mxu0 %v2606
        %2826 = vmatprep.subr.mxu0 %v2609
        %2827 = vmatpush1.msra.mxu0 %v2608
        %2828 = vmatprep.subr.mxu0 %v2611
        %2829 = vmatpush1.msra.mxu0 %v2610
        %2830 = vmatprep.subr.mxu0 %v2613
        %2831 = vmatpush1.msra.mxu0 %v2612
        %2832 = vmatprep.subr.mxu0 %v2615
        %2833 = vmatpush1.msra.mxu0 %v2614
        %2834 = vmatprep.subr.mxu0 %v2617
        %2835 = vmatpush1.msra.mxu0 %v2616
        %2836 = vmatprep.subr.mxu0 %v2619
        %2837 = vmatpush1.msra.mxu0 %v2618
        %2838 = vmatprep.subr.mxu0 %v2621
        %2839 = vmatpush1.msra.mxu0 %v2620
        %2840 = vmatprep.subr.mxu0 %v2623
        %2841 = vmatpush1.msra.mxu0 %v2622
        %2842 = vmatprep.subr.mxu0 %v2625
        %2843 = vmatpush1.msra.mxu0 %v2624
        %2844 = vmatprep.subr.mxu0 %v2627
        %2845 = vmatpush1.msra.mxu0 %v2626
        %2846 = vmatprep.subr.mxu0 %v2629
        %2847 = vmatpush1.msra.mxu0 %v2628
        %2848 = vmatprep.subr.mxu0 %v2631
        %2849 = vmatpush1.msra.mxu0 %v2630
        %2850 = vmatprep.subr.mxu0 %v2633
        %2851 = vmatpush1.msra.mxu0 %v2632
        %2852 = vmatprep.subr.mxu0 %v2635
        %2853 = vmatpush1.msra.mxu0 %v2634
        %2854 = vmatprep.subr.mxu0 %v2637
        %2855 = vmatpush1.msra.mxu0 %v2636
        %2856 = vmatprep.subr.mxu0 %v2639
        %2857 = vmatpush1.msra.mxu0 %v2638
        %2858 = vmatprep.subr.mxu0 %v2641
        %2859 = vmatpush1.msra.mxu0 %v2640
        %2860 = vmatprep.subr.mxu0 %v2643
        %2861 = vmatpush1.msra.mxu0 %v2642
        %2862 = vmatprep.subr.mxu0 %v2645
        %2863 = vmatpush1.msra.mxu0 %v2644
        %2864 = vmatprep.subr.mxu0 %v2647
        %2865 = vmatpush1.msra.mxu0 %v2646
        %2866 = vmatprep.subr.mxu0 %v2649
        %2867 = vmatpush1.msra.mxu0 %v2648
        %2868 = vmatprep.subr.mxu0 0.0
        %2869 = vmatpush1.msra.mxu0 0.0
        %2870 = vmatprep.subr.mxu0 0.0
        %2871 = vmatpush1.msra.mxu0 0.0
        %2872 = vmatprep.subr.mxu0 0.0
        %2873 = vmatpush1.msra.mxu0 0.0
        %2874 = vmatprep.subr.mxu0 0.0
        %2875 = vmatpush1.msra.mxu0 0.0
        %2876 = vmatprep.subr.mxu0 0.0
        %2877 = vmatpush1.msra.mxu0 0.0
        %2878 = vmatprep.subr.mxu0 0.0
        %2879 = vmatpush1.msra.mxu0 0.0
        %2880 = vmatprep.subr.mxu0 0.0
        %2881 = vmatpush1.msra.mxu0 0.0
        %2882 = vmatprep.subr.mxu0 0.0
        %2883 = vmatpush1.msra.mxu0 0.0
        %2884 = vmatprep.mubr.f32.mxu0 %v2818
        %2885 = vmatmul.mubr.f32.gmra.mrb[0].mxu0 %v2668
        %v2886 = vpop.f32.mrb[0].mxu0
        %v2887 = vadd.f32 0.0, %v2886
        %v2888 = vpop.f32.mrb[0].mxu0
        %v2889 = vadd.f32 0.0, %v2888
        %2890 = vdwg.mxu0
        %vm2891 = vcmask 130048
        %v2892 = vsel %vm2891, %v2889, 0.0
        %v2893 = vadd.f32 %v2887, %v2892
        %2894 = vadd.xlane.f32.xlu0 %v2893
        %v2895 = vpop.xlane.xlu0 %2894
        %v2896 = vmul.f32 %v2602, %v2602
        %v2897 = vmul.f32 %v2603, %v2603
        %v2898 = vmul.f32 %v2604, %v2604
        %v2899 = vmul.f32 %v2605, %v2605
        %v2900 = vmul.f32 %v2606, %v2606
        %v2901 = vmul.f32 %v2607, %v2607
        %v2902 = vmul.f32 %v2608, %v2608
        %v2903 = vmul.f32 %v2609, %v2609
        %v2904 = vmul.f32 %v2610, %v2610
        %v2905 = vmul.f32 %v2611, %v2611
        %v2906 = vmul.f32 %v2612, %v2612
        %v2907 = vmul.f32 %v2613, %v2613
        %v2908 = vmul.f32 %v2614, %v2614
        %v2909 = vmul.f32 %v2615, %v2615
        %v2910 = vmul.f32 %v2616, %v2616
        %v2911 = vmul.f32 %v2617, %v2617
        %v2912 = vmul.f32 %v2618, %v2618
        %v2913 = vmul.f32 %v2619, %v2619
        %v2914 = vmul.f32 %v2620, %v2620
        %v2915 = vmul.f32 %v2621, %v2621
        %v2916 = vmul.f32 %v2622, %v2622
        %v2917 = vmul.f32 %v2623, %v2623
        %v2918 = vmul.f32 %v2624, %v2624
        %v2919 = vmul.f32 %v2625, %v2625
        %v2920 = vmul.f32 %v2626, %v2626
        %v2921 = vmul.f32 %v2627, %v2627
        %v2922 = vmul.f32 %v2628, %v2628
        %v2923 = vmul.f32 %v2629, %v2629
        %v2924 = vmul.f32 %v2630, %v2630
        %v2925 = vmul.f32 %v2631, %v2631
        %v2926 = vmul.f32 %v2632, %v2632
        %v2927 = vmul.f32 %v2633, %v2633
        %v2928 = vmul.f32 %v2634, %v2634
        %v2929 = vmul.f32 %v2635, %v2635
        %v2930 = vmul.f32 %v2636, %v2636
        %v2931 = vmul.f32 %v2637, %v2637
        %v2932 = vmul.f32 %v2638, %v2638
        %v2933 = vmul.f32 %v2639, %v2639
        %v2934 = vmul.f32 %v2640, %v2640
        %v2935 = vmul.f32 %v2641, %v2641
        %v2936 = vmul.f32 %v2642, %v2642
        %v2937 = vmul.f32 %v2643, %v2643
        %v2938 = vmul.f32 %v2644, %v2644
        %v2939 = vmul.f32 %v2645, %v2645
        %v2940 = vmul.f32 %v2646, %v2646
        %v2941 = vmul.f32 %v2647, %v2647
        %v2942 = vmul.f32 %v2648, %v2648
        %v2943 = vmul.f32 %v2649, %v2649
        %2944 = vmatprep.subr.mxu0 %v2897
        %2945 = vmatpush1.msra.mxu0 %v2896
        %2946 = vmatprep.subr.mxu0 %v2899
        %2947 = vmatpush1.msra.mxu0 %v2898
        %2948 = vmatprep.subr.mxu0 %v2901
        %2949 = vmatpush1.msra.mxu0 %v2900
        %2950 = vmatprep.subr.mxu0 %v2903
        %2951 = vmatpush1.msra.mxu0 %v2902
        %2952 = vmatprep.subr.mxu0 %v2905
        %2953 = vmatpush1.msra.mxu0 %v2904
        %2954 = vmatprep.subr.mxu0 %v2907
        %2955 = vmatpush1.msra.mxu0 %v2906
        %2956 = vmatprep.subr.mxu0 %v2909
        %2957 = vmatpush1.msra.mxu0 %v2908
        %2958 = vmatprep.subr.mxu0 %v2911
        %2959 = vmatpush1.msra.mxu0 %v2910
        %2960 = vmatprep.subr.mxu0 %v2913
        %2961 = vmatpush1.msra.mxu0 %v2912
        %2962 = vmatprep.subr.mxu0 %v2915
        %2963 = vmatpush1.msra.mxu0 %v2914
        %2964 = vmatprep.subr.mxu0 %v2917
        %2965 = vmatpush1.msra.mxu0 %v2916
        %2966 = vmatprep.subr.mxu0 %v2919
        %2967 = vmatpush1.msra.mxu0 %v2918
        %2968 = vmatprep.subr.mxu0 %v2921
        %2969 = vmatpush1.msra.mxu0 %v2920
        %2970 = vmatprep.subr.mxu0 %v2923
        %2971 = vmatpush1.msra.mxu0 %v2922
        %2972 = vmatprep.subr.mxu0 %v2925
        %2973 = vmatpush1.msra.mxu0 %v2924
        %2974 = vmatprep.subr.mxu0 %v2927
        %2975 = vmatpush1.msra.mxu0 %v2926
        %2976 = vmatprep.subr.mxu0 %v2929
        %2977 = vmatpush1.msra.mxu0 %v2928
        %2978 = vmatprep.subr.mxu0 %v2931
        %2979 = vmatpush1.msra.mxu0 %v2930
        %2980 = vmatprep.subr.mxu0 %v2933
        %2981 = vmatpush1.msra.mxu0 %v2932
        %2982 = vmatprep.subr.mxu0 %v2935
        %2983 = vmatpush1.msra.mxu0 %v2934
        %2984 = vmatprep.subr.mxu0 %v2937
        %2985 = vmatpush1.msra.mxu0 %v2936
        %2986 = vmatprep.subr.mxu0 %v2939
        %2987 = vmatpush1.msra.mxu0 %v2938
        %2988 = vmatprep.subr.mxu0 %v2941
        %2989 = vmatpush1.msra.mxu0 %v2940
        %2990 = vmatprep.subr.mxu0 %v2943
        %2991 = vmatpush1.msra.mxu0 %v2942
        %2992 = vmatprep.subr.mxu0 0.0
        %2993 = vmatpush1.msra.mxu0 0.0
        %2994 = vmatprep.subr.mxu0 0.0
        %2995 = vmatpush1.msra.mxu0 0.0
        %2996 = vmatprep.subr.mxu0 0.0
        %2997 = vmatpush1.msra.mxu0 0.0
        %2998 = vmatprep.subr.mxu0 0.0
        %2999 = vmatpush1.msra.mxu0 0.0
        %3000 = vmatprep.subr.mxu0 0.0
        %3001 = vmatpush1.msra.mxu0 0.0
        %3002 = vmatprep.subr.mxu0 0.0
        %3003 = vmatpush1.msra.mxu0 0.0
        %3004 = vmatprep.subr.mxu0 0.0
        %3005 = vmatpush1.msra.mxu0 0.0
        %3006 = vmatprep.subr.mxu0 0.0
        %3007 = vmatpush1.msra.mxu0 0.0
        %3008 = vmatprep.mubr.f32.mxu0 %v2818
        %3009 = vmatmul.mubr.f32.gmra.mrb[0].mxu0 %v2668
        %v3010 = vpop.f32.mrb[0].mxu0
        %v3011 = vadd.f32 0.0, %v3010
        %v3012 = vpop.f32.mrb[0].mxu0
        %v3013 = vadd.f32 0.0, %v3012
        %3014 = vdwg.mxu0
        %v3015 = vsel %vm2891, %v3013, 0.0
        %v3016 = vadd.f32 %v3011, %v3015
        %3017 = vadd.xlane.f32.xlu0 %v3016
        %v3018 = vpop.xlane.xlu0 %3017
        %v3019 = vrcp.pop 3456.0
        %v3020 = vmul.f32 %v2895, %v3019
        %v3021 = vmul.f32 %v3020, 3456.0
        %v3022 = vmul.f32 %v3021, %v3020
        %v3023 = vsub.f32 %v3018, %v3022
        %v3024 = vrcp.pop 3455.0
        %v3025 = vmul.f32 %v3023, %v3024
        %v3026 = vmax.f32 %v3025, 0.0
        %v3027 = vrsqrt.pop %v3026
        %v3028 = vmul.f32 %v3026, %v3027
        %vm3029 = vcmp.eq.f32.partialorder %v3026, inf
        %v3030 = vsel %vm3029, %v3026, %v3028
        %vm3031 = vcmp.eq.f32.partialorder %v3026, 0.0
        %v3032 = vand.u32 %v3026, 2147483648
        %v3033 = vsel %vm3031, %v3032, %v3030
        %v3034 = vadd.f32 %v3033, 1e-06
        %v3035 = vrcp.pop %v3034
        %v3036 = vmul.f32 1.0, %v3035
        %vm3037 = vcmask 64512
        %v3039 = vsel %vm3037, %v2792, 0
        %v3042 = vsel %vm3037, %v2793, 0
        %v3045 = vsel %vm3037, %v2794, 0
        %v3048 = vsel %vm3037, %v2795, 0
        %v3051 = vsel %vm3037, %v2796, 0
        %v3054 = vsel %vm3037, %v2797, 0
        %v3057 = vsel %vm3037, %v2798, 0
        %v3060 = vsel %vm3037, %v2799, 0
        %v3063 = vsel %vm3037, %v2800, 0
        %v3066 = vsel %vm3037, %v2801, 0
        %v3069 = vsel %vm3037, %v2802, 0
        %v3072 = vsel %vm3037, %v2803, 0
        %v3075 = vsel %vm3037, %v2804, 0
        %v3078 = vsel %vm3037, %v2805, 0
        %v3081 = vsel %vm3037, %v2806, 0
        %v3084 = vsel %vm3037, %v2807, 0
        %v3087 = vsel %vm3037, %v2808, 0
        %v3090 = vsel %vm3037, %v2809, 0
        %v3093 = vsel %vm3037, %v2810, 0
        %v3096 = vsel %vm3037, %v2811, 0
        %v3099 = vsel %vm3037, %v2812, 0
        %v3102 = vsel %vm3037, %v2813, 0
        %v3105 = vsel %vm3037, %v2814, 0
        %v3108 = vsel %vm3037, %v2815, 0
        %3110 = vmatprep.subr.mxu0 0.0
        %3111 = vmatpush1.msra.mxu0 %v3020
        %3112 = vmatprep.subr.mxu0 0.0
        %3113 = vmatpush1.msra.mxu0 0.0
        %3114 = vmatprep.subr.mxu0 0.0
        %3115 = vmatpush1.msra.mxu0 0.0
        %3116 = vmatprep.subr.mxu0 0.0
        %3117 = vmatpush1.msra.mxu0 0.0
        %3118 = vmatprep.subr.mxu0 0.0
        %3119 = vmatpush1.msra.mxu0 0.0
        %3120 = vmatprep.subr.mxu0 0.0
        %3121 = vmatpush1.msra.mxu0 0.0
        %3122 = vmatprep.subr.mxu0 0.0
        %3123 = vmatpush1.msra.mxu0 0.0
        %3124 = vmatprep.subr.mxu0 0.0
        %3125 = vmatpush1.msra.mxu0 0.0
        %3126 = vmatprep.subr.mxu0 0.0
        %3127 = vmatpush1.msra.mxu0 0.0
        %3128 = vmatprep.subr.mxu0 0.0
        %3129 = vmatpush1.msra.mxu0 0.0
        %3130 = vmatprep.subr.mxu0 0.0
        %3131 = vmatpush1.msra.mxu0 0.0
        %3132 = vmatprep.subr.mxu0 0.0
        %3133 = vmatpush1.msra.mxu0 0.0
        %3134 = vmatprep.subr.mxu0 0.0
        %3135 = vmatpush1.msra.mxu0 0.0
        %3136 = vmatprep.subr.mxu0 0.0
        %3137 = vmatpush1.msra.mxu0 0.0
        %3138 = vmatprep.subr.mxu0 0.0
        %3139 = vmatpush1.msra.mxu0 0.0
        %3140 = vmatprep.subr.mxu0 0.0
        %3141 = vmatpush1.msra.mxu0 0.0
        %3142 = vmatprep.subr.mxu0 0.0
        %3143 = vmatpush1.msra.mxu0 0.0
        %3144 = vmatprep.subr.mxu0 0.0
        %3145 = vmatpush1.msra.mxu0 0.0
        %3146 = vmatprep.subr.mxu0 0.0
        %3147 = vmatpush1.msra.mxu0 0.0
        %3148 = vmatprep.subr.mxu0 0.0
        %3149 = vmatpush1.msra.mxu0 0.0
        %3150 = vmatprep.subr.mxu0 0.0
        %3151 = vmatpush1.msra.mxu0 0.0
        %3152 = vmatprep.subr.mxu0 0.0
        %3153 = vmatpush1.msra.mxu0 0.0
        %3154 = vmatprep.subr.mxu0 0.0
        %3155 = vmatpush1.msra.mxu0 0.0
        %3156 = vmatprep.subr.mxu0 0.0
        %3157 = vmatpush1.msra.mxu0 0.0
        %3158 = vmatprep.subr.mxu0 0.0
        %3159 = vmatpush1.msra.mxu0 0.0
        %3160 = vmatprep.subr.mxu0 0.0
        %3161 = vmatpush1.msra.mxu0 0.0
        %3162 = vmatprep.subr.mxu0 0.0
        %3163 = vmatpush1.msra.mxu0 0.0
        %3164 = vmatprep.subr.mxu0 0.0
        %3165 = vmatpush1.msra.mxu0 0.0
        %3166 = vmatprep.subr.mxu0 0.0
        %3167 = vmatpush1.msra.mxu0 0.0
        %3168 = vmatprep.subr.mxu0 0.0
        %3169 = vmatpush1.msra.mxu0 0.0
        %3170 = vmatprep.subr.mxu0 0.0
        %3171 = vmatpush1.msra.mxu0 0.0
        %3172 = vmatprep.subr.mxu0 0.0
        %3173 = vmatpush1.msra.mxu0 0.0
        %3174 = vmatprep.mubr.f32.mxu0 0.0
        %3175 = vmatmul.mubr.f32.gmra.mrb[0].mxu0 %v3039
        %v3176 = vpop.f32.mrb[0].mxu0
        %v3177 = vadd.f32 0.0, %v3176
        %v3178 = vpop.f32.mrb[0].mxu0
        %3179 = vmatprep.mubr.f32.mxu0 0.0
        %3180 = vmatmul.mubr.f32.gmra.mrb[0].mxu0 %v3042
        %v3181 = vpop.f32.mrb[0].mxu0
        %v3182 = vadd.f32 0.0, %v3181
        %v3183 = vpop.f32.mrb[0].mxu0
        %3184 = vmatprep.mubr.f32.mxu0 0.0
        %3185 = vmatmul.mubr.f32.gmra.mrb[0].mxu0 %v3045
        %v3186 = vpop.f32.mrb[0].mxu0
        %v3187 = vadd.f32 0.0, %v3186
        %v3188 = vpop.f32.mrb[0].mxu0
        %3189 = vmatprep.mubr.f32.mxu0 0.0
        %3190 = vmatmul.mubr.f32.gmra.mrb[0].mxu0 %v3048
        %v3191 = vpop.f32.mrb[0].mxu0
        %v3192 = vadd.f32 0.0, %v3191
        %v3193 = vpop.f32.mrb[0].mxu0
        %3194 = vmatprep.mubr.f32.mxu0 0.0
        %3195 = vmatmul.mubr.f32.gmra.mrb[0].mxu0 %v3051
        %v3196 = vpop.f32.mrb[0].mxu0
        %v3197 = vadd.f32 0.0, %v3196
        %v3198 = vpop.f32.mrb[0].mxu0
        %3199 = vmatprep.mubr.f32.mxu0 0.0
        %3200 = vmatmul.mubr.f32.gmra.mrb[0].mxu0 %v3054
        %v3201 = vpop.f32.mrb[0].mxu0
        %v3202 = vadd.f32 0.0, %v3201
        %v3203 = vpop.f32.mrb[0].mxu0
        %3204 = vmatprep.mubr.f32.mxu0 0.0
        %3205 = vmatmul.mubr.f32.gmra.mrb[0].mxu0 %v3057
        %v3206 = vpop.f32.mrb[0].mxu0
        %v3207 = vadd.f32 0.0, %v3206
        %v3208 = vpop.f32.mrb[0].mxu0
        %3209 = vmatprep.mubr.f32.mxu0 0.0
        %3210 = vmatmul.mubr.f32.gmra.mrb[0].mxu0 %v3060
        %v3211 = vpop.f32.mrb[0].mxu0
        %v3212 = vadd.f32 0.0, %v3211
        %v3213 = vpop.f32.mrb[0].mxu0
        %3214 = vmatprep.mubr.f32.mxu0 0.0
        %3215 = vmatmul.mubr.f32.gmra.mrb[0].mxu0 %v3063
        %v3216 = vpop.f32.mrb[0].mxu0
        %v3217 = vadd.f32 0.0, %v3216
        %v3218 = vpop.f32.mrb[0].mxu0
        %3219 = vmatprep.mubr.f32.mxu0 0.0
        %3220 = vmatmul.mubr.f32.gmra.mrb[0].mxu0 %v3066
        %v3221 = vpop.f32.mrb[0].mxu0
        %v3222 = vadd.f32 0.0, %v3221
        %v3223 = vpop.f32.mrb[0].mxu0
        %3224 = vmatprep.mubr.f32.mxu0 0.0
        %3225 = vmatmul.mubr.f32.gmra.mrb[0].mxu0 %v3069
        %v3226 = vpop.f32.mrb[0].mxu0
        %v3227 = vadd.f32 0.0, %v3226
        %v3228 = vpop.f32.mrb[0].mxu0
        %3229 = vmatprep.mubr.f32.mxu0 0.0
        %3230 = vmatmul.mubr.f32.gmra.mrb[0].mxu0 %v3072
        %v3231 = vpop.f32.mrb[0].mxu0
        %v3232 = vadd.f32 0.0, %v3231
        %v3233 = vpop.f32.mrb[0].mxu0
        %3234 = vmatprep.mubr.f32.mxu0 0.0
        %3235 = vmatmul.mubr.f32.gmra.mrb[0].mxu0 %v3075
        %v3236 = vpop.f32.mrb[0].mxu0
        %v3237 = vadd.f32 0.0, %v3236
        %v3238 = vpop.f32.mrb[0].mxu0
        %3239 = vmatprep.mubr.f32.mxu0 0.0
        %3240 = vmatmul.mubr.f32.gmra.mrb[0].mxu0 %v3078
        %v3241 = vpop.f32.mrb[0].mxu0
        %v3242 = vadd.f32 0.0, %v3241
        %v3243 = vpop.f32.mrb[0].mxu0
        %3244 = vmatprep.mubr.f32.mxu0 0.0
        %3245 = vmatmul.mubr.f32.gmra.mrb[0].mxu0 %v3081
        %v3246 = vpop.f32.mrb[0].mxu0
        %v3247 = vadd.f32 0.0, %v3246
        %v3248 = vpop.f32.mrb[0].mxu0
        %3249 = vmatprep.mubr.f32.mxu0 0.0
        %3250 = vmatmul.mubr.f32.gmra.mrb[0].mxu0 %v3084
        %v3251 = vpop.f32.mrb[0].mxu0
        %v3252 = vadd.f32 0.0, %v3251
        %v3253 = vpop.f32.mrb[0].mxu0
        %3254 = vmatprep.mubr.f32.mxu0 0.0
        %3255 = vmatmul.mubr.f32.gmra.mrb[0].mxu0 %v3087
        %v3256 = vpop.f32.mrb[0].mxu0
        %v3257 = vadd.f32 0.0, %v3256
        %v3258 = vpop.f32.mrb[0].mxu0
        %3259 = vmatprep.mubr.f32.mxu0 0.0
        %3260 = vmatmul.mubr.f32.gmra.mrb[0].mxu0 %v3090
        %v3261 = vpop.f32.mrb[0].mxu0
        %v3262 = vadd.f32 0.0, %v3261
        %v3263 = vpop.f32.mrb[0].mxu0
        %3264 = vmatprep.mubr.f32.mxu0 0.0
        %3265 = vmatmul.mubr.f32.gmra.mrb[0].mxu0 %v3093
        %v3266 = vpop.f32.mrb[0].mxu0
        %v3267 = vadd.f32 0.0, %v3266
        %v3268 = vpop.f32.mrb[0].mxu0
        %3269 = vmatprep.mubr.f32.mxu0 0.0
        %3270 = vmatmul.mubr.f32.gmra.mrb[0].mxu0 %v3096
        %v3271 = vpop.f32.mrb[0].mxu0
        %v3272 = vadd.f32 0.0, %v3271
        %v3273 = vpop.f32.mrb[0].mxu0
        %3274 = vmatprep.mubr.f32.mxu0 0.0
        %3275 = vmatmul.mubr.f32.gmra.mrb[0].mxu0 %v3099
        %v3276 = vpop.f32.mrb[0].mxu0
        %v3277 = vadd.f32 0.0, %v3276
        %v3278 = vpop.f32.mrb[0].mxu0
        %3279 = vmatprep.mubr.f32.mxu0 0.0
        %3280 = vmatmul.mubr.f32.gmra.mrb[0].mxu0 %v3102
        %v3281 = vpop.f32.mrb[0].mxu0
        %v3282 = vadd.f32 0.0, %v3281
        %v3283 = vpop.f32.mrb[0].mxu0
        %3284 = vmatprep.mubr.f32.mxu0 0.0
        %3285 = vmatmul.mubr.f32.gmra.mrb[0].mxu0 %v3105
        %v3286 = vpop.f32.mrb[0].mxu0
        %v3287 = vadd.f32 0.0, %v3286
        %v3288 = vpop.f32.mrb[0].mxu0
        %3289 = vmatprep.mubr.f32.mxu0 0.0
        %3290 = vmatmul.mubr.f32.gmra.mrb[0].mxu0 %v3108
        %v3291 = vpop.f32.mrb[0].mxu0
        %v3292 = vadd.f32 0.0, %v3291
        %v3293 = vpop.f32.mrb[0].mxu0
        %3294 = vdwg.mxu0
        %3295 = vmatprep.subr.mxu0 0.0
        %3296 = vmatpush1.msra.mxu0 %v3036
        %3297 = vmatprep.subr.mxu0 0.0
        %3298 = vmatpush1.msra.mxu0 0.0
        %3299 = vmatprep.subr.mxu0 0.0
        %3300 = vmatpush1.msra.mxu0 0.0
        %3301 = vmatprep.subr.mxu0 0.0
        %3302 = vmatpush1.msra.mxu0 0.0
        %3303 = vmatprep.subr.mxu0 0.0
        %3304 = vmatpush1.msra.mxu0 0.0
        %3305 = vmatprep.subr.mxu0 0.0
        %3306 = vmatpush1.msra.mxu0 0.0
        %3307 = vmatprep.subr.mxu0 0.0
        %3308 = vmatpush1.msra.mxu0 0.0
        %3309 = vmatprep.subr.mxu0 0.0
        %3310 = vmatpush1.msra.mxu0 0.0
        %3311 = vmatprep.subr.mxu0 0.0
        %3312 = vmatpush1.msra.mxu0 0.0
        %3313 = vmatprep.subr.mxu0 0.0
        %3314 = vmatpush1.msra.mxu0 0.0
        %3315 = vmatprep.subr.mxu0 0.0
        %3316 = vmatpush1.msra.mxu0 0.0
        %3317 = vmatprep.subr.mxu0 0.0
        %3318 = vmatpush1.msra.mxu0 0.0
        %3319 = vmatprep.subr.mxu0 0.0
        %3320 = vmatpush1.msra.mxu0 0.0
        %3321 = vmatprep.subr.mxu0 0.0
        %3322 = vmatpush1.msra.mxu0 0.0
        %3323 = vmatprep.subr.mxu0 0.0
        %3324 = vmatpush1.msra.mxu0 0.0
        %3325 = vmatprep.subr.mxu0 0.0
        %3326 = vmatpush1.msra.mxu0 0.0
        %3327 = vmatprep.subr.mxu0 0.0
        %3328 = vmatpush1.msra.mxu0 0.0
        %3329 = vmatprep.subr.mxu0 0.0
        %3330 = vmatpush1.msra.mxu0 0.0
        %3331 = vmatprep.subr.mxu0 0.0
        %3332 = vmatpush1.msra.mxu0 0.0
        %3333 = vmatprep.subr.mxu0 0.0
        %3334 = vmatpush1.msra.mxu0 0.0
        %3335 = vmatprep.subr.mxu0 0.0
        %3336 = vmatpush1.msra.mxu0 0.0
        %3337 = vmatprep.subr.mxu0 0.0
        %3338 = vmatpush1.msra.mxu0 0.0
        %3339 = vmatprep.subr.mxu0 0.0
        %3340 = vmatpush1.msra.mxu0 0.0
        %3341 = vmatprep.subr.mxu0 0.0
        %3342 = vmatpush1.msra.mxu0 0.0
        %3343 = vmatprep.subr.mxu0 0.0
        %3344 = vmatpush1.msra.mxu0 0.0
        %3345 = vmatprep.subr.mxu0 0.0
        %3346 = vmatpush1.msra.mxu0 0.0
        %3347 = vmatprep.subr.mxu0 0.0
        %3348 = vmatpush1.msra.mxu0 0.0
        %3349 = vmatprep.subr.mxu0 0.0
        %3350 = vmatpush1.msra.mxu0 0.0
        %3351 = vmatprep.subr.mxu0 0.0
        %3352 = vmatpush1.msra.mxu0 0.0
        %3353 = vmatprep.subr.mxu0 0.0
        %3354 = vmatpush1.msra.mxu0 0.0
        %3355 = vmatprep.subr.mxu0 0.0
        %3356 = vmatpush1.msra.mxu0 0.0
        %3357 = vmatprep.subr.mxu0 0.0
        %3358 = vmatpush1.msra.mxu0 0.0
        %3359 = vmatprep.mubr.f32.mxu0 0.0
        %3360 = vmatmul.mubr.f32.gmra.mrb[0].mxu0 %v3039
        %v3361 = vpop.f32.mrb[0].mxu0
        %v3362 = vadd.f32 0.0, %v3361
        %v3363 = vpop.f32.mrb[0].mxu0
        %3364 = vmatprep.mubr.f32.mxu0 0.0
        %3365 = vmatmul.mubr.f32.gmra.mrb[0].mxu0 %v3042
        %v3366 = vpop.f32.mrb[0].mxu0
        %v3367 = vadd.f32 0.0, %v3366
        %v3368 = vpop.f32.mrb[0].mxu0
        %3369 = vmatprep.mubr.f32.mxu0 0.0
        %3370 = vmatmul.mubr.f32.gmra.mrb[0].mxu0 %v3045
        %v3371 = vpop.f32.mrb[0].mxu0
        %v3372 = vadd.f32 0.0, %v3371
        %v3373 = vpop.f32.mrb[0].mxu0
        %3374 = vmatprep.mubr.f32.mxu0 0.0
        %3375 = vmatmul.mubr.f32.gmra.mrb[0].mxu0 %v3048
        %v3376 = vpop.f32.mrb[0].mxu0
        %v3377 = vadd.f32 0.0, %v3376
        %v3378 = vpop.f32.mrb[0].mxu0
        %3379 = vmatprep.mubr.f32.mxu0 0.0
        %3380 = vmatmul.mubr.f32.gmra.mrb[0].mxu0 %v3051
        %v3381 = vpop.f32.mrb[0].mxu0
        %v3382 = vadd.f32 0.0, %v3381
        %v3383 = vpop.f32.mrb[0].mxu0
        %3384 = vmatprep.mubr.f32.mxu0 0.0
        %3385 = vmatmul.mubr.f32.gmra.mrb[0].mxu0 %v3054
        %v3386 = vpop.f32.mrb[0].mxu0
        %v3387 = vadd.f32 0.0, %v3386
        %v3388 = vpop.f32.mrb[0].mxu0
        %3389 = vmatprep.mubr.f32.mxu0 0.0
        %3390 = vmatmul.mubr.f32.gmra.mrb[0].mxu0 %v3057
        %v3391 = vpop.f32.mrb[0].mxu0
        %v3392 = vadd.f32 0.0, %v3391
        %v3393 = vpop.f32.mrb[0].mxu0
        %3394 = vmatprep.mubr.f32.mxu0 0.0
        %3395 = vmatmul.mubr.f32.gmra.mrb[0].mxu0 %v3060
        %v3396 = vpop.f32.mrb[0].mxu0
        %v3397 = vadd.f32 0.0, %v3396
        %v3398 = vpop.f32.mrb[0].mxu0
        %3399 = vmatprep.mubr.f32.mxu0 0.0
        %3400 = vmatmul.mubr.f32.gmra.mrb[0].mxu0 %v3063
        %v3401 = vpop.f32.mrb[0].mxu0
        %v3402 = vadd.f32 0.0, %v3401
        %v3403 = vpop.f32.mrb[0].mxu0
        %3404 = vmatprep.mubr.f32.mxu0 0.0
        %3405 = vmatmul.mubr.f32.gmra.mrb[0].mxu0 %v3066
        %v3406 = vpop.f32.mrb[0].mxu0
        %v3407 = vadd.f32 0.0, %v3406
        %v3408 = vpop.f32.mrb[0].mxu0
        %3409 = vmatprep.mubr.f32.mxu0 0.0
        %3410 = vmatmul.mubr.f32.gmra.mrb[0].mxu0 %v3069
        %v3411 = vpop.f32.mrb[0].mxu0
        %v3412 = vadd.f32 0.0, %v3411
        %v3413 = vpop.f32.mrb[0].mxu0
        %3414 = vmatprep.mubr.f32.mxu0 0.0
        %3415 = vmatmul.mubr.f32.gmra.mrb[0].mxu0 %v3072
        %v3416 = vpop.f32.mrb[0].mxu0
        %v3417 = vadd.f32 0.0, %v3416
        %v3418 = vpop.f32.mrb[0].mxu0
        %3419 = vmatprep.mubr.f32.mxu0 0.0
        %3420 = vmatmul.mubr.f32.gmra.mrb[0].mxu0 %v3075
        %v3421 = vpop.f32.mrb[0].mxu0
        %v3422 = vadd.f32 0.0, %v3421
        %v3423 = vpop.f32.mrb[0].mxu0
        %3424 = vmatprep.mubr.f32.mxu0 0.0
        %3425 = vmatmul.mubr.f32.gmra.mrb[0].mxu0 %v3078
        %v3426 = vpop.f32.mrb[0].mxu0
        %v3427 = vadd.f32 0.0, %v3426
        %v3428 = vpop.f32.mrb[0].mxu0
        %3429 = vmatprep.mubr.f32.mxu0 0.0
        %3430 = vmatmul.mubr.f32.gmra.mrb[0].mxu0 %v3081
        %v3431 = vpop.f32.mrb[0].mxu0
        %v3432 = vadd.f32 0.0, %v3431
        %v3433 = vpop.f32.mrb[0].mxu0
        %3434 = vmatprep.mubr.f32.mxu0 0.0
        %3435 = vmatmul.mubr.f32.gmra.mrb[0].mxu0 %v3084
        %v3436 = vpop.f32.mrb[0].mxu0
        %v3437 = vadd.f32 0.0, %v3436
        %v3438 = vpop.f32.mrb[0].mxu0
        %3439 = vmatprep.mubr.f32.mxu0 0.0
        %3440 = vmatmul.mubr.f32.gmra.mrb[0].mxu0 %v3087
        %v3441 = vpop.f32.mrb[0].mxu0
        %v3442 = vadd.f32 0.0, %v3441
        %v3443 = vpop.f32.mrb[0].mxu0
        %3444 = vmatprep.mubr.f32.mxu0 0.0
        %3445 = vmatmul.mubr.f32.gmra.mrb[0].mxu0 %v3090
        %v3446 = vpop.f32.mrb[0].mxu0
        %v3447 = vadd.f32 0.0, %v3446
        %v3448 = vpop.f32.mrb[0].mxu0
        %3449 = vmatprep.mubr.f32.mxu0 0.0
        %3450 = vmatmul.mubr.f32.gmra.mrb[0].mxu0 %v3093
        %v3451 = vpop.f32.mrb[0].mxu0
        %v3452 = vadd.f32 0.0, %v3451
        %v3453 = vpop.f32.mrb[0].mxu0
        %3454 = vmatprep.mubr.f32.mxu0 0.0
        %3455 = vmatmul.mubr.f32.gmra.mrb[0].mxu0 %v3096
        %v3456 = vpop.f32.mrb[0].mxu0
        %v3457 = vadd.f32 0.0, %v3456
        %v3458 = vpop.f32.mrb[0].mxu0
        %3459 = vmatprep.mubr.f32.mxu0 0.0
        %3460 = vmatmul.mubr.f32.gmra.mrb[0].mxu0 %v3099
        %v3461 = vpop.f32.mrb[0].mxu0
        %v3462 = vadd.f32 0.0, %v3461
        %v3463 = vpop.f32.mrb[0].mxu0
        %3464 = vmatprep.mubr.f32.mxu0 0.0
        %3465 = vmatmul.mubr.f32.gmra.mrb[0].mxu0 %v3102
        %v3466 = vpop.f32.mrb[0].mxu0
        %v3467 = vadd.f32 0.0, %v3466
        %v3468 = vpop.f32.mrb[0].mxu0
        %3469 = vmatprep.mubr.f32.mxu0 0.0
        %3470 = vmatmul.mubr.f32.gmra.mrb[0].mxu0 %v3105
        %v3471 = vpop.f32.mrb[0].mxu0
        %v3472 = vadd.f32 0.0, %v3471
        %v3473 = vpop.f32.mrb[0].mxu0
        %3474 = vmatprep.mubr.f32.mxu0 0.0
        %3475 = vmatmul.mubr.f32.gmra.mrb[0].mxu0 %v3108
        %v3476 = vpop.f32.mrb[0].mxu0
        %v3477 = vadd.f32 0.0, %v3476
        %v3478 = vpop.f32.mrb[0].mxu0
        %3479 = vdwg.mxu0
        %3481 = vset.pattern.permute.xlu0 0
        %3482 = vperm.xlu0 %3481, %v3177
        %v3483 = vpop.permute.xlu0 %3482
        %3486 = vset.pattern.permute.xlu0 0
        %3487 = vperm.xlu0 %3486, %v3182
        %v3488 = vpop.permute.xlu0 %3487
        %3491 = vset.pattern.permute.xlu0 0
        %3492 = vperm.xlu0 %3491, %v3187
        %v3493 = vpop.permute.xlu0 %3492
        %3496 = vset.pattern.permute.xlu0 0
        %3497 = vperm.xlu0 %3496, %v3192
        %v3498 = vpop.permute.xlu0 %3497
        %3501 = vset.pattern.permute.xlu0 0
        %3502 = vperm.xlu0 %3501, %v3197
        %v3503 = vpop.permute.xlu0 %3502
        %3506 = vset.pattern.permute.xlu0 0
        %3507 = vperm.xlu0 %3506, %v3202
        %v3508 = vpop.permute.xlu0 %3507
        %3511 = vset.pattern.permute.xlu0 0
        %3512 = vperm.xlu0 %3511, %v3207
        %v3513 = vpop.permute.xlu0 %3512
        %3516 = vset.pattern.permute.xlu0 0
        %3517 = vperm.xlu0 %3516, %v3212
        %v3518 = vpop.permute.xlu0 %3517
        %3521 = vset.pattern.permute.xlu0 0
        %3522 = vperm.xlu0 %3521, %v3217
        %v3523 = vpop.permute.xlu0 %3522
        %3526 = vset.pattern.permute.xlu0 0
        %3527 = vperm.xlu0 %3526, %v3222
        %v3528 = vpop.permute.xlu0 %3527
        %3531 = vset.pattern.permute.xlu0 0
        %3532 = vperm.xlu0 %3531, %v3227
        %v3533 = vpop.permute.xlu0 %3532
        %3536 = vset.pattern.permute.xlu0 0
        %3537 = vperm.xlu0 %3536, %v3232
        %v3538 = vpop.permute.xlu0 %3537
        %3541 = vset.pattern.permute.xlu0 0
        %3542 = vperm.xlu0 %3541, %v3237
        %v3543 = vpop.permute.xlu0 %3542
        %3546 = vset.pattern.permute.xlu0 0
        %3547 = vperm.xlu0 %3546, %v3242
        %v3548 = vpop.permute.xlu0 %3547
        %3551 = vset.pattern.permute.xlu0 0
        %3552 = vperm.xlu0 %3551, %v3247
        %v3553 = vpop.permute.xlu0 %3552
        %3556 = vset.pattern.permute.xlu0 0
        %3557 = vperm.xlu0 %3556, %v3252
        %v3558 = vpop.permute.xlu0 %3557
        %3561 = vset.pattern.permute.xlu0 0
        %3562 = vperm.xlu0 %3561, %v3257
        %v3563 = vpop.permute.xlu0 %3562
        %3566 = vset.pattern.permute.xlu0 0
        %3567 = vperm.xlu0 %3566, %v3262
        %v3568 = vpop.permute.xlu0 %3567
        %3571 = vset.pattern.permute.xlu0 0
        %3572 = vperm.xlu0 %3571, %v3267
        %v3573 = vpop.permute.xlu0 %3572
        %3576 = vset.pattern.permute.xlu0 0
        %3577 = vperm.xlu0 %3576, %v3272
        %v3578 = vpop.permute.xlu0 %3577
        %3581 = vset.pattern.permute.xlu0 0
        %3582 = vperm.xlu0 %3581, %v3277
        %v3583 = vpop.permute.xlu0 %3582
        %3586 = vset.pattern.permute.xlu0 0
        %3587 = vperm.xlu0 %3586, %v3282
        %v3588 = vpop.permute.xlu0 %3587
        %3591 = vset.pattern.permute.xlu0 0
        %3592 = vperm.xlu0 %3591, %v3287
        %v3593 = vpop.permute.xlu0 %3592
        %3596 = vset.pattern.permute.xlu0 0
        %3597 = vperm.xlu0 %3596, %v3292
        %v3598 = vpop.permute.xlu0 %3597
        %v3600 = vsub.f32 %v2602, %v3483
        %v3601 = vsub.f32 %v2603, %v3483
        %v3602 = vsub.f32 %v2604, %v3488
        %v3603 = vsub.f32 %v2605, %v3488
        %v3604 = vsub.f32 %v2606, %v3493
        %v3605 = vsub.f32 %v2607, %v3493
        %v3606 = vsub.f32 %v2608, %v3498
        %v3607 = vsub.f32 %v2609, %v3498
        %v3608 = vsub.f32 %v2610, %v3503
        %v3609 = vsub.f32 %v2611, %v3503
        %v3610 = vsub.f32 %v2612, %v3508
        %v3611 = vsub.f32 %v2613, %v3508
        %v3612 = vsub.f32 %v2614, %v3513
        %v3613 = vsub.f32 %v2615, %v3513
        %v3614 = vsub.f32 %v2616, %v3518
        %v3615 = vsub.f32 %v2617, %v3518
        %v3616 = vsub.f32 %v2618, %v3523
        %v3617 = vsub.f32 %v2619, %v3523
        %v3618 = vsub.f32 %v2620, %v3528
        %v3619 = vsub.f32 %v2621, %v3528
        %v3620 = vsub.f32 %v2622, %v3533
        %v3621 = vsub.f32 %v2623, %v3533
        %v3622 = vsub.f32 %v2624, %v3538
        %v3623 = vsub.f32 %v2625, %v3538
        %v3624 = vsub.f32 %v2626, %v3543
        %v3625 = vsub.f32 %v2627, %v3543
        %v3626 = vsub.f32 %v2628, %v3548
        %v3627 = vsub.f32 %v2629, %v3548
        %v3628 = vsub.f32 %v2630, %v3553
        %v3629 = vsub.f32 %v2631, %v3553
        %v3630 = vsub.f32 %v2632, %v3558
        %v3631 = vsub.f32 %v2633, %v3558
        %v3632 = vsub.f32 %v2634, %v3563
        %v3633 = vsub.f32 %v2635, %v3563
        %v3634 = vsub.f32 %v2636, %v3568
        %v3635 = vsub.f32 %v2637, %v3568
        %v3636 = vsub.f32 %v2638, %v3573
        %v3637 = vsub.f32 %v2639, %v3573
        %v3638 = vsub.f32 %v2640, %v3578
        %v3639 = vsub.f32 %v2641, %v3578
        %v3640 = vsub.f32 %v2642, %v3583
        %v3641 = vsub.f32 %v2643, %v3583
        %v3642 = vsub.f32 %v2644, %v3588
        %v3643 = vsub.f32 %v2645, %v3588
        %v3644 = vsub.f32 %v2646, %v3593
        %v3645 = vsub.f32 %v2647, %v3593
        %v3646 = vsub.f32 %v2648, %v3598
        %v3647 = vsub.f32 %v2649, %v3598
        %3649 = vset.pattern.permute.xlu0 0
        %3650 = vperm.xlu0 %3649, %v3362
        %v3651 = vpop.permute.xlu0 %3650
        %3654 = vset.pattern.permute.xlu0 0
        %3655 = vperm.xlu0 %3654, %v3367
        %v3656 = vpop.permute.xlu0 %3655
        %3659 = vset.pattern.permute.xlu0 0
        %3660 = vperm.xlu0 %3659, %v3372
        %v3661 = vpop.permute.xlu0 %3660
        %3664 = vset.pattern.permute.xlu0 0
        %3665 = vperm.xlu0 %3664, %v3377
        %v3666 = vpop.permute.xlu0 %3665
        %3669 = vset.pattern.permute.xlu0 0
        %3670 = vperm.xlu0 %3669, %v3382
        %v3671 = vpop.permute.xlu0 %3670
        %3674 = vset.pattern.permute.xlu0 0
        %3675 = vperm.xlu0 %3674, %v3387
        %v3676 = vpop.permute.xlu0 %3675
        %3679 = vset.pattern.permute.xlu0 0
        %3680 = vperm.xlu0 %3679, %v3392
        %v3681 = vpop.permute.xlu0 %3680
        %3684 = vset.pattern.permute.xlu0 0
        %3685 = vperm.xlu0 %3684, %v3397
        %v3686 = vpop.permute.xlu0 %3685
        %3689 = vset.pattern.permute.xlu0 0
        %3690 = vperm.xlu0 %3689, %v3402
        %v3691 = vpop.permute.xlu0 %3690
        %3694 = vset.pattern.permute.xlu0 0
        %3695 = vperm.xlu0 %3694, %v3407
        %v3696 = vpop.permute.xlu0 %3695
        %3699 = vset.pattern.permute.xlu0 0
        %3700 = vperm.xlu0 %3699, %v3412
        %v3701 = vpop.permute.xlu0 %3700
        %3704 = vset.pattern.permute.xlu0 0
        %3705 = vperm.xlu0 %3704, %v3417
        %v3706 = vpop.permute.xlu0 %3705
        %3709 = vset.pattern.permute.xlu0 0
        %3710 = vperm.xlu0 %3709, %v3422
        %v3711 = vpop.permute.xlu0 %3710
        %3714 = vset.pattern.permute.xlu0 0
        %3715 = vperm.xlu0 %3714, %v3427
        %v3716 = vpop.permute.xlu0 %3715
        %3719 = vset.pattern.permute.xlu0 0
        %3720 = vperm.xlu0 %3719, %v3432
        %v3721 = vpop.permute.xlu0 %3720
        %3724 = vset.pattern.permute.xlu0 0
        %3725 = vperm.xlu0 %3724, %v3437
        %v3726 = vpop.permute.xlu0 %3725
        %3729 = vset.pattern.permute.xlu0 0
        %3730 = vperm.xlu0 %3729, %v3442
        %v3731 = vpop.permute.xlu0 %3730
        %3734 = vset.pattern.permute.xlu0 0
        %3735 = vperm.xlu0 %3734, %v3447
        %v3736 = vpop.permute.xlu0 %3735
        %3739 = vset.pattern.permute.xlu0 0
        %3740 = vperm.xlu0 %3739, %v3452
        %v3741 = vpop.permute.xlu0 %3740
        %3744 = vset.pattern.permute.xlu0 0
        %3745 = vperm.xlu0 %3744, %v3457
        %v3746 = vpop.permute.xlu0 %3745
        %3749 = vset.pattern.permute.xlu0 0
        %3750 = vperm.xlu0 %3749, %v3462
        %v3751 = vpop.permute.xlu0 %3750
        %3754 = vset.pattern.permute.xlu0 0
        %3755 = vperm.xlu0 %3754, %v3467
        %v3756 = vpop.permute.xlu0 %3755
        %3759 = vset.pattern.permute.xlu0 0
        %3760 = vperm.xlu0 %3759, %v3472
        %v3761 = vpop.permute.xlu0 %3760
        %3764 = vset.pattern.permute.xlu0 0
        %3765 = vperm.xlu0 %3764, %v3477
        %v3766 = vpop.permute.xlu0 %3765
        %v3768 = vmul.f32 %v3600, %v3651
        %v3769 = vmul.f32 %v3601, %v3651
        %v3770 = vmul.f32 %v3602, %v3656
        %v3771 = vmul.f32 %v3603, %v3656
        %v3772 = vmul.f32 %v3604, %v3661
        %v3773 = vmul.f32 %v3605, %v3661
        %v3774 = vmul.f32 %v3606, %v3666
        %v3775 = vmul.f32 %v3607, %v3666
        %v3776 = vmul.f32 %v3608, %v3671
        %v3777 = vmul.f32 %v3609, %v3671
        %v3778 = vmul.f32 %v3610, %v3676
        %v3779 = vmul.f32 %v3611, %v3676
        %v3780 = vmul.f32 %v3612, %v3681
        %v3781 = vmul.f32 %v3613, %v3681
        %v3782 = vmul.f32 %v3614, %v3686
        %v3783 = vmul.f32 %v3615, %v3686
        %v3784 = vmul.f32 %v3616, %v3691
        %v3785 = vmul.f32 %v3617, %v3691
        %v3786 = vmul.f32 %v3618, %v3696
        %v3787 = vmul.f32 %v3619, %v3696
        %v3788 = vmul.f32 %v3620, %v3701
        %v3789 = vmul.f32 %v3621, %v3701
        %v3790 = vmul.f32 %v3622, %v3706
        %v3791 = vmul.f32 %v3623, %v3706
        %v3792 = vmul.f32 %v3624, %v3711
        %v3793 = vmul.f32 %v3625, %v3711
        %v3794 = vmul.f32 %v3626, %v3716
        %v3795 = vmul.f32 %v3627, %v3716
        %v3796 = vmul.f32 %v3628, %v3721
        %v3797 = vmul.f32 %v3629, %v3721
        %v3798 = vmul.f32 %v3630, %v3726
        %v3799 = vmul.f32 %v3631, %v3726
        %v3800 = vmul.f32 %v3632, %v3731
        %v3801 = vmul.f32 %v3633, %v3731
        %v3802 = vmul.f32 %v3634, %v3736
        %v3803 = vmul.f32 %v3635, %v3736
        %v3804 = vmul.f32 %v3636, %v3741
        %v3805 = vmul.f32 %v3637, %v3741
        %v3806 = vmul.f32 %v3638, %v3746
        %v3807 = vmul.f32 %v3639, %v3746
        %v3808 = vmul.f32 %v3640, %v3751
        %v3809 = vmul.f32 %v3641, %v3751
        %v3810 = vmul.f32 %v3642, %v3756
        %v3811 = vmul.f32 %v3643, %v3756
        %v3812 = vmul.f32 %v3644, %v3761
        %v3813 = vmul.f32 %v3645, %v3761
        %v3814 = vmul.f32 %v3646, %v3766
        %v3815 = vmul.f32 %v3647, %v3766
        %v3817 = vlaneseq
        %v3818 = vshrl.u32 %v3817, 7
        %v3819 = vsub.s32 0, %v3818
        %v3820 = vrot.slane %v2650, %v3819
        %v3821 = vlaneseq
        %v3822 = vshrl.u32 %v3821, 7
        %v3823 = vsub.s32 1, %v3822
        %v3824 = vrot.slane %v2650, %v3823
        %v3827 = vmul.f32 %v3768, %v3820
        %v3828 = vmul.f32 %v3769, %v3824
        %v3829 = vmul.f32 %v3770, %v3820
        %v3830 = vmul.f32 %v3771, %v3824
        %v3831 = vmul.f32 %v3772, %v3820
        %v3832 = vmul.f32 %v3773, %v3824
        %v3833 = vmul.f32 %v3774, %v3820
        %v3834 = vmul.f32 %v3775, %v3824
        %v3835 = vmul.f32 %v3776, %v3820
        %v3836 = vmul.f32 %v3777, %v3824
        %v3837 = vmul.f32 %v3778, %v3820
        %v3838 = vmul.f32 %v3779, %v3824
        %v3839 = vmul.f32 %v3780, %v3820
        %v3840 = vmul.f32 %v3781, %v3824
        %v3841 = vmul.f32 %v3782, %v3820
        %v3842 = vmul.f32 %v3783, %v3824
        %v3843 = vmul.f32 %v3784, %v3820
        %v3844 = vmul.f32 %v3785, %v3824
        %v3845 = vmul.f32 %v3786, %v3820
        %v3846 = vmul.f32 %v3787, %v3824
        %v3847 = vmul.f32 %v3788, %v3820
        %v3848 = vmul.f32 %v3789, %v3824
        %v3849 = vmul.f32 %v3790, %v3820
        %v3850 = vmul.f32 %v3791, %v3824
        %v3851 = vmul.f32 %v3792, %v3820
        %v3852 = vmul.f32 %v3793, %v3824
        %v3853 = vmul.f32 %v3794, %v3820
        %v3854 = vmul.f32 %v3795, %v3824
        %v3855 = vmul.f32 %v3796, %v3820
        %v3856 = vmul.f32 %v3797, %v3824
        %v3857 = vmul.f32 %v3798, %v3820
        %v3858 = vmul.f32 %v3799, %v3824
        %v3859 = vmul.f32 %v3800, %v3820
        %v3860 = vmul.f32 %v3801, %v3824
        %v3861 = vmul.f32 %v3802, %v3820
        %v3862 = vmul.f32 %v3803, %v3824
        %v3863 = vmul.f32 %v3804, %v3820
        %v3864 = vmul.f32 %v3805, %v3824
        %v3865 = vmul.f32 %v3806, %v3820
        %v3866 = vmul.f32 %v3807, %v3824
        %v3867 = vmul.f32 %v3808, %v3820
        %v3868 = vmul.f32 %v3809, %v3824
        %v3869 = vmul.f32 %v3810, %v3820
        %v3870 = vmul.f32 %v3811, %v3824
        %v3871 = vmul.f32 %v3812, %v3820
        %v3872 = vmul.f32 %v3813, %v3824
        %v3873 = vmul.f32 %v3814, %v3820
        %v3874 = vmul.f32 %v3815, %v3824
        %v3876 = vlaneseq
        %v3877 = vshrl.u32 %v3876, 7
        %v3878 = vsub.s32 0, %v3877
        %v3879 = vrot.slane %v2651, %v3878
        %v3880 = vlaneseq
        %v3881 = vshrl.u32 %v3880, 7
        %v3882 = vsub.s32 1, %v3881
        %v3883 = vrot.slane %v2651, %v3882
        %v3886 = vadd.f32 %v3827, %v3879
        %v3887 = vadd.f32 %v3828, %v3883
        %v3888 = vadd.f32 %v3829, %v3879
        %v3889 = vadd.f32 %v3830, %v3883
        %v3890 = vadd.f32 %v3831, %v3879
        %v3891 = vadd.f32 %v3832, %v3883
        %v3892 = vadd.f32 %v3833, %v3879
        %v3893 = vadd.f32 %v3834, %v3883
        %v3894 = vadd.f32 %v3835, %v3879
        %v3895 = vadd.f32 %v3836, %v3883
        %v3896 = vadd.f32 %v3837, %v3879
        %v3897 = vadd.f32 %v3838, %v3883
        %v3898 = vadd.f32 %v3839, %v3879
        %v3899 = vadd.f32 %v3840, %v3883
        %v3900 = vadd.f32 %v3841, %v3879
        %v3901 = vadd.f32 %v3842, %v3883
        %v3902 = vadd.f32 %v3843, %v3879
        %v3903 = vadd.f32 %v3844, %v3883
        %v3904 = vadd.f32 %v3845, %v3879
        %v3905 = vadd.f32 %v3846, %v3883
        %v3906 = vadd.f32 %v3847, %v3879
        %v3907 = vadd.f32 %v3848, %v3883
        %v3908 = vadd.f32 %v3849, %v3879
        %v3909 = vadd.f32 %v3850, %v3883
        %v3910 = vadd.f32 %v3851, %v3879
        %v3911 = vadd.f32 %v3852, %v3883
        %v3912 = vadd.f32 %v3853, %v3879
        %v3913 = vadd.f32 %v3854, %v3883
        %v3914 = vadd.f32 %v3855, %v3879
        %v3915 = vadd.f32 %v3856, %v3883
        %v3916 = vadd.f32 %v3857, %v3879
        %v3917 = vadd.f32 %v3858, %v3883
        %v3918 = vadd.f32 %v3859, %v3879
        %v3919 = vadd.f32 %v3860, %v3883
        %v3920 = vadd.f32 %v3861, %v3879
        %v3921 = vadd.f32 %v3862, %v3883
        %v3922 = vadd.f32 %v3863, %v3879
        %v3923 = vadd.f32 %v3864, %v3883
        %v3924 = vadd.f32 %v3865, %v3879
        %v3925 = vadd.f32 %v3866, %v3883
        %v3926 = vadd.f32 %v3867, %v3879
        %v3927 = vadd.f32 %v3868, %v3883
        %v3928 = vadd.f32 %v3869, %v3879
        %v3929 = vadd.f32 %v3870, %v3883
        %v3930 = vadd.f32 %v3871, %v3879
        %v3931 = vadd.f32 %v3872, %v3883
        %v3932 = vadd.f32 %v3873, %v3879
        %v3933 = vadd.f32 %v3874, %v3883
        %v3934 = vmul.u32 %v2653, 2
        %v3935 = vmul.u32 %v2670, 2
        %v3936 = vmul.u32 %v2671, 2
        %v3937 = vmul.u32 %v2672, 2
        %v3938 = vmul.u32 %v2673, 2
        %v3939 = vmul.u32 %v2674, 2
        %v3940 = vmul.u32 %v2675, 2
        %v3941 = vmul.u32 %v2676, 2
        %v3942 = vmul.u32 %v2677, 2
        %v3943 = vmul.u32 %v2678, 2
        %v3944 = vmul.u32 %v2679, 2
        %v3945 = vmul.u32 %v2680, 2
        %vm3946 = vcmp.eq.s32.totalorder %v2655, %v3934
        %vm3947 = vcmp.eq.s32.totalorder %v2656, %v3934
        %vm3948 = vcmp.eq.s32.totalorder %v2655, %v3935
        %vm3949 = vcmp.eq.s32.totalorder %v2656, %v3935
        %vm3950 = vcmp.eq.s32.totalorder %v2655, %v3936
        %vm3951 = vcmp.eq.s32.totalorder %v2656, %v3936
        %vm3952 = vcmp.eq.s32.totalorder %v2655, %v3937
        %vm3953 = vcmp.eq.s32.totalorder %v2656, %v3937
        %vm3954 = vcmp.eq.s32.totalorder %v2655, %v3938
        %vm3955 = vcmp.eq.s32.totalorder %v2656, %v3938
        %vm3956 = vcmp.eq.s32.totalorder %v2655, %v3939
        %vm3957 = vcmp.eq.s32.totalorder %v2656, %v3939
        %vm3958 = vcmp.eq.s32.totalorder %v2655, %v3940
        %vm3959 = vcmp.eq.s32.totalorder %v2656, %v3940
        %vm3960 = vcmp.eq.s32.totalorder %v2655, %v3941
        %vm3961 = vcmp.eq.s32.totalorder %v2656, %v3941
        %vm3962 = vcmp.eq.s32.totalorder %v2655, %v3942
        %vm3963 = vcmp.eq.s32.totalorder %v2656, %v3942
        %vm3964 = vcmp.eq.s32.totalorder %v2655, %v3943
        %vm3965 = vcmp.eq.s32.totalorder %v2656, %v3943
        %vm3966 = vcmp.eq.s32.totalorder %v2655, %v3944
        %vm3967 = vcmp.eq.s32.totalorder %v2656, %v3944
        %vm3968 = vcmp.eq.s32.totalorder %v2655, %v3945
        %vm3969 = vcmp.eq.s32.totalorder %v2656, %v3945
        %v3970 = vsel %vm3946, 1, 0
        %v3971 = vsel %vm3947, 1, 0
        %v3972 = vsel %vm3948, 1, 0
        %v3973 = vsel %vm3949, 1, 0
        %v3974 = vsel %vm3950, 1, 0
        %v3975 = vsel %vm3951, 1, 0
        %v3976 = vsel %vm3952, 1, 0
        %v3977 = vsel %vm3953, 1, 0
        %v3978 = vsel %vm3954, 1, 0
        %v3979 = vsel %vm3955, 1, 0
        %v3980 = vsel %vm3956, 1, 0
        %v3981 = vsel %vm3957, 1, 0
        %v3982 = vsel %vm3958, 1, 0
        %v3983 = vsel %vm3959, 1, 0
        %v3984 = vsel %vm3960, 1, 0
        %v3985 = vsel %vm3961, 1, 0
        %v3986 = vsel %vm3962, 1, 0
        %v3987 = vsel %vm3963, 1, 0
        %v3988 = vsel %vm3964, 1, 0
        %v3989 = vsel %vm3965, 1, 0
        %v3990 = vsel %vm3966, 1, 0
        %v3991 = vsel %vm3967, 1, 0
        %v3992 = vsel %vm3968, 1, 0
        %v3993 = vsel %vm3969, 1, 0
        %v3994 = vcvt.s32.f32 %v3970
        %v3995 = vcvt.s32.f32 %v3971
        %v3996 = vcvt.s32.f32 %v3972
        %v3997 = vcvt.s32.f32 %v3973
        %v3998 = vcvt.s32.f32 %v3974
        %v3999 = vcvt.s32.f32 %v3975
        %v4000 = vcvt.s32.f32 %v3976
        %v4001 = vcvt.s32.f32 %v3977
        %v4002 = vcvt.s32.f32 %v3978
        %v4003 = vcvt.s32.f32 %v3979
        %v4004 = vcvt.s32.f32 %v3980
        %v4005 = vcvt.s32.f32 %v3981
        %v4006 = vcvt.s32.f32 %v3982
        %v4007 = vcvt.s32.f32 %v3983
        %v4008 = vcvt.s32.f32 %v3984
        %v4009 = vcvt.s32.f32 %v3985
        %v4010 = vcvt.s32.f32 %v3986
        %v4011 = vcvt.s32.f32 %v3987
        %v4012 = vcvt.s32.f32 %v3988
        %v4013 = vcvt.s32.f32 %v3989
        %v4014 = vcvt.s32.f32 %v3990
        %v4015 = vcvt.s32.f32 %v3991
        %v4016 = vcvt.s32.f32 %v3992
        %v4017 = vcvt.s32.f32 %v3993
        %v4018 = vadd.s32 %v3934, 1
        %v4019 = vadd.s32 %v3935, 1
        %v4020 = vadd.s32 %v3936, 1
        %v4021 = vadd.s32 %v3937, 1
        %v4022 = vadd.s32 %v3938, 1
        %v4023 = vadd.s32 %v3939, 1
        %v4024 = vadd.s32 %v3940, 1
        %v4025 = vadd.s32 %v3941, 1
        %v4026 = vadd.s32 %v3942, 1
        %v4027 = vadd.s32 %v3943, 1
        %v4028 = vadd.s32 %v3944, 1
        %v4029 = vadd.s32 %v3945, 1
        %vm4030 = vcmp.eq.s32.totalorder %v2655, %v4018
        %vm4031 = vcmp.eq.s32.totalorder %v2656, %v4018
        %vm4032 = vcmp.eq.s32.totalorder %v2655, %v4019
        %vm4033 = vcmp.eq.s32.totalorder %v2656, %v4019
        %vm4034 = vcmp.eq.s32.totalorder %v2655, %v4020
        %vm4035 = vcmp.eq.s32.totalorder %v2656, %v4020
        %vm4036 = vcmp.eq.s32.totalorder %v2655, %v4021
        %vm4037 = vcmp.eq.s32.totalorder %v2656, %v4021
        %vm4038 = vcmp.eq.s32.totalorder %v2655, %v4022
        %vm4039 = vcmp.eq.s32.totalorder %v2656, %v4022
        %vm4040 = vcmp.eq.s32.totalorder %v2655, %v4023
        %vm4041 = vcmp.eq.s32.totalorder %v2656, %v4023
        %vm4042 = vcmp.eq.s32.totalorder %v2655, %v4024
        %vm4043 = vcmp.eq.s32.totalorder %v2656, %v4024
        %vm4044 = vcmp.eq.s32.totalorder %v2655, %v4025
        %vm4045 = vcmp.eq.s32.totalorder %v2656, %v4025
        %vm4046 = vcmp.eq.s32.totalorder %v2655, %v4026
        %vm4047 = vcmp.eq.s32.totalorder %v2656, %v4026
        %vm4048 = vcmp.eq.s32.totalorder %v2655, %v4027
        %vm4049 = vcmp.eq.s32.totalorder %v2656, %v4027
        %vm4050 = vcmp.eq.s32.totalorder %v2655, %v4028
        %vm4051 = vcmp.eq.s32.totalorder %v2656, %v4028
        %vm4052 = vcmp.eq.s32.totalorder %v2655, %v4029
        %vm4053 = vcmp.eq.s32.totalorder %v2656, %v4029
        %v4054 = vsel %vm4030, 1, 0
        %v4055 = vsel %vm4031, 1, 0
        %v4056 = vsel %vm4032, 1, 0
        %v4057 = vsel %vm4033, 1, 0
        %v4058 = vsel %vm4034, 1, 0
        %v4059 = vsel %vm4035, 1, 0
        %v4060 = vsel %vm4036, 1, 0
        %v4061 = vsel %vm4037, 1, 0
        %v4062 = vsel %vm4038, 1, 0
        %v4063 = vsel %vm4039, 1, 0
        %v4064 = vsel %vm4040, 1, 0
        %v4065 = vsel %vm4041, 1, 0
        %v4066 = vsel %vm4042, 1, 0
        %v4067 = vsel %vm4043, 1, 0
        %v4068 = vsel %vm4044, 1, 0
        %v4069 = vsel %vm4045, 1, 0
        %v4070 = vsel %vm4046, 1, 0
        %v4071 = vsel %vm4047, 1, 0
        %v4072 = vsel %vm4048, 1, 0
        %v4073 = vsel %vm4049, 1, 0
        %v4074 = vsel %vm4050, 1, 0
        %v4075 = vsel %vm4051, 1, 0
        %v4076 = vsel %vm4052, 1, 0
        %v4077 = vsel %vm4053, 1, 0
        %v4078 = vcvt.s32.f32 %v4054
        %v4079 = vcvt.s32.f32 %v4055
        %v4080 = vcvt.s32.f32 %v4056
        %v4081 = vcvt.s32.f32 %v4057
        %v4082 = vcvt.s32.f32 %v4058
        %v4083 = vcvt.s32.f32 %v4059
        %v4084 = vcvt.s32.f32 %v4060
        %v4085 = vcvt.s32.f32 %v4061
        %v4086 = vcvt.s32.f32 %v4062
        %v4087 = vcvt.s32.f32 %v4063
        %v4088 = vcvt.s32.f32 %v4064
        %v4089 = vcvt.s32.f32 %v4065
        %v4090 = vcvt.s32.f32 %v4066
        %v4091 = vcvt.s32.f32 %v4067
        %v4092 = vcvt.s32.f32 %v4068
        %v4093 = vcvt.s32.f32 %v4069
        %v4094 = vcvt.s32.f32 %v4070
        %v4095 = vcvt.s32.f32 %v4071
        %v4096 = vcvt.s32.f32 %v4072
        %v4097 = vcvt.s32.f32 %v4073
        %v4098 = vcvt.s32.f32 %v4074
        %v4099 = vcvt.s32.f32 %v4075
        %v4100 = vcvt.s32.f32 %v4076
        %v4101 = vcvt.s32.f32 %v4077
        %v4103 = vsel %vm2816, %v3995, 0
        %v4106 = vsel %vm2816, %v3997, 0
        %v4109 = vsel %vm2816, %v3999, 0
        %v4112 = vsel %vm2816, %v4001, 0
        %v4115 = vsel %vm2816, %v4003, 0
        %v4118 = vsel %vm2816, %v4005, 0
        %v4121 = vsel %vm2816, %v4007, 0
        %v4124 = vsel %vm2816, %v4009, 0
        %v4127 = vsel %vm2816, %v4011, 0
        %v4130 = vsel %vm2816, %v4013, 0
        %v4133 = vsel %vm2816, %v4015, 0
        %v4136 = vsel %vm2816, %v4017, 0
        %4138 = vmatprep.subr.mxu0 %v3887
        %4139 = vmatpush1.msra.mxu0 %v3886
        %4140 = vmatprep.subr.mxu0 %v3889
        %4141 = vmatpush1.msra.mxu0 %v3888
        %4142 = vmatprep.subr.mxu0 %v3891
        %4143 = vmatpush1.msra.mxu0 %v3890
        %4144 = vmatprep.subr.mxu0 %v3893
        %4145 = vmatpush1.msra.mxu0 %v3892
        %4146 = vmatprep.subr.mxu0 %v3895
        %4147 = vmatpush1.msra.mxu0 %v3894
        %4148 = vmatprep.subr.mxu0 %v3897
        %4149 = vmatpush1.msra.mxu0 %v3896
        %4150 = vmatprep.subr.mxu0 %v3899
        %4151 = vmatpush1.msra.mxu0 %v3898
        %4152 = vmatprep.subr.mxu0 %v3901
        %4153 = vmatpush1.msra.mxu0 %v3900
        %4154 = vmatprep.subr.mxu0 %v3903
        %4155 = vmatpush1.msra.mxu0 %v3902
        %4156 = vmatprep.subr.mxu0 %v3905
        %4157 = vmatpush1.msra.mxu0 %v3904
        %4158 = vmatprep.subr.mxu0 %v3907
        %4159 = vmatpush1.msra.mxu0 %v3906
        %4160 = vmatprep.subr.mxu0 %v3909
        %4161 = vmatpush1.msra.mxu0 %v3908
        %4162 = vmatprep.subr.mxu0 %v3911
        %4163 = vmatpush1.msra.mxu0 %v3910
        %4164 = vmatprep.subr.mxu0 %v3913
        %4165 = vmatpush1.msra.mxu0 %v3912
        %4166 = vmatprep.subr.mxu0 %v3915
        %4167 = vmatpush1.msra.mxu0 %v3914
        %4168 = vmatprep.subr.mxu0 %v3917
        %4169 = vmatpush1.msra.mxu0 %v3916
        %4170 = vmatprep.subr.mxu0 %v3919
        %4171 = vmatpush1.msra.mxu0 %v3918
        %4172 = vmatprep.subr.mxu0 %v3921
        %4173 = vmatpush1.msra.mxu0 %v3920
        %4174 = vmatprep.subr.mxu0 %v3923
        %4175 = vmatpush1.msra.mxu0 %v3922
        %4176 = vmatprep.subr.mxu0 %v3925
        %4177 = vmatpush1.msra.mxu0 %v3924
        %4178 = vmatprep.subr.mxu0 %v3927
        %4179 = vmatpush1.msra.mxu0 %v3926
        %4180 = vmatprep.subr.mxu0 %v3929
        %4181 = vmatpush1.msra.mxu0 %v3928
        %4182 = vmatprep.subr.mxu0 %v3931
        %4183 = vmatpush1.msra.mxu0 %v3930
        %4184 = vmatprep.subr.mxu0 %v3933
        %4185 = vmatpush1.msra.mxu0 %v3932
        %4186 = vmatprep.subr.mxu0 0.0
        %4187 = vmatpush1.msra.mxu0 0.0
        %4188 = vmatprep.subr.mxu0 0.0
        %4189 = vmatpush1.msra.mxu0 0.0
        %4190 = vmatprep.subr.mxu0 0.0
        %4191 = vmatpush1.msra.mxu0 0.0
        %4192 = vmatprep.subr.mxu0 0.0
        %4193 = vmatpush1.msra.mxu0 0.0
        %4194 = vmatprep.subr.mxu0 0.0
        %4195 = vmatpush1.msra.mxu0 0.0
        %4196 = vmatprep.subr.mxu0 0.0
        %4197 = vmatpush1.msra.mxu0 0.0
        %4198 = vmatprep.subr.mxu0 0.0
        %4199 = vmatpush1.msra.mxu0 0.0
        %4200 = vmatprep.subr.mxu0 0.0
        %4201 = vmatpush1.msra.mxu0 0.0
        %4202 = vmatprep.mubr.f32.mxu0 %v4103
        %4203 = vmatmul.mubr.f32.gmra.mrb[0].mxu0 %v3994
        %v4204 = vpop.f32.mrb[0].mxu0
        %v4205 = vadd.f32 0.0, %v4204
        %v4206 = vpop.f32.mrb[0].mxu0
        %v4207 = vadd.f32 0.0, %v4206
        %4208 = vmatprep.mubr.f32.mxu0 %v4106
        %4209 = vmatmul.mubr.f32.gmra.mrb[0].mxu0 %v3996
        %v4210 = vpop.f32.mrb[0].mxu0
        %v4211 = vadd.f32 0.0, %v4210
        %v4212 = vpop.f32.mrb[0].mxu0
        %v4213 = vadd.f32 0.0, %v4212
        %4214 = vmatprep.mubr.f32.mxu0 %v4109
        %4215 = vmatmul.mubr.f32.gmra.mrb[0].mxu0 %v3998
        %v4216 = vpop.f32.mrb[0].mxu0
        %v4217 = vadd.f32 0.0, %v4216
        %v4218 = vpop.f32.mrb[0].mxu0
        %v4219 = vadd.f32 0.0, %v4218
        %4220 = vmatprep.mubr.f32.mxu0 %v4112
        %4221 = vmatmul.mubr.f32.gmra.mrb[0].mxu0 %v4000
        %v4222 = vpop.f32.mrb[0].mxu0
        %v4223 = vadd.f32 0.0, %v4222
        %v4224 = vpop.f32.mrb[0].mxu0
        %v4225 = vadd.f32 0.0, %v4224
        %4226 = vmatprep.mubr.f32.mxu0 %v4115
        %4227 = vmatmul.mubr.f32.gmra.mrb[0].mxu0 %v4002
        %v4228 = vpop.f32.mrb[0].mxu0
        %v4229 = vadd.f32 0.0, %v4228
        %v4230 = vpop.f32.mrb[0].mxu0
        %v4231 = vadd.f32 0.0, %v4230
        %4232 = vmatprep.mubr.f32.mxu0 %v4118
        %4233 = vmatmul.mubr.f32.gmra.mrb[0].mxu0 %v4004
        %v4234 = vpop.f32.mrb[0].mxu0
        %v4235 = vadd.f32 0.0, %v4234
        %v4236 = vpop.f32.mrb[0].mxu0
        %v4237 = vadd.f32 0.0, %v4236
        %4238 = vmatprep.mubr.f32.mxu0 %v4121
        %4239 = vmatmul.mubr.f32.gmra.mrb[0].mxu0 %v4006
        %v4240 = vpop.f32.mrb[0].mxu0
        %v4241 = vadd.f32 0.0, %v4240
        %v4242 = vpop.f32.mrb[0].mxu0
        %v4243 = vadd.f32 0.0, %v4242
        %4244 = vmatprep.mubr.f32.mxu0 %v4124
        %4245 = vmatmul.mubr.f32.gmra.mrb[0].mxu0 %v4008
        %v4246 = vpop.f32.mrb[0].mxu0
        %v4247 = vadd.f32 0.0, %v4246
        %v4248 = vpop.f32.mrb[0].mxu0
        %v4249 = vadd.f32 0.0, %v4248
        %4250 = vmatprep.mubr.f32.mxu0 %v4127
        %4251 = vmatmul.mubr.f32.gmra.mrb[0].mxu0 %v4010
        %v4252 = vpop.f32.mrb[0].mxu0
        %v4253 = vadd.f32 0.0, %v4252
        %v4254 = vpop.f32.mrb[0].mxu0
        %v4255 = vadd.f32 0.0, %v4254
        %4256 = vmatprep.mubr.f32.mxu0 %v4130
        %4257 = vmatmul.mubr.f32.gmra.mrb[0].mxu0 %v4012
        %v4258 = vpop.f32.mrb[0].mxu0
        %v4259 = vadd.f32 0.0, %v4258
        %v4260 = vpop.f32.mrb[0].mxu0
        %v4261 = vadd.f32 0.0, %v4260
        %4262 = vmatprep.mubr.f32.mxu0 %v4133
        %4263 = vmatmul.mubr.f32.gmra.mrb[0].mxu0 %v4014
        %v4264 = vpop.f32.mrb[0].mxu0
        %v4265 = vadd.f32 0.0, %v4264
        %v4266 = vpop.f32.mrb[0].mxu0
        %v4267 = vadd.f32 0.0, %v4266
        %4268 = vmatprep.mubr.f32.mxu0 %v4136
        %4269 = vmatmul.mubr.f32.gmra.mrb[0].mxu0 %v4016
        %v4270 = vpop.f32.mrb[0].mxu0
        %v4271 = vadd.f32 0.0, %v4270
        %v4272 = vpop.f32.mrb[0].mxu0
        %v4273 = vadd.f32 0.0, %v4272
        %4274 = vdwg.mxu0
        %v4276 = vsel %vm2816, %v4079, 0
        %v4279 = vsel %vm2816, %v4081, 0
        %v4282 = vsel %vm2816, %v4083, 0
        %v4285 = vsel %vm2816, %v4085, 0
        %v4288 = vsel %vm2816, %v4087, 0
        %v4291 = vsel %vm2816, %v4089, 0
        %v4294 = vsel %vm2816, %v4091, 0
        %v4297 = vsel %vm2816, %v4093, 0
        %v4300 = vsel %vm2816, %v4095, 0
        %v4303 = vsel %vm2816, %v4097, 0
        %v4306 = vsel %vm2816, %v4099, 0
        %v4309 = vsel %vm2816, %v4101, 0
        %4311 = vmatprep.subr.mxu0 %v3887
        %4312 = vmatpush1.msra.mxu0 %v3886
        %4313 = vmatprep.subr.mxu0 %v3889
        %4314 = vmatpush1.msra.mxu0 %v3888
        %4315 = vmatprep.subr.mxu0 %v3891
        %4316 = vmatpush1.msra.mxu0 %v3890
        %4317 = vmatprep.subr.mxu0 %v3893
        %4318 = vmatpush1.msra.mxu0 %v3892
        %4319 = vmatprep.subr.mxu0 %v3895
        %4320 = vmatpush1.msra.mxu0 %v3894
        %4321 = vmatprep.subr.mxu0 %v3897
        %4322 = vmatpush1.msra.mxu0 %v3896
        %4323 = vmatprep.subr.mxu0 %v3899
        %4324 = vmatpush1.msra.mxu0 %v3898
        %4325 = vmatprep.subr.mxu0 %v3901
        %4326 = vmatpush1.msra.mxu0 %v3900
        %4327 = vmatprep.subr.mxu0 %v3903
        %4328 = vmatpush1.msra.mxu0 %v3902
        %4329 = vmatprep.subr.mxu0 %v3905
        %4330 = vmatpush1.msra.mxu0 %v3904
        %4331 = vmatprep.subr.mxu0 %v3907
        %4332 = vmatpush1.msra.mxu0 %v3906
        %4333 = vmatprep.subr.mxu0 %v3909
        %4334 = vmatpush1.msra.mxu0 %v3908
        %4335 = vmatprep.subr.mxu0 %v3911
        %4336 = vmatpush1.msra.mxu0 %v3910
        %4337 = vmatprep.subr.mxu0 %v3913
        %4338 = vmatpush1.msra.mxu0 %v3912
        %4339 = vmatprep.subr.mxu0 %v3915
        %4340 = vmatpush1.msra.mxu0 %v3914
        %4341 = vmatprep.subr.mxu0 %v3917
        %4342 = vmatpush1.msra.mxu0 %v3916
        %4343 = vmatprep.subr.mxu0 %v3919
        %4344 = vmatpush1.msra.mxu0 %v3918
        %4345 = vmatprep.subr.mxu0 %v3921
        %4346 = vmatpush1.msra.mxu0 %v3920
        %4347 = vmatprep.subr.mxu0 %v3923
        %4348 = vmatpush1.msra.mxu0 %v3922
        %4349 = vmatprep.subr.mxu0 %v3925
        %4350 = vmatpush1.msra.mxu0 %v3924
        %4351 = vmatprep.subr.mxu0 %v3927
        %4352 = vmatpush1.msra.mxu0 %v3926
        %4353 = vmatprep.subr.mxu0 %v3929
        %4354 = vmatpush1.msra.mxu0 %v3928
        %4355 = vmatprep.subr.mxu0 %v3931
        %4356 = vmatpush1.msra.mxu0 %v3930
        %4357 = vmatprep.subr.mxu0 %v3933
        %4358 = vmatpush1.msra.mxu0 %v3932
        %4359 = vmatprep.subr.mxu0 0.0
        %4360 = vmatpush1.msra.mxu0 0.0
        %4361 = vmatprep.subr.mxu0 0.0
        %4362 = vmatpush1.msra.mxu0 0.0
        %4363 = vmatprep.subr.mxu0 0.0
        %4364 = vmatpush1.msra.mxu0 0.0
        %4365 = vmatprep.subr.mxu0 0.0
        %4366 = vmatpush1.msra.mxu0 0.0
        %4367 = vmatprep.subr.mxu0 0.0
        %4368 = vmatpush1.msra.mxu0 0.0
        %4369 = vmatprep.subr.mxu0 0.0
        %4370 = vmatpush1.msra.mxu0 0.0
        %4371 = vmatprep.subr.mxu0 0.0
        %4372 = vmatpush1.msra.mxu0 0.0
        %4373 = vmatprep.subr.mxu0 0.0
        %4374 = vmatpush1.msra.mxu0 0.0
        %4375 = vmatprep.mubr.f32.mxu0 %v4276
        %4376 = vmatmul.mubr.f32.gmra.mrb[0].mxu0 %v4078
        %v4377 = vpop.f32.mrb[0].mxu0
        %v4378 = vadd.f32 0.0, %v4377
        %v4379 = vpop.f32.mrb[0].mxu0
        %v4380 = vadd.f32 0.0, %v4379
        %4381 = vmatprep.mubr.f32.mxu0 %v4279
        %4382 = vmatmul.mubr.f32.gmra.mrb[0].mxu0 %v4080
        %v4383 = vpop.f32.mrb[0].mxu0
        %v4384 = vadd.f32 0.0, %v4383
        %v4385 = vpop.f32.mrb[0].mxu0
        %v4386 = vadd.f32 0.0, %v4385
        %4387 = vmatprep.mubr.f32.mxu0 %v4282
        %4388 = vmatmul.mubr.f32.gmra.mrb[0].mxu0 %v4082
        %v4389 = vpop.f32.mrb[0].mxu0
        %v4390 = vadd.f32 0.0, %v4389
        %v4391 = vpop.f32.mrb[0].mxu0
        %v4392 = vadd.f32 0.0, %v4391
        %4393 = vmatprep.mubr.f32.mxu0 %v4285
        %4394 = vmatmul.mubr.f32.gmra.mrb[0].mxu0 %v4084
        %v4395 = vpop.f32.mrb[0].mxu0
        %v4396 = vadd.f32 0.0, %v4395
        %v4397 = vpop.f32.mrb[0].mxu0
        %v4398 = vadd.f32 0.0, %v4397
        %4399 = vmatprep.mubr.f32.mxu0 %v4288
        %4400 = vmatmul.mubr.f32.gmra.mrb[0].mxu0 %v4086
        %v4401 = vpop.f32.mrb[0].mxu0
        %v4402 = vadd.f32 0.0, %v4401
        %v4403 = vpop.f32.mrb[0].mxu0
        %v4404 = vadd.f32 0.0, %v4403
        %4405 = vmatprep.mubr.f32.mxu0 %v4291
        %4406 = vmatmul.mubr.f32.gmra.mrb[0].mxu0 %v4088
        %v4407 = vpop.f32.mrb[0].mxu0
        %v4408 = vadd.f32 0.0, %v4407
        %v4409 = vpop.f32.mrb[0].mxu0
        %v4410 = vadd.f32 0.0, %v4409
        %4411 = vmatprep.mubr.f32.mxu0 %v4294
        %4412 = vmatmul.mubr.f32.gmra.mrb[0].mxu0 %v4090
        %v4413 = vpop.f32.mrb[0].mxu0
        %v4414 = vadd.f32 0.0, %v4413
        %v4415 = vpop.f32.mrb[0].mxu0
        %v4416 = vadd.f32 0.0, %v4415
        %4417 = vmatprep.mubr.f32.mxu0 %v4297
        %4418 = vmatmul.mubr.f32.gmra.mrb[0].mxu0 %v4092
        %v4419 = vpop.f32.mrb[0].mxu0
        %v4420 = vadd.f32 0.0, %v4419
        %v4421 = vpop.f32.mrb[0].mxu0
        %v4422 = vadd.f32 0.0, %v4421
        %4423 = vmatprep.mubr.f32.mxu0 %v4300
        %4424 = vmatmul.mubr.f32.gmra.mrb[0].mxu0 %v4094
        %v4425 = vpop.f32.mrb[0].mxu0
        %v4426 = vadd.f32 0.0, %v4425
        %v4427 = vpop.f32.mrb[0].mxu0
        %v4428 = vadd.f32 0.0, %v4427
        %4429 = vmatprep.mubr.f32.mxu0 %v4303
        %4430 = vmatmul.mubr.f32.gmra.mrb[0].mxu0 %v4096
        %v4431 = vpop.f32.mrb[0].mxu0
        %v4432 = vadd.f32 0.0, %v4431
        %v4433 = vpop.f32.mrb[0].mxu0
        %v4434 = vadd.f32 0.0, %v4433
        %4435 = vmatprep.mubr.f32.mxu0 %v4306
        %4436 = vmatmul.mubr.f32.gmra.mrb[0].mxu0 %v4098
        %v4437 = vpop.f32.mrb[0].mxu0
        %v4438 = vadd.f32 0.0, %v4437
        %v4439 = vpop.f32.mrb[0].mxu0
        %v4440 = vadd.f32 0.0, %v4439
        %4441 = vmatprep.mubr.f32.mxu0 %v4309
        %4442 = vmatmul.mubr.f32.gmra.mrb[0].mxu0 %v4100
        %v4443 = vpop.f32.mrb[0].mxu0
        %v4444 = vadd.f32 0.0, %v4443
        %v4445 = vpop.f32.mrb[0].mxu0
        %v4446 = vadd.f32 0.0, %v4445
        %4447 = vdwg.mxu0
        %v4448 = vmax.f32 %v4205, %v4378
        %v4449 = vmax.f32 %v4207, %v4380
        %v4450 = vmax.f32 %v4211, %v4384
        %v4451 = vmax.f32 %v4213, %v4386
        %v4452 = vmax.f32 %v4217, %v4390
        %v4453 = vmax.f32 %v4219, %v4392
        %v4454 = vmax.f32 %v4223, %v4396
        %v4455 = vmax.f32 %v4225, %v4398
        %v4456 = vmax.f32 %v4229, %v4402
        %v4457 = vmax.f32 %v4231, %v4404
        %v4458 = vmax.f32 %v4235, %v4408
        %v4459 = vmax.f32 %v4237, %v4410
        %v4460 = vmax.f32 %v4241, %v4414
        %v4461 = vmax.f32 %v4243, %v4416
        %v4462 = vmax.f32 %v4247, %v4420
        %v4463 = vmax.f32 %v4249, %v4422
        %v4464 = vmax.f32 %v4253, %v4426
        %v4465 = vmax.f32 %v4255, %v4428
        %v4466 = vmax.f32 %v4259, %v4432
        %v4467 = vmax.f32 %v4261, %v4434
        %v4468 = vmax.f32 %v4265, %v4438
        %v4469 = vmax.f32 %v4267, %v4440
        %v4470 = vmax.f32 %v4271, %v4444
        %v4471 = vmax.f32 %v4273, %v4446
        %v4472 = vmul.u32 %v2655, 2
        %vm4473 = vcmp.eq.s32.totalorder %v2653, %v4472
        %vm4474 = vcmp.eq.s32.totalorder %v2670, %v4472
        %vm4475 = vcmp.eq.s32.totalorder %v2671, %v4472
        %vm4476 = vcmp.eq.s32.totalorder %v2672, %v4472
        %vm4477 = vcmp.eq.s32.totalorder %v2673, %v4472
        %vm4478 = vcmp.eq.s32.totalorder %v2674, %v4472
        %vm4479 = vcmp.eq.s32.totalorder %v2675, %v4472
        %vm4480 = vcmp.eq.s32.totalorder %v2676, %v4472
        %vm4481 = vcmp.eq.s32.totalorder %v2677, %v4472
        %vm4482 = vcmp.eq.s32.totalorder %v2678, %v4472
        %vm4483 = vcmp.eq.s32.totalorder %v2679, %v4472
        %vm4484 = vcmp.eq.s32.totalorder %v2680, %v4472
        %vm4485 = vcmp.eq.s32.totalorder %v2681, %v4472
        %vm4486 = vcmp.eq.s32.totalorder %v2682, %v4472
        %vm4487 = vcmp.eq.s32.totalorder %v2683, %v4472
        %vm4488 = vcmp.eq.s32.totalorder %v2684, %v4472
        %vm4489 = vcmp.eq.s32.totalorder %v2685, %v4472
        %vm4490 = vcmp.eq.s32.totalorder %v2686, %v4472
        %v4491 = vsel %vm4473, 1, 0
        %v4492 = vsel %vm4474, 1, 0
        %v4493 = vsel %vm4475, 1, 0
        %v4494 = vsel %vm4476, 1, 0
        %v4495 = vsel %vm4477, 1, 0
        %v4496 = vsel %vm4478, 1, 0
        %v4497 = vsel %vm4479, 1, 0
        %v4498 = vsel %vm4480, 1, 0
        %v4499 = vsel %vm4481, 1, 0
        %v4500 = vsel %vm4482, 1, 0
        %v4501 = vsel %vm4483, 1, 0
        %v4502 = vsel %vm4484, 1, 0
        %v4503 = vsel %vm4485, 1, 0
        %v4504 = vsel %vm4486, 1, 0
        %v4505 = vsel %vm4487, 1, 0
        %v4506 = vsel %vm4488, 1, 0
        %v4507 = vsel %vm4489, 1, 0
        %v4508 = vsel %vm4490, 1, 0
        %v4509 = vcvt.s32.f32 %v4491
        %v4510 = vcvt.s32.f32 %v4492
        %v4511 = vcvt.s32.f32 %v4493
        %v4512 = vcvt.s32.f32 %v4494
        %v4513 = vcvt.s32.f32 %v4495
        %v4514 = vcvt.s32.f32 %v4496
        %v4515 = vcvt.s32.f32 %v4497
        %v4516 = vcvt.s32.f32 %v4498
        %v4517 = vcvt.s32.f32 %v4499
        %v4518 = vcvt.s32.f32 %v4500
        %v4519 = vcvt.s32.f32 %v4501
        %v4520 = vcvt.s32.f32 %v4502
        %v4521 = vcvt.s32.f32 %v4503
        %v4522 = vcvt.s32.f32 %v4504
        %v4523 = vcvt.s32.f32 %v4505
        %v4524 = vcvt.s32.f32 %v4506
        %v4525 = vcvt.s32.f32 %v4507
        %v4526 = vcvt.s32.f32 %v4508
        %v4527 = vadd.s32 %v4472, 1
        %vm4528 = vcmp.eq.s32.totalorder %v2653, %v4527
        %vm4529 = vcmp.eq.s32.totalorder %v2670, %v4527
        %vm4530 = vcmp.eq.s32.totalorder %v2671, %v4527
        %vm4531 = vcmp.eq.s32.totalorder %v2672, %v4527
        %vm4532 = vcmp.eq.s32.totalorder %v2673, %v4527
        %vm4533 = vcmp.eq.s32.totalorder %v2674, %v4527
        %vm4534 = vcmp.eq.s32.totalorder %v2675, %v4527
        %vm4535 = vcmp.eq.s32.totalorder %v2676, %v4527
        %vm4536 = vcmp.eq.s32.totalorder %v2677, %v4527
        %vm4537 = vcmp.eq.s32.totalorder %v2678, %v4527
        %vm4538 = vcmp.eq.s32.totalorder %v2679, %v4527
        %vm4539 = vcmp.eq.s32.totalorder %v2680, %v4527
        %vm4540 = vcmp.eq.s32.totalorder %v2681, %v4527
        %vm4541 = vcmp.eq.s32.totalorder %v2682, %v4527
        %vm4542 = vcmp.eq.s32.totalorder %v2683, %v4527
        %vm4543 = vcmp.eq.s32.totalorder %v2684, %v4527
        %vm4544 = vcmp.eq.s32.totalorder %v2685, %v4527
        %vm4545 = vcmp.eq.s32.totalorder %v2686, %v4527
        %v4546 = vsel %vm4528, 1, 0
        %v4547 = vsel %vm4529, 1, 0
        %v4548 = vsel %vm4530, 1, 0
        %v4549 = vsel %vm4531, 1, 0
        %v4550 = vsel %vm4532, 1, 0
        %v4551 = vsel %vm4533, 1, 0
        %v4552 = vsel %vm4534, 1, 0
        %v4553 = vsel %vm4535, 1, 0
        %v4554 = vsel %vm4536, 1, 0
        %v4555 = vsel %vm4537, 1, 0
        %v4556 = vsel %vm4538, 1, 0
        %v4557 = vsel %vm4539, 1, 0
        %v4558 = vsel %vm4540, 1, 0
        %v4559 = vsel %vm4541, 1, 0
        %v4560 = vsel %vm4542, 1, 0
        %v4561 = vsel %vm4543, 1, 0
        %v4562 = vsel %vm4544, 1, 0
        %v4563 = vsel %vm4545, 1, 0
        %v4564 = vcvt.s32.f32 %v4546
        %v4565 = vcvt.s32.f32 %v4547
        %v4566 = vcvt.s32.f32 %v4548
        %v4567 = vcvt.s32.f32 %v4549
        %v4568 = vcvt.s32.f32 %v4550
        %v4569 = vcvt.s32.f32 %v4551
        %v4570 = vcvt.s32.f32 %v4552
        %v4571 = vcvt.s32.f32 %v4553
        %v4572 = vcvt.s32.f32 %v4554
        %v4573 = vcvt.s32.f32 %v4555
        %v4574 = vcvt.s32.f32 %v4556
        %v4575 = vcvt.s32.f32 %v4557
        %v4576 = vcvt.s32.f32 %v4558
        %v4577 = vcvt.s32.f32 %v4559
        %v4578 = vcvt.s32.f32 %v4560
        %v4579 = vcvt.s32.f32 %v4561
        %v4580 = vcvt.s32.f32 %v4562
        %v4581 = vcvt.s32.f32 %v4563
        %v4583 = vsel %vm2891, %v4449, 0
        %v4586 = vsel %vm2891, %v4451, 0
        %v4589 = vsel %vm2891, %v4453, 0
        %v4592 = vsel %vm2891, %v4455, 0
        %v4595 = vsel %vm2891, %v4457, 0
        %v4598 = vsel %vm2891, %v4459, 0
        %v4601 = vsel %vm2891, %v4461, 0
        %v4604 = vsel %vm2891, %v4463, 0
        %v4607 = vsel %vm2891, %v4465, 0
        %v4610 = vsel %vm2891, %v4467, 0
        %v4613 = vsel %vm2891, %v4469, 0
        %v4616 = vsel %vm2891, %v4471, 0
        %4618 = vmatprep.subr.mxu0 0.0
        %4619 = vmatpush1.msra.mxu0 %v4509
        %4620 = vmatprep.subr.mxu0 0.0
        %4621 = vmatpush1.msra.mxu0 %v4510
        %4622 = vmatprep.subr.mxu0 0.0
        %4623 = vmatpush1.msra.mxu0 %v4511
        %4624 = vmatprep.subr.mxu0 0.0
        %4625 = vmatpush1.msra.mxu0 %v4512
        %4626 = vmatprep.subr.mxu0 0.0
        %4627 = vmatpush1.msra.mxu0 %v4513
        %4628 = vmatprep.subr.mxu0 0.0
        %4629 = vmatpush1.msra.mxu0 %v4514
        %4630 = vmatprep.subr.mxu0 0.0
        %4631 = vmatpush1.msra.mxu0 %v4515
        %4632 = vmatprep.subr.mxu0 0.0
        %4633 = vmatpush1.msra.mxu0 %v4516
        %4634 = vmatprep.subr.mxu0 0.0
        %4635 = vmatpush1.msra.mxu0 %v4517
        %4636 = vmatprep.subr.mxu0 0.0
        %4637 = vmatpush1.msra.mxu0 %v4518
        %4638 = vmatprep.subr.mxu0 0.0
        %4639 = vmatpush1.msra.mxu0 %v4519
        %4640 = vmatprep.subr.mxu0 0.0
        %4641 = vmatpush1.msra.mxu0 %v4520
        %4642 = vmatprep.subr.mxu0 0.0
        %4643 = vmatpush1.msra.mxu0 %v4521
        %4644 = vmatprep.subr.mxu0 0.0
        %4645 = vmatpush1.msra.mxu0 %v4522
        %4646 = vmatprep.subr.mxu0 0.0
        %4647 = vmatpush1.msra.mxu0 %v4523
        %4648 = vmatprep.subr.mxu0 0.0
        %4649 = vmatpush1.msra.mxu0 %v4524
        %4650 = vmatprep.subr.mxu0 0.0
        %4651 = vmatpush1.msra.mxu0 %v4525
        %4652 = vmatprep.subr.mxu0 0.0
        %4653 = vmatpush1.msra.mxu0 %v4526
        %4654 = vmatprep.subr.mxu0 0.0
        %4655 = vmatpush1.msra.mxu0 0.0
        %4656 = vmatprep.subr.mxu0 0.0
        %4657 = vmatpush1.msra.mxu0 0.0
        %4658 = vmatprep.subr.mxu0 0.0
        %4659 = vmatpush1.msra.mxu0 0.0
        %4660 = vmatprep.subr.mxu0 0.0
        %4661 = vmatpush1.msra.mxu0 0.0
        %4662 = vmatprep.subr.mxu0 0.0
        %4663 = vmatpush1.msra.mxu0 0.0
        %4664 = vmatprep.subr.mxu0 0.0
        %4665 = vmatpush1.msra.mxu0 0.0
        %4666 = vmatprep.subr.mxu0 0.0
        %4667 = vmatpush1.msra.mxu0 0.0
        %4668 = vmatprep.subr.mxu0 0.0
        %4669 = vmatpush1.msra.mxu0 0.0
        %4670 = vmatprep.subr.mxu0 0.0
        %4671 = vmatpush1.msra.mxu0 0.0
        %4672 = vmatprep.subr.mxu0 0.0
        %4673 = vmatpush1.msra.mxu0 0.0
        %4674 = vmatprep.subr.mxu0 0.0
        %4675 = vmatpush1.msra.mxu0 0.0
        %4676 = vmatprep.subr.mxu0 0.0
        %4677 = vmatpush1.msra.mxu0 0.0
        %4678 = vmatprep.subr.mxu0 0.0
        %4679 = vmatpush1.msra.mxu0 0.0
        %4680 = vmatprep.subr.mxu0 0.0
        %4681 = vmatpush1.msra.mxu0 0.0
        %4682 = vmatprep.mubr.f32.mxu0 %v4583
        %4683 = vmatmul.mubr.f32.gmra.mrb[0].mxu0 %v4448
        %v4684 = vpop.f32.mrb[0].mxu0
        %v4685 = vadd.f32 0.0, %v4684
        %v4686 = vpop.f32.mrb[0].mxu0
        %4687 = vmatprep.mubr.f32.mxu0 %v4586
        %4688 = vmatmul.mubr.f32.gmra.mrb[0].mxu0 %v4450
        %v4689 = vpop.f32.mrb[0].mxu0
        %v4690 = vadd.f32 0.0, %v4689
        %v4691 = vpop.f32.mrb[0].mxu0
        %4692 = vmatprep.mubr.f32.mxu0 %v4589
        %4693 = vmatmul.mubr.f32.gmra.mrb[0].mxu0 %v4452
        %v4694 = vpop.f32.mrb[0].mxu0
        %v4695 = vadd.f32 0.0, %v4694
        %v4696 = vpop.f32.mrb[0].mxu0
        %4697 = vmatprep.mubr.f32.mxu0 %v4592
        %4698 = vmatmul.mubr.f32.gmra.mrb[0].mxu0 %v4454
        %v4699 = vpop.f32.mrb[0].mxu0
        %v4700 = vadd.f32 0.0, %v4699
        %v4701 = vpop.f32.mrb[0].mxu0
        %4702 = vmatprep.mubr.f32.mxu0 %v4595
        %4703 = vmatmul.mubr.f32.gmra.mrb[0].mxu0 %v4456
        %v4704 = vpop.f32.mrb[0].mxu0
        %v4705 = vadd.f32 0.0, %v4704
        %v4706 = vpop.f32.mrb[0].mxu0
        %4707 = vmatprep.mubr.f32.mxu0 %v4598
        %4708 = vmatmul.mubr.f32.gmra.mrb[0].mxu0 %v4458
        %v4709 = vpop.f32.mrb[0].mxu0
        %v4710 = vadd.f32 0.0, %v4709
        %v4711 = vpop.f32.mrb[0].mxu0
        %4712 = vmatprep.mubr.f32.mxu0 %v4601
        %4713 = vmatmul.mubr.f32.gmra.mrb[0].mxu0 %v4460
        %v4714 = vpop.f32.mrb[0].mxu0
        %v4715 = vadd.f32 0.0, %v4714
        %v4716 = vpop.f32.mrb[0].mxu0
        %4717 = vmatprep.mubr.f32.mxu0 %v4604
        %4718 = vmatmul.mubr.f32.gmra.mrb[0].mxu0 %v4462
        %v4719 = vpop.f32.mrb[0].mxu0
        %v4720 = vadd.f32 0.0, %v4719
        %v4721 = vpop.f32.mrb[0].mxu0
        %4722 = vmatprep.mubr.f32.mxu0 %v4607
        %4723 = vmatmul.mubr.f32.gmra.mrb[0].mxu0 %v4464
        %v4724 = vpop.f32.mrb[0].mxu0
        %v4725 = vadd.f32 0.0, %v4724
        %v4726 = vpop.f32.mrb[0].mxu0
        %4727 = vmatprep.mubr.f32.mxu0 %v4610
        %4728 = vmatmul.mubr.f32.gmra.mrb[0].mxu0 %v4466
        %v4729 = vpop.f32.mrb[0].mxu0
        %v4730 = vadd.f32 0.0, %v4729
        %v4731 = vpop.f32.mrb[0].mxu0
        %4732 = vmatprep.mubr.f32.mxu0 %v4613
        %4733 = vmatmul.mubr.f32.gmra.mrb[0].mxu0 %v4468
        %v4734 = vpop.f32.mrb[0].mxu0
        %v4735 = vadd.f32 0.0, %v4734
        %v4736 = vpop.f32.mrb[0].mxu0
        %4737 = vmatprep.mubr.f32.mxu0 %v4616
        %4738 = vmatmul.mubr.f32.gmra.mrb[0].mxu0 %v4470
        %v4739 = vpop.f32.mrb[0].mxu0
        %v4740 = vadd.f32 0.0, %v4739
        %v4741 = vpop.f32.mrb[0].mxu0
        %4742 = vdwg.mxu0
        %4743 = vmatprep.subr.mxu0 0.0
        %4744 = vmatpush1.msra.mxu0 %v4564
        %4745 = vmatprep.subr.mxu0 0.0
        %4746 = vmatpush1.msra.mxu0 %v4565
        %4747 = vmatprep.subr.mxu0 0.0
        %4748 = vmatpush1.msra.mxu0 %v4566
        %4749 = vmatprep.subr.mxu0 0.0
        %4750 = vmatpush1.msra.mxu0 %v4567
        %4751 = vmatprep.subr.mxu0 0.0
        %4752 = vmatpush1.msra.mxu0 %v4568
        %4753 = vmatprep.subr.mxu0 0.0
        %4754 = vmatpush1.msra.mxu0 %v4569
        %4755 = vmatprep.subr.mxu0 0.0
        %4756 = vmatpush1.msra.mxu0 %v4570
        %4757 = vmatprep.subr.mxu0 0.0
        %4758 = vmatpush1.msra.mxu0 %v4571
        %4759 = vmatprep.subr.mxu0 0.0
        %4760 = vmatpush1.msra.mxu0 %v4572
        %4761 = vmatprep.subr.mxu0 0.0
        %4762 = vmatpush1.msra.mxu0 %v4573
        %4763 = vmatprep.subr.mxu0 0.0
        %4764 = vmatpush1.msra.mxu0 %v4574
        %4765 = vmatprep.subr.mxu0 0.0
        %4766 = vmatpush1.msra.mxu0 %v4575
        %4767 = vmatprep.subr.mxu0 0.0
        %4768 = vmatpush1.msra.mxu0 %v4576
        %4769 = vmatprep.subr.mxu0 0.0
        %4770 = vmatpush1.msra.mxu0 %v4577
        %4771 = vmatprep.subr.mxu0 0.0
        %4772 = vmatpush1.msra.mxu0 %v4578
        %4773 = vmatprep.subr.mxu0 0.0
        %4774 = vmatpush1.msra.mxu0 %v4579
        %4775 = vmatprep.subr.mxu0 0.0
        %4776 = vmatpush1.msra.mxu0 %v4580
        %4777 = vmatprep.subr.mxu0 0.0
        %4778 = vmatpush1.msra.mxu0 %v4581
        %4779 = vmatprep.subr.mxu0 0.0
        %4780 = vmatpush1.msra.mxu0 0.0
        %4781 = vmatprep.subr.mxu0 0.0
        %4782 = vmatpush1.msra.mxu0 0.0
        %4783 = vmatprep.subr.mxu0 0.0
        %4784 = vmatpush1.msra.mxu0 0.0
        %4785 = vmatprep.subr.mxu0 0.0
        %4786 = vmatpush1.msra.mxu0 0.0
        %4787 = vmatprep.subr.mxu0 0.0
        %4788 = vmatpush1.msra.mxu0 0.0
        %4789 = vmatprep.subr.mxu0 0.0
        %4790 = vmatpush1.msra.mxu0 0.0
        %4791 = vmatprep.subr.mxu0 0.0
        %4792 = vmatpush1.msra.mxu0 0.0
        %4793 = vmatprep.subr.mxu0 0.0
        %4794 = vmatpush1.msra.mxu0 0.0
        %4795 = vmatprep.subr.mxu0 0.0
        %4796 = vmatpush1.msra.mxu0 0.0
        %4797 = vmatprep.subr.mxu0 0.0
        %4798 = vmatpush1.msra.mxu0 0.0
        %4799 = vmatprep.subr.mxu0 0.0
        %4800 = vmatpush1.msra.mxu0 0.0
        %4801 = vmatprep.subr.mxu0 0.0
        %4802 = vmatpush1.msra.mxu0 0.0
        %4803 = vmatprep.subr.mxu0 0.0
        %4804 = vmatpush1.msra.mxu0 0.0
        %4805 = vmatprep.subr.mxu0 0.0
        %4806 = vmatpush1.msra.mxu0 0.0
        %4807 = vmatprep.mubr.f32.mxu0 %v4583
        %4808 = vmatmul.mubr.f32.gmra.mrb[0].mxu0 %v4448
        %v4809 = vpop.f32.mrb[0].mxu0
        %v4810 = vadd.f32 0.0, %v4809
        %v4811 = vpop.f32.mrb[0].mxu0
        %4812 = vmatprep.mubr.f32.mxu0 %v4586
        %4813 = vmatmul.mubr.f32.gmra.mrb[0].mxu0 %v4450
        %v4814 = vpop.f32.mrb[0].mxu0
        %v4815 = vadd.f32 0.0, %v4814
        %v4816 = vpop.f32.mrb[0].mxu0
        %4817 = vmatprep.mubr.f32.mxu0 %v4589
        %4818 = vmatmul.mubr.f32.gmra.mrb[0].mxu0 %v4452
        %v4819 = vpop.f32.mrb[0].mxu0
        %v4820 = vadd.f32 0.0, %v4819
        %v4821 = vpop.f32.mrb[0].mxu0
        %4822 = vmatprep.mubr.f32.mxu0 %v4592
        %4823 = vmatmul.mubr.f32.gmra.mrb[0].mxu0 %v4454
        %v4824 = vpop.f32.mrb[0].mxu0
        %v4825 = vadd.f32 0.0, %v4824
        %v4826 = vpop.f32.mrb[0].mxu0
        %4827 = vmatprep.mubr.f32.mxu0 %v4595
        %4828 = vmatmul.mubr.f32.gmra.mrb[0].mxu0 %v4456
        %v4829 = vpop.f32.mrb[0].mxu0
        %v4830 = vadd.f32 0.0, %v4829
        %v4831 = vpop.f32.mrb[0].mxu0
        %4832 = vmatprep.mubr.f32.mxu0 %v4598
        %4833 = vmatmul.mubr.f32.gmra.mrb[0].mxu0 %v4458
        %v4834 = vpop.f32.mrb[0].mxu0
        %v4835 = vadd.f32 0.0, %v4834
        %v4836 = vpop.f32.mrb[0].mxu0
        %4837 = vmatprep.mubr.f32.mxu0 %v4601
        %4838 = vmatmul.mubr.f32.gmra.mrb[0].mxu0 %v4460
        %v4839 = vpop.f32.mrb[0].mxu0
        %v4840 = vadd.f32 0.0, %v4839
        %v4841 = vpop.f32.mrb[0].mxu0
        %4842 = vmatprep.mubr.f32.mxu0 %v4604
        %4843 = vmatmul.mubr.f32.gmra.mrb[0].mxu0 %v4462
        %v4844 = vpop.f32.mrb[0].mxu0
        %v4845 = vadd.f32 0.0, %v4844
        %v4846 = vpop.f32.mrb[0].mxu0
        %4847 = vmatprep.mubr.f32.mxu0 %v4607
        %4848 = vmatmul.mubr.f32.gmra.mrb[0].mxu0 %v4464
        %v4849 = vpop.f32.mrb[0].mxu0
        %v4850 = vadd.f32 0.0, %v4849
        %v4851 = vpop.f32.mrb[0].mxu0
        %4852 = vmatprep.mubr.f32.mxu0 %v4610
        %4853 = vmatmul.mubr.f32.gmra.mrb[0].mxu0 %v4466
        %v4854 = vpop.f32.mrb[0].mxu0
        %v4855 = vadd.f32 0.0, %v4854
        %v4856 = vpop.f32.mrb[0].mxu0
        %4857 = vmatprep.mubr.f32.mxu0 %v4613
        %4858 = vmatmul.mubr.f32.gmra.mrb[0].mxu0 %v4468
        %v4859 = vpop.f32.mrb[0].mxu0
        %v4860 = vadd.f32 0.0, %v4859
        %v4861 = vpop.f32.mrb[0].mxu0
        %4862 = vmatprep.mubr.f32.mxu0 %v4616
        %4863 = vmatmul.mubr.f32.gmra.mrb[0].mxu0 %v4470
        %v4864 = vpop.f32.mrb[0].mxu0
        %v4865 = vadd.f32 0.0, %v4864
        %v4866 = vpop.f32.mrb[0].mxu0
        %4867 = vdwg.mxu0
        %v4868 = vmax.f32 %v4685, %v4810
        %v4869 = vmax.f32 %v4690, %v4815
        %v4870 = vmax.f32 %v4695, %v4820
        %v4871 = vmax.f32 %v4700, %v4825
        %v4872 = vmax.f32 %v4705, %v4830
        %v4873 = vmax.f32 %v4710, %v4835
        %v4874 = vmax.f32 %v4715, %v4840
        %v4875 = vmax.f32 %v4720, %v4845
        %v4876 = vmax.f32 %v4725, %v4850
        %v4877 = vmax.f32 %v4730, %v4855
        %v4878 = vmax.f32 %v4735, %v4860
        %v4879 = vmax.f32 %v4740, %v4865
        %v4880 = vshra.s32 %v2653, 3
        %v4881 = vshra.s32 %v2670, 3
        %v4882 = vshra.s32 %v2671, 3
        %v4883 = vshra.s32 %v2672, 3
        %v4884 = vshra.s32 %v2673, 3
        %v4885 = vshra.s32 %v2674, 3
        %v4886 = vshra.s32 %v2675, 3
        %v4887 = vshra.s32 %v2676, 3
        %v4888 = vmul.u32 %v4880, 12
        %v4889 = vmul.u32 %v4881, 12
        %v4890 = vmul.u32 %v4882, 12
        %v4891 = vmul.u32 %v4883, 12
        %v4892 = vmul.u32 %v4884, 12
        %v4893 = vmul.u32 %v4885, 12
        %v4894 = vmul.u32 %v4886, 12
        %v4895 = vmul.u32 %v4887, 12
        %v4896 = vand.u32 %v2653, 7
        %v4897 = vand.u32 %v2670, 7
        %v4898 = vand.u32 %v2671, 7
        %v4899 = vand.u32 %v2672, 7
        %v4900 = vand.u32 %v2673, 7
        %v4901 = vand.u32 %v2674, 7
        %v4902 = vand.u32 %v2675, 7
        %v4903 = vand.u32 %v2676, 7
        %v4904 = vadd.s32 %v4888, %v4896
        %v4905 = vadd.s32 %v4889, %v4897
        %v4906 = vadd.s32 %v4890, %v4898
        %v4907 = vadd.s32 %v4891, %v4899
        %v4908 = vadd.s32 %v4892, %v4900
        %v4909 = vadd.s32 %v4893, %v4901
        %v4910 = vadd.s32 %v4894, %v4902
        %v4911 = vadd.s32 %v4895, %v4903
        %vm4912 = vcmp.eq.s32.totalorder %v2655, %v4904
        %vm4913 = vcmp.eq.s32.totalorder %v2655, %v4905
        %vm4914 = vcmp.eq.s32.totalorder %v2655, %v4906
        %vm4915 = vcmp.eq.s32.totalorder %v2655, %v4907
        %vm4916 = vcmp.eq.s32.totalorder %v2655, %v4908
        %vm4917 = vcmp.eq.s32.totalorder %v2655, %v4909
        %vm4918 = vcmp.eq.s32.totalorder %v2655, %v4910
        %vm4919 = vcmp.eq.s32.totalorder %v2655, %v4911
        %v4920 = vsel %vm4912, 1, 0
        %v4921 = vsel %vm4913, 1, 0
        %v4922 = vsel %vm4914, 1, 0
        %v4923 = vsel %vm4915, 1, 0
        %v4924 = vsel %vm4916, 1, 0
        %v4925 = vsel %vm4917, 1, 0
        %v4926 = vsel %vm4918, 1, 0
        %v4927 = vsel %vm4919, 1, 0
        %v4928 = vcvt.s32.f32 %v4920
        %v4929 = vcvt.s32.f32 %v4921
        %v4930 = vcvt.s32.f32 %v4922
        %v4931 = vcvt.s32.f32 %v4923
        %v4932 = vcvt.s32.f32 %v4924
        %v4933 = vcvt.s32.f32 %v4925
        %v4934 = vcvt.s32.f32 %v4926
        %v4935 = vcvt.s32.f32 %v4927
        %vm4936 = vcmask 785408
        %v4938 = vsel %vm4936, %v4928, 0
        %v4941 = vsel %vm4936, %v4929, 0
        %v4944 = vsel %vm4936, %v4930, 0
        %v4947 = vsel %vm4936, %v4931, 0
        %v4950 = vsel %vm4936, %v4932, 0
        %v4953 = vsel %vm4936, %v4933, 0
        %v4956 = vsel %vm4936, %v4934, 0
        %v4959 = vsel %vm4936, %v4935, 0
        %4961 = vmatprep.subr.mxu0 0.0
        %4962 = vmatpush1.msra.mxu0 %v4868
        %4963 = vmatprep.subr.mxu0 0.0
        %4964 = vmatpush1.msra.mxu0 %v4869
        %4965 = vmatprep.subr.mxu0 0.0
        %4966 = vmatpush1.msra.mxu0 %v4870
        %4967 = vmatprep.subr.mxu0 0.0
        %4968 = vmatpush1.msra.mxu0 %v4871
        %4969 = vmatprep.subr.mxu0 0.0
        %4970 = vmatpush1.msra.mxu0 %v4872
        %4971 = vmatprep.subr.mxu0 0.0
        %4972 = vmatpush1.msra.mxu0 %v4873
        %4973 = vmatprep.subr.mxu0 0.0
        %4974 = vmatpush1.msra.mxu0 %v4874
        %4975 = vmatprep.subr.mxu0 0.0
        %4976 = vmatpush1.msra.mxu0 %v4875
        %4977 = vmatprep.subr.mxu0 0.0
        %4978 = vmatpush1.msra.mxu0 %v4876
        %4979 = vmatprep.subr.mxu0 0.0
        %4980 = vmatpush1.msra.mxu0 %v4877
        %4981 = vmatprep.subr.mxu0 0.0
        %4982 = vmatpush1.msra.mxu0 %v4878
        %4983 = vmatprep.subr.mxu0 0.0
        %4984 = vmatpush1.msra.mxu0 %v4879
        %4985 = vmatprep.subr.mxu0 0.0
        %4986 = vmatpush1.msra.mxu0 0.0
        %4987 = vmatprep.subr.mxu0 0.0
        %4988 = vmatpush1.msra.mxu0 0.0
        %4989 = vmatprep.subr.mxu0 0.0
        %4990 = vmatpush1.msra.mxu0 0.0
        %4991 = vmatprep.subr.mxu0 0.0
        %4992 = vmatpush1.msra.mxu0 0.0
        %4993 = vmatprep.subr.mxu0 0.0
        %4994 = vmatpush1.msra.mxu0 0.0
        %4995 = vmatprep.subr.mxu0 0.0
        %4996 = vmatpush1.msra.mxu0 0.0
        %4997 = vmatprep.subr.mxu0 0.0
        %4998 = vmatpush1.msra.mxu0 0.0
        %4999 = vmatprep.subr.mxu0 0.0
        %5000 = vmatpush1.msra.mxu0 0.0
        %5001 = vmatprep.subr.mxu0 0.0
        %5002 = vmatpush1.msra.mxu0 0.0
        %5003 = vmatprep.subr.mxu0 0.0
        %5004 = vmatpush1.msra.mxu0 0.0
        %5005 = vmatprep.subr.mxu0 0.0
        %5006 = vmatpush1.msra.mxu0 0.0
        %5007 = vmatprep.subr.mxu0 0.0
        %5008 = vmatpush1.msra.mxu0 0.0
        %5009 = vmatprep.subr.mxu0 0.0
        %5010 = vmatpush1.msra.mxu0 0.0
        %5011 = vmatprep.subr.mxu0 0.0
        %5012 = vmatpush1.msra.mxu0 0.0
        %5013 = vmatprep.subr.mxu0 0.0
        %5014 = vmatpush1.msra.mxu0 0.0
        %5015 = vmatprep.subr.mxu0 0.0
        %5016 = vmatpush1.msra.mxu0 0.0
        %5017 = vmatprep.subr.mxu0 0.0
        %5018 = vmatpush1.msra.mxu0 0.0
        %5019 = vmatprep.subr.mxu0 0.0
        %5020 = vmatpush1.msra.mxu0 0.0
        %5021 = vmatprep.subr.mxu0 0.0
        %5022 = vmatpush1.msra.mxu0 0.0
        %5023 = vmatprep.subr.mxu0 0.0
        %5024 = vmatpush1.msra.mxu0 0.0
        %5025 = vmatprep.mubr.f32.mxu0 0.0
        %5026 = vmatmul.mubr.f32.gmra.mrb[0].mxu0 %v4938
        %v5027 = vpop.f32.mrb[0].mxu0
        %v5028 = vadd.f32 0.0, %v5027
        %v5029 = vpop.f32.mrb[0].mxu0
        %5030 = vmatprep.mubr.f32.mxu0 0.0
        %5031 = vmatmul.mubr.f32.gmra.mrb[0].mxu0 %v4941
        %v5032 = vpop.f32.mrb[0].mxu0
        %v5033 = vadd.f32 0.0, %v5032
        %v5034 = vpop.f32.mrb[0].mxu0
        %5035 = vmatprep.mubr.f32.mxu0 0.0
        %5036 = vmatmul.mubr.f32.gmra.mrb[0].mxu0 %v4944
        %v5037 = vpop.f32.mrb[0].mxu0
        %v5038 = vadd.f32 0.0, %v5037
        %v5039 = vpop.f32.mrb[0].mxu0
        %5040 = vmatprep.mubr.f32.mxu0 0.0
        %5041 = vmatmul.mubr.f32.gmra.mrb[0].mxu0 %v4947
        %v5042 = vpop.f32.mrb[0].mxu0
        %v5043 = vadd.f32 0.0, %v5042
        %v5044 = vpop.f32.mrb[0].mxu0
        %5045 = vmatprep.mubr.f32.mxu0 0.0
        %5046 = vmatmul.mubr.f32.gmra.mrb[0].mxu0 %v4950
        %v5047 = vpop.f32.mrb[0].mxu0
        %v5048 = vadd.f32 0.0, %v5047
        %v5049 = vpop.f32.mrb[0].mxu0
        %5050 = vmatprep.mubr.f32.mxu0 0.0
        %5051 = vmatmul.mubr.f32.gmra.mrb[0].mxu0 %v4953
        %v5052 = vpop.f32.mrb[0].mxu0
        %v5053 = vadd.f32 0.0, %v5052
        %v5054 = vpop.f32.mrb[0].mxu0
        %5055 = vmatprep.mubr.f32.mxu0 0.0
        %5056 = vmatmul.mubr.f32.gmra.mrb[0].mxu0 %v4956
        %v5057 = vpop.f32.mrb[0].mxu0
        %v5058 = vadd.f32 0.0, %v5057
        %v5059 = vpop.f32.mrb[0].mxu0
        %5060 = vmatprep.mubr.f32.mxu0 0.0
        %5061 = vmatmul.mubr.f32.gmra.mrb[0].mxu0 %v4959
        %v5062 = vpop.f32.mrb[0].mxu0
        %v5063 = vadd.f32 0.0, %v5062
        %v5064 = vpop.f32.mrb[0].mxu0
        %5065 = vdwg.mxu0
        %v5066 = vld [vmem:[%s5] sm:$0xff]
        %v5067 = vld [vmem:[%s5 + $0x8] sm:$0xff]
        %v5068 = vld [vmem:[%s5 + $0x10] sm:$0xff]
        %v5069 = vld [vmem:[%s5 + $0x18] sm:$0xff]
        %v5070 = vld [vmem:[%s5 + $0x20] sm:$0xff]
        %v5071 = vld [vmem:[%s5 + $0x28] sm:$0xff]
        %v5072 = vld [vmem:[%s5 + $0x30] sm:$0xff]
        %v5073 = vld [vmem:[%s5 + $0x38] sm:$0xff]
        %v5074 = vld [vmem:[%s5 + $0x40] sm:$0xff]
        %v5075 = vadd.s32 %v4904, 1
        %v5076 = vadd.s32 %v4905, 1
        %v5077 = vadd.s32 %v4906, 1
        %v5078 = vadd.s32 %v4907, 1
        %v5079 = vadd.s32 %v4908, 1
        %v5080 = vadd.s32 %v4909, 1
        %v5081 = vadd.s32 %v4910, 1
        %v5082 = vadd.s32 %v4911, 1
        %vm5083 = vcmp.eq.s32.totalorder %v2655, %v5075
        %vm5084 = vcmp.eq.s32.totalorder %v2655, %v5076
        %vm5085 = vcmp.eq.s32.totalorder %v2655, %v5077
        %vm5086 = vcmp.eq.s32.totalorder %v2655, %v5078
        %vm5087 = vcmp.eq.s32.totalorder %v2655, %v5079
        %vm5088 = vcmp.eq.s32.totalorder %v2655, %v5080
        %vm5089 = vcmp.eq.s32.totalorder %v2655, %v5081
        %vm5090 = vcmp.eq.s32.totalorder %v2655, %v5082
        %v5091 = vsel %vm5083, 1, 0
        %v5092 = vsel %vm5084, 1, 0
        %v5093 = vsel %vm5085, 1, 0
        %v5094 = vsel %vm5086, 1, 0
        %v5095 = vsel %vm5087, 1, 0
        %v5096 = vsel %vm5088, 1, 0
        %v5097 = vsel %vm5089, 1, 0
        %v5098 = vsel %vm5090, 1, 0
        %v5099 = vcvt.s32.f32 %v5091
        %v5100 = vcvt.s32.f32 %v5092
        %v5101 = vcvt.s32.f32 %v5093
        %v5102 = vcvt.s32.f32 %v5094
        %v5103 = vcvt.s32.f32 %v5095
        %v5104 = vcvt.s32.f32 %v5096
        %v5105 = vcvt.s32.f32 %v5097
        %v5106 = vcvt.s32.f32 %v5098
        %v5108 = vsel %vm4936, %v5099, 0
        %v5111 = vsel %vm4936, %v5100, 0
        %v5114 = vsel %vm4936, %v5101, 0
        %v5117 = vsel %vm4936, %v5102, 0
        %v5120 = vsel %vm4936, %v5103, 0
        %v5123 = vsel %vm4936, %v5104, 0
        %v5126 = vsel %vm4936, %v5105, 0
        %v5129 = vsel %vm4936, %v5106, 0
        %5131 = vmatprep.subr.mxu0 0.0
        %5132 = vmatpush1.msra.mxu0 %v4868
        %5133 = vmatprep.subr.mxu0 0.0
        %5134 = vmatpush1.msra.mxu0 %v4869
        %5135 = vmatprep.subr.mxu0 0.0
        %5136 = vmatpush1.msra.mxu0 %v4870
        %5137 = vmatprep.subr.mxu0 0.0
        %5138 = vmatpush1.msra.mxu0 %v4871
        %5139 = vmatprep.subr.mxu0 0.0
        %5140 = vmatpush1.msra.mxu0 %v4872
        %5141 = vmatprep.subr.mxu0 0.0
        %5142 = vmatpush1.msra.mxu0 %v4873
        %5143 = vmatprep.subr.mxu0 0.0
        %5144 = vmatpush1.msra.mxu0 %v4874
        %5145 = vmatprep.subr.mxu0 0.0
        %5146 = vmatpush1.msra.mxu0 %v4875
        %5147 = vmatprep.subr.mxu0 0.0
        %5148 = vmatpush1.msra.mxu0 %v4876
        %5149 = vmatprep.subr.mxu0 0.0
        %5150 = vmatpush1.msra.mxu0 %v4877
        %5151 = vmatprep.subr.mxu0 0.0
        %5152 = vmatpush1.msra.mxu0 %v4878
        %5153 = vmatprep.subr.mxu0 0.0
        %5154 = vmatpush1.msra.mxu0 %v4879
        %5155 = vmatprep.subr.mxu0 0.0
        %5156 = vmatpush1.msra.mxu0 0.0
        %5157 = vmatprep.subr.mxu0 0.0
        %5158 = vmatpush1.msra.mxu0 0.0
        %5159 = vmatprep.subr.mxu0 0.0
        %5160 = vmatpush1.msra.mxu0 0.0
        %5161 = vmatprep.subr.mxu0 0.0
        %5162 = vmatpush1.msra.mxu0 0.0
        %5163 = vmatprep.subr.mxu0 0.0
        %5164 = vmatpush1.msra.mxu0 0.0
        %5165 = vmatprep.subr.mxu0 0.0
        %5166 = vmatpush1.msra.mxu0 0.0
        %5167 = vmatprep.subr.mxu0 0.0
        %5168 = vmatpush1.msra.mxu0 0.0
        %5169 = vmatprep.subr.mxu0 0.0
        %5170 = vmatpush1.msra.mxu0 0.0
        %5171 = vmatprep.subr.mxu0 0.0
        %5172 = vmatpush1.msra.mxu0 0.0
        %5173 = vmatprep.subr.mxu0 0.0
        %5174 = vmatpush1.msra.mxu0 0.0
        %5175 = vmatprep.subr.mxu0 0.0
        %5176 = vmatpush1.msra.mxu0 0.0
        %5177 = vmatprep.subr.mxu0 0.0
        %5178 = vmatpush1.msra.mxu0 0.0
        %5179 = vmatprep.subr.mxu0 0.0
        %5180 = vmatpush1.msra.mxu0 0.0
        %5181 = vmatprep.subr.mxu0 0.0
        %5182 = vmatpush1.msra.mxu0 0.0
        %5183 = vmatprep.subr.mxu0 0.0
        %5184 = vmatpush1.msra.mxu0 0.0
        %5185 = vmatprep.subr.mxu0 0.0
        %5186 = vmatpush1.msra.mxu0 0.0
        %5187 = vmatprep.subr.mxu0 0.0
        %5188 = vmatpush1.msra.mxu0 0.0
        %5189 = vmatprep.subr.mxu0 0.0
        %5190 = vmatpush1.msra.mxu0 0.0
        %5191 = vmatprep.subr.mxu0 0.0
        %5192 = vmatpush1.msra.mxu0 0.0
        %5193 = vmatprep.subr.mxu0 0.0
        %5194 = vmatpush1.msra.mxu0 0.0
        %5195 = vmatprep.mubr.f32.mxu0 0.0
        %5196 = vmatmul.mubr.f32.gmra.mrb[0].mxu0 %v5108
        %v5197 = vpop.f32.mrb[0].mxu0
        %v5198 = vadd.f32 0.0, %v5197
        %v5199 = vpop.f32.mrb[0].mxu0
        %5200 = vmatprep.mubr.f32.mxu0 0.0
        %5201 = vmatmul.mubr.f32.gmra.mrb[0].mxu0 %v5111
        %v5202 = vpop.f32.mrb[0].mxu0
        %v5203 = vadd.f32 0.0, %v5202
        %v5204 = vpop.f32.mrb[0].mxu0
        %5205 = vmatprep.mubr.f32.mxu0 0.0
        %5206 = vmatmul.mubr.f32.gmra.mrb[0].mxu0 %v5114
        %v5207 = vpop.f32.mrb[0].mxu0
        %v5208 = vadd.f32 0.0, %v5207
        %v5209 = vpop.f32.mrb[0].mxu0
        %5210 = vmatprep.mubr.f32.mxu0 0.0
        %5211 = vmatmul.mubr.f32.gmra.mrb[0].mxu0 %v5117
        %v5212 = vpop.f32.mrb[0].mxu0
        %v5213 = vadd.f32 0.0, %v5212
        %v5214 = vpop.f32.mrb[0].mxu0
        %5215 = vmatprep.mubr.f32.mxu0 0.0
        %5216 = vmatmul.mubr.f32.gmra.mrb[0].mxu0 %v5120
        %v5217 = vpop.f32.mrb[0].mxu0
        %v5218 = vadd.f32 0.0, %v5217
        %v5219 = vpop.f32.mrb[0].mxu0
        %5220 = vmatprep.mubr.f32.mxu0 0.0
        %5221 = vmatmul.mubr.f32.gmra.mrb[0].mxu0 %v5123
        %v5222 = vpop.f32.mrb[0].mxu0
        %v5223 = vadd.f32 0.0, %v5222
        %v5224 = vpop.f32.mrb[0].mxu0
        %5225 = vmatprep.mubr.f32.mxu0 0.0
        %5226 = vmatmul.mubr.f32.gmra.mrb[0].mxu0 %v5126
        %v5227 = vpop.f32.mrb[0].mxu0
        %v5228 = vadd.f32 0.0, %v5227
        %v5229 = vpop.f32.mrb[0].mxu0
        %5230 = vmatprep.mubr.f32.mxu0 0.0
        %5231 = vmatmul.mubr.f32.gmra.mrb[0].mxu0 %v5129
        %v5232 = vpop.f32.mrb[0].mxu0
        %v5233 = vadd.f32 0.0, %v5232
        %v5234 = vpop.f32.mrb[0].mxu0
        %5235 = vdwg.mxu0
        %s5236 = scalar_lea.vmem %s5, 72
        %v5237 = vld [vmem:[%s5236] sm:$0xff]
        %v5238 = vld [vmem:[%s5236 + $0x8] sm:$0xff]
        %v5239 = vld [vmem:[%s5236 + $0x10] sm:$0xff]
        %v5240 = vld [vmem:[%s5236 + $0x18] sm:$0xff]
        %v5241 = vld [vmem:[%s5236 + $0x20] sm:$0xff]
        %v5242 = vld [vmem:[%s5236 + $0x28] sm:$0xff]
        %v5243 = vld [vmem:[%s5236 + $0x30] sm:$0xff]
        %v5244 = vld [vmem:[%s5236 + $0x38] sm:$0xff]
        %v5245 = vld [vmem:[%s5236 + $0x40] sm:$0xff]
        %vm5246 = vcmask 588800
        %v5248 = vsel %vm5246, %v5198, 0
        %v5251 = vsel %vm5246, %v5203, 0
        %v5254 = vsel %vm5246, %v5208, 0
        %v5257 = vsel %vm5246, %v5213, 0
        %v5260 = vsel %vm5246, %v5218, 0
        %v5263 = vsel %vm5246, %v5223, 0
        %v5266 = vsel %vm5246, %v5228, 0
        %v5269 = vsel %vm5246, %v5233, 0
        %5271 = vmatprep.subr.mxu0 0.0
        %5272 = vmatpush1.msra.mxu0 %v5237
        %5273 = vmatprep.subr.mxu0 0.0
        %5274 = vmatpush1.msra.mxu0 %v5238
        %5275 = vmatprep.subr.mxu0 0.0
        %5276 = vmatpush1.msra.mxu0 %v5239
        %5277 = vmatprep.subr.mxu0 0.0
        %5278 = vmatpush1.msra.mxu0 %v5240
        %5279 = vmatprep.subr.mxu0 0.0
        %5280 = vmatpush1.msra.mxu0 %v5241
        %5281 = vmatprep.subr.mxu0 0.0
        %5282 = vmatpush1.msra.mxu0 %v5242
        %5283 = vmatprep.subr.mxu0 0.0
        %5284 = vmatpush1.msra.mxu0 %v5243
        %5285 = vmatprep.subr.mxu0 0.0
        %5286 = vmatpush1.msra.mxu0 %v5244
        %5287 = vmatprep.subr.mxu0 0.0
        %5288 = vmatpush1.msra.mxu0 %v5245
        %5289 = vmatprep.subr.mxu0 0.0
        %5290 = vmatpush1.msra.mxu0 0.0
        %5291 = vmatprep.subr.mxu0 0.0
        %5292 = vmatpush1.msra.mxu0 0.0
        %5293 = vmatprep.subr.mxu0 0.0
        %5294 = vmatpush1.msra.mxu0 0.0
        %5295 = vmatprep.subr.mxu0 0.0
        %5296 = vmatpush1.msra.mxu0 0.0
        %5297 = vmatprep.subr.mxu0 0.0
        %5298 = vmatpush1.msra.mxu0 0.0
        %5299 = vmatprep.subr.mxu0 0.0
        %5300 = vmatpush1.msra.mxu0 0.0
        %5301 = vmatprep.subr.mxu0 0.0
        %5302 = vmatpush1.msra.mxu0 0.0
        %5303 = vmatprep.subr.mxu0 0.0
        %5304 = vmatpush1.msra.mxu0 0.0
        %5305 = vmatprep.subr.mxu0 0.0
        %5306 = vmatpush1.msra.mxu0 0.0
        %5307 = vmatprep.subr.mxu0 0.0
        %5308 = vmatpush1.msra.mxu0 0.0
        %5309 = vmatprep.subr.mxu0 0.0
        %5310 = vmatpush1.msra.mxu0 0.0
        %5311 = vmatprep.subr.mxu0 0.0
        %5312 = vmatpush1.msra.mxu0 0.0
        %5313 = vmatprep.subr.mxu0 0.0
        %5314 = vmatpush1.msra.mxu0 0.0
        %5315 = vmatprep.subr.mxu0 0.0
        %5316 = vmatpush1.msra.mxu0 0.0
        %5317 = vmatprep.subr.mxu0 0.0
        %5318 = vmatpush1.msra.mxu0 0.0
        %5319 = vmatprep.subr.mxu0 0.0
        %5320 = vmatpush1.msra.mxu0 0.0
        %5321 = vmatprep.subr.mxu0 0.0
        %5322 = vmatpush1.msra.mxu0 0.0
        %5323 = vmatprep.subr.mxu0 0.0
        %5324 = vmatpush1.msra.mxu0 0.0
        %5325 = vmatprep.subr.mxu0 0.0
        %5326 = vmatpush1.msra.mxu0 0.0
        %5327 = vmatprep.subr.mxu0 0.0
        %5328 = vmatpush1.msra.mxu0 0.0
        %5329 = vmatprep.subr.mxu0 0.0
        %5330 = vmatpush1.msra.mxu0 0.0
        %5331 = vmatprep.subr.mxu0 0.0
        %5332 = vmatpush1.msra.mxu0 0.0
        %5333 = vmatprep.subr.mxu0 0.0
        %5334 = vmatpush1.msra.mxu0 0.0
        %5335 = vmatprep.mubr.f32.mxu0 0.0
        %5336 = vmatmul.mubr.f32.gmra.mrb[0].mxu0 %v5248
        %v5337 = vpop.f32.mrb[0].mxu0
        %v5338 = vadd.f32 0.0, %v5337
        %v5339 = vpop.f32.mrb[0].mxu0
        %5340 = vmatprep.mubr.f32.mxu0 0.0
        %5341 = vmatmul.mubr.f32.gmra.mrb[0].mxu0 %v5251
        %v5342 = vpop.f32.mrb[0].mxu0
        %v5343 = vadd.f32 0.0, %v5342
        %v5344 = vpop.f32.mrb[0].mxu0
        %5345 = vmatprep.mubr.f32.mxu0 0.0
        %5346 = vmatmul.mubr.f32.gmra.mrb[0].mxu0 %v5254
        %v5347 = vpop.f32.mrb[0].mxu0
        %v5348 = vadd.f32 0.0, %v5347
        %v5349 = vpop.f32.mrb[0].mxu0
        %5350 = vmatprep.mubr.f32.mxu0 0.0
        %5351 = vmatmul.mubr.f32.gmra.mrb[0].mxu0 %v5257
        %v5352 = vpop.f32.mrb[0].mxu0
        %v5353 = vadd.f32 0.0, %v5352
        %v5354 = vpop.f32.mrb[0].mxu0
        %5355 = vmatprep.mubr.f32.mxu0 0.0
        %5356 = vmatmul.mubr.f32.gmra.mrb[0].mxu0 %v5260
        %v5357 = vpop.f32.mrb[0].mxu0
        %v5358 = vadd.f32 0.0, %v5357
        %v5359 = vpop.f32.mrb[0].mxu0
        %5360 = vmatprep.mubr.f32.mxu0 0.0
        %5361 = vmatmul.mubr.f32.gmra.mrb[0].mxu0 %v5263
        %v5362 = vpop.f32.mrb[0].mxu0
        %v5363 = vadd.f32 0.0, %v5362
        %v5364 = vpop.f32.mrb[0].mxu0
        %5365 = vmatprep.mubr.f32.mxu0 0.0
        %5366 = vmatmul.mubr.f32.gmra.mrb[0].mxu0 %v5266
        %v5367 = vpop.f32.mrb[0].mxu0
        %v5368 = vadd.f32 0.0, %v5367
        %v5369 = vpop.f32.mrb[0].mxu0
        %5370 = vmatprep.mubr.f32.mxu0 0.0
        %5371 = vmatmul.mubr.f32.gmra.mrb[0].mxu0 %v5269
        %v5372 = vpop.f32.mrb[0].mxu0
        %v5373 = vadd.f32 0.0, %v5372
        %v5374 = vpop.f32.mrb[0].mxu0
        %5375 = vdwg.mxu0
        %v5377 = vsel %vm5246, %v5028, 0
        %v5380 = vsel %vm5246, %v5033, 0
        %v5383 = vsel %vm5246, %v5038, 0
        %v5386 = vsel %vm5246, %v5043, 0
        %v5389 = vsel %vm5246, %v5048, 0
        %v5392 = vsel %vm5246, %v5053, 0
        %v5395 = vsel %vm5246, %v5058, 0
        %v5398 = vsel %vm5246, %v5063, 0
        %5400 = vmatprep.subr.mxu0 0.0
        %5401 = vmatpush1.msra.mxu0 %v5066
        %5402 = vmatprep.subr.mxu0 0.0
        %5403 = vmatpush1.msra.mxu0 %v5067
        %5404 = vmatprep.subr.mxu0 0.0
        %5405 = vmatpush1.msra.mxu0 %v5068
        %5406 = vmatprep.subr.mxu0 0.0
        %5407 = vmatpush1.msra.mxu0 %v5069
        %5408 = vmatprep.subr.mxu0 0.0
        %5409 = vmatpush1.msra.mxu0 %v5070
        %5410 = vmatprep.subr.mxu0 0.0
        %5411 = vmatpush1.msra.mxu0 %v5071
        %5412 = vmatprep.subr.mxu0 0.0
        %5413 = vmatpush1.msra.mxu0 %v5072
        %5414 = vmatprep.subr.mxu0 0.0
        %5415 = vmatpush1.msra.mxu0 %v5073
        %5416 = vmatprep.subr.mxu0 0.0
        %5417 = vmatpush1.msra.mxu0 %v5074
        %5418 = vmatprep.subr.mxu0 0.0
        %5419 = vmatpush1.msra.mxu0 0.0
        %5420 = vmatprep.subr.mxu0 0.0
        %5421 = vmatpush1.msra.mxu0 0.0
        %5422 = vmatprep.subr.mxu0 0.0
        %5423 = vmatpush1.msra.mxu0 0.0
        %5424 = vmatprep.subr.mxu0 0.0
        %5425 = vmatpush1.msra.mxu0 0.0
        %5426 = vmatprep.subr.mxu0 0.0
        %5427 = vmatpush1.msra.mxu0 0.0
        %5428 = vmatprep.subr.mxu0 0.0
        %5429 = vmatpush1.msra.mxu0 0.0
        %5430 = vmatprep.subr.mxu0 0.0
        %5431 = vmatpush1.msra.mxu0 0.0
        %5432 = vmatprep.subr.mxu0 0.0
        %5433 = vmatpush1.msra.mxu0 0.0
        %5434 = vmatprep.subr.mxu0 0.0
        %5435 = vmatpush1.msra.mxu0 0.0
        %5436 = vmatprep.subr.mxu0 0.0
        %5437 = vmatpush1.msra.mxu0 0.0
        %5438 = vmatprep.subr.mxu0 0.0
        %5439 = vmatpush1.msra.mxu0 0.0
        %5440 = vmatprep.subr.mxu0 0.0
        %5441 = vmatpush1.msra.mxu0 0.0
        %5442 = vmatprep.subr.mxu0 0.0
        %5443 = vmatpush1.msra.mxu0 0.0
        %5444 = vmatprep.subr.mxu0 0.0
        %5445 = vmatpush1.msra.mxu0 0.0
        %5446 = vmatprep.subr.mxu0 0.0
        %5447 = vmatpush1.msra.mxu0 0.0
        %5448 = vmatprep.subr.mxu0 0.0
        %5449 = vmatpush1.msra.mxu0 0.0
        %5450 = vmatprep.subr.mxu0 0.0
        %5451 = vmatpush1.msra.mxu0 0.0
        %5452 = vmatprep.subr.mxu0 0.0
        %5453 = vmatpush1.msra.mxu0 0.0
        %5454 = vmatprep.subr.mxu0 0.0
        %5455 = vmatpush1.msra.mxu0 0.0
        %5456 = vmatprep.subr.mxu0 0.0
        %5457 = vmatpush1.msra.mxu0 0.0
        %5458 = vmatprep.subr.mxu0 0.0
        %5459 = vmatpush1.msra.mxu0 0.0
        %5460 = vmatprep.subr.mxu0 0.0
        %5461 = vmatpush1.msra.mxu0 0.0
        %5462 = vmatprep.subr.mxu0 0.0
        %5463 = vmatpush1.msra.mxu0 0.0
        %5464 = vmatprep.mubr.f32.mxu0 0.0
        %5465 = vmatmul.mubr.f32.gmra.mrb[0].mxu0 %v5377
        %v5466 = vpop.f32.mrb[0].mxu0
        %v5467 = vadd.f32 %v5338, %v5466
        %v5468 = vpop.f32.mrb[0].mxu0
        %5469 = vmatprep.mubr.f32.mxu0 0.0
        %5470 = vmatmul.mubr.f32.gmra.mrb[0].mxu0 %v5380
        %v5471 = vpop.f32.mrb[0].mxu0
        %v5472 = vadd.f32 %v5343, %v5471
        %v5473 = vpop.f32.mrb[0].mxu0
        %5474 = vmatprep.mubr.f32.mxu0 0.0
        %5475 = vmatmul.mubr.f32.gmra.mrb[0].mxu0 %v5383
        %v5476 = vpop.f32.mrb[0].mxu0
        %v5477 = vadd.f32 %v5348, %v5476
        %v5478 = vpop.f32.mrb[0].mxu0
        %5479 = vmatprep.mubr.f32.mxu0 0.0
        %5480 = vmatmul.mubr.f32.gmra.mrb[0].mxu0 %v5386
        %v5481 = vpop.f32.mrb[0].mxu0
        %v5482 = vadd.f32 %v5353, %v5481
        %v5483 = vpop.f32.mrb[0].mxu0
        %5484 = vmatprep.mubr.f32.mxu0 0.0
        %5485 = vmatmul.mubr.f32.gmra.mrb[0].mxu0 %v5389
        %v5486 = vpop.f32.mrb[0].mxu0
        %v5487 = vadd.f32 %v5358, %v5486
        %v5488 = vpop.f32.mrb[0].mxu0
        %5489 = vmatprep.mubr.f32.mxu0 0.0
        %5490 = vmatmul.mubr.f32.gmra.mrb[0].mxu0 %v5392
        %v5491 = vpop.f32.mrb[0].mxu0
        %v5492 = vadd.f32 %v5363, %v5491
        %v5493 = vpop.f32.mrb[0].mxu0
        %5494 = vmatprep.mubr.f32.mxu0 0.0
        %5495 = vmatmul.mubr.f32.gmra.mrb[0].mxu0 %v5395
        %v5496 = vpop.f32.mrb[0].mxu0
        %v5497 = vadd.f32 %v5368, %v5496
        %v5498 = vpop.f32.mrb[0].mxu0
        %5499 = vmatprep.mubr.f32.mxu0 0.0
        %5500 = vmatmul.mubr.f32.gmra.mrb[0].mxu0 %v5398
        %v5501 = vpop.f32.mrb[0].mxu0
        %v5502 = vadd.f32 %v5373, %v5501
        %v5503 = vpop.f32.mrb[0].mxu0
        %5504 = vdwg.mxu0
        %v5505 = vadd.s32 %v4904, 2
        %v5506 = vadd.s32 %v4905, 2
        %v5507 = vadd.s32 %v4906, 2
        %v5508 = vadd.s32 %v4907, 2
        %v5509 = vadd.s32 %v4908, 2
        %v5510 = vadd.s32 %v4909, 2
        %v5511 = vadd.s32 %v4910, 2
        %v5512 = vadd.s32 %v4911, 2
        %vm5513 = vcmp.eq.s32.totalorder %v2655, %v5505
        %vm5514 = vcmp.eq.s32.totalorder %v2655, %v5506
        %vm5515 = vcmp.eq.s32.totalorder %v2655, %v5507
        %vm5516 = vcmp.eq.s32.totalorder %v2655, %v5508
        %vm5517 = vcmp.eq.s32.totalorder %v2655, %v5509
        %vm5518 = vcmp.eq.s32.totalorder %v2655, %v5510
        %vm5519 = vcmp.eq.s32.totalorder %v2655, %v5511
        %vm5520 = vcmp.eq.s32.totalorder %v2655, %v5512
        %v5521 = vsel %vm5513, 1, 0
        %v5522 = vsel %vm5514, 1, 0
        %v5523 = vsel %vm5515, 1, 0
        %v5524 = vsel %vm5516, 1, 0
        %v5525 = vsel %vm5517, 1, 0
        %v5526 = vsel %vm5518, 1, 0
        %v5527 = vsel %vm5519, 1, 0
        %v5528 = vsel %vm5520, 1, 0
        %v5529 = vcvt.s32.f32 %v5521
        %v5530 = vcvt.s32.f32 %v5522
        %v5531 = vcvt.s32.f32 %v5523
        %v5532 = vcvt.s32.f32 %v5524
        %v5533 = vcvt.s32.f32 %v5525
        %v5534 = vcvt.s32.f32 %v5526
        %v5535 = vcvt.s32.f32 %v5527
        %v5536 = vcvt.s32.f32 %v5528
        %v5538 = vsel %vm4936, %v5529, 0
        %v5541 = vsel %vm4936, %v5530, 0
        %v5544 = vsel %vm4936, %v5531, 0
        %v5547 = vsel %vm4936, %v5532, 0
        %v5550 = vsel %vm4936, %v5533, 0
        %v5553 = vsel %vm4936, %v5534, 0
        %v5556 = vsel %vm4936, %v5535, 0
        %v5559 = vsel %vm4936, %v5536, 0
        %5561 = vmatprep.subr.mxu0 0.0
        %5562 = vmatpush1.msra.mxu0 %v4868
        %5563 = vmatprep.subr.mxu0 0.0
        %5564 = vmatpush1.msra.mxu0 %v4869
        %5565 = vmatprep.subr.mxu0 0.0
        %5566 = vmatpush1.msra.mxu0 %v4870
        %5567 = vmatprep.subr.mxu0 0.0
        %5568 = vmatpush1.msra.mxu0 %v4871
        %5569 = vmatprep.subr.mxu0 0.0
        %5570 = vmatpush1.msra.mxu0 %v4872
        %5571 = vmatprep.subr.mxu0 0.0
        %5572 = vmatpush1.msra.mxu0 %v4873
        %5573 = vmatprep.subr.mxu0 0.0
        %5574 = vmatpush1.msra.mxu0 %v4874
        %5575 = vmatprep.subr.mxu0 0.0
        %5576 = vmatpush1.msra.mxu0 %v4875
        %5577 = vmatprep.subr.mxu0 0.0
        %5578 = vmatpush1.msra.mxu0 %v4876
        %5579 = vmatprep.subr.mxu0 0.0
        %5580 = vmatpush1.msra.mxu0 %v4877
        %5581 = vmatprep.subr.mxu0 0.0
        %5582 = vmatpush1.msra.mxu0 %v4878
        %5583 = vmatprep.subr.mxu0 0.0
        %5584 = vmatpush1.msra.mxu0 %v4879
        %5585 = vmatprep.subr.mxu0 0.0
        %5586 = vmatpush1.msra.mxu0 0.0
        %5587 = vmatprep.subr.mxu0 0.0
        %5588 = vmatpush1.msra.mxu0 0.0
        %5589 = vmatprep.subr.mxu0 0.0
        %5590 = vmatpush1.msra.mxu0 0.0
        %5591 = vmatprep.subr.mxu0 0.0
        %5592 = vmatpush1.msra.mxu0 0.0
        %5593 = vmatprep.subr.mxu0 0.0
        %5594 = vmatpush1.msra.mxu0 0.0
        %5595 = vmatprep.subr.mxu0 0.0
        %5596 = vmatpush1.msra.mxu0 0.0
        %5597 = vmatprep.subr.mxu0 0.0
        %5598 = vmatpush1.msra.mxu0 0.0
        %5599 = vmatprep.subr.mxu0 0.0
        %5600 = vmatpush1.msra.mxu0 0.0
        %5601 = vmatprep.subr.mxu0 0.0
        %5602 = vmatpush1.msra.mxu0 0.0
        %5603 = vmatprep.subr.mxu0 0.0
        %5604 = vmatpush1.msra.mxu0 0.0
        %5605 = vmatprep.subr.mxu0 0.0
        %5606 = vmatpush1.msra.mxu0 0.0
        %5607 = vmatprep.subr.mxu0 0.0
        %5608 = vmatpush1.msra.mxu0 0.0
        %5609 = vmatprep.subr.mxu0 0.0
        %5610 = vmatpush1.msra.mxu0 0.0
        %5611 = vmatprep.subr.mxu0 0.0
        %5612 = vmatpush1.msra.mxu0 0.0
        %5613 = vmatprep.subr.mxu0 0.0
        %5614 = vmatpush1.msra.mxu0 0.0
        %5615 = vmatprep.subr.mxu0 0.0
        %5616 = vmatpush1.msra.mxu0 0.0
        %5617 = vmatprep.subr.mxu0 0.0
        %5618 = vmatpush1.msra.mxu0 0.0
        %5619 = vmatprep.subr.mxu0 0.0
        %5620 = vmatpush1.msra.mxu0 0.0
        %5621 = vmatprep.subr.mxu0 0.0
        %5622 = vmatpush1.msra.mxu0 0.0
        %5623 = vmatprep.subr.mxu0 0.0
        %5624 = vmatpush1.msra.mxu0 0.0
        %5625 = vmatprep.mubr.f32.mxu0 0.0
        %5626 = vmatmul.mubr.f32.gmra.mrb[0].mxu0 %v5538
        %v5627 = vpop.f32.mrb[0].mxu0
        %v5628 = vadd.f32 0.0, %v5627
        %v5629 = vpop.f32.mrb[0].mxu0
        %5630 = vmatprep.mubr.f32.mxu0 0.0
        %5631 = vmatmul.mubr.f32.gmra.mrb[0].mxu0 %v5541
        %v5632 = vpop.f32.mrb[0].mxu0
        %v5633 = vadd.f32 0.0, %v5632
        %v5634 = vpop.f32.mrb[0].mxu0
        %5635 = vmatprep.mubr.f32.mxu0 0.0
        %5636 = vmatmul.mubr.f32.gmra.mrb[0].mxu0 %v5544
        %v5637 = vpop.f32.mrb[0].mxu0
        %v5638 = vadd.f32 0.0, %v5637
        %v5639 = vpop.f32.mrb[0].mxu0
        %5640 = vmatprep.mubr.f32.mxu0 0.0
        %5641 = vmatmul.mubr.f32.gmra.mrb[0].mxu0 %v5547
        %v5642 = vpop.f32.mrb[0].mxu0
        %v5643 = vadd.f32 0.0, %v5642
        %v5644 = vpop.f32.mrb[0].mxu0
        %5645 = vmatprep.mubr.f32.mxu0 0.0
        %5646 = vmatmul.mubr.f32.gmra.mrb[0].mxu0 %v5550
        %v5647 = vpop.f32.mrb[0].mxu0
        %v5648 = vadd.f32 0.0, %v5647
        %v5649 = vpop.f32.mrb[0].mxu0
        %5650 = vmatprep.mubr.f32.mxu0 0.0
        %5651 = vmatmul.mubr.f32.gmra.mrb[0].mxu0 %v5553
        %v5652 = vpop.f32.mrb[0].mxu0
        %v5653 = vadd.f32 0.0, %v5652
        %v5654 = vpop.f32.mrb[0].mxu0
        %5655 = vmatprep.mubr.f32.mxu0 0.0
        %5656 = vmatmul.mubr.f32.gmra.mrb[0].mxu0 %v5556
        %v5657 = vpop.f32.mrb[0].mxu0
        %v5658 = vadd.f32 0.0, %v5657
        %v5659 = vpop.f32.mrb[0].mxu0
        %5660 = vmatprep.mubr.f32.mxu0 0.0
        %5661 = vmatmul.mubr.f32.gmra.mrb[0].mxu0 %v5559
        %v5662 = vpop.f32.mrb[0].mxu0
        %v5663 = vadd.f32 0.0, %v5662
        %v5664 = vpop.f32.mrb[0].mxu0
        %5665 = vdwg.mxu0
        %s5666 = scalar_lea.vmem %s5, 144
        %v5667 = vld [vmem:[%s5666] sm:$0xff]
        %v5668 = vld [vmem:[%s5666 + $0x8] sm:$0xff]
        %v5669 = vld [vmem:[%s5666 + $0x10] sm:$0xff]
        %v5670 = vld [vmem:[%s5666 + $0x18] sm:$0xff]
        %v5671 = vld [vmem:[%s5666 + $0x20] sm:$0xff]
        %v5672 = vld [vmem:[%s5666 + $0x28] sm:$0xff]
        %v5673 = vld [vmem:[%s5666 + $0x30] sm:$0xff]
        %v5674 = vld [vmem:[%s5666 + $0x38] sm:$0xff]
        %v5675 = vld [vmem:[%s5666 + $0x40] sm:$0xff]
        %v5677 = vsel %vm5246, %v5628, 0
        %v5680 = vsel %vm5246, %v5633, 0
        %v5683 = vsel %vm5246, %v5638, 0
        %v5686 = vsel %vm5246, %v5643, 0
        %v5689 = vsel %vm5246, %v5648, 0
        %v5692 = vsel %vm5246, %v5653, 0
        %v5695 = vsel %vm5246, %v5658, 0
        %v5698 = vsel %vm5246, %v5663, 0
        %5700 = vmatprep.subr.mxu0 0.0
        %5701 = vmatpush1.msra.mxu0 %v5667
        %5702 = vmatprep.subr.mxu0 0.0
        %5703 = vmatpush1.msra.mxu0 %v5668
        %5704 = vmatprep.subr.mxu0 0.0
        %5705 = vmatpush1.msra.mxu0 %v5669
        %5706 = vmatprep.subr.mxu0 0.0
        %5707 = vmatpush1.msra.mxu0 %v5670
        %5708 = vmatprep.subr.mxu0 0.0
        %5709 = vmatpush1.msra.mxu0 %v5671
        %5710 = vmatprep.subr.mxu0 0.0
        %5711 = vmatpush1.msra.mxu0 %v5672
        %5712 = vmatprep.subr.mxu0 0.0
        %5713 = vmatpush1.msra.mxu0 %v5673
        %5714 = vmatprep.subr.mxu0 0.0
        %5715 = vmatpush1.msra.mxu0 %v5674
        %5716 = vmatprep.subr.mxu0 0.0
        %5717 = vmatpush1.msra.mxu0 %v5675
        %5718 = vmatprep.subr.mxu0 0.0
        %5719 = vmatpush1.msra.mxu0 0.0
        %5720 = vmatprep.subr.mxu0 0.0
        %5721 = vmatpush1.msra.mxu0 0.0
        %5722 = vmatprep.subr.mxu0 0.0
        %5723 = vmatpush1.msra.mxu0 0.0
        %5724 = vmatprep.subr.mxu0 0.0
        %5725 = vmatpush1.msra.mxu0 0.0
        %5726 = vmatprep.subr.mxu0 0.0
        %5727 = vmatpush1.msra.mxu0 0.0
        %5728 = vmatprep.subr.mxu0 0.0
        %5729 = vmatpush1.msra.mxu0 0.0
        %5730 = vmatprep.subr.mxu0 0.0
        %5731 = vmatpush1.msra.mxu0 0.0
        %5732 = vmatprep.subr.mxu0 0.0
        %5733 = vmatpush1.msra.mxu0 0.0
        %5734 = vmatprep.subr.mxu0 0.0
        %5735 = vmatpush1.msra.mxu0 0.0
        %5736 = vmatprep.subr.mxu0 0.0
        %5737 = vmatpush1.msra.mxu0 0.0
        %5738 = vmatprep.subr.mxu0 0.0
        %5739 = vmatpush1.msra.mxu0 0.0
        %5740 = vmatprep.subr.mxu0 0.0
        %5741 = vmatpush1.msra.mxu0 0.0
        %5742 = vmatprep.subr.mxu0 0.0
        %5743 = vmatpush1.msra.mxu0 0.0
        %5744 = vmatprep.subr.mxu0 0.0
        %5745 = vmatpush1.msra.mxu0 0.0
        %5746 = vmatprep.subr.mxu0 0.0
        %5747 = vmatpush1.msra.mxu0 0.0
        %5748 = vmatprep.subr.mxu0 0.0
        %5749 = vmatpush1.msra.mxu0 0.0
        %5750 = vmatprep.subr.mxu0 0.0
        %5751 = vmatpush1.msra.mxu0 0.0
        %5752 = vmatprep.subr.mxu0 0.0
        %5753 = vmatpush1.msra.mxu0 0.0
        %5754 = vmatprep.subr.mxu0 0.0
        %5755 = vmatpush1.msra.mxu0 0.0
        %5756 = vmatprep.subr.mxu0 0.0
        %5757 = vmatpush1.msra.mxu0 0.0
        %5758 = vmatprep.subr.mxu0 0.0
        %5759 = vmatpush1.msra.mxu0 0.0
        %5760 = vmatprep.subr.mxu0 0.0
        %5761 = vmatpush1.msra.mxu0 0.0
        %5762 = vmatprep.subr.mxu0 0.0
        %5763 = vmatpush1.msra.mxu0 0.0
        %5764 = vmatprep.mubr.f32.mxu0 0.0
        %5765 = vmatmul.mubr.f32.gmra.mrb[0].mxu0 %v5677
        %v5766 = vpop.f32.mrb[0].mxu0
        %v5767 = vadd.f32 0.0, %v5766
        %v5768 = vpop.f32.mrb[0].mxu0
        %5769 = vmatprep.mubr.f32.mxu0 0.0
        %5770 = vmatmul.mubr.f32.gmra.mrb[0].mxu0 %v5680
        %v5771 = vpop.f32.mrb[0].mxu0
        %v5772 = vadd.f32 0.0, %v5771
        %v5773 = vpop.f32.mrb[0].mxu0
        %5774 = vmatprep.mubr.f32.mxu0 0.0
        %5775 = vmatmul.mubr.f32.gmra.mrb[0].mxu0 %v5683
        %v5776 = vpop.f32.mrb[0].mxu0
        %v5777 = vadd.f32 0.0, %v5776
        %v5778 = vpop.f32.mrb[0].mxu0
        %5779 = vmatprep.mubr.f32.mxu0 0.0
        %5780 = vmatmul.mubr.f32.gmra.mrb[0].mxu0 %v5686
        %v5781 = vpop.f32.mrb[0].mxu0
        %v5782 = vadd.f32 0.0, %v5781
        %v5783 = vpop.f32.mrb[0].mxu0
        %5784 = vmatprep.mubr.f32.mxu0 0.0
        %5785 = vmatmul.mubr.f32.gmra.mrb[0].mxu0 %v5689
        %v5786 = vpop.f32.mrb[0].mxu0
        %v5787 = vadd.f32 0.0, %v5786
        %v5788 = vpop.f32.mrb[0].mxu0
        %5789 = vmatprep.mubr.f32.mxu0 0.0
        %5790 = vmatmul.mubr.f32.gmra.mrb[0].mxu0 %v5692
        %v5791 = vpop.f32.mrb[0].mxu0
        %v5792 = vadd.f32 0.0, %v5791
        %v5793 = vpop.f32.mrb[0].mxu0
        %5794 = vmatprep.mubr.f32.mxu0 0.0
        %5795 = vmatmul.mubr.f32.gmra.mrb[0].mxu0 %v5695
        %v5796 = vpop.f32.mrb[0].mxu0
        %v5797 = vadd.f32 0.0, %v5796
        %v5798 = vpop.f32.mrb[0].mxu0
        %5799 = vmatprep.mubr.f32.mxu0 0.0
        %5800 = vmatmul.mubr.f32.gmra.mrb[0].mxu0 %v5698
        %v5801 = vpop.f32.mrb[0].mxu0
        %v5802 = vadd.f32 0.0, %v5801
        %v5803 = vpop.f32.mrb[0].mxu0
        %5804 = vdwg.mxu0
        %v5805 = vadd.f32 %v5467, %v5767
        %v5806 = vadd.f32 %v5472, %v5772
        %v5807 = vadd.f32 %v5477, %v5777
        %v5808 = vadd.f32 %v5482, %v5782
        %v5809 = vadd.f32 %v5487, %v5787
        %v5810 = vadd.f32 %v5492, %v5792
        %v5811 = vadd.f32 %v5497, %v5797
        %v5812 = vadd.f32 %v5502, %v5802
        %v5813 = vadd.s32 %v4904, 3
        %v5814 = vadd.s32 %v4905, 3
        %v5815 = vadd.s32 %v4906, 3
        %v5816 = vadd.s32 %v4907, 3
        %v5817 = vadd.s32 %v4908, 3
        %v5818 = vadd.s32 %v4909, 3
        %v5819 = vadd.s32 %v4910, 3
        %v5820 = vadd.s32 %v4911, 3
        %vm5821 = vcmp.eq.s32.totalorder %v2655, %v5813
        %vm5822 = vcmp.eq.s32.totalorder %v2655, %v5814
        %vm5823 = vcmp.eq.s32.totalorder %v2655, %v5815
        %vm5824 = vcmp.eq.s32.totalorder %v2655, %v5816
        %vm5825 = vcmp.eq.s32.totalorder %v2655, %v5817
        %vm5826 = vcmp.eq.s32.totalorder %v2655, %v5818
        %vm5827 = vcmp.eq.s32.totalorder %v2655, %v5819
        %vm5828 = vcmp.eq.s32.totalorder %v2655, %v5820
        %v5829 = vsel %vm5821, 1, 0
        %v5830 = vsel %vm5822, 1, 0
        %v5831 = vsel %vm5823, 1, 0
        %v5832 = vsel %vm5824, 1, 0
        %v5833 = vsel %vm5825, 1, 0
        %v5834 = vsel %vm5826, 1, 0
        %v5835 = vsel %vm5827, 1, 0
        %v5836 = vsel %vm5828, 1, 0
        %v5837 = vcvt.s32.f32 %v5829
        %v5838 = vcvt.s32.f32 %v5830
        %v5839 = vcvt.s32.f32 %v5831
        %v5840 = vcvt.s32.f32 %v5832
        %v5841 = vcvt.s32.f32 %v5833
        %v5842 = vcvt.s32.f32 %v5834
        %v5843 = vcvt.s32.f32 %v5835
        %v5844 = vcvt.s32.f32 %v5836
        %v5846 = vsel %vm4936, %v5837, 0
        %v5849 = vsel %vm4936, %v5838, 0
        %v5852 = vsel %vm4936, %v5839, 0
        %v5855 = vsel %vm4936, %v5840, 0
        %v5858 = vsel %vm4936, %v5841, 0
        %v5861 = vsel %vm4936, %v5842, 0
        %v5864 = vsel %vm4936, %v5843, 0
        %v5867 = vsel %vm4936, %v5844, 0
        %5869 = vmatprep.subr.mxu0 0.0
        %5870 = vmatpush1.msra.mxu0 %v4868
        %5871 = vmatprep.subr.mxu0 0.0
        %5872 = vmatpush1.msra.mxu0 %v4869
        %5873 = vmatprep.subr.mxu0 0.0
        %5874 = vmatpush1.msra.mxu0 %v4870
        %5875 = vmatprep.subr.mxu0 0.0
        %5876 = vmatpush1.msra.mxu0 %v4871
        %5877 = vmatprep.subr.mxu0 0.0
        %5878 = vmatpush1.msra.mxu0 %v4872
        %5879 = vmatprep.subr.mxu0 0.0
        %5880 = vmatpush1.msra.mxu0 %v4873
        %5881 = vmatprep.subr.mxu0 0.0
        %5882 = vmatpush1.msra.mxu0 %v4874
        %5883 = vmatprep.subr.mxu0 0.0
        %5884 = vmatpush1.msra.mxu0 %v4875
        %5885 = vmatprep.subr.mxu0 0.0
        %5886 = vmatpush1.msra.mxu0 %v4876
        %5887 = vmatprep.subr.mxu0 0.0
        %5888 = vmatpush1.msra.mxu0 %v4877
        %5889 = vmatprep.subr.mxu0 0.0
        %5890 = vmatpush1.msra.mxu0 %v4878
        %5891 = vmatprep.subr.mxu0 0.0
        %5892 = vmatpush1.msra.mxu0 %v4879
        %5893 = vmatprep.subr.mxu0 0.0
        %5894 = vmatpush1.msra.mxu0 0.0
        %5895 = vmatprep.subr.mxu0 0.0
        %5896 = vmatpush1.msra.mxu0 0.0
        %5897 = vmatprep.subr.mxu0 0.0
        %5898 = vmatpush1.msra.mxu0 0.0
        %5899 = vmatprep.subr.mxu0 0.0
        %5900 = vmatpush1.msra.mxu0 0.0
        %5901 = vmatprep.subr.mxu0 0.0
        %5902 = vmatpush1.msra.mxu0 0.0
        %5903 = vmatprep.subr.mxu0 0.0
        %5904 = vmatpush1.msra.mxu0 0.0
        %5905 = vmatprep.subr.mxu0 0.0
        %5906 = vmatpush1.msra.mxu0 0.0
        %5907 = vmatprep.subr.mxu0 0.0
        %5908 = vmatpush1.msra.mxu0 0.0
        %5909 = vmatprep.subr.mxu0 0.0
        %5910 = vmatpush1.msra.mxu0 0.0
        %5911 = vmatprep.subr.mxu0 0.0
        %5912 = vmatpush1.msra.mxu0 0.0
        %5913 = vmatprep.subr.mxu0 0.0
        %5914 = vmatpush1.msra.mxu0 0.0
        %5915 = vmatprep.subr.mxu0 0.0
        %5916 = vmatpush1.msra.mxu0 0.0
        %5917 = vmatprep.subr.mxu0 0.0
        %5918 = vmatpush1.msra.mxu0 0.0
        %5919 = vmatprep.subr.mxu0 0.0
        %5920 = vmatpush1.msra.mxu0 0.0
        %5921 = vmatprep.subr.mxu0 0.0
        %5922 = vmatpush1.msra.mxu0 0.0
        %5923 = vmatprep.subr.mxu0 0.0
        %5924 = vmatpush1.msra.mxu0 0.0
        %5925 = vmatprep.subr.mxu0 0.0
        %5926 = vmatpush1.msra.mxu0 0.0
        %5927 = vmatprep.subr.mxu0 0.0
        %5928 = vmatpush1.msra.mxu0 0.0
        %5929 = vmatprep.subr.mxu0 0.0
        %5930 = vmatpush1.msra.mxu0 0.0
        %5931 = vmatprep.subr.mxu0 0.0
        %5932 = vmatpush1.msra.mxu0 0.0
        %5933 = vmatprep.mubr.f32.mxu0 0.0
        %5934 = vmatmul.mubr.f32.gmra.mrb[0].mxu0 %v5846
        %v5935 = vpop.f32.mrb[0].mxu0
        %v5936 = vadd.f32 0.0, %v5935
        %v5937 = vpop.f32.mrb[0].mxu0
        %5938 = vmatprep.mubr.f32.mxu0 0.0
        %5939 = vmatmul.mubr.f32.gmra.mrb[0].mxu0 %v5849
        %v5940 = vpop.f32.mrb[0].mxu0
        %v5941 = vadd.f32 0.0, %v5940
        %v5942 = vpop.f32.mrb[0].mxu0
        %5943 = vmatprep.mubr.f32.mxu0 0.0
        %5944 = vmatmul.mubr.f32.gmra.mrb[0].mxu0 %v5852
        %v5945 = vpop.f32.mrb[0].mxu0
        %v5946 = vadd.f32 0.0, %v5945
        %v5947 = vpop.f32.mrb[0].mxu0
        %5948 = vmatprep.mubr.f32.mxu0 0.0
        %5949 = vmatmul.mubr.f32.gmra.mrb[0].mxu0 %v5855
        %v5950 = vpop.f32.mrb[0].mxu0
        %v5951 = vadd.f32 0.0, %v5950
        %v5952 = vpop.f32.mrb[0].mxu0
        %5953 = vmatprep.mubr.f32.mxu0 0.0
        %5954 = vmatmul.mubr.f32.gmra.mrb[0].mxu0 %v5858
        %v5955 = vpop.f32.mrb[0].mxu0
        %v5956 = vadd.f32 0.0, %v5955
        %v5957 = vpop.f32.mrb[0].mxu0
        %5958 = vmatprep.mubr.f32.mxu0 0.0
        %5959 = vmatmul.mubr.f32.gmra.mrb[0].mxu0 %v5861
        %v5960 = vpop.f32.mrb[0].mxu0
        %v5961 = vadd.f32 0.0, %v5960
        %v5962 = vpop.f32.mrb[0].mxu0
        %5963 = vmatprep.mubr.f32.mxu0 0.0
        %5964 = vmatmul.mubr.f32.gmra.mrb[0].mxu0 %v5864
        %v5965 = vpop.f32.mrb[0].mxu0
        %v5966 = vadd.f32 0.0, %v5965
        %v5967 = vpop.f32.mrb[0].mxu0
        %5968 = vmatprep.mubr.f32.mxu0 0.0
        %5969 = vmatmul.mubr.f32.gmra.mrb[0].mxu0 %v5867
        %v5970 = vpop.f32.mrb[0].mxu0
        %v5971 = vadd.f32 0.0, %v5970
        %v5972 = vpop.f32.mrb[0].mxu0
        %5973 = vdwg.mxu0
        %s5974 = scalar_lea.vmem %s5, 216
        %v5975 = vld [vmem:[%s5974] sm:$0xff]
        %v5976 = vld [vmem:[%s5974 + $0x8] sm:$0xff]
        %v5977 = vld [vmem:[%s5974 + $0x10] sm:$0xff]
        %v5978 = vld [vmem:[%s5974 + $0x18] sm:$0xff]
        %v5979 = vld [vmem:[%s5974 + $0x20] sm:$0xff]
        %v5980 = vld [vmem:[%s5974 + $0x28] sm:$0xff]
        %v5981 = vld [vmem:[%s5974 + $0x30] sm:$0xff]
        %v5982 = vld [vmem:[%s5974 + $0x38] sm:$0xff]
        %v5983 = vld [vmem:[%s5974 + $0x40] sm:$0xff]
        %v5985 = vsel %vm5246, %v5936, 0
        %v5988 = vsel %vm5246, %v5941, 0
        %v5991 = vsel %vm5246, %v5946, 0
        %v5994 = vsel %vm5246, %v5951, 0
        %v5997 = vsel %vm5246, %v5956, 0
        %v6000 = vsel %vm5246, %v5961, 0
        %v6003 = vsel %vm5246, %v5966, 0
        %v6006 = vsel %vm5246, %v5971, 0
        %6008 = vmatprep.subr.mxu0 0.0
        %6009 = vmatpush1.msra.mxu0 %v5975
        %6010 = vmatprep.subr.mxu0 0.0
        %6011 = vmatpush1.msra.mxu0 %v5976
        %6012 = vmatprep.subr.mxu0 0.0
        %6013 = vmatpush1.msra.mxu0 %v5977
        %6014 = vmatprep.subr.mxu0 0.0
        %6015 = vmatpush1.msra.mxu0 %v5978
        %6016 = vmatprep.subr.mxu0 0.0
        %6017 = vmatpush1.msra.mxu0 %v5979
        %6018 = vmatprep.subr.mxu0 0.0
        %6019 = vmatpush1.msra.mxu0 %v5980
        %6020 = vmatprep.subr.mxu0 0.0
        %6021 = vmatpush1.msra.mxu0 %v5981
        %6022 = vmatprep.subr.mxu0 0.0
        %6023 = vmatpush1.msra.mxu0 %v5982
        %6024 = vmatprep.subr.mxu0 0.0
        %6025 = vmatpush1.msra.mxu0 %v5983
        %6026 = vmatprep.subr.mxu0 0.0
        %6027 = vmatpush1.msra.mxu0 0.0
        %6028 = vmatprep.subr.mxu0 0.0
        %6029 = vmatpush1.msra.mxu0 0.0
        %6030 = vmatprep.subr.mxu0 0.0
        %6031 = vmatpush1.msra.mxu0 0.0
        %6032 = vmatprep.subr.mxu0 0.0
        %6033 = vmatpush1.msra.mxu0 0.0
        %6034 = vmatprep.subr.mxu0 0.0
        %6035 = vmatpush1.msra.mxu0 0.0
        %6036 = vmatprep.subr.mxu0 0.0
        %6037 = vmatpush1.msra.mxu0 0.0
        %6038 = vmatprep.subr.mxu0 0.0
        %6039 = vmatpush1.msra.mxu0 0.0
        %6040 = vmatprep.subr.mxu0 0.0
        %6041 = vmatpush1.msra.mxu0 0.0
        %6042 = vmatprep.subr.mxu0 0.0
        %6043 = vmatpush1.msra.mxu0 0.0
        %6044 = vmatprep.subr.mxu0 0.0
        %6045 = vmatpush1.msra.mxu0 0.0
        %6046 = vmatprep.subr.mxu0 0.0
        %6047 = vmatpush1.msra.mxu0 0.0
        %6048 = vmatprep.subr.mxu0 0.0
        %6049 = vmatpush1.msra.mxu0 0.0
        %6050 = vmatprep.subr.mxu0 0.0
        %6051 = vmatpush1.msra.mxu0 0.0
        %6052 = vmatprep.subr.mxu0 0.0
        %6053 = vmatpush1.msra.mxu0 0.0
        %6054 = vmatprep.subr.mxu0 0.0
        %6055 = vmatpush1.msra.mxu0 0.0
        %6056 = vmatprep.subr.mxu0 0.0
        %6057 = vmatpush1.msra.mxu0 0.0
        %6058 = vmatprep.subr.mxu0 0.0
        %6059 = vmatpush1.msra.mxu0 0.0
        %6060 = vmatprep.subr.mxu0 0.0
        %6061 = vmatpush1.msra.mxu0 0.0
        %6062 = vmatprep.subr.mxu0 0.0
        %6063 = vmatpush1.msra.mxu0 0.0
        %6064 = vmatprep.subr.mxu0 0.0
        %6065 = vmatpush1.msra.mxu0 0.0
        %6066 = vmatprep.subr.mxu0 0.0
        %6067 = vmatpush1.msra.mxu0 0.0
        %6068 = vmatprep.subr.mxu0 0.0
        %6069 = vmatpush1.msra.mxu0 0.0
        %6070 = vmatprep.subr.mxu0 0.0
        %6071 = vmatpush1.msra.mxu0 0.0
        %6072 = vmatprep.mubr.f32.mxu0 0.0
        %6073 = vmatmul.mubr.f32.gmra.mrb[0].mxu0 %v5985
        %v6074 = vpop.f32.mrb[0].mxu0
        %v6075 = vadd.f32 0.0, %v6074
        %v6076 = vpop.f32.mrb[0].mxu0
        %6077 = vmatprep.mubr.f32.mxu0 0.0
        %6078 = vmatmul.mubr.f32.gmra.mrb[0].mxu0 %v5988
        %v6079 = vpop.f32.mrb[0].mxu0
        %v6080 = vadd.f32 0.0, %v6079
        %v6081 = vpop.f32.mrb[0].mxu0
        %6082 = vmatprep.mubr.f32.mxu0 0.0
        %6083 = vmatmul.mubr.f32.gmra.mrb[0].mxu0 %v5991
        %v6084 = vpop.f32.mrb[0].mxu0
        %v6085 = vadd.f32 0.0, %v6084
        %v6086 = vpop.f32.mrb[0].mxu0
        %6087 = vmatprep.mubr.f32.mxu0 0.0
        %6088 = vmatmul.mubr.f32.gmra.mrb[0].mxu0 %v5994
        %v6089 = vpop.f32.mrb[0].mxu0
        %v6090 = vadd.f32 0.0, %v6089
        %v6091 = vpop.f32.mrb[0].mxu0
        %6092 = vmatprep.mubr.f32.mxu0 0.0
        %6093 = vmatmul.mubr.f32.gmra.mrb[0].mxu0 %v5997
        %v6094 = vpop.f32.mrb[0].mxu0
        %v6095 = vadd.f32 0.0, %v6094
        %v6096 = vpop.f32.mrb[0].mxu0
        %6097 = vmatprep.mubr.f32.mxu0 0.0
        %6098 = vmatmul.mubr.f32.gmra.mrb[0].mxu0 %v6000
        %v6099 = vpop.f32.mrb[0].mxu0
        %v6100 = vadd.f32 0.0, %v6099
        %v6101 = vpop.f32.mrb[0].mxu0
        %6102 = vmatprep.mubr.f32.mxu0 0.0
        %6103 = vmatmul.mubr.f32.gmra.mrb[0].mxu0 %v6003
        %v6104 = vpop.f32.mrb[0].mxu0
        %v6105 = vadd.f32 0.0, %v6104
        %v6106 = vpop.f32.mrb[0].mxu0
        %6107 = vmatprep.mubr.f32.mxu0 0.0
        %6108 = vmatmul.mubr.f32.gmra.mrb[0].mxu0 %v6006
        %v6109 = vpop.f32.mrb[0].mxu0
        %v6110 = vadd.f32 0.0, %v6109
        %v6111 = vpop.f32.mrb[0].mxu0
        %6112 = vdwg.mxu0
        %v6113 = vadd.f32 %v5805, %v6075
        %v6114 = vadd.f32 %v5806, %v6080
        %v6115 = vadd.f32 %v5807, %v6085
        %v6116 = vadd.f32 %v5808, %v6090
        %v6117 = vadd.f32 %v5809, %v6095
        %v6118 = vadd.f32 %v5810, %v6100
        %v6119 = vadd.f32 %v5811, %v6105
        %v6120 = vadd.f32 %v5812, %v6110
        %v6121 = vadd.s32 %v4904, 4
        %v6122 = vadd.s32 %v4905, 4
        %v6123 = vadd.s32 %v4906, 4
        %v6124 = vadd.s32 %v4907, 4
        %v6125 = vadd.s32 %v4908, 4
        %v6126 = vadd.s32 %v4909, 4
        %v6127 = vadd.s32 %v4910, 4
        %v6128 = vadd.s32 %v4911, 4
        %vm6129 = vcmp.eq.s32.totalorder %v2655, %v6121
        %vm6130 = vcmp.eq.s32.totalorder %v2655, %v6122
        %vm6131 = vcmp.eq.s32.totalorder %v2655, %v6123
        %vm6132 = vcmp.eq.s32.totalorder %v2655, %v6124
        %vm6133 = vcmp.eq.s32.totalorder %v2655, %v6125
        %vm6134 = vcmp.eq.s32.totalorder %v2655, %v6126
        %vm6135 = vcmp.eq.s32.totalorder %v2655, %v6127
        %vm6136 = vcmp.eq.s32.totalorder %v2655, %v6128
        %v6137 = vsel %vm6129, 1, 0
        %v6138 = vsel %vm6130, 1, 0
        %v6139 = vsel %vm6131, 1, 0
        %v6140 = vsel %vm6132, 1, 0
        %v6141 = vsel %vm6133, 1, 0
        %v6142 = vsel %vm6134, 1, 0
        %v6143 = vsel %vm6135, 1, 0
        %v6144 = vsel %vm6136, 1, 0
        %v6145 = vcvt.s32.f32 %v6137
        %v6146 = vcvt.s32.f32 %v6138
        %v6147 = vcvt.s32.f32 %v6139
        %v6148 = vcvt.s32.f32 %v6140
        %v6149 = vcvt.s32.f32 %v6141
        %v6150 = vcvt.s32.f32 %v6142
        %v6151 = vcvt.s32.f32 %v6143
        %v6152 = vcvt.s32.f32 %v6144
        %v6154 = vsel %vm4936, %v6145, 0
        %v6157 = vsel %vm4936, %v6146, 0
        %v6160 = vsel %vm4936, %v6147, 0
        %v6163 = vsel %vm4936, %v6148, 0
        %v6166 = vsel %vm4936, %v6149, 0
        %v6169 = vsel %vm4936, %v6150, 0
        %v6172 = vsel %vm4936, %v6151, 0
        %v6175 = vsel %vm4936, %v6152, 0
        %6177 = vmatprep.subr.mxu0 0.0
        %6178 = vmatpush1.msra.mxu0 %v4868
        %6179 = vmatprep.subr.mxu0 0.0
        %6180 = vmatpush1.msra.mxu0 %v4869
        %6181 = vmatprep.subr.mxu0 0.0
        %6182 = vmatpush1.msra.mxu0 %v4870
        %6183 = vmatprep.subr.mxu0 0.0
        %6184 = vmatpush1.msra.mxu0 %v4871
        %6185 = vmatprep.subr.mxu0 0.0
        %6186 = vmatpush1.msra.mxu0 %v4872
        %6187 = vmatprep.subr.mxu0 0.0
        %6188 = vmatpush1.msra.mxu0 %v4873
        %6189 = vmatprep.subr.mxu0 0.0
        %6190 = vmatpush1.msra.mxu0 %v4874
        %6191 = vmatprep.subr.mxu0 0.0
        %6192 = vmatpush1.msra.mxu0 %v4875
        %6193 = vmatprep.subr.mxu0 0.0
        %6194 = vmatpush1.msra.mxu0 %v4876
        %6195 = vmatprep.subr.mxu0 0.0
        %6196 = vmatpush1.msra.mxu0 %v4877
        %6197 = vmatprep.subr.mxu0 0.0
        %6198 = vmatpush1.msra.mxu0 %v4878
        %6199 = vmatprep.subr.mxu0 0.0
        %6200 = vmatpush1.msra.mxu0 %v4879
        %6201 = vmatprep.subr.mxu0 0.0
        %6202 = vmatpush1.msra.mxu0 0.0
        %6203 = vmatprep.subr.mxu0 0.0
        %6204 = vmatpush1.msra.mxu0 0.0
        %6205 = vmatprep.subr.mxu0 0.0
        %6206 = vmatpush1.msra.mxu0 0.0
        %6207 = vmatprep.subr.mxu0 0.0
        %6208 = vmatpush1.msra.mxu0 0.0
        %6209 = vmatprep.subr.mxu0 0.0
        %6210 = vmatpush1.msra.mxu0 0.0
        %6211 = vmatprep.subr.mxu0 0.0
        %6212 = vmatpush1.msra.mxu0 0.0
        %6213 = vmatprep.subr.mxu0 0.0
        %6214 = vmatpush1.msra.mxu0 0.0
        %6215 = vmatprep.subr.mxu0 0.0
        %6216 = vmatpush1.msra.mxu0 0.0
        %6217 = vmatprep.subr.mxu0 0.0
        %6218 = vmatpush1.msra.mxu0 0.0
        %6219 = vmatprep.subr.mxu0 0.0
        %6220 = vmatpush1.msra.mxu0 0.0
        %6221 = vmatprep.subr.mxu0 0.0
        %6222 = vmatpush1.msra.mxu0 0.0
        %6223 = vmatprep.subr.mxu0 0.0
        %6224 = vmatpush1.msra.mxu0 0.0
        %6225 = vmatprep.subr.mxu0 0.0
        %6226 = vmatpush1.msra.mxu0 0.0
        %6227 = vmatprep.subr.mxu0 0.0
        %6228 = vmatpush1.msra.mxu0 0.0
        %6229 = vmatprep.subr.mxu0 0.0
        %6230 = vmatpush1.msra.mxu0 0.0
        %6231 = vmatprep.subr.mxu0 0.0
        %6232 = vmatpush1.msra.mxu0 0.0
        %6233 = vmatprep.subr.mxu0 0.0
        %6234 = vmatpush1.msra.mxu0 0.0
        %6235 = vmatprep.subr.mxu0 0.0
        %6236 = vmatpush1.msra.mxu0 0.0
        %6237 = vmatprep.subr.mxu0 0.0
        %6238 = vmatpush1.msra.mxu0 0.0
        %6239 = vmatprep.subr.mxu0 0.0
        %6240 = vmatpush1.msra.mxu0 0.0
        %6241 = vmatprep.mubr.f32.mxu0 0.0
        %6242 = vmatmul.mubr.f32.gmra.mrb[0].mxu0 %v6154
        %v6243 = vpop.f32.mrb[0].mxu0
        %v6244 = vadd.f32 0.0, %v6243
        %v6245 = vpop.f32.mrb[0].mxu0
        %6246 = vmatprep.mubr.f32.mxu0 0.0
        %6247 = vmatmul.mubr.f32.gmra.mrb[0].mxu0 %v6157
        %v6248 = vpop.f32.mrb[0].mxu0
        %v6249 = vadd.f32 0.0, %v6248
        %v6250 = vpop.f32.mrb[0].mxu0
        %6251 = vmatprep.mubr.f32.mxu0 0.0
        %6252 = vmatmul.mubr.f32.gmra.mrb[0].mxu0 %v6160
        %v6253 = vpop.f32.mrb[0].mxu0
        %v6254 = vadd.f32 0.0, %v6253
        %v6255 = vpop.f32.mrb[0].mxu0
        %6256 = vmatprep.mubr.f32.mxu0 0.0
        %6257 = vmatmul.mubr.f32.gmra.mrb[0].mxu0 %v6163
        %v6258 = vpop.f32.mrb[0].mxu0
        %v6259 = vadd.f32 0.0, %v6258
        %v6260 = vpop.f32.mrb[0].mxu0
        %6261 = vmatprep.mubr.f32.mxu0 0.0
        %6262 = vmatmul.mubr.f32.gmra.mrb[0].mxu0 %v6166
        %v6263 = vpop.f32.mrb[0].mxu0
        %v6264 = vadd.f32 0.0, %v6263
        %v6265 = vpop.f32.mrb[0].mxu0
        %6266 = vmatprep.mubr.f32.mxu0 0.0
        %6267 = vmatmul.mubr.f32.gmra.mrb[0].mxu0 %v6169
        %v6268 = vpop.f32.mrb[0].mxu0
        %v6269 = vadd.f32 0.0, %v6268
        %v6270 = vpop.f32.mrb[0].mxu0
        %6271 = vmatprep.mubr.f32.mxu0 0.0
        %6272 = vmatmul.mubr.f32.gmra.mrb[0].mxu0 %v6172
        %v6273 = vpop.f32.mrb[0].mxu0
        %v6274 = vadd.f32 0.0, %v6273
        %v6275 = vpop.f32.mrb[0].mxu0
        %6276 = vmatprep.mubr.f32.mxu0 0.0
        %6277 = vmatmul.mubr.f32.gmra.mrb[0].mxu0 %v6175
        %v6278 = vpop.f32.mrb[0].mxu0
        %v6279 = vadd.f32 0.0, %v6278
        %v6280 = vpop.f32.mrb[0].mxu0
        %6281 = vdwg.mxu0
        %s6282 = scalar_lea.vmem %s5, 288
        %v6283 = vld [vmem:[%s6282] sm:$0xff]
        %v6284 = vld [vmem:[%s6282 + $0x8] sm:$0xff]
        %v6285 = vld [vmem:[%s6282 + $0x10] sm:$0xff]
        %v6286 = vld [vmem:[%s6282 + $0x18] sm:$0xff]
        %v6287 = vld [vmem:[%s6282 + $0x20] sm:$0xff]
        %v6288 = vld [vmem:[%s6282 + $0x28] sm:$0xff]
        %v6289 = vld [vmem:[%s6282 + $0x30] sm:$0xff]
        %v6290 = vld [vmem:[%s6282 + $0x38] sm:$0xff]
        %v6291 = vld [vmem:[%s6282 + $0x40] sm:$0xff]
        %v6293 = vsel %vm5246, %v6244, 0
        %v6296 = vsel %vm5246, %v6249, 0
        %v6299 = vsel %vm5246, %v6254, 0
        %v6302 = vsel %vm5246, %v6259, 0
        %v6305 = vsel %vm5246, %v6264, 0
        %v6308 = vsel %vm5246, %v6269, 0
        %v6311 = vsel %vm5246, %v6274, 0
        %v6314 = vsel %vm5246, %v6279, 0
        %6316 = vmatprep.subr.mxu0 0.0
        %6317 = vmatpush1.msra.mxu0 %v6283
        %6318 = vmatprep.subr.mxu0 0.0
        %6319 = vmatpush1.msra.mxu0 %v6284
        %6320 = vmatprep.subr.mxu0 0.0
        %6321 = vmatpush1.msra.mxu0 %v6285
        %6322 = vmatprep.subr.mxu0 0.0
        %6323 = vmatpush1.msra.mxu0 %v6286
        %6324 = vmatprep.subr.mxu0 0.0
        %6325 = vmatpush1.msra.mxu0 %v6287
        %6326 = vmatprep.subr.mxu0 0.0
        %6327 = vmatpush1.msra.mxu0 %v6288
        %6328 = vmatprep.subr.mxu0 0.0
        %6329 = vmatpush1.msra.mxu0 %v6289
        %6330 = vmatprep.subr.mxu0 0.0
        %6331 = vmatpush1.msra.mxu0 %v6290
        %6332 = vmatprep.subr.mxu0 0.0
        %6333 = vmatpush1.msra.mxu0 %v6291
        %6334 = vmatprep.subr.mxu0 0.0
        %6335 = vmatpush1.msra.mxu0 0.0
        %6336 = vmatprep.subr.mxu0 0.0
        %6337 = vmatpush1.msra.mxu0 0.0
        %6338 = vmatprep.subr.mxu0 0.0
        %6339 = vmatpush1.msra.mxu0 0.0
        %6340 = vmatprep.subr.mxu0 0.0
        %6341 = vmatpush1.msra.mxu0 0.0
        %6342 = vmatprep.subr.mxu0 0.0
        %6343 = vmatpush1.msra.mxu0 0.0
        %6344 = vmatprep.subr.mxu0 0.0
        %6345 = vmatpush1.msra.mxu0 0.0
        %6346 = vmatprep.subr.mxu0 0.0
        %6347 = vmatpush1.msra.mxu0 0.0
        %6348 = vmatprep.subr.mxu0 0.0
        %6349 = vmatpush1.msra.mxu0 0.0
        %6350 = vmatprep.subr.mxu0 0.0
        %6351 = vmatpush1.msra.mxu0 0.0
        %6352 = vmatprep.subr.mxu0 0.0
        %6353 = vmatpush1.msra.mxu0 0.0
        %6354 = vmatprep.subr.mxu0 0.0
        %6355 = vmatpush1.msra.mxu0 0.0
        %6356 = vmatprep.subr.mxu0 0.0
        %6357 = vmatpush1.msra.mxu0 0.0
        %6358 = vmatprep.subr.mxu0 0.0
        %6359 = vmatpush1.msra.mxu0 0.0
        %6360 = vmatprep.subr.mxu0 0.0
        %6361 = vmatpush1.msra.mxu0 0.0
        %6362 = vmatprep.subr.mxu0 0.0
        %6363 = vmatpush1.msra.mxu0 0.0
        %6364 = vmatprep.subr.mxu0 0.0
        %6365 = vmatpush1.msra.mxu0 0.0
        %6366 = vmatprep.subr.mxu0 0.0
        %6367 = vmatpush1.msra.mxu0 0.0
        %6368 = vmatprep.subr.mxu0 0.0
        %6369 = vmatpush1.msra.mxu0 0.0
        %6370 = vmatprep.subr.mxu0 0.0
        %6371 = vmatpush1.msra.mxu0 0.0
        %6372 = vmatprep.subr.mxu0 0.0
        %6373 = vmatpush1.msra.mxu0 0.0
        %6374 = vmatprep.subr.mxu0 0.0
        %6375 = vmatpush1.msra.mxu0 0.0
        %6376 = vmatprep.subr.mxu0 0.0
        %6377 = vmatpush1.msra.mxu0 0.0
        %6378 = vmatprep.subr.mxu0 0.0
        %6379 = vmatpush1.msra.mxu0 0.0
        %6380 = vmatprep.mubr.f32.mxu0 0.0
        %6381 = vmatmul.mubr.f32.gmra.mrb[0].mxu0 %v6293
        %v6382 = vpop.f32.mrb[0].mxu0
        %v6383 = vadd.f32 0.0, %v6382
        %v6384 = vpop.f32.mrb[0].mxu0
        %6385 = vmatprep.mubr.f32.mxu0 0.0
        %6386 = vmatmul.mubr.f32.gmra.mrb[0].mxu0 %v6296
        %v6387 = vpop.f32.mrb[0].mxu0
        %v6388 = vadd.f32 0.0, %v6387
        %v6389 = vpop.f32.mrb[0].mxu0
        %6390 = vmatprep.mubr.f32.mxu0 0.0
        %6391 = vmatmul.mubr.f32.gmra.mrb[0].mxu0 %v6299
        %v6392 = vpop.f32.mrb[0].mxu0
        %v6393 = vadd.f32 0.0, %v6392
        %v6394 = vpop.f32.mrb[0].mxu0
        %6395 = vmatprep.mubr.f32.mxu0 0.0
        %6396 = vmatmul.mubr.f32.gmra.mrb[0].mxu0 %v6302
        %v6397 = vpop.f32.mrb[0].mxu0
        %v6398 = vadd.f32 0.0, %v6397
        %v6399 = vpop.f32.mrb[0].mxu0
        %6400 = vmatprep.mubr.f32.mxu0 0.0
        %6401 = vmatmul.mubr.f32.gmra.mrb[0].mxu0 %v6305
        %v6402 = vpop.f32.mrb[0].mxu0
        %v6403 = vadd.f32 0.0, %v6402
        %v6404 = vpop.f32.mrb[0].mxu0
        %6405 = vmatprep.mubr.f32.mxu0 0.0
        %6406 = vmatmul.mubr.f32.gmra.mrb[0].mxu0 %v6308
        %v6407 = vpop.f32.mrb[0].mxu0
        %v6408 = vadd.f32 0.0, %v6407
        %v6409 = vpop.f32.mrb[0].mxu0
        %6410 = vmatprep.mubr.f32.mxu0 0.0
        %6411 = vmatmul.mubr.f32.gmra.mrb[0].mxu0 %v6311
        %v6412 = vpop.f32.mrb[0].mxu0
        %v6413 = vadd.f32 0.0, %v6412
        %v6414 = vpop.f32.mrb[0].mxu0
        %6415 = vmatprep.mubr.f32.mxu0 0.0
        %6416 = vmatmul.mubr.f32.gmra.mrb[0].mxu0 %v6314
        %v6417 = vpop.f32.mrb[0].mxu0
        %v6418 = vadd.f32 0.0, %v6417
        %v6419 = vpop.f32.mrb[0].mxu0
        %6420 = vdwg.mxu0
        %v6421 = vadd.f32 %v6113, %v6383
        %v6422 = vadd.f32 %v6114, %v6388
        %v6423 = vadd.f32 %v6115, %v6393
        %v6424 = vadd.f32 %v6116, %v6398
        %v6425 = vadd.f32 %v6117, %v6403
        %v6426 = vadd.f32 %v6118, %v6408
        %v6427 = vadd.f32 %v6119, %v6413
        %v6428 = vadd.f32 %v6120, %v6418
        %v6429 = vld [vmem:[%s6] sm:$0x1]
        %v6431 = vlaneseq
        %v6432 = vshrl.u32 %v6431, 7
        %v6433 = vsub.s32 0, %v6432
        %v6434 = vrot.slane %v6429, %v6433
        %v6436 = vadd.f32 %v6421, %v6434
        %v6437 = vadd.f32 %v6422, %v6434
        %v6438 = vadd.f32 %v6423, %v6434
        %v6439 = vadd.f32 %v6424, %v6434
        %v6440 = vadd.f32 %v6425, %v6434
        %v6441 = vadd.f32 %v6426, %v6434
        %v6442 = vadd.f32 %v6427, %v6434
        %v6443 = vadd.f32 %v6428, %v6434
        %v6444 = vmax.f32 %v6436, 0.0
        %v6445 = vmax.f32 %v6437, 0.0
        %v6446 = vmax.f32 %v6438, 0.0
        %v6447 = vmax.f32 %v6439, 0.0
        %v6448 = vmax.f32 %v6440, 0.0
        %v6449 = vmax.f32 %v6441, 0.0
        %v6450 = vmax.f32 %v6442, 0.0
        %v6451 = vmax.f32 %v6443, 0.0
        %v6452 = vld [vmem:[#allocation5] sm:$0x1]
        %v6453 = vld [vmem:[#allocation7] sm:$0x1]
        %v6454 = vmul.u32 %v2653, 8
        %vm6455 = vcmp.ge.s32.totalorder %v2655, %v6454
        %v6456 = vmul.u32 %v2660, 8
        %vm6457 = vcmp.lt.s32.totalorder %v2655, %v6456
        %vm6458 = vmand %vm6455, %vm6457
        %v6459 = vsel %vm6458, 1, 0
        %v6460 = vcvt.s32.f32 %v6459
        %v6461 = vmul.u32 %v2655, 8
        %vm6462 = vcmp.ge.s32.totalorder %v2653, %v6461
        %vm6463 = vcmp.ge.s32.totalorder %v2670, %v6461
        %vm6464 = vcmp.ge.s32.totalorder %v2671, %v6461
        %vm6465 = vcmp.ge.s32.totalorder %v2672, %v6461
        %vm6466 = vcmp.ge.s32.totalorder %v2673, %v6461
        %vm6467 = vcmp.ge.s32.totalorder %v2674, %v6461
        %vm6468 = vcmp.ge.s32.totalorder %v2675, %v6461
        %vm6469 = vcmp.ge.s32.totalorder %v2676, %v6461
        %v6470 = vmul.u32 %v2718, 8
        %vm6471 = vcmp.lt.s32.totalorder %v2653, %v6470
        %vm6472 = vcmp.lt.s32.totalorder %v2670, %v6470
        %vm6473 = vcmp.lt.s32.totalorder %v2671, %v6470
        %vm6474 = vcmp.lt.s32.totalorder %v2672, %v6470
        %vm6475 = vcmp.lt.s32.totalorder %v2673, %v6470
        %vm6476 = vcmp.lt.s32.totalorder %v2674, %v6470
        %vm6477 = vcmp.lt.s32.totalorder %v2675, %v6470
        %vm6478 = vcmp.lt.s32.totalorder %v2676, %v6470
        %vm6479 = vmand %vm6462, %vm6471
        %vm6480 = vmand %vm6463, %vm6472
        %vm6481 = vmand %vm6464, %vm6473
        %vm6482 = vmand %vm6465, %vm6474
        %vm6483 = vmand %vm6466, %vm6475
        %vm6484 = vmand %vm6467, %vm6476
        %vm6485 = vmand %vm6468, %vm6477
        %vm6486 = vmand %vm6469, %vm6478
        %v6487 = vsel %vm6479, 1, 0
        %v6488 = vsel %vm6480, 1, 0
        %v6489 = vsel %vm6481, 1, 0
        %v6490 = vsel %vm6482, 1, 0
        %v6491 = vsel %vm6483, 1, 0
        %v6492 = vsel %vm6484, 1, 0
        %v6493 = vsel %vm6485, 1, 0
        %v6494 = vsel %vm6486, 1, 0
        %v6495 = vcvt.s32.f32 %v6487
        %v6496 = vcvt.s32.f32 %v6488
        %v6497 = vcvt.s32.f32 %v6489
        %v6498 = vcvt.s32.f32 %v6490
        %v6499 = vcvt.s32.f32 %v6491
        %v6500 = vcvt.s32.f32 %v6492
        %v6501 = vcvt.s32.f32 %v6493
        %v6502 = vcvt.s32.f32 %v6494
        %v6504 = vsel %vm2816, %v6460, 0
        %6506 = vmatprep.subr.mxu0 0.0
        %6507 = vmatpush1.msra.mxu0 %v6444
        %6508 = vmatprep.subr.mxu0 0.0
        %6509 = vmatpush1.msra.mxu0 %v6445
        %6510 = vmatprep.subr.mxu0 0.0
        %6511 = vmatpush1.msra.mxu0 %v6446
        %6512 = vmatprep.subr.mxu0 0.0
        %6513 = vmatpush1.msra.mxu0 %v6447
        %6514 = vmatprep.subr.mxu0 0.0
        %6515 = vmatpush1.msra.mxu0 %v6448
        %6516 = vmatprep.subr.mxu0 0.0
        %6517 = vmatpush1.msra.mxu0 %v6449
        %6518 = vmatprep.subr.mxu0 0.0
        %6519 = vmatpush1.msra.mxu0 %v6450
        %6520 = vmatprep.subr.mxu0 0.0
        %6521 = vmatpush1.msra.mxu0 %v6451
        %6522 = vmatprep.subr.mxu0 0.0
        %6523 = vmatpush1.msra.mxu0 0.0
        %6524 = vmatprep.subr.mxu0 0.0
        %6525 = vmatpush1.msra.mxu0 0.0
        %6526 = vmatprep.subr.mxu0 0.0
        %6527 = vmatpush1.msra.mxu0 0.0
        %6528 = vmatprep.subr.mxu0 0.0
        %6529 = vmatpush1.msra.mxu0 0.0
        %6530 = vmatprep.subr.mxu0 0.0
        %6531 = vmatpush1.msra.mxu0 0.0
        %6532 = vmatprep.subr.mxu0 0.0
        %6533 = vmatpush1.msra.mxu0 0.0
        %6534 = vmatprep.subr.mxu0 0.0
        %6535 = vmatpush1.msra.mxu0 0.0
        %6536 = vmatprep.subr.mxu0 0.0
        %6537 = vmatpush1.msra.mxu0 0.0
        %6538 = vmatprep.subr.mxu0 0.0
        %6539 = vmatpush1.msra.mxu0 0.0
        %6540 = vmatprep.subr.mxu0 0.0
        %6541 = vmatpush1.msra.mxu0 0.0
        %6542 = vmatprep.subr.mxu0 0.0
        %6543 = vmatpush1.msra.mxu0 0.0
        %6544 = vmatprep.subr.mxu0 0.0
        %6545 = vmatpush1.msra.mxu0 0.0
        %6546 = vmatprep.subr.mxu0 0.0
        %6547 = vmatpush1.msra.mxu0 0.0
        %6548 = vmatprep.subr.mxu0 0.0
        %6549 = vmatpush1.msra.mxu0 0.0
        %6550 = vmatprep.subr.mxu0 0.0
        %6551 = vmatpush1.msra.mxu0 0.0
        %6552 = vmatprep.subr.mxu0 0.0
        %6553 = vmatpush1.msra.mxu0 0.0
        %6554 = vmatprep.subr.mxu0 0.0
        %6555 = vmatpush1.msra.mxu0 0.0
        %6556 = vmatprep.subr.mxu0 0.0
        %6557 = vmatpush1.msra.mxu0 0.0
        %6558 = vmatprep.subr.mxu0 0.0
        %6559 = vmatpush1.msra.mxu0 0.0
        %6560 = vmatprep.subr.mxu0 0.0
        %6561 = vmatpush1.msra.mxu0 0.0
        %6562 = vmatprep.subr.mxu0 0.0
        %6563 = vmatpush1.msra.mxu0 0.0
        %6564 = vmatprep.subr.mxu0 0.0
        %6565 = vmatpush1.msra.mxu0 0.0
        %6566 = vmatprep.subr.mxu0 0.0
        %6567 = vmatpush1.msra.mxu0 0.0
        %6568 = vmatprep.subr.mxu0 0.0
        %6569 = vmatpush1.msra.mxu0 0.0
        %6570 = vmatprep.mubr.f32.mxu0 0.0
        %6571 = vmatmul.mubr.f32.gmra.mrb[0].mxu0 %v6504
        %v6572 = vpop.f32.mrb[0].mxu0
        %v6573 = vadd.f32 0.0, %v6572
        %v6574 = vpop.f32.mrb[0].mxu0
        %6575 = vdwg.mxu0
        %v6576 = vsel %vm4936, %v6573, 0.0
        %6577 = vadd.xlane.f32.xlu0 %v6576
        %v6578 = vpop.xlane.xlu0 %6577
        %v6579 = vmul.f32 %v6444, %v6444
        %v6580 = vmul.f32 %v6445, %v6445
        %v6581 = vmul.f32 %v6446, %v6446
        %v6582 = vmul.f32 %v6447, %v6447
        %v6583 = vmul.f32 %v6448, %v6448
        %v6584 = vmul.f32 %v6449, %v6449
        %v6585 = vmul.f32 %v6450, %v6450
        %v6586 = vmul.f32 %v6451, %v6451
        %6587 = vmatprep.subr.mxu0 0.0
        %6588 = vmatpush1.msra.mxu0 %v6579
        %6589 = vmatprep.subr.mxu0 0.0
        %6590 = vmatpush1.msra.mxu0 %v6580
        %6591 = vmatprep.subr.mxu0 0.0
        %6592 = vmatpush1.msra.mxu0 %v6581
        %6593 = vmatprep.subr.mxu0 0.0
        %6594 = vmatpush1.msra.mxu0 %v6582
        %6595 = vmatprep.subr.mxu0 0.0
        %6596 = vmatpush1.msra.mxu0 %v6583
        %6597 = vmatprep.subr.mxu0 0.0
        %6598 = vmatpush1.msra.mxu0 %v6584
        %6599 = vmatprep.subr.mxu0 0.0
        %6600 = vmatpush1.msra.mxu0 %v6585
        %6601 = vmatprep.subr.mxu0 0.0
        %6602 = vmatpush1.msra.mxu0 %v6586
        %6603 = vmatprep.subr.mxu0 0.0
        %6604 = vmatpush1.msra.mxu0 0.0
        %6605 = vmatprep.subr.mxu0 0.0
        %6606 = vmatpush1.msra.mxu0 0.0
        %6607 = vmatprep.subr.mxu0 0.0
        %6608 = vmatpush1.msra.mxu0 0.0
        %6609 = vmatprep.subr.mxu0 0.0
        %6610 = vmatpush1.msra.mxu0 0.0
        %6611 = vmatprep.subr.mxu0 0.0
        %6612 = vmatpush1.msra.mxu0 0.0
        %6613 = vmatprep.subr.mxu0 0.0
        %6614 = vmatpush1.msra.mxu0 0.0
        %6615 = vmatprep.subr.mxu0 0.0
        %6616 = vmatpush1.msra.mxu0 0.0
        %6617 = vmatprep.subr.mxu0 0.0
        %6618 = vmatpush1.msra.mxu0 0.0
        %6619 = vmatprep.subr.mxu0 0.0
        %6620 = vmatpush1.msra.mxu0 0.0
        %6621 = vmatprep.subr.mxu0 0.0
        %6622 = vmatpush1.msra.mxu0 0.0
        %6623 = vmatprep.subr.mxu0 0.0
        %6624 = vmatpush1.msra.mxu0 0.0
        %6625 = vmatprep.subr.mxu0 0.0
        %6626 = vmatpush1.msra.mxu0 0.0
        %6627 = vmatprep.subr.mxu0 0.0
        %6628 = vmatpush1.msra.mxu0 0.0
        %6629 = vmatprep.subr.mxu0 0.0
        %6630 = vmatpush1.msra.mxu0 0.0
        %6631 = vmatprep.subr.mxu0 0.0
        %6632 = vmatpush1.msra.mxu0 0.0
        %6633 = vmatprep.subr.mxu0 0.0
        %6634 = vmatpush1.msra.mxu0 0.0
        %6635 = vmatprep.subr.mxu0 0.0
        %6636 = vmatpush1.msra.mxu0 0.0
        %6637 = vmatprep.subr.mxu0 0.0
        %6638 = vmatpush1.msra.mxu0 0.0
        %6639 = vmatprep.subr.mxu0 0.0
        %6640 = vmatpush1.msra.mxu0 0.0
        %6641 = vmatprep.subr.mxu0 0.0
        %6642 = vmatpush1.msra.mxu0 0.0
        %6643 = vmatprep.subr.mxu0 0.0
        %6644 = vmatpush1.msra.mxu0 0.0
        %6645 = vmatprep.subr.mxu0 0.0
        %6646 = vmatpush1.msra.mxu0 0.0
        %6647 = vmatprep.subr.mxu0 0.0
        %6648 = vmatpush1.msra.mxu0 0.0
        %6649 = vmatprep.subr.mxu0 0.0
        %6650 = vmatpush1.msra.mxu0 0.0
        %6651 = vmatprep.mubr.f32.mxu0 0.0
        %6652 = vmatmul.mubr.f32.gmra.mrb[0].mxu0 %v6504
        %v6653 = vpop.f32.mrb[0].mxu0
        %v6654 = vadd.f32 0.0, %v6653
        %v6655 = vpop.f32.mrb[0].mxu0
        %6656 = vdwg.mxu0
        %v6657 = vsel %vm4936, %v6654, 0.0
        %6658 = vadd.xlane.f32.xlu0 %v6657
        %v6659 = vpop.xlane.xlu0 %6658
        %v6660 = vrcp.pop 768.0
        %v6661 = vmul.f32 %v6578, %v6660
        %v6662 = vmul.f32 %v6661, 768.0
        %v6663 = vmul.f32 %v6662, %v6661
        %v6664 = vsub.f32 %v6659, %v6663
        %v6665 = vrcp.pop 767.0
        %v6666 = vmul.f32 %v6664, %v6665
        %v6667 = vmax.f32 %v6666, 0.0
        %v6668 = vrsqrt.pop %v6667
        %v6669 = vmul.f32 %v6667, %v6668
        %vm6670 = vcmp.eq.f32.partialorder %v6667, inf
        %v6671 = vsel %vm6670, %v6667, %v6669
        %vm6672 = vcmp.eq.f32.partialorder %v6667, 0.0
        %v6673 = vand.u32 %v6667, 2147483648
        %v6674 = vsel %vm6672, %v6673, %v6671
        %v6675 = vadd.f32 %v6674, 1e-06
        %v6676 = vrcp.pop %v6675
        %v6677 = vmul.f32 1.0, %v6676
        %v6679 = vsel %vm3037, %v6495, 0
        %v6682 = vsel %vm3037, %v6496, 0
        %v6685 = vsel %vm3037, %v6497, 0
        %v6688 = vsel %vm3037, %v6498, 0
        %v6691 = vsel %vm3037, %v6499, 0
        %v6694 = vsel %vm3037, %v6500, 0
        %v6697 = vsel %vm3037, %v6501, 0
        %v6700 = vsel %vm3037, %v6502, 0
        %6702 = vmatprep.subr.mxu0 0.0
        %6703 = vmatpush1.msra.mxu0 %v6661
        %6704 = vmatprep.subr.mxu0 0.0
        %6705 = vmatpush1.msra.mxu0 0.0
        %6706 = vmatprep.subr.mxu0 0.0
        %6707 = vmatpush1.msra.mxu0 0.0
        %6708 = vmatprep.subr.mxu0 0.0
        %6709 = vmatpush1.msra.mxu0 0.0
        %6710 = vmatprep.subr.mxu0 0.0
        %6711 = vmatpush1.msra.mxu0 0.0
        %6712 = vmatprep.subr.mxu0 0.0
        %6713 = vmatpush1.msra.mxu0 0.0
        %6714 = vmatprep.subr.mxu0 0.0
        %6715 = vmatpush1.msra.mxu0 0.0
        %6716 = vmatprep.subr.mxu0 0.0
        %6717 = vmatpush1.msra.mxu0 0.0
        %6718 = vmatprep.subr.mxu0 0.0
        %6719 = vmatpush1.msra.mxu0 0.0
        %6720 = vmatprep.subr.mxu0 0.0
        %6721 = vmatpush1.msra.mxu0 0.0
        %6722 = vmatprep.subr.mxu0 0.0
        %6723 = vmatpush1.msra.mxu0 0.0
        %6724 = vmatprep.subr.mxu0 0.0
        %6725 = vmatpush1.msra.mxu0 0.0
        %6726 = vmatprep.subr.mxu0 0.0
        %6727 = vmatpush1.msra.mxu0 0.0
        %6728 = vmatprep.subr.mxu0 0.0
        %6729 = vmatpush1.msra.mxu0 0.0
        %6730 = vmatprep.subr.mxu0 0.0
        %6731 = vmatpush1.msra.mxu0 0.0
        %6732 = vmatprep.subr.mxu0 0.0
        %6733 = vmatpush1.msra.mxu0 0.0
        %6734 = vmatprep.subr.mxu0 0.0
        %6735 = vmatpush1.msra.mxu0 0.0
        %6736 = vmatprep.subr.mxu0 0.0
        %6737 = vmatpush1.msra.mxu0 0.0
        %6738 = vmatprep.subr.mxu0 0.0
        %6739 = vmatpush1.msra.mxu0 0.0
        %6740 = vmatprep.subr.mxu0 0.0
        %6741 = vmatpush1.msra.mxu0 0.0
        %6742 = vmatprep.subr.mxu0 0.0
        %6743 = vmatpush1.msra.mxu0 0.0
        %6744 = vmatprep.subr.mxu0 0.0
        %6745 = vmatpush1.msra.mxu0 0.0
        %6746 = vmatprep.subr.mxu0 0.0
        %6747 = vmatpush1.msra.mxu0 0.0
        %6748 = vmatprep.subr.mxu0 0.0
        %6749 = vmatpush1.msra.mxu0 0.0
        %6750 = vmatprep.subr.mxu0 0.0
        %6751 = vmatpush1.msra.mxu0 0.0
        %6752 = vmatprep.subr.mxu0 0.0
        %6753 = vmatpush1.msra.mxu0 0.0
        %6754 = vmatprep.subr.mxu0 0.0
        %6755 = vmatpush1.msra.mxu0 0.0
        %6756 = vmatprep.subr.mxu0 0.0
        %6757 = vmatpush1.msra.mxu0 0.0
        %6758 = vmatprep.subr.mxu0 0.0
        %6759 = vmatpush1.msra.mxu0 0.0
        %6760 = vmatprep.subr.mxu0 0.0
        %6761 = vmatpush1.msra.mxu0 0.0
        %6762 = vmatprep.subr.mxu0 0.0
        %6763 = vmatpush1.msra.mxu0 0.0
        %6764 = vmatprep.subr.mxu0 0.0
        %6765 = vmatpush1.msra.mxu0 0.0
        %6766 = vmatprep.mubr.f32.mxu0 0.0
        %6767 = vmatmul.mubr.f32.gmra.mrb[0].mxu0 %v6679
        %v6768 = vpop.f32.mrb[0].mxu0
        %v6769 = vadd.f32 0.0, %v6768
        %v6770 = vpop.f32.mrb[0].mxu0
        %6771 = vmatprep.mubr.f32.mxu0 0.0
        %6772 = vmatmul.mubr.f32.gmra.mrb[0].mxu0 %v6682
        %v6773 = vpop.f32.mrb[0].mxu0
        %v6774 = vadd.f32 0.0, %v6773
        %v6775 = vpop.f32.mrb[0].mxu0
        %6776 = vmatprep.mubr.f32.mxu0 0.0
        %6777 = vmatmul.mubr.f32.gmra.mrb[0].mxu0 %v6685
        %v6778 = vpop.f32.mrb[0].mxu0
        %v6779 = vadd.f32 0.0, %v6778
        %v6780 = vpop.f32.mrb[0].mxu0
        %6781 = vmatprep.mubr.f32.mxu0 0.0
        %6782 = vmatmul.mubr.f32.gmra.mrb[0].mxu0 %v6688
        %v6783 = vpop.f32.mrb[0].mxu0
        %v6784 = vadd.f32 0.0, %v6783
        %v6785 = vpop.f32.mrb[0].mxu0
        %6786 = vmatprep.mubr.f32.mxu0 0.0
        %6787 = vmatmul.mubr.f32.gmra.mrb[0].mxu0 %v6691
        %v6788 = vpop.f32.mrb[0].mxu0
        %v6789 = vadd.f32 0.0, %v6788
        %v6790 = vpop.f32.mrb[0].mxu0
        %6791 = vmatprep.mubr.f32.mxu0 0.0
        %6792 = vmatmul.mubr.f32.gmra.mrb[0].mxu0 %v6694
        %v6793 = vpop.f32.mrb[0].mxu0
        %v6794 = vadd.f32 0.0, %v6793
        %v6795 = vpop.f32.mrb[0].mxu0
        %6796 = vmatprep.mubr.f32.mxu0 0.0
        %6797 = vmatmul.mubr.f32.gmra.mrb[0].mxu0 %v6697
        %v6798 = vpop.f32.mrb[0].mxu0
        %v6799 = vadd.f32 0.0, %v6798
        %v6800 = vpop.f32.mrb[0].mxu0
        %6801 = vmatprep.mubr.f32.mxu0 0.0
        %6802 = vmatmul.mubr.f32.gmra.mrb[0].mxu0 %v6700
        %v6803 = vpop.f32.mrb[0].mxu0
        %v6804 = vadd.f32 0.0, %v6803
        %v6805 = vpop.f32.mrb[0].mxu0
        %6806 = vdwg.mxu0
        %6807 = vmatprep.subr.mxu0 0.0
        %6808 = vmatpush1.msra.mxu0 %v6677
        %6809 = vmatprep.subr.mxu0 0.0
        %6810 = vmatpush1.msra.mxu0 0.0
        %6811 = vmatprep.subr.mxu0 0.0
        %6812 = vmatpush1.msra.mxu0 0.0
        %6813 = vmatprep.subr.mxu0 0.0
        %6814 = vmatpush1.msra.mxu0 0.0
        %6815 = vmatprep.subr.mxu0 0.0
        %6816 = vmatpush1.msra.mxu0 0.0
        %6817 = vmatprep.subr.mxu0 0.0
        %6818 = vmatpush1.msra.mxu0 0.0
        %6819 = vmatprep.subr.mxu0 0.0
        %6820 = vmatpush1.msra.mxu0 0.0
        %6821 = vmatprep.subr.mxu0 0.0
        %6822 = vmatpush1.msra.mxu0 0.0
        %6823 = vmatprep.subr.mxu0 0.0
        %6824 = vmatpush1.msra.mxu0 0.0
        %6825 = vmatprep.subr.mxu0 0.0
        %6826 = vmatpush1.msra.mxu0 0.0
        %6827 = vmatprep.subr.mxu0 0.0
        %6828 = vmatpush1.msra.mxu0 0.0
        %6829 = vmatprep.subr.mxu0 0.0
        %6830 = vmatpush1.msra.mxu0 0.0
        %6831 = vmatprep.subr.mxu0 0.0
        %6832 = vmatpush1.msra.mxu0 0.0
        %6833 = vmatprep.subr.mxu0 0.0
        %6834 = vmatpush1.msra.mxu0 0.0
        %6835 = vmatprep.subr.mxu0 0.0
        %6836 = vmatpush1.msra.mxu0 0.0
        %6837 = vmatprep.subr.mxu0 0.0
        %6838 = vmatpush1.msra.mxu0 0.0
        %6839 = vmatprep.subr.mxu0 0.0
        %6840 = vmatpush1.msra.mxu0 0.0
        %6841 = vmatprep.subr.mxu0 0.0
        %6842 = vmatpush1.msra.mxu0 0.0
        %6843 = vmatprep.subr.mxu0 0.0
        %6844 = vmatpush1.msra.mxu0 0.0
        %6845 = vmatprep.subr.mxu0 0.0
        %6846 = vmatpush1.msra.mxu0 0.0
        %6847 = vmatprep.subr.mxu0 0.0
        %6848 = vmatpush1.msra.mxu0 0.0
        %6849 = vmatprep.subr.mxu0 0.0
        %6850 = vmatpush1.msra.mxu0 0.0
        %6851 = vmatprep.subr.mxu0 0.0
        %6852 = vmatpush1.msra.mxu0 0.0
        %6853 = vmatprep.subr.mxu0 0.0
        %6854 = vmatpush1.msra.mxu0 0.0
        %6855 = vmatprep.subr.mxu0 0.0
        %6856 = vmatpush1.msra.mxu0 0.0
        %6857 = vmatprep.subr.mxu0 0.0
        %6858 = vmatpush1.msra.mxu0 0.0
        %6859 = vmatprep.subr.mxu0 0.0
        %6860 = vmatpush1.msra.mxu0 0.0
        %6861 = vmatprep.subr.mxu0 0.0
        %6862 = vmatpush1.msra.mxu0 0.0
        %6863 = vmatprep.subr.mxu0 0.0
        %6864 = vmatpush1.msra.mxu0 0.0
        %6865 = vmatprep.subr.mxu0 0.0
        %6866 = vmatpush1.msra.mxu0 0.0
        %6867 = vmatprep.subr.mxu0 0.0
        %6868 = vmatpush1.msra.mxu0 0.0
        %6869 = vmatprep.subr.mxu0 0.0
        %6870 = vmatpush1.msra.mxu0 0.0
        %6871 = vmatprep.mubr.f32.mxu0 0.0
        %6872 = vmatmul.mubr.f32.gmra.mrb[0].mxu0 %v6679
        %v6873 = vpop.f32.mrb[0].mxu0
        %v6874 = vadd.f32 0.0, %v6873
        %v6875 = vpop.f32.mrb[0].mxu0
        %6876 = vmatprep.mubr.f32.mxu0 0.0
        %6877 = vmatmul.mubr.f32.gmra.mrb[0].mxu0 %v6682
        %v6878 = vpop.f32.mrb[0].mxu0
        %v6879 = vadd.f32 0.0, %v6878
        %v6880 = vpop.f32.mrb[0].mxu0
        %6881 = vmatprep.mubr.f32.mxu0 0.0
        %6882 = vmatmul.mubr.f32.gmra.mrb[0].mxu0 %v6685
        %v6883 = vpop.f32.mrb[0].mxu0
        %v6884 = vadd.f32 0.0, %v6883
        %v6885 = vpop.f32.mrb[0].mxu0
        %6886 = vmatprep.mubr.f32.mxu0 0.0
        %6887 = vmatmul.mubr.f32.gmra.mrb[0].mxu0 %v6688
        %v6888 = vpop.f32.mrb[0].mxu0
        %v6889 = vadd.f32 0.0, %v6888
        %v6890 = vpop.f32.mrb[0].mxu0
        %6891 = vmatprep.mubr.f32.mxu0 0.0
        %6892 = vmatmul.mubr.f32.gmra.mrb[0].mxu0 %v6691
        %v6893 = vpop.f32.mrb[0].mxu0
        %v6894 = vadd.f32 0.0, %v6893
        %v6895 = vpop.f32.mrb[0].mxu0
        %6896 = vmatprep.mubr.f32.mxu0 0.0
        %6897 = vmatmul.mubr.f32.gmra.mrb[0].mxu0 %v6694
        %v6898 = vpop.f32.mrb[0].mxu0
        %v6899 = vadd.f32 0.0, %v6898
        %v6900 = vpop.f32.mrb[0].mxu0
        %6901 = vmatprep.mubr.f32.mxu0 0.0
        %6902 = vmatmul.mubr.f32.gmra.mrb[0].mxu0 %v6697
        %v6903 = vpop.f32.mrb[0].mxu0
        %v6904 = vadd.f32 0.0, %v6903
        %v6905 = vpop.f32.mrb[0].mxu0
        %6906 = vmatprep.mubr.f32.mxu0 0.0
        %6907 = vmatmul.mubr.f32.gmra.mrb[0].mxu0 %v6700
        %v6908 = vpop.f32.mrb[0].mxu0
        %v6909 = vadd.f32 0.0, %v6908
        %v6910 = vpop.f32.mrb[0].mxu0
        %6911 = vdwg.mxu0
        %6913 = vset.pattern.permute.xlu0 0
        %6914 = vperm.xlu0 %6913, %v6769
        %v6915 = vpop.permute.xlu0 %6914
        %6918 = vset.pattern.permute.xlu0 0
        %6919 = vperm.xlu0 %6918, %v6774
        %v6920 = vpop.permute.xlu0 %6919
        %6923 = vset.pattern.permute.xlu0 0
        %6924 = vperm.xlu0 %6923, %v6779
        %v6925 = vpop.permute.xlu0 %6924
        %6928 = vset.pattern.permute.xlu0 0
        %6929 = vperm.xlu0 %6928, %v6784
        %v6930 = vpop.permute.xlu0 %6929
        %6933 = vset.pattern.permute.xlu0 0
        %6934 = vperm.xlu0 %6933, %v6789
        %v6935 = vpop.permute.xlu0 %6934
        %6938 = vset.pattern.permute.xlu0 0
        %6939 = vperm.xlu0 %6938, %v6794
        %v6940 = vpop.permute.xlu0 %6939
        %6943 = vset.pattern.permute.xlu0 0
        %6944 = vperm.xlu0 %6943, %v6799
        %v6945 = vpop.permute.xlu0 %6944
        %6948 = vset.pattern.permute.xlu0 0
        %6949 = vperm.xlu0 %6948, %v6804
        %v6950 = vpop.permute.xlu0 %6949
        %v6952 = vsub.f32 %v6444, %v6915
        %v6953 = vsub.f32 %v6445, %v6920
        %v6954 = vsub.f32 %v6446, %v6925
        %v6955 = vsub.f32 %v6447, %v6930
        %v6956 = vsub.f32 %v6448, %v6935
        %v6957 = vsub.f32 %v6449, %v6940
        %v6958 = vsub.f32 %v6450, %v6945
        %v6959 = vsub.f32 %v6451, %v6950
        %6961 = vset.pattern.permute.xlu0 0
        %6962 = vperm.xlu0 %6961, %v6874
        %v6963 = vpop.permute.xlu0 %6962
        %6966 = vset.pattern.permute.xlu0 0
        %6967 = vperm.xlu0 %6966, %v6879
        %v6968 = vpop.permute.xlu0 %6967
        %6971 = vset.pattern.permute.xlu0 0
        %6972 = vperm.xlu0 %6971, %v6884
        %v6973 = vpop.permute.xlu0 %6972
        %6976 = vset.pattern.permute.xlu0 0
        %6977 = vperm.xlu0 %6976, %v6889
        %v6978 = vpop.permute.xlu0 %6977
        %6981 = vset.pattern.permute.xlu0 0
        %6982 = vperm.xlu0 %6981, %v6894
        %v6983 = vpop.permute.xlu0 %6982
        %6986 = vset.pattern.permute.xlu0 0
        %6987 = vperm.xlu0 %6986, %v6899
        %v6988 = vpop.permute.xlu0 %6987
        %6991 = vset.pattern.permute.xlu0 0
        %6992 = vperm.xlu0 %6991, %v6904
        %v6993 = vpop.permute.xlu0 %6992
        %6996 = vset.pattern.permute.xlu0 0
        %6997 = vperm.xlu0 %6996, %v6909
        %v6998 = vpop.permute.xlu0 %6997
        %v7000 = vmul.f32 %v6952, %v6963
        %v7001 = vmul.f32 %v6953, %v6968
        %v7002 = vmul.f32 %v6954, %v6973
        %v7003 = vmul.f32 %v6955, %v6978
        %v7004 = vmul.f32 %v6956, %v6983
        %v7005 = vmul.f32 %v6957, %v6988
        %v7006 = vmul.f32 %v6958, %v6993
        %v7007 = vmul.f32 %v6959, %v6998
        %v7009 = vlaneseq
        %v7010 = vshrl.u32 %v7009, 7
        %v7011 = vsub.s32 0, %v7010
        %v7012 = vrot.slane %v6452, %v7011
        %v7014 = vmul.f32 %v7000, %v7012
        %v7015 = vmul.f32 %v7001, %v7012
        %v7016 = vmul.f32 %v7002, %v7012
        %v7017 = vmul.f32 %v7003, %v7012
        %v7018 = vmul.f32 %v7004, %v7012
        %v7019 = vmul.f32 %v7005, %v7012
        %v7020 = vmul.f32 %v7006, %v7012
        %v7021 = vmul.f32 %v7007, %v7012
        %v7023 = vlaneseq
        %v7024 = vshrl.u32 %v7023, 7
        %v7025 = vsub.s32 0, %v7024
        %v7026 = vrot.slane %v6453, %v7025
        %v7028 = vadd.f32 %v7014, %v7026
        %v7029 = vadd.f32 %v7015, %v7026
        %v7030 = vadd.f32 %v7016, %v7026
        %v7031 = vadd.f32 %v7017, %v7026
        %v7032 = vadd.f32 %v7018, %v7026
        %v7033 = vadd.f32 %v7019, %v7026
        %v7034 = vadd.f32 %v7020, %v7026
        %v7035 = vadd.f32 %v7021, %v7026
        %v7037 = vsel %vm2816, %v3994, 0
        %v7040 = vsel %vm2816, %v3996, 0
        %v7043 = vsel %vm2816, %v3998, 0
        %v7046 = vsel %vm2816, %v4000, 0
        %7048 = vmatprep.subr.mxu0 0.0
        %7049 = vmatpush1.msra.mxu0 %v7028
        %7050 = vmatprep.subr.mxu0 0.0
        %7051 = vmatpush1.msra.mxu0 %v7029
        %7052 = vmatprep.subr.mxu0 0.0
        %7053 = vmatpush1.msra.mxu0 %v7030
        %7054 = vmatprep.subr.mxu0 0.0
        %7055 = vmatpush1.msra.mxu0 %v7031
        %7056 = vmatprep.subr.mxu0 0.0
        %7057 = vmatpush1.msra.mxu0 %v7032
        %7058 = vmatprep.subr.mxu0 0.0
        %7059 = vmatpush1.msra.mxu0 %v7033
        %7060 = vmatprep.subr.mxu0 0.0
        %7061 = vmatpush1.msra.mxu0 %v7034
        %7062 = vmatprep.subr.mxu0 0.0
        %7063 = vmatpush1.msra.mxu0 %v7035
        %7064 = vmatprep.subr.mxu0 0.0
        %7065 = vmatpush1.msra.mxu0 0.0
        %7066 = vmatprep.subr.mxu0 0.0
        %7067 = vmatpush1.msra.mxu0 0.0
        %7068 = vmatprep.subr.mxu0 0.0
        %7069 = vmatpush1.msra.mxu0 0.0
        %7070 = vmatprep.subr.mxu0 0.0
        %7071 = vmatpush1.msra.mxu0 0.0
        %7072 = vmatprep.subr.mxu0 0.0
        %7073 = vmatpush1.msra.mxu0 0.0
        %7074 = vmatprep.subr.mxu0 0.0
        %7075 = vmatpush1.msra.mxu0 0.0
        %7076 = vmatprep.subr.mxu0 0.0
        %7077 = vmatpush1.msra.mxu0 0.0
        %7078 = vmatprep.subr.mxu0 0.0
        %7079 = vmatpush1.msra.mxu0 0.0
        %7080 = vmatprep.subr.mxu0 0.0
        %7081 = vmatpush1.msra.mxu0 0.0
        %7082 = vmatprep.subr.mxu0 0.0
        %7083 = vmatpush1.msra.mxu0 0.0
        %7084 = vmatprep.subr.mxu0 0.0
        %7085 = vmatpush1.msra.mxu0 0.0
        %7086 = vmatprep.subr.mxu0 0.0
        %7087 = vmatpush1.msra.mxu0 0.0
        %7088 = vmatprep.subr.mxu0 0.0
        %7089 = vmatpush1.msra.mxu0 0.0
        %7090 = vmatprep.subr.mxu0 0.0
        %7091 = vmatpush1.msra.mxu0 0.0
        %7092 = vmatprep.subr.mxu0 0.0
        %7093 = vmatpush1.msra.mxu0 0.0
        %7094 = vmatprep.subr.mxu0 0.0
        %7095 = vmatpush1.msra.mxu0 0.0
        %7096 = vmatprep.subr.mxu0 0.0
        %7097 = vmatpush1.msra.mxu0 0.0
        %7098 = vmatprep.subr.mxu0 0.0
        %7099 = vmatpush1.msra.mxu0 0.0
        %7100 = vmatprep.subr.mxu0 0.0
        %7101 = vmatpush1.msra.mxu0 0.0
        %7102 = vmatprep.subr.mxu0 0.0
        %7103 = vmatpush1.msra.mxu0 0.0
        %7104 = vmatprep.subr.mxu0 0.0
        %7105 = vmatpush1.msra.mxu0 0.0
        %7106 = vmatprep.subr.mxu0 0.0
        %7107 = vmatpush1.msra.mxu0 0.0
        %7108 = vmatprep.subr.mxu0 0.0
        %7109 = vmatpush1.msra.mxu0 0.0
        %7110 = vmatprep.subr.mxu0 0.0
        %7111 = vmatpush1.msra.mxu0 0.0
        %7112 = vmatprep.mubr.f32.mxu0 0.0
        %7113 = vmatmul.mubr.f32.gmra.mrb[0].mxu0 %v7037
        %v7114 = vpop.f32.mrb[0].mxu0
        %v7115 = vadd.f32 0.0, %v7114
        %v7116 = vpop.f32.mrb[0].mxu0
        %7117 = vmatprep.mubr.f32.mxu0 0.0
        %7118 = vmatmul.mubr.f32.gmra.mrb[0].mxu0 %v7040
        %v7119 = vpop.f32.mrb[0].mxu0
        %v7120 = vadd.f32 0.0, %v7119
        %v7121 = vpop.f32.mrb[0].mxu0
        %7122 = vmatprep.mubr.f32.mxu0 0.0
        %7123 = vmatmul.mubr.f32.gmra.mrb[0].mxu0 %v7043
        %v7124 = vpop.f32.mrb[0].mxu0
        %v7125 = vadd.f32 0.0, %v7124
        %v7126 = vpop.f32.mrb[0].mxu0
        %7127 = vmatprep.mubr.f32.mxu0 0.0
        %7128 = vmatmul.mubr.f32.gmra.mrb[0].mxu0 %v7046
        %v7129 = vpop.f32.mrb[0].mxu0
        %v7130 = vadd.f32 0.0, %v7129
        %v7131 = vpop.f32.mrb[0].mxu0
        %7132 = vdwg.mxu0
        %v7134 = vsel %vm2816, %v4078, 0
        %v7137 = vsel %vm2816, %v4080, 0
        %v7140 = vsel %vm2816, %v4082, 0
        %v7143 = vsel %vm2816, %v4084, 0
        %7145 = vmatprep.subr.mxu0 0.0
        %7146 = vmatpush1.msra.mxu0 %v7028
        %7147 = vmatprep.subr.mxu0 0.0
        %7148 = vmatpush1.msra.mxu0 %v7029
        %7149 = vmatprep.subr.mxu0 0.0
        %7150 = vmatpush1.msra.mxu0 %v7030
        %7151 = vmatprep.subr.mxu0 0.0
        %7152 = vmatpush1.msra.mxu0 %v7031
        %7153 = vmatprep.subr.mxu0 0.0
        %7154 = vmatpush1.msra.mxu0 %v7032
        %7155 = vmatprep.subr.mxu0 0.0
        %7156 = vmatpush1.msra.mxu0 %v7033
        %7157 = vmatprep.subr.mxu0 0.0
        %7158 = vmatpush1.msra.mxu0 %v7034
        %7159 = vmatprep.subr.mxu0 0.0
        %7160 = vmatpush1.msra.mxu0 %v7035
        %7161 = vmatprep.subr.mxu0 0.0
        %7162 = vmatpush1.msra.mxu0 0.0
        %7163 = vmatprep.subr.mxu0 0.0
        %7164 = vmatpush1.msra.mxu0 0.0
        %7165 = vmatprep.subr.mxu0 0.0
        %7166 = vmatpush1.msra.mxu0 0.0
        %7167 = vmatprep.subr.mxu0 0.0
        %7168 = vmatpush1.msra.mxu0 0.0
        %7169 = vmatprep.subr.mxu0 0.0
        %7170 = vmatpush1.msra.mxu0 0.0
        %7171 = vmatprep.subr.mxu0 0.0
        %7172 = vmatpush1.msra.mxu0 0.0
        %7173 = vmatprep.subr.mxu0 0.0
        %7174 = vmatpush1.msra.mxu0 0.0
        %7175 = vmatprep.subr.mxu0 0.0
        %7176 = vmatpush1.msra.mxu0 0.0
        %7177 = vmatprep.subr.mxu0 0.0
        %7178 = vmatpush1.msra.mxu0 0.0
        %7179 = vmatprep.subr.mxu0 0.0
        %7180 = vmatpush1.msra.mxu0 0.0
        %7181 = vmatprep.subr.mxu0 0.0
        %7182 = vmatpush1.msra.mxu0 0.0
        %7183 = vmatprep.subr.mxu0 0.0
        %7184 = vmatpush1.msra.mxu0 0.0
        %7185 = vmatprep.subr.mxu0 0.0
        %7186 = vmatpush1.msra.mxu0 0.0
        %7187 = vmatprep.subr.mxu0 0.0
        %7188 = vmatpush1.msra.mxu0 0.0
        %7189 = vmatprep.subr.mxu0 0.0
        %7190 = vmatpush1.msra.mxu0 0.0
        %7191 = vmatprep.subr.mxu0 0.0
        %7192 = vmatpush1.msra.mxu0 0.0
        %7193 = vmatprep.subr.mxu0 0.0
        %7194 = vmatpush1.msra.mxu0 0.0
        %7195 = vmatprep.subr.mxu0 0.0
        %7196 = vmatpush1.msra.mxu0 0.0
        %7197 = vmatprep.subr.mxu0 0.0
        %7198 = vmatpush1.msra.mxu0 0.0
        %7199 = vmatprep.subr.mxu0 0.0
        %7200 = vmatpush1.msra.mxu0 0.0
        %7201 = vmatprep.subr.mxu0 0.0
        %7202 = vmatpush1.msra.mxu0 0.0
        %7203 = vmatprep.subr.mxu0 0.0
        %7204 = vmatpush1.msra.mxu0 0.0
        %7205 = vmatprep.subr.mxu0 0.0
        %7206 = vmatpush1.msra.mxu0 0.0
        %7207 = vmatprep.subr.mxu0 0.0
        %7208 = vmatpush1.msra.mxu0 0.0
        %7209 = vmatprep.mubr.f32.mxu0 0.0
        %7210 = vmatmul.mubr.f32.gmra.mrb[0].mxu0 %v7134
        %v7211 = vpop.f32.mrb[0].mxu0
        %v7212 = vadd.f32 0.0, %v7211
        %v7213 = vpop.f32.mrb[0].mxu0
        %7214 = vmatprep.mubr.f32.mxu0 0.0
        %7215 = vmatmul.mubr.f32.gmra.mrb[0].mxu0 %v7137
        %v7216 = vpop.f32.mrb[0].mxu0
        %v7217 = vadd.f32 0.0, %v7216
        %v7218 = vpop.f32.mrb[0].mxu0
        %7219 = vmatprep.mubr.f32.mxu0 0.0
        %7220 = vmatmul.mubr.f32.gmra.mrb[0].mxu0 %v7140
        %v7221 = vpop.f32.mrb[0].mxu0
        %v7222 = vadd.f32 0.0, %v7221
        %v7223 = vpop.f32.mrb[0].mxu0
        %7224 = vmatprep.mubr.f32.mxu0 0.0
        %7225 = vmatmul.mubr.f32.gmra.mrb[0].mxu0 %v7143
        %v7226 = vpop.f32.mrb[0].mxu0
        %v7227 = vadd.f32 0.0, %v7226
        %v7228 = vpop.f32.mrb[0].mxu0
        %7229 = vdwg.mxu0
        %v7230 = vmax.f32 %v7115, %v7212
        %v7231 = vmax.f32 %v7120, %v7217
        %v7232 = vmax.f32 %v7125, %v7222
        %v7233 = vmax.f32 %v7130, %v7227
        %v7235 = vsel %vm4936, %v7230, 0
        %v7238 = vsel %vm4936, %v7231, 0
        %v7241 = vsel %vm4936, %v7232, 0
        %v7244 = vsel %vm4936, %v7233, 0
        %7246 = vmatprep.subr.mxu0 0.0
        %7247 = vmatpush1.msra.mxu0 %v4509
        %7248 = vmatprep.subr.mxu0 0.0
        %7249 = vmatpush1.msra.mxu0 %v4510
        %7250 = vmatprep.subr.mxu0 0.0
        %7251 = vmatpush1.msra.mxu0 %v4511
        %7252 = vmatprep.subr.mxu0 0.0
        %7253 = vmatpush1.msra.mxu0 %v4512
        %7254 = vmatprep.subr.mxu0 0.0
        %7255 = vmatpush1.msra.mxu0 %v4513
        %7256 = vmatprep.subr.mxu0 0.0
        %7257 = vmatpush1.msra.mxu0 %v4514
        %7258 = vmatprep.subr.mxu0 0.0
        %7259 = vmatpush1.msra.mxu0 %v4515
        %7260 = vmatprep.subr.mxu0 0.0
        %7261 = vmatpush1.msra.mxu0 %v4516
        %7262 = vmatprep.subr.mxu0 0.0
        %7263 = vmatpush1.msra.mxu0 %v4517
        %7264 = vmatprep.subr.mxu0 0.0
        %7265 = vmatpush1.msra.mxu0 %v4518
        %7266 = vmatprep.subr.mxu0 0.0
        %7267 = vmatpush1.msra.mxu0 %v4519
        %7268 = vmatprep.subr.mxu0 0.0
        %7269 = vmatpush1.msra.mxu0 %v4520
        %7270 = vmatprep.subr.mxu0 0.0
        %7271 = vmatpush1.msra.mxu0 0.0
        %7272 = vmatprep.subr.mxu0 0.0
        %7273 = vmatpush1.msra.mxu0 0.0
        %7274 = vmatprep.subr.mxu0 0.0
        %7275 = vmatpush1.msra.mxu0 0.0
        %7276 = vmatprep.subr.mxu0 0.0
        %7277 = vmatpush1.msra.mxu0 0.0
        %7278 = vmatprep.subr.mxu0 0.0
        %7279 = vmatpush1.msra.mxu0 0.0
        %7280 = vmatprep.subr.mxu0 0.0
        %7281 = vmatpush1.msra.mxu0 0.0
        %7282 = vmatprep.subr.mxu0 0.0
        %7283 = vmatpush1.msra.mxu0 0.0
        %7284 = vmatprep.subr.mxu0 0.0
        %7285 = vmatpush1.msra.mxu0 0.0
        %7286 = vmatprep.subr.mxu0 0.0
        %7287 = vmatpush1.msra.mxu0 0.0
        %7288 = vmatprep.subr.mxu0 0.0
        %7289 = vmatpush1.msra.mxu0 0.0
        %7290 = vmatprep.subr.mxu0 0.0
        %7291 = vmatpush1.msra.mxu0 0.0
        %7292 = vmatprep.subr.mxu0 0.0
        %7293 = vmatpush1.msra.mxu0 0.0
        %7294 = vmatprep.subr.mxu0 0.0
        %7295 = vmatpush1.msra.mxu0 0.0
        %7296 = vmatprep.subr.mxu0 0.0
        %7297 = vmatpush1.msra.mxu0 0.0
        %7298 = vmatprep.subr.mxu0 0.0
        %7299 = vmatpush1.msra.mxu0 0.0
        %7300 = vmatprep.subr.mxu0 0.0
        %7301 = vmatpush1.msra.mxu0 0.0
        %7302 = vmatprep.subr.mxu0 0.0
        %7303 = vmatpush1.msra.mxu0 0.0
        %7304 = vmatprep.subr.mxu0 0.0
        %7305 = vmatpush1.msra.mxu0 0.0
        %7306 = vmatprep.subr.mxu0 0.0
        %7307 = vmatpush1.msra.mxu0 0.0
        %7308 = vmatprep.subr.mxu0 0.0
        %7309 = vmatpush1.msra.mxu0 0.0
        %7310 = vmatprep.mubr.f32.mxu0 0.0
        %7311 = vmatmul.mubr.f32.gmra.mrb[0].mxu0 %v7235
        %v7312 = vpop.f32.mrb[0].mxu0
        %v7313 = vadd.f32 0.0, %v7312
        %v7314 = vpop.f32.mrb[0].mxu0
        %7315 = vmatprep.mubr.f32.mxu0 0.0
        %7316 = vmatmul.mubr.f32.gmra.mrb[0].mxu0 %v7238
        %v7317 = vpop.f32.mrb[0].mxu0
        %v7318 = vadd.f32 0.0, %v7317
        %v7319 = vpop.f32.mrb[0].mxu0
        %7320 = vmatprep.mubr.f32.mxu0 0.0
        %7321 = vmatmul.mubr.f32.gmra.mrb[0].mxu0 %v7241
        %v7322 = vpop.f32.mrb[0].mxu0
        %v7323 = vadd.f32 0.0, %v7322
        %v7324 = vpop.f32.mrb[0].mxu0
        %7325 = vmatprep.mubr.f32.mxu0 0.0
        %7326 = vmatmul.mubr.f32.gmra.mrb[0].mxu0 %v7244
        %v7327 = vpop.f32.mrb[0].mxu0
        %v7328 = vadd.f32 0.0, %v7327
        %v7329 = vpop.f32.mrb[0].mxu0
        %7330 = vdwg.mxu0
        %7331 = vmatprep.subr.mxu0 0.0
        %7332 = vmatpush1.msra.mxu0 %v4564
        %7333 = vmatprep.subr.mxu0 0.0
        %7334 = vmatpush1.msra.mxu0 %v4565
        %7335 = vmatprep.subr.mxu0 0.0
        %7336 = vmatpush1.msra.mxu0 %v4566
        %7337 = vmatprep.subr.mxu0 0.0
        %7338 = vmatpush1.msra.mxu0 %v4567
        %7339 = vmatprep.subr.mxu0 0.0
        %7340 = vmatpush1.msra.mxu0 %v4568
        %7341 = vmatprep.subr.mxu0 0.0
        %7342 = vmatpush1.msra.mxu0 %v4569
        %7343 = vmatprep.subr.mxu0 0.0
        %7344 = vmatpush1.msra.mxu0 %v4570
        %7345 = vmatprep.subr.mxu0 0.0
        %7346 = vmatpush1.msra.mxu0 %v4571
        %7347 = vmatprep.subr.mxu0 0.0
        %7348 = vmatpush1.msra.mxu0 %v4572
        %7349 = vmatprep.subr.mxu0 0.0
        %7350 = vmatpush1.msra.mxu0 %v4573
        %7351 = vmatprep.subr.mxu0 0.0
        %7352 = vmatpush1.msra.mxu0 %v4574
        %7353 = vmatprep.subr.mxu0 0.0
        %7354 = vmatpush1.msra.mxu0 %v4575
        %7355 = vmatprep.subr.mxu0 0.0
        %7356 = vmatpush1.msra.mxu0 0.0
        %7357 = vmatprep.subr.mxu0 0.0
        %7358 = vmatpush1.msra.mxu0 0.0
        %7359 = vmatprep.subr.mxu0 0.0
        %7360 = vmatpush1.msra.mxu0 0.0
        %7361 = vmatprep.subr.mxu0 0.0
        %7362 = vmatpush1.msra.mxu0 0.0
        %7363 = vmatprep.subr.mxu0 0.0
        %7364 = vmatpush1.msra.mxu0 0.0
        %7365 = vmatprep.subr.mxu0 0.0
        %7366 = vmatpush1.msra.mxu0 0.0
        %7367 = vmatprep.subr.mxu0 0.0
        %7368 = vmatpush1.msra.mxu0 0.0
        %7369 = vmatprep.subr.mxu0 0.0
        %7370 = vmatpush1.msra.mxu0 0.0
        %7371 = vmatprep.subr.mxu0 0.0
        %7372 = vmatpush1.msra.mxu0 0.0
        %7373 = vmatprep.subr.mxu0 0.0
        %7374 = vmatpush1.msra.mxu0 0.0
        %7375 = vmatprep.subr.mxu0 0.0
        %7376 = vmatpush1.msra.mxu0 0.0
        %7377 = vmatprep.subr.mxu0 0.0
        %7378 = vmatpush1.msra.mxu0 0.0
        %7379 = vmatprep.subr.mxu0 0.0
        %7380 = vmatpush1.msra.mxu0 0.0
        %7381 = vmatprep.subr.mxu0 0.0
        %7382 = vmatpush1.msra.mxu0 0.0
        %7383 = vmatprep.subr.mxu0 0.0
        %7384 = vmatpush1.msra.mxu0 0.0
        %7385 = vmatprep.subr.mxu0 0.0
        %7386 = vmatpush1.msra.mxu0 0.0
        %7387 = vmatprep.subr.mxu0 0.0
        %7388 = vmatpush1.msra.mxu0 0.0
        %7389 = vmatprep.subr.mxu0 0.0
        %7390 = vmatpush1.msra.mxu0 0.0
        %7391 = vmatprep.subr.mxu0 0.0
        %7392 = vmatpush1.msra.mxu0 0.0
        %7393 = vmatprep.subr.mxu0 0.0
        %7394 = vmatpush1.msra.mxu0 0.0
        %7395 = vmatprep.mubr.f32.mxu0 0.0
        %7396 = vmatmul.mubr.f32.gmra.mrb[0].mxu0 %v7235
        %v7397 = vpop.f32.mrb[0].mxu0
        %v7398 = vadd.f32 0.0, %v7397
        %v7399 = vpop.f32.mrb[0].mxu0
        %7400 = vmatprep.mubr.f32.mxu0 0.0
        %7401 = vmatmul.mubr.f32.gmra.mrb[0].mxu0 %v7238
        %v7402 = vpop.f32.mrb[0].mxu0
        %v7403 = vadd.f32 0.0, %v7402
        %v7404 = vpop.f32.mrb[0].mxu0
        %7405 = vmatprep.mubr.f32.mxu0 0.0
        %7406 = vmatmul.mubr.f32.gmra.mrb[0].mxu0 %v7241
        %v7407 = vpop.f32.mrb[0].mxu0
        %v7408 = vadd.f32 0.0, %v7407
        %v7409 = vpop.f32.mrb[0].mxu0
        %7410 = vmatprep.mubr.f32.mxu0 0.0
        %7411 = vmatmul.mubr.f32.gmra.mrb[0].mxu0 %v7244
        %v7412 = vpop.f32.mrb[0].mxu0
        %v7413 = vadd.f32 0.0, %v7412
        %v7414 = vpop.f32.mrb[0].mxu0
        %7415 = vdwg.mxu0
        %v7416 = vmax.f32 %v7313, %v7398
        %v7417 = vmax.f32 %v7318, %v7403
        %v7418 = vmax.f32 %v7323, %v7408
        %v7419 = vmax.f32 %v7328, %v7413
        %v7420 = vmul.u32 %v2653, 4
        %vm7421 = vcmp.eq.s32.totalorder %v2655, %v7420
        %v7422 = vsel %vm7421, 1, 0
        %v7423 = vcvt.s32.f32 %v7422
        %vm7424 = vcmask 261120
        %v7426 = vsel %vm7424, %v7423, 0
        %7428 = vmatprep.subr.mxu0 0.0
        %7429 = vmatpush1.msra.mxu0 %v7416
        %7430 = vmatprep.subr.mxu0 0.0
        %7431 = vmatpush1.msra.mxu0 %v7417
        %7432 = vmatprep.subr.mxu0 0.0
        %7433 = vmatpush1.msra.mxu0 %v7418
        %7434 = vmatprep.subr.mxu0 0.0
        %7435 = vmatpush1.msra.mxu0 %v7419
        %7436 = vmatprep.subr.mxu0 0.0
        %7437 = vmatpush1.msra.mxu0 0.0
        %7438 = vmatprep.subr.mxu0 0.0
        %7439 = vmatpush1.msra.mxu0 0.0
        %7440 = vmatprep.subr.mxu0 0.0
        %7441 = vmatpush1.msra.mxu0 0.0
        %7442 = vmatprep.subr.mxu0 0.0
        %7443 = vmatpush1.msra.mxu0 0.0
        %7444 = vmatprep.subr.mxu0 0.0
        %7445 = vmatpush1.msra.mxu0 0.0
        %7446 = vmatprep.subr.mxu0 0.0
        %7447 = vmatpush1.msra.mxu0 0.0
        %7448 = vmatprep.subr.mxu0 0.0
        %7449 = vmatpush1.msra.mxu0 0.0
        %7450 = vmatprep.subr.mxu0 0.0
        %7451 = vmatpush1.msra.mxu0 0.0
        %7452 = vmatprep.subr.mxu0 0.0
        %7453 = vmatpush1.msra.mxu0 0.0
        %7454 = vmatprep.subr.mxu0 0.0
        %7455 = vmatpush1.msra.mxu0 0.0
        %7456 = vmatprep.subr.mxu0 0.0
        %7457 = vmatpush1.msra.mxu0 0.0
        %7458 = vmatprep.subr.mxu0 0.0
        %7459 = vmatpush1.msra.mxu0 0.0
        %7460 = vmatprep.subr.mxu0 0.0
        %7461 = vmatpush1.msra.mxu0 0.0
        %7462 = vmatprep.subr.mxu0 0.0
        %7463 = vmatpush1.msra.mxu0 0.0
        %7464 = vmatprep.subr.mxu0 0.0
        %7465 = vmatpush1.msra.mxu0 0.0
        %7466 = vmatprep.subr.mxu0 0.0
        %7467 = vmatpush1.msra.mxu0 0.0
        %7468 = vmatprep.subr.mxu0 0.0
        %7469 = vmatpush1.msra.mxu0 0.0
        %7470 = vmatprep.subr.mxu0 0.0
        %7471 = vmatpush1.msra.mxu0 0.0
        %7472 = vmatprep.subr.mxu0 0.0
        %7473 = vmatpush1.msra.mxu0 0.0
        %7474 = vmatprep.subr.mxu0 0.0
        %7475 = vmatpush1.msra.mxu0 0.0
        %7476 = vmatprep.subr.mxu0 0.0
        %7477 = vmatpush1.msra.mxu0 0.0
        %7478 = vmatprep.subr.mxu0 0.0
        %7479 = vmatpush1.msra.mxu0 0.0
        %7480 = vmatprep.subr.mxu0 0.0
        %7481 = vmatpush1.msra.mxu0 0.0
        %7482 = vmatprep.subr.mxu0 0.0
        %7483 = vmatpush1.msra.mxu0 0.0
        %7484 = vmatprep.subr.mxu0 0.0
        %7485 = vmatpush1.msra.mxu0 0.0
        %7486 = vmatprep.subr.mxu0 0.0
        %7487 = vmatpush1.msra.mxu0 0.0
        %7488 = vmatprep.subr.mxu0 0.0
        %7489 = vmatpush1.msra.mxu0 0.0
        %7490 = vmatprep.subr.mxu0 0.0
        %7491 = vmatpush1.msra.mxu0 0.0
        %7492 = vmatprep.mubr.f32.mxu0 0.0
        %7493 = vmatmul.mubr.f32.gmra.mrb[0].mxu0 %v7426
        %v7494 = vpop.f32.mrb[0].mxu0
        %v7495 = vadd.f32 0.0, %v7494
        %v7496 = vpop.f32.mrb[0].mxu0
        %7497 = vdwg.mxu0
        %v7498 = vld [vmem:[%s9] sm:$0xff]
        %v7499 = vld [vmem:[%s9 + $0x8] sm:$0xff]
        %v7500 = vld [vmem:[%s9 + $0x10] sm:$0xff]
        %v7501 = vld [vmem:[%s9 + $0x18] sm:$0xff]
        %v7502 = vld [vmem:[%s9 + $0x20] sm:$0xff]
        %v7503 = vld [vmem:[%s9 + $0x28] sm:$0xff]
        %v7504 = vadd.s32 %v7420, 1
        %vm7505 = vcmp.eq.s32.totalorder %v2655, %v7504
        %v7506 = vsel %vm7505, 1, 0
        %v7507 = vcvt.s32.f32 %v7506
        %v7509 = vsel %vm7424, %v7507, 0
        %7511 = vmatprep.subr.mxu0 0.0
        %7512 = vmatpush1.msra.mxu0 %v7416
        %7513 = vmatprep.subr.mxu0 0.0
        %7514 = vmatpush1.msra.mxu0 %v7417
        %7515 = vmatprep.subr.mxu0 0.0
        %7516 = vmatpush1.msra.mxu0 %v7418
        %7517 = vmatprep.subr.mxu0 0.0
        %7518 = vmatpush1.msra.mxu0 %v7419
        %7519 = vmatprep.subr.mxu0 0.0
        %7520 = vmatpush1.msra.mxu0 0.0
        %7521 = vmatprep.subr.mxu0 0.0
        %7522 = vmatpush1.msra.mxu0 0.0
        %7523 = vmatprep.subr.mxu0 0.0
        %7524 = vmatpush1.msra.mxu0 0.0
        %7525 = vmatprep.subr.mxu0 0.0
        %7526 = vmatpush1.msra.mxu0 0.0
        %7527 = vmatprep.subr.mxu0 0.0
        %7528 = vmatpush1.msra.mxu0 0.0
        %7529 = vmatprep.subr.mxu0 0.0
        %7530 = vmatpush1.msra.mxu0 0.0
        %7531 = vmatprep.subr.mxu0 0.0
        %7532 = vmatpush1.msra.mxu0 0.0
        %7533 = vmatprep.subr.mxu0 0.0
        %7534 = vmatpush1.msra.mxu0 0.0
        %7535 = vmatprep.subr.mxu0 0.0
        %7536 = vmatpush1.msra.mxu0 0.0
        %7537 = vmatprep.subr.mxu0 0.0
        %7538 = vmatpush1.msra.mxu0 0.0
        %7539 = vmatprep.subr.mxu0 0.0
        %7540 = vmatpush1.msra.mxu0 0.0
        %7541 = vmatprep.subr.mxu0 0.0
        %7542 = vmatpush1.msra.mxu0 0.0
        %7543 = vmatprep.subr.mxu0 0.0
        %7544 = vmatpush1.msra.mxu0 0.0
        %7545 = vmatprep.subr.mxu0 0.0
        %7546 = vmatpush1.msra.mxu0 0.0
        %7547 = vmatprep.subr.mxu0 0.0
        %7548 = vmatpush1.msra.mxu0 0.0
        %7549 = vmatprep.subr.mxu0 0.0
        %7550 = vmatpush1.msra.mxu0 0.0
        %7551 = vmatprep.subr.mxu0 0.0
        %7552 = vmatpush1.msra.mxu0 0.0
        %7553 = vmatprep.subr.mxu0 0.0
        %7554 = vmatpush1.msra.mxu0 0.0
        %7555 = vmatprep.subr.mxu0 0.0
        %7556 = vmatpush1.msra.mxu0 0.0
        %7557 = vmatprep.subr.mxu0 0.0
        %7558 = vmatpush1.msra.mxu0 0.0
        %7559 = vmatprep.subr.mxu0 0.0
        %7560 = vmatpush1.msra.mxu0 0.0
        %7561 = vmatprep.subr.mxu0 0.0
        %7562 = vmatpush1.msra.mxu0 0.0
        %7563 = vmatprep.subr.mxu0 0.0
        %7564 = vmatpush1.msra.mxu0 0.0
        %7565 = vmatprep.subr.mxu0 0.0
        %7566 = vmatpush1.msra.mxu0 0.0
        %7567 = vmatprep.subr.mxu0 0.0
        %7568 = vmatpush1.msra.mxu0 0.0
        %7569 = vmatprep.subr.mxu0 0.0
        %7570 = vmatpush1.msra.mxu0 0.0
        %7571 = vmatprep.subr.mxu0 0.0
        %7572 = vmatpush1.msra.mxu0 0.0
        %7573 = vmatprep.subr.mxu0 0.0
        %7574 = vmatpush1.msra.mxu0 0.0
        %7575 = vmatprep.mubr.f32.mxu0 0.0
        %7576 = vmatmul.mubr.f32.gmra.mrb[0].mxu0 %v7509
        %v7577 = vpop.f32.mrb[0].mxu0
        %v7578 = vadd.f32 0.0, %v7577
        %v7579 = vpop.f32.mrb[0].mxu0
        %7580 = vdwg.mxu0
        %s7581 = scalar_lea.vmem %s9, 48
        %v7582 = vld [vmem:[%s7581] sm:$0xff]
        %v7583 = vld [vmem:[%s7581 + $0x8] sm:$0xff]
        %v7584 = vld [vmem:[%s7581 + $0x10] sm:$0xff]
        %v7585 = vld [vmem:[%s7581 + $0x18] sm:$0xff]
        %v7586 = vld [vmem:[%s7581 + $0x20] sm:$0xff]
        %v7587 = vld [vmem:[%s7581 + $0x28] sm:$0xff]
        %vm7588 = vcmask 392192
        %v7590 = vsel %vm7588, %v7578, 0
        %7592 = vmatprep.subr.mxu0 0.0
        %7593 = vmatpush1.msra.mxu0 %v7582
        %7594 = vmatprep.subr.mxu0 0.0
        %7595 = vmatpush1.msra.mxu0 %v7583
        %7596 = vmatprep.subr.mxu0 0.0
        %7597 = vmatpush1.msra.mxu0 %v7584
        %7598 = vmatprep.subr.mxu0 0.0
        %7599 = vmatpush1.msra.mxu0 %v7585
        %7600 = vmatprep.subr.mxu0 0.0
        %7601 = vmatpush1.msra.mxu0 %v7586
        %7602 = vmatprep.subr.mxu0 0.0
        %7603 = vmatpush1.msra.mxu0 %v7587
        %7604 = vmatprep.subr.mxu0 0.0
        %7605 = vmatpush1.msra.mxu0 0.0
        %7606 = vmatprep.subr.mxu0 0.0
        %7607 = vmatpush1.msra.mxu0 0.0
        %7608 = vmatprep.subr.mxu0 0.0
        %7609 = vmatpush1.msra.mxu0 0.0
        %7610 = vmatprep.subr.mxu0 0.0
        %7611 = vmatpush1.msra.mxu0 0.0
        %7612 = vmatprep.subr.mxu0 0.0
        %7613 = vmatpush1.msra.mxu0 0.0
        %7614 = vmatprep.subr.mxu0 0.0
        %7615 = vmatpush1.msra.mxu0 0.0
        %7616 = vmatprep.subr.mxu0 0.0
        %7617 = vmatpush1.msra.mxu0 0.0
        %7618 = vmatprep.subr.mxu0 0.0
        %7619 = vmatpush1.msra.mxu0 0.0
        %7620 = vmatprep.subr.mxu0 0.0
        %7621 = vmatpush1.msra.mxu0 0.0
        %7622 = vmatprep.subr.mxu0 0.0
        %7623 = vmatpush1.msra.mxu0 0.0
        %7624 = vmatprep.subr.mxu0 0.0
        %7625 = vmatpush1.msra.mxu0 0.0
        %7626 = vmatprep.subr.mxu0 0.0
        %7627 = vmatpush1.msra.mxu0 0.0
        %7628 = vmatprep.subr.mxu0 0.0
        %7629 = vmatpush1.msra.mxu0 0.0
        %7630 = vmatprep.subr.mxu0 0.0
        %7631 = vmatpush1.msra.mxu0 0.0
        %7632 = vmatprep.subr.mxu0 0.0
        %7633 = vmatpush1.msra.mxu0 0.0
        %7634 = vmatprep.subr.mxu0 0.0
        %7635 = vmatpush1.msra.mxu0 0.0
        %7636 = vmatprep.subr.mxu0 0.0
        %7637 = vmatpush1.msra.mxu0 0.0
        %7638 = vmatprep.subr.mxu0 0.0
        %7639 = vmatpush1.msra.mxu0 0.0
        %7640 = vmatprep.subr.mxu0 0.0
        %7641 = vmatpush1.msra.mxu0 0.0
        %7642 = vmatprep.subr.mxu0 0.0
        %7643 = vmatpush1.msra.mxu0 0.0
        %7644 = vmatprep.subr.mxu0 0.0
        %7645 = vmatpush1.msra.mxu0 0.0
        %7646 = vmatprep.subr.mxu0 0.0
        %7647 = vmatpush1.msra.mxu0 0.0
        %7648 = vmatprep.subr.mxu0 0.0
        %7649 = vmatpush1.msra.mxu0 0.0
        %7650 = vmatprep.subr.mxu0 0.0
        %7651 = vmatpush1.msra.mxu0 0.0
        %7652 = vmatprep.subr.mxu0 0.0
        %7653 = vmatpush1.msra.mxu0 0.0
        %7654 = vmatprep.subr.mxu0 0.0
        %7655 = vmatpush1.msra.mxu0 0.0
        %7656 = vmatprep.mubr.f32.mxu0 0.0
        %7657 = vmatmul.mubr.f32.gmra.mrb[0].mxu0 %v7590
        %v7658 = vpop.f32.mrb[0].mxu0
        %v7659 = vadd.f32 0.0, %v7658
        %v7660 = vpop.f32.mrb[0].mxu0
        %7661 = vdwg.mxu0
        %v7663 = vsel %vm7588, %v7495, 0
        %7665 = vmatprep.subr.mxu0 0.0
        %7666 = vmatpush1.msra.mxu0 %v7498
        %7667 = vmatprep.subr.mxu0 0.0
        %7668 = vmatpush1.msra.mxu0 %v7499
        %7669 = vmatprep.subr.mxu0 0.0
        %7670 = vmatpush1.msra.mxu0 %v7500
        %7671 = vmatprep.subr.mxu0 0.0
        %7672 = vmatpush1.msra.mxu0 %v7501
        %7673 = vmatprep.subr.mxu0 0.0
        %7674 = vmatpush1.msra.mxu0 %v7502
        %7675 = vmatprep.subr.mxu0 0.0
        %7676 = vmatpush1.msra.mxu0 %v7503
        %7677 = vmatprep.subr.mxu0 0.0
        %7678 = vmatpush1.msra.mxu0 0.0
        %7679 = vmatprep.subr.mxu0 0.0
        %7680 = vmatpush1.msra.mxu0 0.0
        %7681 = vmatprep.subr.mxu0 0.0
        %7682 = vmatpush1.msra.mxu0 0.0
        %7683 = vmatprep.subr.mxu0 0.0
        %7684 = vmatpush1.msra.mxu0 0.0
        %7685 = vmatprep.subr.mxu0 0.0
        %7686 = vmatpush1.msra.mxu0 0.0
        %7687 = vmatprep.subr.mxu0 0.0
        %7688 = vmatpush1.msra.mxu0 0.0
        %7689 = vmatprep.subr.mxu0 0.0
        %7690 = vmatpush1.msra.mxu0 0.0
        %7691 = vmatprep.subr.mxu0 0.0
        %7692 = vmatpush1.msra.mxu0 0.0
        %7693 = vmatprep.subr.mxu0 0.0
        %7694 = vmatpush1.msra.mxu0 0.0
        %7695 = vmatprep.subr.mxu0 0.0
        %7696 = vmatpush1.msra.mxu0 0.0
        %7697 = vmatprep.subr.mxu0 0.0
        %7698 = vmatpush1.msra.mxu0 0.0
        %7699 = vmatprep.subr.mxu0 0.0
        %7700 = vmatpush1.msra.mxu0 0.0
        %7701 = vmatprep.subr.mxu0 0.0
        %7702 = vmatpush1.msra.mxu0 0.0
        %7703 = vmatprep.subr.mxu0 0.0
        %7704 = vmatpush1.msra.mxu0 0.0
        %7705 = vmatprep.subr.mxu0 0.0
        %7706 = vmatpush1.msra.mxu0 0.0
        %7707 = vmatprep.subr.mxu0 0.0
        %7708 = vmatpush1.msra.mxu0 0.0
        %7709 = vmatprep.subr.mxu0 0.0
        %7710 = vmatpush1.msra.mxu0 0.0
        %7711 = vmatprep.subr.mxu0 0.0
        %7712 = vmatpush1.msra.mxu0 0.0
        %7713 = vmatprep.subr.mxu0 0.0
        %7714 = vmatpush1.msra.mxu0 0.0
        %7715 = vmatprep.subr.mxu0 0.0
        %7716 = vmatpush1.msra.mxu0 0.0
        %7717 = vmatprep.subr.mxu0 0.0
        %7718 = vmatpush1.msra.mxu0 0.0
        %7719 = vmatprep.subr.mxu0 0.0
        %7720 = vmatpush1.msra.mxu0 0.0
        %7721 = vmatprep.subr.mxu0 0.0
        %7722 = vmatpush1.msra.mxu0 0.0
        %7723 = vmatprep.subr.mxu0 0.0
        %7724 = vmatpush1.msra.mxu0 0.0
        %7725 = vmatprep.subr.mxu0 0.0
        %7726 = vmatpush1.msra.mxu0 0.0
        %7727 = vmatprep.subr.mxu0 0.0
        %7728 = vmatpush1.msra.mxu0 0.0
        %7729 = vmatprep.mubr.f32.mxu0 0.0
        %7730 = vmatmul.mubr.f32.gmra.mrb[0].mxu0 %v7663
        %v7731 = vpop.f32.mrb[0].mxu0
        %v7732 = vadd.f32 %v7659, %v7731
        %v7733 = vpop.f32.mrb[0].mxu0
        %7734 = vdwg.mxu0
        %v7735 = vadd.s32 %v7420, 2
        %vm7736 = vcmp.eq.s32.totalorder %v2655, %v7735
        %v7737 = vsel %vm7736, 1, 0
        %v7738 = vcvt.s32.f32 %v7737
        %v7740 = vsel %vm7424, %v7738, 0
        %7742 = vmatprep.subr.mxu0 0.0
        %7743 = vmatpush1.msra.mxu0 %v7416
        %7744 = vmatprep.subr.mxu0 0.0
        %7745 = vmatpush1.msra.mxu0 %v7417
        %7746 = vmatprep.subr.mxu0 0.0
        %7747 = vmatpush1.msra.mxu0 %v7418
        %7748 = vmatprep.subr.mxu0 0.0
        %7749 = vmatpush1.msra.mxu0 %v7419
        %7750 = vmatprep.subr.mxu0 0.0
        %7751 = vmatpush1.msra.mxu0 0.0
        %7752 = vmatprep.subr.mxu0 0.0
        %7753 = vmatpush1.msra.mxu0 0.0
        %7754 = vmatprep.subr.mxu0 0.0
        %7755 = vmatpush1.msra.mxu0 0.0
        %7756 = vmatprep.subr.mxu0 0.0
        %7757 = vmatpush1.msra.mxu0 0.0
        %7758 = vmatprep.subr.mxu0 0.0
        %7759 = vmatpush1.msra.mxu0 0.0
        %7760 = vmatprep.subr.mxu0 0.0
        %7761 = vmatpush1.msra.mxu0 0.0
        %7762 = vmatprep.subr.mxu0 0.0
        %7763 = vmatpush1.msra.mxu0 0.0
        %7764 = vmatprep.subr.mxu0 0.0
        %7765 = vmatpush1.msra.mxu0 0.0
        %7766 = vmatprep.subr.mxu0 0.0
        %7767 = vmatpush1.msra.mxu0 0.0
        %7768 = vmatprep.subr.mxu0 0.0
        %7769 = vmatpush1.msra.mxu0 0.0
        %7770 = vmatprep.subr.mxu0 0.0
        %7771 = vmatpush1.msra.mxu0 0.0
        %7772 = vmatprep.subr.mxu0 0.0
        %7773 = vmatpush1.msra.mxu0 0.0
        %7774 = vmatprep.subr.mxu0 0.0
        %7775 = vmatpush1.msra.mxu0 0.0
        %7776 = vmatprep.subr.mxu0 0.0
        %7777 = vmatpush1.msra.mxu0 0.0
        %7778 = vmatprep.subr.mxu0 0.0
        %7779 = vmatpush1.msra.mxu0 0.0
        %7780 = vmatprep.subr.mxu0 0.0
        %7781 = vmatpush1.msra.mxu0 0.0
        %7782 = vmatprep.subr.mxu0 0.0
        %7783 = vmatpush1.msra.mxu0 0.0
        %7784 = vmatprep.subr.mxu0 0.0
        %7785 = vmatpush1.msra.mxu0 0.0
        %7786 = vmatprep.subr.mxu0 0.0
        %7787 = vmatpush1.msra.mxu0 0.0
        %7788 = vmatprep.subr.mxu0 0.0
        %7789 = vmatpush1.msra.mxu0 0.0
        %7790 = vmatprep.subr.mxu0 0.0
        %7791 = vmatpush1.msra.mxu0 0.0
        %7792 = vmatprep.subr.mxu0 0.0
        %7793 = vmatpush1.msra.mxu0 0.0
        %7794 = vmatprep.subr.mxu0 0.0
        %7795 = vmatpush1.msra.mxu0 0.0
        %7796 = vmatprep.subr.mxu0 0.0
        %7797 = vmatpush1.msra.mxu0 0.0
        %7798 = vmatprep.subr.mxu0 0.0
        %7799 = vmatpush1.msra.mxu0 0.0
        %7800 = vmatprep.subr.mxu0 0.0
        %7801 = vmatpush1.msra.mxu0 0.0
        %7802 = vmatprep.subr.mxu0 0.0
        %7803 = vmatpush1.msra.mxu0 0.0
        %7804 = vmatprep.subr.mxu0 0.0
        %7805 = vmatpush1.msra.mxu0 0.0
        %7806 = vmatprep.mubr.f32.mxu0 0.0
        %7807 = vmatmul.mubr.f32.gmra.mrb[0].mxu0 %v7740
        %v7808 = vpop.f32.mrb[0].mxu0
        %v7809 = vadd.f32 0.0, %v7808
        %v7810 = vpop.f32.mrb[0].mxu0
        %7811 = vdwg.mxu0
        %s7812 = scalar_lea.vmem %s9, 96
        %v7813 = vld [vmem:[%s7812] sm:$0xff]
        %v7814 = vld [vmem:[%s7812 + $0x8] sm:$0xff]
        %v7815 = vld [vmem:[%s7812 + $0x10] sm:$0xff]
        %v7816 = vld [vmem:[%s7812 + $0x18] sm:$0xff]
        %v7817 = vld [vmem:[%s7812 + $0x20] sm:$0xff]
        %v7818 = vld [vmem:[%s7812 + $0x28] sm:$0xff]
        %v7820 = vsel %vm7588, %v7809, 0
        %7822 = vmatprep.subr.mxu0 0.0
        %7823 = vmatpush1.msra.mxu0 %v7813
        %7824 = vmatprep.subr.mxu0 0.0
        %7825 = vmatpush1.msra.mxu0 %v7814
        %7826 = vmatprep.subr.mxu0 0.0
        %7827 = vmatpush1.msra.mxu0 %v7815
        %7828 = vmatprep.subr.mxu0 0.0
        %7829 = vmatpush1.msra.mxu0 %v7816
        %7830 = vmatprep.subr.mxu0 0.0
        %7831 = vmatpush1.msra.mxu0 %v7817
        %7832 = vmatprep.subr.mxu0 0.0
        %7833 = vmatpush1.msra.mxu0 %v7818
        %7834 = vmatprep.subr.mxu0 0.0
        %7835 = vmatpush1.msra.mxu0 0.0
        %7836 = vmatprep.subr.mxu0 0.0
        %7837 = vmatpush1.msra.mxu0 0.0
        %7838 = vmatprep.subr.mxu0 0.0
        %7839 = vmatpush1.msra.mxu0 0.0
        %7840 = vmatprep.subr.mxu0 0.0
        %7841 = vmatpush1.msra.mxu0 0.0
        %7842 = vmatprep.subr.mxu0 0.0
        %7843 = vmatpush1.msra.mxu0 0.0
        %7844 = vmatprep.subr.mxu0 0.0
        %7845 = vmatpush1.msra.mxu0 0.0
        %7846 = vmatprep.subr.mxu0 0.0
        %7847 = vmatpush1.msra.mxu0 0.0
        %7848 = vmatprep.subr.mxu0 0.0
        %7849 = vmatpush1.msra.mxu0 0.0
        %7850 = vmatprep.subr.mxu0 0.0
        %7851 = vmatpush1.msra.mxu0 0.0
        %7852 = vmatprep.subr.mxu0 0.0
        %7853 = vmatpush1.msra.mxu0 0.0
        %7854 = vmatprep.subr.mxu0 0.0
        %7855 = vmatpush1.msra.mxu0 0.0
        %7856 = vmatprep.subr.mxu0 0.0
        %7857 = vmatpush1.msra.mxu0 0.0
        %7858 = vmatprep.subr.mxu0 0.0
        %7859 = vmatpush1.msra.mxu0 0.0
        %7860 = vmatprep.subr.mxu0 0.0
        %7861 = vmatpush1.msra.mxu0 0.0
        %7862 = vmatprep.subr.mxu0 0.0
        %7863 = vmatpush1.msra.mxu0 0.0
        %7864 = vmatprep.subr.mxu0 0.0
        %7865 = vmatpush1.msra.mxu0 0.0
        %7866 = vmatprep.subr.mxu0 0.0
        %7867 = vmatpush1.msra.mxu0 0.0
        %7868 = vmatprep.subr.mxu0 0.0
        %7869 = vmatpush1.msra.mxu0 0.0
        %7870 = vmatprep.subr.mxu0 0.0
        %7871 = vmatpush1.msra.mxu0 0.0
        %7872 = vmatprep.subr.mxu0 0.0
        %7873 = vmatpush1.msra.mxu0 0.0
        %7874 = vmatprep.subr.mxu0 0.0
        %7875 = vmatpush1.msra.mxu0 0.0
        %7876 = vmatprep.subr.mxu0 0.0
        %7877 = vmatpush1.msra.mxu0 0.0
        %7878 = vmatprep.subr.mxu0 0.0
        %7879 = vmatpush1.msra.mxu0 0.0
        %7880 = vmatprep.subr.mxu0 0.0
        %7881 = vmatpush1.msra.mxu0 0.0
        %7882 = vmatprep.subr.mxu0 0.0
        %7883 = vmatpush1.msra.mxu0 0.0
        %7884 = vmatprep.subr.mxu0 0.0
        %7885 = vmatpush1.msra.mxu0 0.0
        %7886 = vmatprep.mubr.f32.mxu0 0.0
        %7887 = vmatmul.mubr.f32.gmra.mrb[0].mxu0 %v7820
        %v7888 = vpop.f32.mrb[0].mxu0
        %v7889 = vadd.f32 0.0, %v7888
        %v7890 = vpop.f32.mrb[0].mxu0
        %7891 = vdwg.mxu0
        %v7892 = vadd.f32 %v7732, %v7889
        %v7893 = vadd.s32 %v7420, 3
        %vm7894 = vcmp.eq.s32.totalorder %v2655, %v7893
        %v7895 = vsel %vm7894, 1, 0
        %v7896 = vcvt.s32.f32 %v7895
        %v7898 = vsel %vm7424, %v7896, 0
        %7900 = vmatprep.subr.mxu0 0.0
        %7901 = vmatpush1.msra.mxu0 %v7416
        %7902 = vmatprep.subr.mxu0 0.0
        %7903 = vmatpush1.msra.mxu0 %v7417
        %7904 = vmatprep.subr.mxu0 0.0
        %7905 = vmatpush1.msra.mxu0 %v7418
        %7906 = vmatprep.subr.mxu0 0.0
        %7907 = vmatpush1.msra.mxu0 %v7419
        %7908 = vmatprep.subr.mxu0 0.0
        %7909 = vmatpush1.msra.mxu0 0.0
        %7910 = vmatprep.subr.mxu0 0.0
        %7911 = vmatpush1.msra.mxu0 0.0
        %7912 = vmatprep.subr.mxu0 0.0
        %7913 = vmatpush1.msra.mxu0 0.0
        %7914 = vmatprep.subr.mxu0 0.0
        %7915 = vmatpush1.msra.mxu0 0.0
        %7916 = vmatprep.subr.mxu0 0.0
        %7917 = vmatpush1.msra.mxu0 0.0
        %7918 = vmatprep.subr.mxu0 0.0
        %7919 = vmatpush1.msra.mxu0 0.0
        %7920 = vmatprep.subr.mxu0 0.0
        %7921 = vmatpush1.msra.mxu0 0.0
        %7922 = vmatprep.subr.mxu0 0.0
        %7923 = vmatpush1.msra.mxu0 0.0
        %7924 = vmatprep.subr.mxu0 0.0
        %7925 = vmatpush1.msra.mxu0 0.0
        %7926 = vmatprep.subr.mxu0 0.0
        %7927 = vmatpush1.msra.mxu0 0.0
        %7928 = vmatprep.subr.mxu0 0.0
        %7929 = vmatpush1.msra.mxu0 0.0
        %7930 = vmatprep.subr.mxu0 0.0
        %7931 = vmatpush1.msra.mxu0 0.0
        %7932 = vmatprep.subr.mxu0 0.0
        %7933 = vmatpush1.msra.mxu0 0.0
        %7934 = vmatprep.subr.mxu0 0.0
        %7935 = vmatpush1.msra.mxu0 0.0
        %7936 = vmatprep.subr.mxu0 0.0
        %7937 = vmatpush1.msra.mxu0 0.0
        %7938 = vmatprep.subr.mxu0 0.0
        %7939 = vmatpush1.msra.mxu0 0.0
        %7940 = vmatprep.subr.mxu0 0.0
        %7941 = vmatpush1.msra.mxu0 0.0
        %7942 = vmatprep.subr.mxu0 0.0
        %7943 = vmatpush1.msra.mxu0 0.0
        %7944 = vmatprep.subr.mxu0 0.0
        %7945 = vmatpush1.msra.mxu0 0.0
        %7946 = vmatprep.subr.mxu0 0.0
        %7947 = vmatpush1.msra.mxu0 0.0
        %7948 = vmatprep.subr.mxu0 0.0
        %7949 = vmatpush1.msra.mxu0 0.0
        %7950 = vmatprep.subr.mxu0 0.0
        %7951 = vmatpush1.msra.mxu0 0.0
        %7952 = vmatprep.subr.mxu0 0.0
        %7953 = vmatpush1.msra.mxu0 0.0
        %7954 = vmatprep.subr.mxu0 0.0
        %7955 = vmatpush1.msra.mxu0 0.0
        %7956 = vmatprep.subr.mxu0 0.0
        %7957 = vmatpush1.msra.mxu0 0.0
        %7958 = vmatprep.subr.mxu0 0.0
        %7959 = vmatpush1.msra.mxu0 0.0
        %7960 = vmatprep.subr.mxu0 0.0
        %7961 = vmatpush1.msra.mxu0 0.0
        %7962 = vmatprep.subr.mxu0 0.0
        %7963 = vmatpush1.msra.mxu0 0.0
        %7964 = vmatprep.mubr.f32.mxu0 0.0
        %7965 = vmatmul.mubr.f32.gmra.mrb[0].mxu0 %v7898
        %v7966 = vpop.f32.mrb[0].mxu0
        %v7967 = vadd.f32 0.0, %v7966
        %v7968 = vpop.f32.mrb[0].mxu0
        %7969 = vdwg.mxu0
        %s7970 = scalar_lea.vmem %s9, 144
        %v7971 = vld [vmem:[%s7970] sm:$0xff]
        %v7972 = vld [vmem:[%s7970 + $0x8] sm:$0xff]
        %v7973 = vld [vmem:[%s7970 + $0x10] sm:$0xff]
        %v7974 = vld [vmem:[%s7970 + $0x18] sm:$0xff]
        %v7975 = vld [vmem:[%s7970 + $0x20] sm:$0xff]
        %v7976 = vld [vmem:[%s7970 + $0x28] sm:$0xff]
        %v7978 = vsel %vm7588, %v7967, 0
        %7980 = vmatprep.subr.mxu0 0.0
        %7981 = vmatpush1.msra.mxu0 %v7971
        %7982 = vmatprep.subr.mxu0 0.0
        %7983 = vmatpush1.msra.mxu0 %v7972
        %7984 = vmatprep.subr.mxu0 0.0
        %7985 = vmatpush1.msra.mxu0 %v7973
        %7986 = vmatprep.subr.mxu0 0.0
        %7987 = vmatpush1.msra.mxu0 %v7974
        %7988 = vmatprep.subr.mxu0 0.0
        %7989 = vmatpush1.msra.mxu0 %v7975
        %7990 = vmatprep.subr.mxu0 0.0
        %7991 = vmatpush1.msra.mxu0 %v7976
        %7992 = vmatprep.subr.mxu0 0.0
        %7993 = vmatpush1.msra.mxu0 0.0
        %7994 = vmatprep.subr.mxu0 0.0
        %7995 = vmatpush1.msra.mxu0 0.0
        %7996 = vmatprep.subr.mxu0 0.0
        %7997 = vmatpush1.msra.mxu0 0.0
        %7998 = vmatprep.subr.mxu0 0.0
        %7999 = vmatpush1.msra.mxu0 0.0
        %8000 = vmatprep.subr.mxu0 0.0
        %8001 = vmatpush1.msra.mxu0 0.0
        %8002 = vmatprep.subr.mxu0 0.0
        %8003 = vmatpush1.msra.mxu0 0.0
        %8004 = vmatprep.subr.mxu0 0.0
        %8005 = vmatpush1.msra.mxu0 0.0
        %8006 = vmatprep.subr.mxu0 0.0
        %8007 = vmatpush1.msra.mxu0 0.0
        %8008 = vmatprep.subr.mxu0 0.0
        %8009 = vmatpush1.msra.mxu0 0.0
        %8010 = vmatprep.subr.mxu0 0.0
        %8011 = vmatpush1.msra.mxu0 0.0
        %8012 = vmatprep.subr.mxu0 0.0
        %8013 = vmatpush1.msra.mxu0 0.0
        %8014 = vmatprep.subr.mxu0 0.0
        %8015 = vmatpush1.msra.mxu0 0.0
        %8016 = vmatprep.subr.mxu0 0.0
        %8017 = vmatpush1.msra.mxu0 0.0
        %8018 = vmatprep.subr.mxu0 0.0
        %8019 = vmatpush1.msra.mxu0 0.0
        %8020 = vmatprep.subr.mxu0 0.0
        %8021 = vmatpush1.msra.mxu0 0.0
        %8022 = vmatprep.subr.mxu0 0.0
        %8023 = vmatpush1.msra.mxu0 0.0
        %8024 = vmatprep.subr.mxu0 0.0
        %8025 = vmatpush1.msra.mxu0 0.0
        %8026 = vmatprep.subr.mxu0 0.0
        %8027 = vmatpush1.msra.mxu0 0.0
        %8028 = vmatprep.subr.mxu0 0.0
        %8029 = vmatpush1.msra.mxu0 0.0
        %8030 = vmatprep.subr.mxu0 0.0
        %8031 = vmatpush1.msra.mxu0 0.0
        %8032 = vmatprep.subr.mxu0 0.0
        %8033 = vmatpush1.msra.mxu0 0.0
        %8034 = vmatprep.subr.mxu0 0.0
        %8035 = vmatpush1.msra.mxu0 0.0
        %8036 = vmatprep.subr.mxu0 0.0
        %8037 = vmatpush1.msra.mxu0 0.0
        %8038 = vmatprep.subr.mxu0 0.0
        %8039 = vmatpush1.msra.mxu0 0.0
        %8040 = vmatprep.subr.mxu0 0.0
        %8041 = vmatpush1.msra.mxu0 0.0
        %8042 = vmatprep.subr.mxu0 0.0
        %8043 = vmatpush1.msra.mxu0 0.0
        %8044 = vmatprep.mubr.f32.mxu0 0.0
        %8045 = vmatmul.mubr.f32.gmra.mrb[0].mxu0 %v7978
        %v8046 = vpop.f32.mrb[0].mxu0
        %v8047 = vadd.f32 0.0, %v8046
        %v8048 = vpop.f32.mrb[0].mxu0
        %8049 = vdwg.mxu0
        %v8050 = vadd.f32 %v7892, %v8047
        %v8051 = vld [vmem:[#allocation8] sm:$0x1]
        %v8053 = vlaneseq
        %v8054 = vshrl.u32 %v8053, 7
        %v8055 = vsub.s32 0, %v8054
        %v8056 = vrot.slane %v8051, %v8055
        %v8058 = vadd.f32 %v8050, %v8056
        %v8059 = vmax.f32 %v8058, 0.0
        %v8060 = vld [vmem:[#allocation10] sm:$0x1]
        %v8061 = vld [vmem:[#allocation11] sm:$0x1]
        %8062 = vadd.xlane.f32.xlu0 %v8059
        %v8063 = vpop.xlane.xlu0 %8062
        %v8064 = vrcp.pop 120.0
        %v8065 = vmul.f32 %v8063, %v8064
        %v8066 = vmul.f32 %v8059, %v8059
        %8067 = vadd.xlane.f32.xlu0 %v8066
        %v8068 = vpop.xlane.xlu0 %8067
        %v8069 = vmul.f32 %v8068, %v8064
        %v8070 = vmul.f32 %v8065, %v8065
        %v8071 = vsub.f32 %v8069, %v8070
        %v8072 = vsub.f32 %v8059, %v8065
        %v8073 = vadd.f32 %v8071, 1e-05
        %v8074 = vrsqrt.pop %v8073
        %v8075 = vmul.f32 %v8072, %v8074
        %v8077 = vlaneseq
        %v8078 = vshrl.u32 %v8077, 7
        %v8079 = vsub.s32 0, %v8078
        %v8080 = vrot.slane %v8060, %v8079
        %v8082 = vmul.f32 %v8075, %v8080
        %v8084 = vlaneseq
        %v8085 = vshrl.u32 %v8084, 7
        %v8086 = vsub.s32 0, %v8085
        %v8087 = vrot.slane %v8061, %v8086
        %v8089 = vadd.f32 %v8082, %v8087
        %v8090 = vld [vmem:[%s13] sm:$0xff]
        %v8091 = vld [vmem:[%s13 + $0x8] sm:$0xff]
        %v8092 = vld [vmem:[%s13 + $0x10] sm:$0xff]
        %v8093 = vld [vmem:[%s13 + $0x18] sm:$0xff]
        %v8094 = vld [vmem:[%s13 + $0x20] sm:$0xff]
        %v8095 = vld [vmem:[%s13 + $0x28] sm:$0xff]
        %v8096 = vld [vmem:[%s13 + $0x30] sm:$0xff]
        %v8097 = vld [vmem:[%s13 + $0x38] sm:$0xff]
        %v8098 = vld [vmem:[%s13 + $0x40] sm:$0xff]
        %v8099 = vld [vmem:[%s13 + $0x48] sm:$0xff]
        %v8100 = vld [vmem:[%s13 + $0x50] sm:$0xff]
        %v8101 = vld [vmem:[%s13 + $0x58] sm:$0xff]
        %v8102 = vld [vmem:[%s13 + $0x60] sm:$0xff]
        %v8103 = vld [vmem:[%s13 + $0x68] sm:$0xff]
        %v8104 = vld [vmem:[%s13 + $0x70] sm:$0xff]
        %v8105 = vld [vmem:[%s13 + $0x78] sm:$0xff]
        %v8106 = vld [vmem:[#allocation13] sm:$0x1]
        %v8108 = vlaneseq
        %v8109 = vshrl.u32 %v8108, 7
        %v8110 = vsub.s32 0, %v8109
        %v8111 = vrot.slane %v8106, %v8110
        %8113 = vmatprep.subr.mxu0 0.0
        %8114 = vmatpush1.msra.mxu0 %v8090
        %8115 = vmatprep.subr.mxu0 0.0
        %8116 = vmatpush1.msra.mxu0 %v8091
        %8117 = vmatprep.subr.mxu0 0.0
        %8118 = vmatpush1.msra.mxu0 %v8092
        %8119 = vmatprep.subr.mxu0 0.0
        %8120 = vmatpush1.msra.mxu0 %v8093
        %8121 = vmatprep.subr.mxu0 0.0
        %8122 = vmatpush1.msra.mxu0 %v8094
        %8123 = vmatprep.subr.mxu0 0.0
        %8124 = vmatpush1.msra.mxu0 %v8095
        %8125 = vmatprep.subr.mxu0 0.0
        %8126 = vmatpush1.msra.mxu0 %v8096
        %8127 = vmatprep.subr.mxu0 0.0
        %8128 = vmatpush1.msra.mxu0 %v8097
        %8129 = vmatprep.subr.mxu0 0.0
        %8130 = vmatpush1.msra.mxu0 %v8098
        %8131 = vmatprep.subr.mxu0 0.0
        %8132 = vmatpush1.msra.mxu0 %v8099
        %8133 = vmatprep.subr.mxu0 0.0
        %8134 = vmatpush1.msra.mxu0 %v8100
        %8135 = vmatprep.subr.mxu0 0.0
        %8136 = vmatpush1.msra.mxu0 %v8101
        %8137 = vmatprep.subr.mxu0 0.0
        %8138 = vmatpush1.msra.mxu0 %v8102
        %8139 = vmatprep.subr.mxu0 0.0
        %8140 = vmatpush1.msra.mxu0 %v8103
        %8141 = vmatprep.subr.mxu0 0.0
        %8142 = vmatpush1.msra.mxu0 %v8104
        %8143 = vmatprep.subr.mxu0 0.0
        %8144 = vmatpush1.msra.mxu0 %v8105
        %8145 = vmatprep.subr.mxu0 0.0
        %8146 = vmatpush1.msra.mxu0 0.0
        %8147 = vmatprep.subr.mxu0 0.0
        %8148 = vmatpush1.msra.mxu0 0.0
        %8149 = vmatprep.subr.mxu0 0.0
        %8150 = vmatpush1.msra.mxu0 0.0
        %8151 = vmatprep.subr.mxu0 0.0
        %8152 = vmatpush1.msra.mxu0 0.0
        %8153 = vmatprep.subr.mxu0 0.0
        %8154 = vmatpush1.msra.mxu0 0.0
        %8155 = vmatprep.subr.mxu0 0.0
        %8156 = vmatpush1.msra.mxu0 0.0
        %8157 = vmatprep.subr.mxu0 0.0
        %8158 = vmatpush1.msra.mxu0 0.0
        %8159 = vmatprep.subr.mxu0 0.0
        %8160 = vmatpush1.msra.mxu0 0.0
        %8161 = vmatprep.subr.mxu0 0.0
        %8162 = vmatpush1.msra.mxu0 0.0
        %8163 = vmatprep.subr.mxu0 0.0
        %8164 = vmatpush1.msra.mxu0 0.0
        %8165 = vmatprep.subr.mxu0 0.0
        %8166 = vmatpush1.msra.mxu0 0.0
        %8167 = vmatprep.subr.mxu0 0.0
        %8168 = vmatpush1.msra.mxu0 0.0
        %8169 = vmatprep.subr.mxu0 0.0
        %8170 = vmatpush1.msra.mxu0 0.0
        %8171 = vmatprep.subr.mxu0 0.0
        %8172 = vmatpush1.msra.mxu0 0.0
        %8173 = vmatprep.subr.mxu0 0.0
        %8174 = vmatpush1.msra.mxu0 0.0
        %8175 = vmatprep.subr.mxu0 0.0
        %8176 = vmatpush1.msra.mxu0 0.0
        %8177 = vmatprep.mubr.f32.mxu0 0.0
        %8178 = vmatmul.mubr.f32.gmra.mrb[0].mxu0 %v8089
        %v8179 = vpop.f32.mrb[0].mxu0
        %v8180 = vadd.f32 %v8111, %v8179
        %v8181 = vpop.f32.mrb[0].mxu0
        %8182 = vdwg.mxu0
        %v8183 = vmax.f32 %v8180, 0.0
        %v8184 = vld [vmem:[#allocation14] sm:$0x1]
        %v8185 = vld [vmem:[#allocation16] sm:$0x1]
        %8186 = vadd.xlane.f32.xlu0 %v8183
        %v8187 = vpop.xlane.xlu0 %8186
        %v8188 = vrcp.pop 60.0
        %v8189 = vmul.f32 %v8187, %v8188
        %v8190 = vmul.f32 %v8183, %v8183
        %8191 = vadd.xlane.f32.xlu0 %v8190
        %v8192 = vpop.xlane.xlu0 %8191
        %v8193 = vmul.f32 %v8192, %v8188
        %v8194 = vmul.f32 %v8189, %v8189
        %v8195 = vsub.f32 %v8193, %v8194
        %v8196 = vsub.f32 %v8183, %v8189
        %v8197 = vadd.f32 %v8195, 1e-05
        %v8198 = vrsqrt.pop %v8197
        %v8199 = vmul.f32 %v8196, %v8198
        %v8201 = vlaneseq
        %v8202 = vshrl.u32 %v8201, 7
        %v8203 = vsub.s32 0, %v8202
        %v8204 = vrot.slane %v8184, %v8203
        %v8206 = vmul.f32 %v8199, %v8204
        %v8208 = vlaneseq
        %v8209 = vshrl.u32 %v8208, 7
        %v8210 = vsub.s32 0, %v8209
        %v8211 = vrot.slane %v8185, %v8210
        %v8213 = vadd.f32 %v8206, %v8211
        %v8214 = vld [vmem:[#allocation17] sm:$0xff]
        %v8215 = vld [vmem:[#allocation17 + $0x8] sm:$0xff]
        %v8216 = vld [vmem:[#allocation17 + $0x10] sm:$0xff]
        %v8217 = vld [vmem:[#allocation17 + $0x18] sm:$0xff]
        %v8218 = vld [vmem:[#allocation17 + $0x20] sm:$0xff]
        %v8219 = vld [vmem:[#allocation17 + $0x28] sm:$0xff]
        %v8220 = vld [vmem:[#allocation17 + $0x30] sm:$0xff]
        %v8221 = vld [vmem:[#allocation17 + $0x38] sm:$0xff]
        %v8222 = vld [vmem:[#allocation17 + $0x40] sm:$0xff]
        %v8223 = vld [vmem:[#allocation17 + $0x48] sm:$0xff]
        %v8224 = vld [vmem:[#allocation17 + $0x50] sm:$0xff]
        %v8225 = vld [vmem:[#allocation17 + $0x58] sm:$0xff]
        %v8226 = vld [vmem:[#allocation17 + $0x60] sm:$0xff]
        %v8227 = vld [vmem:[#allocation17 + $0x68] sm:$0xff]
        %v8228 = vld [vmem:[#allocation17 + $0x70] sm:$0xff]
        %v8229 = vld [vmem:[#allocation17 + $0x78] sm:$0xff]
        %v8230 = vld [vmem:[#allocation19] sm:$0x1]
        %v8232 = vlaneseq
        %v8233 = vshrl.u32 %v8232, 7
        %v8234 = vsub.s32 0, %v8233
        %v8235 = vrot.slane %v8230, %v8234
        %8237 = vmatprep.subr.mxu0 0.0
        %8238 = vmatpush1.msra.mxu0 %v8214
        %8239 = vmatprep.subr.mxu0 0.0
        %8240 = vmatpush1.msra.mxu0 %v8215
        %8241 = vmatprep.subr.mxu0 0.0
        %8242 = vmatpush1.msra.mxu0 %v8216
        %8243 = vmatprep.subr.mxu0 0.0
        %8244 = vmatpush1.msra.mxu0 %v8217
        %8245 = vmatprep.subr.mxu0 0.0
        %8246 = vmatpush1.msra.mxu0 %v8218
        %8247 = vmatprep.subr.mxu0 0.0
        %8248 = vmatpush1.msra.mxu0 %v8219
        %8249 = vmatprep.subr.mxu0 0.0
        %8250 = vmatpush1.msra.mxu0 %v8220
        %8251 = vmatprep.subr.mxu0 0.0
        %8252 = vmatpush1.msra.mxu0 %v8221
        %8253 = vmatprep.subr.mxu0 0.0
        %8254 = vmatpush1.msra.mxu0 %v8222
        %8255 = vmatprep.subr.mxu0 0.0
        %8256 = vmatpush1.msra.mxu0 %v8223
        %8257 = vmatprep.subr.mxu0 0.0
        %8258 = vmatpush1.msra.mxu0 %v8224
        %8259 = vmatprep.subr.mxu0 0.0
        %8260 = vmatpush1.msra.mxu0 %v8225
        %8261 = vmatprep.subr.mxu0 0.0
        %8262 = vmatpush1.msra.mxu0 %v8226
        %8263 = vmatprep.subr.mxu0 0.0
        %8264 = vmatpush1.msra.mxu0 %v8227
        %8265 = vmatprep.subr.mxu0 0.0
        %8266 = vmatpush1.msra.mxu0 %v8228
        %8267 = vmatprep.subr.mxu0 0.0
        %8268 = vmatpush1.msra.mxu0 %v8229
        %8269 = vmatprep.subr.mxu0 0.0
        %8270 = vmatpush1.msra.mxu0 0.0
        %8271 = vmatprep.subr.mxu0 0.0
        %8272 = vmatpush1.msra.mxu0 0.0
        %8273 = vmatprep.subr.mxu0 0.0
        %8274 = vmatpush1.msra.mxu0 0.0
        %8275 = vmatprep.subr.mxu0 0.0
        %8276 = vmatpush1.msra.mxu0 0.0
        %8277 = vmatprep.subr.mxu0 0.0
        %8278 = vmatpush1.msra.mxu0 0.0
        %8279 = vmatprep.subr.mxu0 0.0
        %8280 = vmatpush1.msra.mxu0 0.0
        %8281 = vmatprep.subr.mxu0 0.0
        %8282 = vmatpush1.msra.mxu0 0.0
        %8283 = vmatprep.subr.mxu0 0.0
        %8284 = vmatpush1.msra.mxu0 0.0
        %8285 = vmatprep.subr.mxu0 0.0
        %8286 = vmatpush1.msra.mxu0 0.0
        %8287 = vmatprep.subr.mxu0 0.0
        %8288 = vmatpush1.msra.mxu0 0.0
        %8289 = vmatprep.subr.mxu0 0.0
        %8290 = vmatpush1.msra.mxu0 0.0
        %8291 = vmatprep.subr.mxu0 0.0
        %8292 = vmatpush1.msra.mxu0 0.0
        %8293 = vmatprep.subr.mxu0 0.0
        %8294 = vmatpush1.msra.mxu0 0.0
        %8295 = vmatprep.subr.mxu0 0.0
        %8296 = vmatpush1.msra.mxu0 0.0
        %8297 = vmatprep.subr.mxu0 0.0
        %8298 = vmatpush1.msra.mxu0 0.0
        %8299 = vmatprep.subr.mxu0 0.0
        %8300 = vmatpush1.msra.mxu0 0.0
        %8301 = vmatprep.mubr.f32.mxu0 0.0
        %8302 = vmatmul.mubr.f32.gmra.mrb[0].mxu0 %v8213
        %v8303 = vpop.f32.mrb[0].mxu0
        %v8304 = vadd.f32 %v8235, %v8303
        %v8305 = vpop.f32.mrb[0].mxu0
        %8306 = vdwg.mxu0
        %8307 = vst [vmem:[%s738] sm:$0xff] %v8304
        %s8308 = sand.u32 %s451, 1
        %s8309 = scalar_lea.sflag [#allocation4], %s8308
        %s8310 = sand.u32 %s451, 1
        %s8311 = smul.addr %s8310, 8
        %s8312 = scalar_lea.vmem [#allocation20], %s8311
        // Predicated region
        $region141: #{cnn_forward.1} parent=95 // pred_check
          %p8313 = pneg %p461
        $region142: #{cnn_forward.1} parent=95 // pred_check_branch
          %8315 = sbr.rel (%p8313) target = $region144
        $region143: #{cnn_forward.1} parent=95 // pred_region
          %s8317 = ssub.s32 128, 128
          %8318 = vsyncadd %s8309, %s8317
          %s8319 = smul.addr %s39, 128
          %s8320 = scalar_lea.hbm %s19, %s8319
          %s8322 = sshll.u32 %s8312, 4
          %s8323 = int_to_ptr.vmem [resolvable:$true] %s8322
          %8325 = dma.vmem_to_hbm [thread:$0]  %s8323, 128, %s8320, %s8309
        $region144: #{cnn_forward.1} parent=95 // pred_fallthru
          _
      $region96: #{cnn_forward.1} parent=5 // pred_fallthru
        _
      %p8326 = scmp.le.s32.totalorder 2, %s34
      // Predicated region
      $region145: #{cnn_forward.1} parent=5 // pred_check
        %p8327 = pneg %p8326
      $region146: #{cnn_forward.1} parent=5 // pred_check_branch
        %8329 = sbr.rel (%p8327) target = $region148
      $region147: #{cnn_forward.1} parent=5 // pred_region
        %s8330 = ssub.s32 %s34, 2
        // Predicated region
        $region149: #{cnn_forward.1} parent=147 // pred_check
          %p8331 = pneg %p467
        $region150: #{cnn_forward.1} parent=147 // pred_check_branch
          %8333 = sbr.rel (%p8331) target = $region152
        $region151: #{cnn_forward.1} parent=147 // pred_region
          %s8334 = sand.u32 %s452, 1
          %s8335 = scalar_lea.sflag [#allocation4], %s8334
          %s8336 = sand.u32 %s452, 1
          %s8337 = smul.addr %s8336, 8
          %s8338 = scalar_lea.vmem [#allocation20], %s8337
          %8339 = dma.done %s8335, 128
        $region152: #{cnn_forward.1} parent=147 // pred_fallthru
          _
      $region148: #{cnn_forward.1} parent=5 // pred_fallthru
        _
    $region6: #{cnn_forward.1} parent=1 // loop_footer
      %s38 = sadd.s32 1, %s34
    $region7: #{cnn_forward.1} parent=1 // loop_footer_branch
      %33 = sbr.rel target = $region3
    $region8: #{cnn_forward.1} parent=1 // loop_exit
      _
    %8340 = vsyncpa [#allocation3], 1
    %s8341 = scalar_lea.sflag [#allocation3], 1
    %8342 = vsyncpa %s8341, 1
    %8343 = vsyncpa [#allocation6], 1
    %8344 = vsyncpa [#allocation9], 1
    %8345 = vsyncpa [#allocation12], 1
    %8346 = vsyncpa [#allocation15], 1
    %8347 = vsyncpa [#allocation18], 1
    %8348 = vsyncpa [#allocation4], 1
    %s8349 = scalar_lea.sflag [#allocation4], 1
    %8350 = vsyncpa %s8349, 1

</llo_original>
